<compile_context>
chip_gen: v5e
topology: v5e:2x2
jax: 0.10.0
libtpu: 0.0.40
codegen_flags: <defaults>
</compile_context>

<pallas_src>
import jax
import jax.numpy as jnp
from jax import lax
from jax.experimental import pallas as pl
from jax.experimental.pallas import tpu as pltpu

_LANE = 128
_SUB = 8
_VMEM_LIMIT = 32 * 1024 * 1024


def _round_up(n, m):
    return (n + m - 1) // m * m


def _pad_lstm_gate_rows(w, H, Hp):
    """Pad the 4 stacked LSTM gate blocks (i, f, g, o) from H to Hp rows each."""
    if w.ndim == 1:
        w4 = w.reshape(4, H)
        return jnp.zeros((4, Hp), w.dtype).at[:, :H].set(w4).reshape(4 * Hp)
    w4 = w.reshape(4, H, w.shape[1])
    out = jnp.zeros((4, Hp, w.shape[1]), w.dtype).at[:, :H, :].set(w4)
    return out.reshape(4 * Hp, w.shape[1])


def _pad_last(w, n):
    return jnp.pad(w, [(0, 0)] * (w.ndim - 1) + [(0, n - w.shape[-1])])


def _lstm_activations(gates, c, Hp):
    """PyTorch LSTM cell nonlinearity, gate order i, f, g, o (gate width Hp)."""
    i = jax.nn.sigmoid(gates[:, 0 * Hp:1 * Hp])
    f = jax.nn.sigmoid(gates[:, 1 * Hp:2 * Hp])
    g = jnp.tanh(gates[:, 2 * Hp:3 * Hp])
    o = jax.nn.sigmoid(gates[:, 3 * Hp:4 * Hp])
    c_new = f * c + i * g
    h_new = o * jnp.tanh(c_new)
    return h_new, c_new


# ----------------------------- encoder kernel ------------------------------
def encoder_kernel(xemb_ref, vmask_ref, wih_t_ref, whh_t_ref, b_ref,
                   out_ref, hn_ref, cn_ref,
                   xg_sc, h_sc, c_sc):
    T, Bt, E = xemb_ref.shape
    Hp = hn_ref.shape[1]

    # Hoisted input-to-hidden projection (+ bias) for ALL timesteps: a single
    # (T*Bt, E) @ (E, 4Hp) MXU matmul instead of T tiny per-step matmuls.
    # Reshape (T, Bt, E) -> (T*Bt, E) is layout-preserving (Bt % 8 == 0).
    x2 = xemb_ref[...].reshape(T * Bt, E)
    xg_sc[...] = (jnp.dot(x2, wih_t_ref[...],
                          preferred_element_type=jnp.float32)
                  .reshape(T, Bt, 4 * Hp)
                  + b_ref[...])

    h_sc[...] = jnp.zeros_like(h_sc)
    c_sc[...] = jnp.zeros_like(c_sc)

    def step(t, carry):
        h = h_sc[...]
        c = c_sc[...]
        # Only the recurrent h @ W_hh^T matmul remains on the serial path.
        gates = xg_sc[t] + jnp.dot(h, whh_t_ref[...],
                                   preferred_element_type=jnp.float32)
        h_new, c_new = _lstm_activations(gates, c, Hp)
        m = vmask_ref[t]                               # (Bt, 1), 1.0 while valid
        # packed-sequence semantics: freeze state past each row's length,
        # zero padded output positions (pad_packed_sequence pads with 0).
        h_sc[...] = m * h_new + (1.0 - m) * h
        c_sc[...] = m * c_new + (1.0 - m) * c
        out_ref[t] = m * h_new                         # full (Bt, Hp) lane-dense store
        return carry

    lax.fori_loop(0, T, step, 0, unroll=(T <= 32))

    hn_ref[...] = h_sc[...]
    cn_ref[...] = c_sc[...]


def run_encoder(xemb_tm, vmask_tm, wih_t, whh_t, b_row, *, b_tile):
    """xemb_tm: (Tp, Bp, E); vmask_tm: (Tp, Bp, 1). Returns enc (Tp,Bp,Hp), hn, cn."""
    Tp, Bp, E = xemb_tm.shape
    Hp = whh_t.shape[0]
    grid = (Bp // b_tile,)
    return pl.pallas_call(
        encoder_kernel,
        out_shape=(jax.ShapeDtypeStruct((Tp, Bp, Hp), jnp.float32),
                   jax.ShapeDtypeStruct((Bp, Hp), jnp.float32),
                   jax.ShapeDtypeStruct((Bp, Hp), jnp.float32)),
        grid=grid,
        in_specs=[
            pl.BlockSpec((Tp, b_tile, E), lambda b: (0, b, 0)),
            pl.BlockSpec((Tp, b_tile, 1), lambda b: (0, b, 0)),
            pl.BlockSpec((E, 4 * Hp), lambda b: (0, 0)),
            pl.BlockSpec((Hp, 4 * Hp), lambda b: (0, 0)),
            pl.BlockSpec((1, 4 * Hp), lambda b: (0, 0)),
        ],
        out_specs=(
            pl.BlockSpec((Tp, b_tile, Hp), lambda b: (0, b, 0)),
            pl.BlockSpec((b_tile, Hp), lambda b: (b, 0)),
            pl.BlockSpec((b_tile, Hp), lambda b: (b, 0)),
        ),
        scratch_shapes=[
            pltpu.VMEM((Tp, b_tile, 4 * Hp), jnp.float32),   # hoisted x-projection
            pltpu.VMEM((b_tile, Hp), jnp.float32),           # h
            pltpu.VMEM((b_tile, Hp), jnp.float32),           # c
        ],
        compiler_params=pltpu.CompilerParams(
            dimension_semantics=("parallel",),               # batch tiles -> megacore
            vmem_limit_bytes=_VMEM_LIMIT,
        ),
    )(xemb_tm, vmask_tm, wih_t, whh_t, b_row)


# ----------------------------- decoder kernel ------------------------------
def decoder_kernel(yemb_ref, enc_ref, amask_ref, h0_ref, c0_ref,
                   wa_ref, wih_e_t_ref, wih_c_t_ref, whh_t_ref, b_ref,
                   wfc_t_ref, bfc_ref,
                   logits_ref,
                   yg_sc, ep_sc, h_sc, c_sc):
    Ty, Bt, E = yemb_ref.shape
    T = enc_ref.shape[1]
    Hp = h0_ref.shape[1]
    Op = logits_ref.shape[2]

    # Hoisted: y-embedding input projection (+ LSTM bias) for all steps.
    y2 = yemb_ref[...].reshape(Ty * Bt, E)
    yg_sc[...] = (jnp.dot(y2, wih_e_t_ref[...],
                          preferred_element_type=jnp.float32)
                  .reshape(Ty, Bt, 4 * Hp)
                  + b_ref[...])

    # Hoisted: proj_encoder = enc @ Wa (reused by every decoder step).
    e2 = enc_ref[...].reshape(Bt * T, Hp)                    # T % 8 == 0
    ep_sc[...] = jnp.dot(e2, wa_ref[...],
                         preferred_element_type=jnp.float32).reshape(Bt, T, Hp)

    h_sc[...] = h0_ref[...]
    c_sc[...] = c0_ref[...]

    # Hoisted loop-invariants (JAX does not CSE broadcasts inside the loop).
    amask3 = (amask_ref[...] > 0.0)[:, None, :]              # (Bt, 1, T) bool
    bfc = jnp.broadcast_to(bfc_ref[...], (Bt, Op))           # (Bt, Op)
    neg = jnp.float32(-1e30)                                 # finite: no NaN if a row is fully masked

    def step(t, carry):
        h = h_sc[...]
        c = c_sc[...]

        # --- multiplicative attention: MXU batched contractions -------------
        q3 = h[:, None, :]                                   # (Bt, 1, Hp)
        scores = jnp.einsum('bqk,btk->bqt', q3, ep_sc[...],
                            preferred_element_type=jnp.float32)        # (Bt, 1, T)
        scores = jnp.where(amask3, scores, neg)
        smax = jnp.max(scores, axis=2, keepdims=True)
        e = jnp.exp(scores - smax)
        aw = e / jnp.sum(e, axis=2, keepdims=True)                      # softmax over T
        context = jnp.einsum('bqt,bth->bqh', aw, enc_ref[...],
                             preferred_element_type=jnp.float32)[:, 0, :]   # (Bt, Hp)

        # --- LSTM cell: y-projection precomputed; context & recurrence here -
        gates = (yg_sc[t]
                 + jnp.dot(context, wih_c_t_ref[...],
                           preferred_element_type=jnp.float32)
                 + jnp.dot(h, whh_t_ref[...],
                           preferred_element_type=jnp.float32))
        h_new, c_new = _lstm_activations(gates, c, Hp)
        h_sc[...] = h_new
        c_sc[...] = c_new

        # output projection: full (Bt, Op) lane-dense store per step
        logits_ref[t] = jnp.dot(h_new, wfc_t_ref[...],
                                preferred_element_type=jnp.float32) + bfc
        return carry

    lax.fori_loop(0, Ty, step, 0, unroll=(Ty <= 32))


def run_decoder(yemb_tm, enc_bm, amask, h0, c0,
                wa, wih_e_t, wih_c_t, whh_t, b_row, wfc_t, bfc_row, *, b_tile):
    Ty, Bp, E = yemb_tm.shape
    Tp = enc_bm.shape[1]
    Hp = h0.shape[1]
    Op = wfc_t.shape[1]
    grid = (Bp // b_tile,)
    return pl.pallas_call(
        decoder_kernel,
        out_shape=jax.ShapeDtypeStruct((Ty, Bp, Op), jnp.float32),
        grid=grid,
        in_specs=[
            pl.BlockSpec((Ty, b_tile, E), lambda b: (0, b, 0)),
            pl.BlockSpec((b_tile, Tp, Hp), lambda b: (b, 0, 0)),
            pl.BlockSpec((b_tile, Tp), lambda b: (b, 0)),
            pl.BlockSpec((b_tile, Hp), lambda b: (b, 0)),
            pl.BlockSpec((b_tile, Hp), lambda b: (b, 0)),
            pl.BlockSpec((Hp, Hp), lambda b: (0, 0)),            # Wa
            pl.BlockSpec((E, 4 * Hp), lambda b: (0, 0)),         # W_ih (embed part)^T
            pl.BlockSpec((Hp, 4 * Hp), lambda b: (0, 0)),        # W_ih (context part)^T
            pl.BlockSpec((Hp, 4 * Hp), lambda b: (0, 0)),        # W_hh^T
            pl.BlockSpec((1, 4 * Hp), lambda b: (0, 0)),         # LSTM bias
            pl.BlockSpec((Hp, Op), lambda b: (0, 0)),            # fc^T
            pl.BlockSpec((1, Op), lambda b: (0, 0)),             # fc bias
        ],
        out_specs=pl.BlockSpec((Ty, b_tile, Op), lambda b: (0, b, 0)),
        scratch_shapes=[
            pltpu.VMEM((Ty, b_tile, 4 * Hp), jnp.float32),       # hoisted y-projection
            pltpu.VMEM((b_tile, Tp, Hp), jnp.float32),           # enc @ Wa
            pltpu.VMEM((b_tile, Hp), jnp.float32),               # h
            pltpu.VMEM((b_tile, Hp), jnp.float32),               # c
        ],
        compiler_params=pltpu.CompilerParams(
            dimension_semantics=("parallel",),
            vmem_limit_bytes=_VMEM_LIMIT,
        ),
    )(yemb_tm, enc_bm, amask, h0, c0,
      wa, wih_e_t, wih_c_t, whh_t, b_row, wfc_t, bfc_row)


# ------------------------------- full model --------------------------------
def encoder_decoder_lstm_ma(params, x, x_lengths, y, y_lengths):
    B, Tx = x.shape
    Ty = y.shape[1]
    E = params["enc_emb"].shape[1]
    H = params["enc_w_hh"].shape[1]
    O = params["fc_w"].shape[0]

    # --- hardware-aligned (exact, zero-padded) shapes -----------------------
    Hp = _round_up(H, _LANE)
    Op = _round_up(O, _LANE)
    Tp = _round_up(Tx, _SUB)
    b_tile = min(_round_up(B, _SUB), 64)
    Bp = _round_up(B, b_tile)

    # --- pad weights (gate-block-wise for LSTM weights); all pads are zero --
    enc_wih_t = _pad_lstm_gate_rows(params["enc_w_ih"], H, Hp).T                 # (E, 4Hp)
    enc_whh_t = _pad_last(_pad_lstm_gate_rows(params["enc_w_hh"], H, Hp), Hp).T  # (Hp, 4Hp)
    enc_b_row = _pad_lstm_gate_rows(params["enc_b"], H, Hp).reshape(1, 4 * Hp)

    dec_wih = _pad_lstm_gate_rows(params["dec_w_ih"], H, Hp)                     # (4Hp, E+H)
    dec_wih_e_t = dec_wih[:, :E].T                                               # (E, 4Hp)
    dec_wih_c_t = _pad_last(dec_wih[:, E:], Hp).T                                # (Hp, 4Hp)
    dec_whh_t = _pad_last(_pad_lstm_gate_rows(params["dec_w_hh"], H, Hp), Hp).T
    dec_b_row = _pad_lstm_gate_rows(params["dec_b"], H, Hp).reshape(1, 4 * Hp)

    wa_p = jnp.zeros((Hp, Hp), jnp.float32).at[:H, :H].set(params["Wa"])
    wfc_t = jnp.zeros((Op, Hp), jnp.float32).at[:O, :H].set(params["fc_w"]).T    # (Hp, Op)
    bfc_row = jnp.zeros((1, Op), jnp.float32).at[0, :O].set(params["fc_b"])

    # --- pad inputs; gather embeddings time-major (no HBM transpose of the
    #     big activation tensors; padding token 0 -> zero embedding row) ------
    x_pad = jnp.pad(x, ((0, Bp - B), (0, Tp - Tx)))              # (Bp, Tp)
    y_pad = jnp.pad(y, ((0, Bp - B), (0, 0)))                    # (Bp, Ty)
    xl_pad = jnp.pad(x_lengths, (0, Bp - B))                     # padded rows: length 0

    xemb_tm = params["enc_emb"][x_pad.T]                         # (Tp, Bp, E)
    yemb_tm = params["dec_emb"][y_pad.T]                         # (Ty, Bp, E)
    vmask_tm = (jnp.arange(Tp)[:, None] < xl_pad[None, :]
                ).astype(jnp.float32)[:, :, None]                # (Tp, Bp, 1)
    amask = (x_pad != 0).astype(jnp.float32)                     # (Bp, Tp); id 0 == padding

    # --- encoder -------------------------------------------------------------
    enc_tm, hn, cn = run_encoder(xemb_tm, vmask_tm,
                                 enc_wih_t, enc_whh_t, enc_b_row, b_tile=b_tile)
    enc_bm = jnp.transpose(enc_tm, (1, 0, 2))                    # (Bp, Tp, Hp)

    # --- decoder -------------------------------------------------------------
    logits_tm = run_decoder(yemb_tm, enc_bm, amask, hn, cn,
                            wa_p, dec_wih_e_t, dec_wih_c_t, dec_whh_t, dec_b_row,
                            wfc_t, bfc_row, b_tile=b_tile)
    return jnp.transpose(logits_tm, (1, 0, 2))[:B, :, :O]        # (B, Ty, O)


# -------------------------- pure-JAX reference ------------------------------
def reference_forward(params, x, x_lengths, y, y_lengths):
    B, Tx = x.shape
    H = params["enc_w_hh"].shape[1]
    x_embed = params["enc_emb"][x]
    y_embed = params["dec_emb"][y]
    valid = (jnp.arange(Tx)[None, :] < x_lengths[:, None]).astype(jnp.float32)

    def enc_cell(carry, inp):
        h, c = carry
        x_t, m = inp
        gates = (x_t @ params["enc_w_ih"].T + h @ params["enc_w_hh"].T
                 + params["enc_b"])
        i, f, g, o = jnp.split(gates, 4, axis=1)
        c_new = jax.nn.sigmoid(f) * c + jax.nn.sigmoid(i) * jnp.tanh(g)
        h_new = jax.nn.sigmoid(o) * jnp.tanh(c_new)
        return (m * h_new + (1 - m) * h, m * c_new + (1 - m) * c), m * h_new

    (hn, cn), enc_tm = lax.scan(enc_cell,
                                (jnp.zeros((B, H), jnp.float32),
                                 jnp.zeros((B, H), jnp.float32)),
                                (jnp.transpose(x_embed, (1, 0, 2)),
                                 valid.T[:, :, None]))
    enc = jnp.transpose(enc_tm, (1, 0, 2))
    mask = (x != 0)
    ep = enc @ params["Wa"]

    def dec_cell(carry, y_t):
        h, c = carry
        scores = jnp.einsum('bk,btk->bt', h, ep)
        scores = jnp.where(mask, scores, -jnp.inf)
        aw = jax.nn.softmax(scores, axis=1)
        context = jnp.einsum('bt,bth->bh', aw, enc)
        inp = jnp.concatenate([y_t, context], axis=1)
        gates = (inp @ params["dec_w_ih"].T + h @ params["dec_w_hh"].T
                 + params["dec_b"])
        i, f, g, o = jnp.split(gates, 4, axis=1)
        c_new = jax.nn.sigmoid(f) * c + jax.nn.sigmoid(i) * jnp.tanh(g)
        h_new = jax.nn.sigmoid(o) * jnp.tanh(c_new)
        return (h_new, c_new), h_new @ params["fc_w"].T + params["fc_b"]

    _, logits_tm = lax.scan(dec_cell, (hn, cn), jnp.transpose(y_embed, (1, 0, 2)))
    return jnp.transpose(logits_tm, (1, 0, 2))


def init_params(key, vocab_size, hidden_size, output_size, embedding_dim):
    ks = jax.random.split(key, 10)
    H, E = hidden_size, embedding_dim

    def n(k, shape, s=0.1):
        return jax.random.normal(k, shape, dtype=jnp.float32) * s

    enc_emb = n(ks[0], (vocab_size, E)).at[0].set(0.0)           # padding_idx=0
    dec_emb = n(ks[1], (output_size, E)).at[0].set(0.0)
    return {
        "enc_emb": enc_emb,
        "dec_emb": dec_emb,
        "enc_w_ih": n(ks[2], (4 * H, E)),
        "enc_w_hh": n(ks[3], (4 * H, H)),
        "enc_b":    n(ks[4], (4 * H,)),                          # b_ih + b_hh combined
        "dec_w_ih": n(ks[5], (4 * H, E + H)),
        "dec_w_hh": n(ks[6], (4 * H, H)),
        "dec_b":    n(ks[7], (4 * H,)),
        "Wa":   n(ks[8], (H, H)),
        "fc_w": n(ks[9], (output_size, H)),
        "fc_b": jnp.zeros((output_size,), jnp.float32),
    }


if __name__ == "__main__":
    vocab_size, hidden_size, output_size, embedding_dim = 50, 32, 40, 16
    B, Tx, Ty = 2, 8, 6

    key = jax.random.PRNGKey(0)
    kp, kx, ky = jax.random.split(key, 3)
    params = init_params(kp, vocab_size, hidden_size, output_size, embedding_dim)

    x_lengths = jnp.array([8, 5], dtype=jnp.int32)               # max == Tx
    y_lengths = jnp.array([6, 4], dtype=jnp.int32)
    x = jax.random.randint(kx, (B, Tx), 1, vocab_size, dtype=jnp.int32)
    x = jnp.where(jnp.arange(Tx)[None, :] < x_lengths[:, None], x, 0)
    y = jax.random.randint(ky, (B, Ty), 1, output_size, dtype=jnp.int32)
    y = jnp.where(jnp.arange(Ty)[None, :] < y_lengths[:, None], y, 0)

    fwd = jax.jit(encoder_decoder_lstm_ma)
    logits = jax.block_until_ready(fwd(params, x, x_lengths, y, y_lengths))
    assert logits.shape == (B, Ty, output_size)
    assert bool(jnp.all(jnp.isfinite(logits)))

    ref = jax.block_until_ready(
        reference_forward(params, x, x_lengths, y, y_lengths))
    assert float(jnp.max(jnp.abs(logits - ref))) < 1e-2
    print("KERNEL_OK")
</pallas_src>

<mosaic_0001>
module attributes {stable_mosaic.version = 11 : i64} {
  func.func @encoder_kernel(%arg0: i32, %arg1: memref<8x8x16xf32, #tpu.memory_space<vmem>>, %arg2: memref<8x8x1xf32, #tpu.memory_space<vmem>>, %arg3: memref<16x512xf32, #tpu.memory_space<vmem>>, %arg4: memref<128x512xf32, #tpu.memory_space<vmem>>, %arg5: memref<1x512xf32, #tpu.memory_space<vmem>>, %arg6: memref<8x8x128xf32, #tpu.memory_space<vmem>>, %arg7: memref<8x128xf32, #tpu.memory_space<vmem>>, %arg8: memref<8x128xf32, #tpu.memory_space<vmem>>, %arg9: memref<8x8x512xf32, #tpu.memory_space<vmem>>, %arg10: memref<8x128xf32, #tpu.memory_space<vmem>>, %arg11: memref<8x128xf32, #tpu.memory_space<vmem>>) attributes {dimension_semantics = [#tpu.dimension_semantics<parallel>], iteration_bounds = array<i64: 1>, scalar_prefetch = 0 : i64, scratch_operands = 3 : i64, tpu.core_type = #tpu.core_type<tc>, window_params = [{transform_indices = @transform_0, window_bounds = array<i64: 8, 8, 16>}, {transform_indices = @transform_1, window_bounds = array<i64: 8, 8, 1>}, {pipeline_mode = #tpu.pipeline_mode<synchronous>, transform_indices = @transform_2, window_bounds = array<i64: 16, 512>}, {pipeline_mode = #tpu.pipeline_mode<synchronous>, transform_indices = @transform_3, window_bounds = array<i64: 128, 512>}, {pipeline_mode = #tpu.pipeline_mode<synchronous>, transform_indices = @transform_4, window_bounds = array<i64: 1, 512>}, {transform_indices = @transform_5, window_bounds = array<i64: 8, 8, 128>}, {transform_indices = @transform_6, window_bounds = array<i64: 8, 128>}, {transform_indices = @transform_7, window_bounds = array<i64: 8, 128>}]} {
    %c0 = arith.constant 0 : index
    %c0_0 = arith.constant 0 : index
    %c0_1 = arith.constant 0 : index
    %0 = vector.load %arg1[%c0, %c0_0, %c0_1] : memref<8x8x16xf32, #tpu.memory_space<vmem>>, vector<8x8x16xf32>
    %1 = vector.shape_cast %0 : vector<8x8x16xf32> to vector<64x16xf32>
    %c0_2 = arith.constant 0 : index
    %c0_3 = arith.constant 0 : index
    %2 = vector.load %arg3[%c0_2, %c0_3] : memref<16x512xf32, #tpu.memory_space<vmem>>, vector<16x512xf32>
    %cst = arith.constant dense<0.000000e+00> : vector<64x512xf32>
    %3 = tpu.matmul %1, %2, %cst {dimension_numbers = #tpu.dot_dimension_numbers<[1], [0], [0], [1], [0, 0, 1, 1], [], []>} : vector<64x16xf32>, vector<16x512xf32>, vector<64x512xf32> -> vector<64x512xf32>
    %4 = vector.shape_cast %3 : vector<64x512xf32> to vector<8x8x512xf32>
    %c0_4 = arith.constant 0 : index
    %c0_5 = arith.constant 0 : index
    %5 = vector.load %arg5[%c0_4, %c0_5] : memref<1x512xf32, #tpu.memory_space<vmem>>, vector<1x512xf32>
    %6 = vector.shape_cast %5 : vector<1x512xf32> to vector<1x1x512xf32>
    %7 = vector.broadcast %6 : vector<1x1x512xf32> to vector<8x8x512xf32>
    %8 = arith.addf %4, %7 : vector<8x8x512xf32>
    %c0_6 = arith.constant 0 : index
    %c0_7 = arith.constant 0 : index
    %c0_8 = arith.constant 0 : index
    %9 = vector.load %arg9[%c0_6, %c0_7, %c0_8] : memref<8x8x512xf32, #tpu.memory_space<vmem>>, vector<8x8x512xf32>
    tpu.vector_store %arg9[%c0_6, %c0_7, %c0_8], %8 {strides = array<i32>} : memref<8x8x512xf32, #tpu.memory_space<vmem>>, vector<8x8x512xf32>,
    %cst_9 = arith.constant 0.000000e+00 : f32
    %10 = vector.broadcast %cst_9 : f32 to vector<8x128xf32>
    %c0_10 = arith.constant 0 : index
    %c0_11 = arith.constant 0 : index
    %11 = vector.load %arg10[%c0_10, %c0_11] : memref<8x128xf32, #tpu.memory_space<vmem>>, vector<8x128xf32>
    tpu.vector_store %arg10[%c0_10, %c0_11], %10 {strides = array<i32>} : memref<8x128xf32, #tpu.memory_space<vmem>>, vector<8x128xf32>,
    %cst_12 = arith.constant 0.000000e+00 : f32
    %12 = vector.broadcast %cst_12 : f32 to vector<8x128xf32>
    %c0_13 = arith.constant 0 : index
    %c0_14 = arith.constant 0 : index
    %13 = vector.load %arg11[%c0_13, %c0_14] : memref<8x128xf32, #tpu.memory_space<vmem>>, vector<8x128xf32>
    tpu.vector_store %arg11[%c0_13, %c0_14], %12 {strides = array<i32>} : memref<8x128xf32, #tpu.memory_space<vmem>>, vector<8x128xf32>,
    %c0_i32 = arith.constant 0 : i32
    %c0_15 = arith.constant 0 : index
    %c0_16 = arith.constant 0 : index
    %14 = vector.load %arg10[%c0_15, %c0_16] : memref<8x128xf32, #tpu.memory_space<vmem>>, vector<8x128xf32>
    %c0_17 = arith.constant 0 : index
    %c0_18 = arith.constant 0 : index
    %15 = vector.load %arg11[%c0_17, %c0_18] : memref<8x128xf32, #tpu.memory_space<vmem>>, vector<8x128xf32>
    %16 = arith.index_cast %c0_i32 : i32 to index
    %c0_19 = arith.constant 0 : index
    %c0_20 = arith.constant 0 : index
    %17 = vector.load %arg9[%16, %c0_19, %c0_20] : memref<8x8x512xf32, #tpu.memory_space<vmem>>, vector<1x8x512xf32>
    %18 = vector.shape_cast %17 : vector<1x8x512xf32> to vector<8x512xf32>
    %c0_21 = arith.constant 0 : index
    %c0_22 = arith.constant 0 : index
    %19 = vector.load %arg4[%c0_21, %c0_22] : memref<128x512xf32, #tpu.memory_space<vmem>>, vector<128x512xf32>
    %cst_23 = arith.constant dense<0.000000e+00> : vector<8x512xf32>
    %20 = tpu.matmul %14, %19, %cst_23 {dimension_numbers = #tpu.dot_dimension_numbers<[1], [0], [0], [1], [0, 0, 1, 1], [], []>} : vector<8x128xf32>, vector<128x512xf32>, vector<8x512xf32> -> vector<8x512xf32>
    %21 = arith.addf %18, %20 : vector<8x512xf32>
    %22 = vector.extract_strided_slice %21 {offsets = [0, 0], sizes = [8, 128], strides = [1, 1]} : vector<8x512xf32> to vector<8x128xf32>
    %23 = arith.negf %22 : vector<8x128xf32>
    %24 = math.exp %23 : vector<8x128xf32>
    %cst_24 = arith.constant 1.000000e+00 : f32
    %25 = vector.broadcast %cst_24 : f32 to vector<8x128xf32>
    %26 = arith.addf %25, %24 : vector<8x128xf32>
    %27 = arith.divf %25, %26 : vector<8x128xf32>
    %28 = vector.extract_strided_slice %21 {offsets = [0, 128], sizes = [8, 128], strides = [1, 1]} : vector<8x512xf32> to vector<8x128xf32>
    %29 = arith.negf %28 : vector<8x128xf32>
    %30 = math.exp %29 : vector<8x128xf32>
    %cst_25 = arith.constant 1.000000e+00 : f32
    %31 = vector.broadcast %cst_25 : f32 to vector<8x128xf32>
    %32 = arith.addf %31, %30 : vector<8x128xf32>
    %33 = arith.divf %31, %32 : vector<8x128xf32>
    %34 = vector.extract_strided_slice %21 {offsets = [0, 256], sizes = [8, 128], strides = [1, 1]} : vector<8x512xf32> to vector<8x128xf32>
    %35 = math.tanh %34 : vector<8x128xf32>
    %36 = vector.extract_strided_slice %21 {offsets = [0, 384], sizes = [8, 128], strides = [1, 1]} : vector<8x512xf32> to vector<8x128xf32>
    %37 = arith.negf %36 : vector<8x128xf32>
    %38 = math.exp %37 : vector<8x128xf32>
    %cst_26 = arith.constant 1.000000e+00 : f32
    %39 = vector.broadcast %cst_26 : f32 to vector<8x128xf32>
    %40 = arith.addf %39, %38 : vector<8x128xf32>
    %41 = arith.divf %39, %40 : vector<8x128xf32>
    %42 = arith.mulf %33, %15 : vector<8x128xf32>
    %43 = arith.mulf %27, %35 : vector<8x128xf32>
    %44 = arith.addf %42, %43 : vector<8x128xf32>
    %45 = math.tanh %44 : vector<8x128xf32>
    %46 = arith.mulf %41, %45 : vector<8x128xf32>
    %47 = arith.index_cast %c0_i32 : i32 to index
    %c0_27 = arith.constant 0 : index
    %c0_28 = arith.constant 0 : index
    %48 = vector.load %arg2[%47, %c0_27, %c0_28] : memref<8x8x1xf32, #tpu.memory_space<vmem>>, vector<1x8x1xf32>
    %49 = vector.shape_cast %48 : vector<1x8x1xf32> to vector<8x1xf32>
    %50 = vector.broadcast %49 : vector<8x1xf32> to vector<8x128xf32>
    %51 = arith.mulf %50, %46 : vector<8x128xf32>
    %cst_29 = arith.constant 1.000000e+00 : f32
    %52 = vector.broadcast %cst_29 : f32 to vector<8x1xf32>
    %53 = arith.subf %52, %49 : vector<8x1xf32>
    %54 = vector.broadcast %53 : vector<8x1xf32> to vector<8x128xf32>
    %55 = arith.mulf %54, %14 : vector<8x128xf32>
    %56 = arith.addf %51, %55 : vector<8x128xf32>
    %c0_30 = arith.constant 0 : index
    %c0_31 = arith.constant 0 : index
    %57 = vector.load %arg10[%c0_30, %c0_31] : memref<8x128xf32, #tpu.memory_space<vmem>>, vector<8x128xf32>
    tpu.vector_store %arg10[%c0_30, %c0_31], %56 {strides = array<i32>} : memref<8x128xf32, #tpu.memory_space<vmem>>, vector<8x128xf32>,
    %58 = vector.broadcast %49 : vector<8x1xf32> to vector<8x128xf32>
    %59 = arith.mulf %58, %44 : vector<8x128xf32>
    %cst_32 = arith.constant 1.000000e+00 : f32
    %60 = vector.broadcast %cst_32 : f32 to vector<8x1xf32>
    %61 = arith.subf %60, %49 : vector<8x1xf32>
    %62 = vector.broadcast %61 : vector<8x1xf32> to vector<8x128xf32>
    %63 = arith.mulf %62, %15 : vector<8x128xf32>
    %64 = arith.addf %59, %63 : vector<8x128xf32>
    %c0_33 = arith.constant 0 : index
    %c0_34 = arith.constant 0 : index
    %65 = vector.load %arg11[%c0_33, %c0_34] : memref<8x128xf32, #tpu.memory_space<vmem>>, vector<8x128xf32>
    tpu.vector_store %arg11[%c0_33, %c0_34], %64 {strides = array<i32>} : memref<8x128xf32, #tpu.memory_space<vmem>>, vector<8x128xf32>,
    %66 = vector.broadcast %49 : vector<8x1xf32> to vector<8x128xf32>
    %67 = arith.mulf %66, %46 : vector<8x128xf32>
    %68 = arith.index_cast %c0_i32 : i32 to index
    %c0_35 = arith.constant 0 : index
    %c0_36 = arith.constant 0 : index
    %69 = vector.load %arg6[%68, %c0_35, %c0_36] : memref<8x8x128xf32, #tpu.memory_space<vmem>>, vector<1x8x128xf32>
    %70 = vector.shape_cast %69 : vector<1x8x128xf32> to vector<8x128xf32>
    %71 = vector.shape_cast %67 : vector<8x128xf32> to vector<1x8x128xf32>
    tpu.vector_store %arg6[%68, %c0_35, %c0_36], %71 {strides = array<i32>} : memref<8x8x128xf32, #tpu.memory_space<vmem>>, vector<1x8x128xf32>,
    %c1_i32 = arith.constant 1 : i32
    %c0_37 = arith.constant 0 : index
    %c0_38 = arith.constant 0 : index
    %72 = vector.load %arg10[%c0_37, %c0_38] : memref<8x128xf32, #tpu.memory_space<vmem>>, vector<8x128xf32>
    %c0_39 = arith.constant 0 : index
    %c0_40 = arith.constant 0 : index
    %73 = vector.load %arg11[%c0_39, %c0_40] : memref<8x128xf32, #tpu.memory_space<vmem>>, vector<8x128xf32>
    %74 = arith.index_cast %c1_i32 : i32 to index
    %c0_41 = arith.constant 0 : index
    %c0_42 = arith.constant 0 : index
    %75 = vector.load %arg9[%74, %c0_41, %c0_42] : memref<8x8x512xf32, #tpu.memory_space<vmem>>, vector<1x8x512xf32>
    %76 = vector.shape_cast %75 : vector<1x8x512xf32> to vector<8x512xf32>
    %c0_43 = arith.constant 0 : index
    %c0_44 = arith.constant 0 : index
    %77 = vector.load %arg4[%c0_43, %c0_44] : memref<128x512xf32, #tpu.memory_space<vmem>>, vector<128x512xf32>
    %cst_45 = arith.constant dense<0.000000e+00> : vector<8x512xf32>
    %78 = tpu.matmul %72, %77, %cst_45 {dimension_numbers = #tpu.dot_dimension_numbers<[1], [0], [0], [1], [0, 0, 1, 1], [], []>} : vector<8x128xf32>, vector<128x512xf32>, vector<8x512xf32> -> vector<8x512xf32>
    %79 = arith.addf %76, %78 : vector<8x512xf32>
    %80 = vector.extract_strided_slice %79 {offsets = [0, 0], sizes = [8, 128], strides = [1, 1]} : vector<8x512xf32> to vector<8x128xf32>
    %81 = arith.negf %80 : vector<8x128xf32>
    %82 = math.exp %81 : vector<8x128xf32>
    %cst_46 = arith.constant 1.000000e+00 : f32
    %83 = vector.broadcast %cst_46 : f32 to vector<8x128xf32>
    %84 = arith.addf %83, %82 : vector<8x128xf32>
    %85 = arith.divf %83, %84 : vector<8x128xf32>
    %86 = vector.extract_strided_slice %79 {offsets = [0, 128], sizes = [8, 128], strides = [1, 1]} : vector<8x512xf32> to vector<8x128xf32>
    %87 = arith.negf %86 : vector<8x128xf32>
    %88 = math.exp %87 : vector<8x128xf32>
    %cst_47 = arith.constant 1.000000e+00 : f32
    %89 = vector.broadcast %cst_47 : f32 to vector<8x128xf32>
    %90 = arith.addf %89, %88 : vector<8x128xf32>
    %91 = arith.divf %89, %90 : vector<8x128xf32>
    %92 = vector.extract_strided_slice %79 {offsets = [0, 256], sizes = [8, 128], strides = [1, 1]} : vector<8x512xf32> to vector<8x128xf32>
    %93 = math.tanh %92 : vector<8x128xf32>
    %94 = vector.extract_strided_slice %79 {offsets = [0, 384], sizes = [8, 128], strides = [1, 1]} : vector<8x512xf32> to vector<8x128xf32>
    %95 = arith.negf %94 : vector<8x128xf32>
    %96 = math.exp %95 : vector<8x128xf32>
    %cst_48 = arith.constant 1.000000e+00 : f32
    %97 = vector.broadcast %cst_48 : f32 to vector<8x128xf32>
    %98 = arith.addf %97, %96 : vector<8x128xf32>
    %99 = arith.divf %97, %98 : vector<8x128xf32>
    %100 = arith.mulf %91, %73 : vector<8x128xf32>
    %101 = arith.mulf %85, %93 : vector<8x128xf32>
    %102 = arith.addf %100, %101 : vector<8x128xf32>
    %103 = math.tanh %102 : vector<8x128xf32>
    %104 = arith.mulf %99, %103 : vector<8x128xf32>
    %105 = arith.index_cast %c1_i32 : i32 to index
    %c0_49 = arith.constant 0 : index
    %c0_50 = arith.constant 0 : index
    %106 = vector.load %arg2[%105, %c0_49, %c0_50] : memref<8x8x1xf32, #tpu.memory_space<vmem>>, vector<1x8x1xf32>
    %107 = vector.shape_cast %106 : vector<1x8x1xf32> to vector<8x1xf32>
    %108 = vector.broadcast %107 : vector<8x1xf32> to vector<8x128xf32>
    %109 = arith.mulf %108, %104 : vector<8x128xf32>
    %cst_51 = arith.constant 1.000000e+00 : f32
    %110 = vector.broadcast %cst_51 : f32 to vector<8x1xf32>
    %111 = arith.subf %110, %107 : vector<8x1xf32>
    %112 = vector.broadcast %111 : vector<8x1xf32> to vector<8x128xf32>
    %113 = arith.mulf %112, %72 : vector<8x128xf32>
    %114 = arith.addf %109, %113 : vector<8x128xf32>
    %c0_52 = arith.constant 0 : index
    %c0_53 = arith.constant 0 : index
    %115 = vector.load %arg10[%c0_52, %c0_53] : memref<8x128xf32, #tpu.memory_space<vmem>>, vector<8x128xf32>
    tpu.vector_store %arg10[%c0_52, %c0_53], %114 {strides = array<i32>} : memref<8x128xf32, #tpu.memory_space<vmem>>, vector<8x128xf32>,
    %116 = vector.broadcast %107 : vector<8x1xf32> to vector<8x128xf32>
    %117 = arith.mulf %116, %102 : vector<8x128xf32>
    %cst_54 = arith.constant 1.000000e+00 : f32
    %118 = vector.broadcast %cst_54 : f32 to vector<8x1xf32>
    %119 = arith.subf %118, %107 : vector<8x1xf32>
    %120 = vector.broadcast %119 : vector<8x1xf32> to vector<8x128xf32>
    %121 = arith.mulf %120, %73 : vector<8x128xf32>
    %122 = arith.addf %117, %121 : vector<8x128xf32>
    %c0_55 = arith.constant 0 : index
    %c0_56 = arith.constant 0 : index
    %123 = vector.load %arg11[%c0_55, %c0_56] : memref<8x128xf32, #tpu.memory_space<vmem>>, vector<8x128xf32>
    tpu.vector_store %arg11[%c0_55, %c0_56], %122 {strides = array<i32>} : memref<8x128xf32, #tpu.memory_space<vmem>>, vector<8x128xf32>,
    %124 = vector.broadcast %107 : vector<8x1xf32> to vector<8x128xf32>
    %125 = arith.mulf %124, %104 : vector<8x128xf32>
    %126 = arith.index_cast %c1_i32 : i32 to index
    %c0_57 = arith.constant 0 : index
    %c0_58 = arith.constant 0 : index
    %127 = vector.load %arg6[%126, %c0_57, %c0_58] : memref<8x8x128xf32, #tpu.memory_space<vmem>>, vector<1x8x128xf32>
    %128 = vector.shape_cast %127 : vector<1x8x128xf32> to vector<8x128xf32>
    %129 = vector.shape_cast %125 : vector<8x128xf32> to vector<1x8x128xf32>
    tpu.vector_store %arg6[%126, %c0_57, %c0_58], %129 {strides = array<i32>} : memref<8x8x128xf32, #tpu.memory_space<vmem>>, vector<1x8x128xf32>,
    %c2_i32 = arith.constant 2 : i32
    %c0_59 = arith.constant 0 : index
    %c0_60 = arith.constant 0 : index
    %130 = vector.load %arg10[%c0_59, %c0_60] : memref<8x128xf32, #tpu.memory_space<vmem>>, vector<8x128xf32>
    %c0_61 = arith.constant 0 : index
    %c0_62 = arith.constant 0 : index
    %131 = vector.load %arg11[%c0_61, %c0_62] : memref<8x128xf32, #tpu.memory_space<vmem>>, vector<8x128xf32>
    %132 = arith.index_cast %c2_i32 : i32 to index
    %c0_63 = arith.constant 0 : index
    %c0_64 = arith.constant 0 : index
    %133 = vector.load %arg9[%132, %c0_63, %c0_64] : memref<8x8x512xf32, #tpu.memory_space<vmem>>, vector<1x8x512xf32>
    %134 = vector.shape_cast %133 : vector<1x8x512xf32> to vector<8x512xf32>
    %c0_65 = arith.constant 0 : index
    %c0_66 = arith.constant 0 : index
    %135 = vector.load %arg4[%c0_65, %c0_66] : memref<128x512xf32, #tpu.memory_space<vmem>>, vector<128x512xf32>
    %cst_67 = arith.constant dense<0.000000e+00> : vector<8x512xf32>
    %136 = tpu.matmul %130, %135, %cst_67 {dimension_numbers = #tpu.dot_dimension_numbers<[1], [0], [0], [1], [0, 0, 1, 1], [], []>} : vector<8x128xf32>, vector<128x512xf32>, vector<8x512xf32> -> vector<8x512xf32>
    %137 = arith.addf %134, %136 : vector<8x512xf32>
    %138 = vector.extract_strided_slice %137 {offsets = [0, 0], sizes = [8, 128], strides = [1, 1]} : vector<8x512xf32> to vector<8x128xf32>
    %139 = arith.negf %138 : vector<8x128xf32>
    %140 = math.exp %139 : vector<8x128xf32>
    %cst_68 = arith.constant 1.000000e+00 : f32
    %141 = vector.broadcast %cst_68 : f32 to vector<8x128xf32>
    %142 = arith.addf %141, %140 : vector<8x128xf32>
    %143 = arith.divf %141, %142 : vector<8x128xf32>
    %144 = vector.extract_strided_slice %137 {offsets = [0, 128], sizes = [8, 128], strides = [1, 1]} : vector<8x512xf32> to vector<8x128xf32>
    %145 = arith.negf %144 : vector<8x128xf32>
    %146 = math.exp %145 : vector<8x128xf32>
    %cst_69 = arith.constant 1.000000e+00 : f32
    %147 = vector.broadcast %cst_69 : f32 to vector<8x128xf32>
    %148 = arith.addf %147, %146 : vector<8x128xf32>
    %149 = arith.divf %147, %148 : vector<8x128xf32>
    %150 = vector.extract_strided_slice %137 {offsets = [0, 256], sizes = [8, 128], strides = [1, 1]} : vector<8x512xf32> to vector<8x128xf32>
    %151 = math.tanh %150 : vector<8x128xf32>
    %152 = vector.extract_strided_slice %137 {offsets = [0, 384], sizes = [8, 128], strides = [1, 1]} : vector<8x512xf32> to vector<8x128xf32>
    %153 = arith.negf %152 : vector<8x128xf32>
    %154 = math.exp %153 : vector<8x128xf32>
    %cst_70 = arith.constant 1.000000e+00 : f32
    %155 = vector.broadcast %cst_70 : f32 to vector<8x128xf32>
    %156 = arith.addf %155, %154 : vector<8x128xf32>
    %157 = arith.divf %155, %156 : vector<8x128xf32>
    %158 = arith.mulf %149, %131 : vector<8x128xf32>
    %159 = arith.mulf %143, %151 : vector<8x128xf32>
    %160 = arith.addf %158, %159 : vector<8x128xf32>
    %161 = math.tanh %160 : vector<8x128xf32>
    %162 = arith.mulf %157, %161 : vector<8x128xf32>
    %163 = arith.index_cast %c2_i32 : i32 to index
    %c0_71 = arith.constant 0 : index
    %c0_72 = arith.constant 0 : index
    %164 = vector.load %arg2[%163, %c0_71, %c0_72] : memref<8x8x1xf32, #tpu.memory_space<vmem>>, vector<1x8x1xf32>
    %165 = vector.shape_cast %164 : vector<1x8x1xf32> to vector<8x1xf32>
    %166 = vector.broadcast %165 : vector<8x1xf32> to vector<8x128xf32>
    %167 = arith.mulf %166, %162 : vector<8x128xf32>
    %cst_73 = arith.constant 1.000000e+00 : f32
    %168 = vector.broadcast %cst_73 : f32 to vector<8x1xf32>
    %169 = arith.subf %168, %165 : vector<8x1xf32>
    %170 = vector.broadcast %169 : vector<8x1xf32> to vector<8x128xf32>
    %171 = arith.mulf %170, %130 : vector<8x128xf32>
    %172 = arith.addf %167, %171 : vector<8x128xf32>
    %c0_74 = arith.constant 0 : index
    %c0_75 = arith.constant 0 : index
    %173 = vector.load %arg10[%c0_74, %c0_75] : memref<8x128xf32, #tpu.memory_space<vmem>>, vector<8x128xf32>
    tpu.vector_store %arg10[%c0_74, %c0_75], %172 {strides = array<i32>} : memref<8x128xf32, #tpu.memory_space<vmem>>, vector<8x128xf32>,
    %174 = vector.broadcast %165 : vector<8x1xf32> to vector<8x128xf32>
    %175 = arith.mulf %174, %160 : vector<8x128xf32>
    %cst_76 = arith.constant 1.000000e+00 : f32
    %176 = vector.broadcast %cst_76 : f32 to vector<8x1xf32>
    %177 = arith.subf %176, %165 : vector<8x1xf32>
    %178 = vector.broadcast %177 : vector<8x1xf32> to vector<8x128xf32>
    %179 = arith.mulf %178, %131 : vector<8x128xf32>
    %180 = arith.addf %175, %179 : vector<8x128xf32>
    %c0_77 = arith.constant 0 : index
    %c0_78 = arith.constant 0 : index
    %181 = vector.load %arg11[%c0_77, %c0_78] : memref<8x128xf32, #tpu.memory_space<vmem>>, vector<8x128xf32>
    tpu.vector_store %arg11[%c0_77, %c0_78], %180 {strides = array<i32>} : memref<8x128xf32, #tpu.memory_space<vmem>>, vector<8x128xf32>,
    %182 = vector.broadcast %165 : vector<8x1xf32> to vector<8x128xf32>
    %183 = arith.mulf %182, %162 : vector<8x128xf32>
    %184 = arith.index_cast %c2_i32 : i32 to index
    %c0_79 = arith.constant 0 : index
    %c0_80 = arith.constant 0 : index
    %185 = vector.load %arg6[%184, %c0_79, %c0_80] : memref<8x8x128xf32, #tpu.memory_space<vmem>>, vector<1x8x128xf32>
    %186 = vector.shape_cast %185 : vector<1x8x128xf32> to vector<8x128xf32>
    %187 = vector.shape_cast %183 : vector<8x128xf32> to vector<1x8x128xf32>
    tpu.vector_store %arg6[%184, %c0_79, %c0_80], %187 {strides = array<i32>} : memref<8x8x128xf32, #tpu.memory_space<vmem>>, vector<1x8x128xf32>,
    %c3_i32 = arith.constant 3 : i32
    %c0_81 = arith.constant 0 : index
    %c0_82 = arith.constant 0 : index
    %188 = vector.load %arg10[%c0_81, %c0_82] : memref<8x128xf32, #tpu.memory_space<vmem>>, vector<8x128xf32>
    %c0_83 = arith.constant 0 : index
    %c0_84 = arith.constant 0 : index
    %189 = vector.load %arg11[%c0_83, %c0_84] : memref<8x128xf32, #tpu.memory_space<vmem>>, vector<8x128xf32>
    %190 = arith.index_cast %c3_i32 : i32 to index
    %c0_85 = arith.constant 0 : index
    %c0_86 = arith.constant 0 : index
    %191 = vector.load %arg9[%190, %c0_85, %c0_86] : memref<8x8x512xf32, #tpu.memory_space<vmem>>, vector<1x8x512xf32>
    %192 = vector.shape_cast %191 : vector<1x8x512xf32> to vector<8x512xf32>
    %c0_87 = arith.constant 0 : index
    %c0_88 = arith.constant 0 : index
    %193 = vector.load %arg4[%c0_87, %c0_88] : memref<128x512xf32, #tpu.memory_space<vmem>>, vector<128x512xf32>
    %cst_89 = arith.constant dense<0.000000e+00> : vector<8x512xf32>
    %194 = tpu.matmul %188, %193, %cst_89 {dimension_numbers = #tpu.dot_dimension_numbers<[1], [0], [0], [1], [0, 0, 1, 1], [], []>} : vector<8x128xf32>, vector<128x512xf32>, vector<8x512xf32> -> vector<8x512xf32>
    %195 = arith.addf %192, %194 : vector<8x512xf32>
    %196 = vector.extract_strided_slice %195 {offsets = [0, 0], sizes = [8, 128], strides = [1, 1]} : vector<8x512xf32> to vector<8x128xf32>
    %197 = arith.negf %196 : vector<8x128xf32>
    %198 = math.exp %197 : vector<8x128xf32>
    %cst_90 = arith.constant 1.000000e+00 : f32
    %199 = vector.broadcast %cst_90 : f32 to vector<8x128xf32>
    %200 = arith.addf %199, %198 : vector<8x128xf32>
    %201 = arith.divf %199, %200 : vector<8x128xf32>
    %202 = vector.extract_strided_slice %195 {offsets = [0, 128], sizes = [8, 128], strides = [1, 1]} : vector<8x512xf32> to vector<8x128xf32>
    %203 = arith.negf %202 : vector<8x128xf32>
    %204 = math.exp %203 : vector<8x128xf32>
    %cst_91 = arith.constant 1.000000e+00 : f32
    %205 = vector.broadcast %cst_91 : f32 to vector<8x128xf32>
    %206 = arith.addf %205, %204 : vector<8x128xf32>
    %207 = arith.divf %205, %206 : vector<8x128xf32>
    %208 = vector.extract_strided_slice %195 {offsets = [0, 256], sizes = [8, 128], strides = [1, 1]} : vector<8x512xf32> to vector<8x128xf32>
    %209 = math.tanh %208 : vector<8x128xf32>
    %210 = vector.extract_strided_slice %195 {offsets = [0, 384], sizes = [8, 128], strides = [1, 1]} : vector<8x512xf32> to vector<8x128xf32>
    %211 = arith.negf %210 : vector<8x128xf32>
    %212 = math.exp %211 : vector<8x128xf32>
    %cst_92 = arith.constant 1.000000e+00 : f32
    %213 = vector.broadcast %cst_92 : f32 to vector<8x128xf32>
    %214 = arith.addf %213, %212 : vector<8x128xf32>
    %215 = arith.divf %213, %214 : vector<8x128xf32>
    %216 = arith.mulf %207, %189 : vector<8x128xf32>
    %217 = arith.mulf %201, %209 : vector<8x128xf32>
    %218 = arith.addf %216, %217 : vector<8x128xf32>
    %219 = math.tanh %218 : vector<8x128xf32>
    %220 = arith.mulf %215, %219 : vector<8x128xf32>
    %221 = arith.index_cast %c3_i32 : i32 to index
    %c0_93 = arith.constant 0 : index
    %c0_94 = arith.constant 0 : index
    %222 = vector.load %arg2[%221, %c0_93, %c0_94] : memref<8x8x1xf32, #tpu.memory_space<vmem>>, vector<1x8x1xf32>
    %223 = vector.shape_cast %222 : vector<1x8x1xf32> to vector<8x1xf32>
    %224 = vector.broadcast %223 : vector<8x1xf32> to vector<8x128xf32>
    %225 = arith.mulf %224, %220 : vector<8x128xf32>
    %cst_95 = arith.constant 1.000000e+00 : f32
    %226 = vector.broadcast %cst_95 : f32 to vector<8x1xf32>
    %227 = arith.subf %226, %223 : vector<8x1xf32>
    %228 = vector.broadcast %227 : vector<8x1xf32> to vector<8x128xf32>
    %229 = arith.mulf %228, %188 : vector<8x128xf32>
    %230 = arith.addf %225, %229 : vector<8x128xf32>
    %c0_96 = arith.constant 0 : index
    %c0_97 = arith.constant 0 : index
    %231 = vector.load %arg10[%c0_96, %c0_97] : memref<8x128xf32, #tpu.memory_space<vmem>>, vector<8x128xf32>
    tpu.vector_store %arg10[%c0_96, %c0_97], %230 {strides = array<i32>} : memref<8x128xf32, #tpu.memory_space<vmem>>, vector<8x128xf32>,
    %232 = vector.broadcast %223 : vector<8x1xf32> to vector<8x128xf32>
    %233 = arith.mulf %232, %218 : vector<8x128xf32>
    %cst_98 = arith.constant 1.000000e+00 : f32
    %234 = vector.broadcast %cst_98 : f32 to vector<8x1xf32>
    %235 = arith.subf %234, %223 : vector<8x1xf32>
    %236 = vector.broadcast %235 : vector<8x1xf32> to vector<8x128xf32>
    %237 = arith.mulf %236, %189 : vector<8x128xf32>
    %238 = arith.addf %233, %237 : vector<8x128xf32>
    %c0_99 = arith.constant 0 : index
    %c0_100 = arith.constant 0 : index
    %239 = vector.load %arg11[%c0_99, %c0_100] : memref<8x128xf32, #tpu.memory_space<vmem>>, vector<8x128xf32>
    tpu.vector_store %arg11[%c0_99, %c0_100], %238 {strides = array<i32>} : memref<8x128xf32, #tpu.memory_space<vmem>>, vector<8x128xf32>,
    %240 = vector.broadcast %223 : vector<8x1xf32> to vector<8x128xf32>
    %241 = arith.mulf %240, %220 : vector<8x128xf32>
    %242 = arith.index_cast %c3_i32 : i32 to index
    %c0_101 = arith.constant 0 : index
    %c0_102 = arith.constant 0 : index
    %243 = vector.load %arg6[%242, %c0_101, %c0_102] : memref<8x8x128xf32, #tpu.memory_space<vmem>>, vector<1x8x128xf32>
    %244 = vector.shape_cast %243 : vector<1x8x128xf32> to vector<8x128xf32>
    %245 = vector.shape_cast %241 : vector<8x128xf32> to vector<1x8x128xf32>
    tpu.vector_store %arg6[%242, %c0_101, %c0_102], %245 {strides = array<i32>} : memref<8x8x128xf32, #tpu.memory_space<vmem>>, vector<1x8x128xf32>,
    %c4_i32 = arith.constant 4 : i32
    %c0_103 = arith.constant 0 : index
    %c0_104 = arith.constant 0 : index
    %246 = vector.load %arg10[%c0_103, %c0_104] : memref<8x128xf32, #tpu.memory_space<vmem>>, vector<8x128xf32>
    %c0_105 = arith.constant 0 : index
    %c0_106 = arith.constant 0 : index
    %247 = vector.load %arg11[%c0_105, %c0_106] : memref<8x128xf32, #tpu.memory_space<vmem>>, vector<8x128xf32>
    %248 = arith.index_cast %c4_i32 : i32 to index
    %c0_107 = arith.constant 0 : index
    %c0_108 = arith.constant 0 : index
    %249 = vector.load %arg9[%248, %c0_107, %c0_108] : memref<8x8x512xf32, #tpu.memory_space<vmem>>, vector<1x8x512xf32>
    %250 = vector.shape_cast %249 : vector<1x8x512xf32> to vector<8x512xf32>
    %c0_109 = arith.constant 0 : index
    %c0_110 = arith.constant 0 : index
    %251 = vector.load %arg4[%c0_109, %c0_110] : memref<128x512xf32, #tpu.memory_space<vmem>>, vector<128x512xf32>
    %cst_111 = arith.constant dense<0.000000e+00> : vector<8x512xf32>
    %252 = tpu.matmul %246, %251, %cst_111 {dimension_numbers = #tpu.dot_dimension_numbers<[1], [0], [0], [1], [0, 0, 1, 1], [], []>} : vector<8x128xf32>, vector<128x512xf32>, vector<8x512xf32> -> vector<8x512xf32>
    %253 = arith.addf %250, %252 : vector<8x512xf32>
    %254 = vector.extract_strided_slice %253 {offsets = [0, 0], sizes = [8, 128], strides = [1, 1]} : vector<8x512xf32> to vector<8x128xf32>
    %255 = arith.negf %254 : vector<8x128xf32>
    %256 = math.exp %255 : vector<8x128xf32>
    %cst_112 = arith.constant 1.000000e+00 : f32
    %257 = vector.broadcast %cst_112 : f32 to vector<8x128xf32>
    %258 = arith.addf %257, %256 : vector<8x128xf32>
    %259 = arith.divf %257, %258 : vector<8x128xf32>
    %260 = vector.extract_strided_slice %253 {offsets = [0, 128], sizes = [8, 128], strides = [1, 1]} : vector<8x512xf32> to vector<8x128xf32>
    %261 = arith.negf %260 : vector<8x128xf32>
    %262 = math.exp %261 : vector<8x128xf32>
    %cst_113 = arith.constant 1.000000e+00 : f32
    %263 = vector.broadcast %cst_113 : f32 to vector<8x128xf32>
    %264 = arith.addf %263, %262 : vector<8x128xf32>
    %265 = arith.divf %263, %264 : vector<8x128xf32>
    %266 = vector.extract_strided_slice %253 {offsets = [0, 256], sizes = [8, 128], strides = [1, 1]} : vector<8x512xf32> to vector<8x128xf32>
    %267 = math.tanh %266 : vector<8x128xf32>
    %268 = vector.extract_strided_slice %253 {offsets = [0, 384], sizes = [8, 128], strides = [1, 1]} : vector<8x512xf32> to vector<8x128xf32>
    %269 = arith.negf %268 : vector<8x128xf32>
    %270 = math.exp %269 : vector<8x128xf32>
    %cst_114 = arith.constant 1.000000e+00 : f32
    %271 = vector.broadcast %cst_114 : f32 to vector<8x128xf32>
    %272 = arith.addf %271, %270 : vector<8x128xf32>
    %273 = arith.divf %271, %272 : vector<8x128xf32>
    %274 = arith.mulf %265, %247 : vector<8x128xf32>
    %275 = arith.mulf %259, %267 : vector<8x128xf32>
    %276 = arith.addf %274, %275 : vector<8x128xf32>
    %277 = math.tanh %276 : vector<8x128xf32>
    %278 = arith.mulf %273, %277 : vector<8x128xf32>
    %279 = arith.index_cast %c4_i32 : i32 to index
    %c0_115 = arith.constant 0 : index
    %c0_116 = arith.constant 0 : index
    %280 = vector.load %arg2[%279, %c0_115, %c0_116] : memref<8x8x1xf32, #tpu.memory_space<vmem>>, vector<1x8x1xf32>
    %281 = vector.shape_cast %280 : vector<1x8x1xf32> to vector<8x1xf32>
    %282 = vector.broadcast %281 : vector<8x1xf32> to vector<8x128xf32>
    %283 = arith.mulf %282, %278 : vector<8x128xf32>
    %cst_117 = arith.constant 1.000000e+00 : f32
    %284 = vector.broadcast %cst_117 : f32 to vector<8x1xf32>
    %285 = arith.subf %284, %281 : vector<8x1xf32>
    %286 = vector.broadcast %285 : vector<8x1xf32> to vector<8x128xf32>
    %287 = arith.mulf %286, %246 : vector<8x128xf32>
    %288 = arith.addf %283, %287 : vector<8x128xf32>
    %c0_118 = arith.constant 0 : index
    %c0_119 = arith.constant 0 : index
    %289 = vector.load %arg10[%c0_118, %c0_119] : memref<8x128xf32, #tpu.memory_space<vmem>>, vector<8x128xf32>
    tpu.vector_store %arg10[%c0_118, %c0_119], %288 {strides = array<i32>} : memref<8x128xf32, #tpu.memory_space<vmem>>, vector<8x128xf32>,
    %290 = vector.broadcast %281 : vector<8x1xf32> to vector<8x128xf32>
    %291 = arith.mulf %290, %276 : vector<8x128xf32>
    %cst_120 = arith.constant 1.000000e+00 : f32
    %292 = vector.broadcast %cst_120 : f32 to vector<8x1xf32>
    %293 = arith.subf %292, %281 : vector<8x1xf32>
    %294 = vector.broadcast %293 : vector<8x1xf32> to vector<8x128xf32>
    %295 = arith.mulf %294, %247 : vector<8x128xf32>
    %296 = arith.addf %291, %295 : vector<8x128xf32>
    %c0_121 = arith.constant 0 : index
    %c0_122 = arith.constant 0 : index
    %297 = vector.load %arg11[%c0_121, %c0_122] : memref<8x128xf32, #tpu.memory_space<vmem>>, vector<8x128xf32>
    tpu.vector_store %arg11[%c0_121, %c0_122], %296 {strides = array<i32>} : memref<8x128xf32, #tpu.memory_space<vmem>>, vector<8x128xf32>,
    %298 = vector.broadcast %281 : vector<8x1xf32> to vector<8x128xf32>
    %299 = arith.mulf %298, %278 : vector<8x128xf32>
    %300 = arith.index_cast %c4_i32 : i32 to index
    %c0_123 = arith.constant 0 : index
    %c0_124 = arith.constant 0 : index
    %301 = vector.load %arg6[%300, %c0_123, %c0_124] : memref<8x8x128xf32, #tpu.memory_space<vmem>>, vector<1x8x128xf32>
    %302 = vector.shape_cast %301 : vector<1x8x128xf32> to vector<8x128xf32>
    %303 = vector.shape_cast %299 : vector<8x128xf32> to vector<1x8x128xf32>
    tpu.vector_store %arg6[%300, %c0_123, %c0_124], %303 {strides = array<i32>} : memref<8x8x128xf32, #tpu.memory_space<vmem>>, vector<1x8x128xf32>,
    %c5_i32 = arith.constant 5 : i32
    %c0_125 = arith.constant 0 : index
    %c0_126 = arith.constant 0 : index
    %304 = vector.load %arg10[%c0_125, %c0_126] : memref<8x128xf32, #tpu.memory_space<vmem>>, vector<8x128xf32>
    %c0_127 = arith.constant 0 : index
    %c0_128 = arith.constant 0 : index
    %305 = vector.load %arg11[%c0_127, %c0_128] : memref<8x128xf32, #tpu.memory_space<vmem>>, vector<8x128xf32>
    %306 = arith.index_cast %c5_i32 : i32 to index
    %c0_129 = arith.constant 0 : index
    %c0_130 = arith.constant 0 : index
    %307 = vector.load %arg9[%306, %c0_129, %c0_130] : memref<8x8x512xf32, #tpu.memory_space<vmem>>, vector<1x8x512xf32>
    %308 = vector.shape_cast %307 : vector<1x8x512xf32> to vector<8x512xf32>
    %c0_131 = arith.constant 0 : index
    %c0_132 = arith.constant 0 : index
    %309 = vector.load %arg4[%c0_131, %c0_132] : memref<128x512xf32, #tpu.memory_space<vmem>>, vector<128x512xf32>
    %cst_133 = arith.constant dense<0.000000e+00> : vector<8x512xf32>
    %310 = tpu.matmul %304, %309, %cst_133 {dimension_numbers = #tpu.dot_dimension_numbers<[1], [0], [0], [1], [0, 0, 1, 1], [], []>} : vector<8x128xf32>, vector<128x512xf32>, vector<8x512xf32> -> vector<8x512xf32>
    %311 = arith.addf %308, %310 : vector<8x512xf32>
    %312 = vector.extract_strided_slice %311 {offsets = [0, 0], sizes = [8, 128], strides = [1, 1]} : vector<8x512xf32> to vector<8x128xf32>
    %313 = arith.negf %312 : vector<8x128xf32>
    %314 = math.exp %313 : vector<8x128xf32>
    %cst_134 = arith.constant 1.000000e+00 : f32
    %315 = vector.broadcast %cst_134 : f32 to vector<8x128xf32>
    %316 = arith.addf %315, %314 : vector<8x128xf32>
    %317 = arith.divf %315, %316 : vector<8x128xf32>
    %318 = vector.extract_strided_slice %311 {offsets = [0, 128], sizes = [8, 128], strides = [1, 1]} : vector<8x512xf32> to vector<8x128xf32>
    %319 = arith.negf %318 : vector<8x128xf32>
    %320 = math.exp %319 : vector<8x128xf32>
    %cst_135 = arith.constant 1.000000e+00 : f32
    %321 = vector.broadcast %cst_135 : f32 to vector<8x128xf32>
    %322 = arith.addf %321, %320 : vector<8x128xf32>
    %323 = arith.divf %321, %322 : vector<8x128xf32>
    %324 = vector.extract_strided_slice %311 {offsets = [0, 256], sizes = [8, 128], strides = [1, 1]} : vector<8x512xf32> to vector<8x128xf32>
    %325 = math.tanh %324 : vector<8x128xf32>
    %326 = vector.extract_strided_slice %311 {offsets = [0, 384], sizes = [8, 128], strides = [1, 1]} : vector<8x512xf32> to vector<8x128xf32>
    %327 = arith.negf %326 : vector<8x128xf32>
    %328 = math.exp %327 : vector<8x128xf32>
    %cst_136 = arith.constant 1.000000e+00 : f32
    %329 = vector.broadcast %cst_136 : f32 to vector<8x128xf32>
    %330 = arith.addf %329, %328 : vector<8x128xf32>
    %331 = arith.divf %329, %330 : vector<8x128xf32>
    %332 = arith.mulf %323, %305 : vector<8x128xf32>
    %333 = arith.mulf %317, %325 : vector<8x128xf32>
    %334 = arith.addf %332, %333 : vector<8x128xf32>
    %335 = math.tanh %334 : vector<8x128xf32>
    %336 = arith.mulf %331, %335 : vector<8x128xf32>
    %337 = arith.index_cast %c5_i32 : i32 to index
    %c0_137 = arith.constant 0 : index
    %c0_138 = arith.constant 0 : index
    %338 = vector.load %arg2[%337, %c0_137, %c0_138] : memref<8x8x1xf32, #tpu.memory_space<vmem>>, vector<1x8x1xf32>
    %339 = vector.shape_cast %338 : vector<1x8x1xf32> to vector<8x1xf32>
    %340 = vector.broadcast %339 : vector<8x1xf32> to vector<8x128xf32>
    %341 = arith.mulf %340, %336 : vector<8x128xf32>
    %cst_139 = arith.constant 1.000000e+00 : f32
    %342 = vector.broadcast %cst_139 : f32 to vector<8x1xf32>
    %343 = arith.subf %342, %339 : vector<8x1xf32>
    %344 = vector.broadcast %343 : vector<8x1xf32> to vector<8x128xf32>
    %345 = arith.mulf %344, %304 : vector<8x128xf32>
    %346 = arith.addf %341, %345 : vector<8x128xf32>
    %c0_140 = arith.constant 0 : index
    %c0_141 = arith.constant 0 : index
    %347 = vector.load %arg10[%c0_140, %c0_141] : memref<8x128xf32, #tpu.memory_space<vmem>>, vector<8x128xf32>
    tpu.vector_store %arg10[%c0_140, %c0_141], %346 {strides = array<i32>} : memref<8x128xf32, #tpu.memory_space<vmem>>, vector<8x128xf32>,
    %348 = vector.broadcast %339 : vector<8x1xf32> to vector<8x128xf32>
    %349 = arith.mulf %348, %334 : vector<8x128xf32>
    %cst_142 = arith.constant 1.000000e+00 : f32
    %350 = vector.broadcast %cst_142 : f32 to vector<8x1xf32>
    %351 = arith.subf %350, %339 : vector<8x1xf32>
    %352 = vector.broadcast %351 : vector<8x1xf32> to vector<8x128xf32>
    %353 = arith.mulf %352, %305 : vector<8x128xf32>
    %354 = arith.addf %349, %353 : vector<8x128xf32>
    %c0_143 = arith.constant 0 : index
    %c0_144 = arith.constant 0 : index
    %355 = vector.load %arg11[%c0_143, %c0_144] : memref<8x128xf32, #tpu.memory_space<vmem>>, vector<8x128xf32>
    tpu.vector_store %arg11[%c0_143, %c0_144], %354 {strides = array<i32>} : memref<8x128xf32, #tpu.memory_space<vmem>>, vector<8x128xf32>,
    %356 = vector.broadcast %339 : vector<8x1xf32> to vector<8x128xf32>
    %357 = arith.mulf %356, %336 : vector<8x128xf32>
    %358 = arith.index_cast %c5_i32 : i32 to index
    %c0_145 = arith.constant 0 : index
    %c0_146 = arith.constant 0 : index
    %359 = vector.load %arg6[%358, %c0_145, %c0_146] : memref<8x8x128xf32, #tpu.memory_space<vmem>>, vector<1x8x128xf32>
    %360 = vector.shape_cast %359 : vector<1x8x128xf32> to vector<8x128xf32>
    %361 = vector.shape_cast %357 : vector<8x128xf32> to vector<1x8x128xf32>
    tpu.vector_store %arg6[%358, %c0_145, %c0_146], %361 {strides = array<i32>} : memref<8x8x128xf32, #tpu.memory_space<vmem>>, vector<1x8x128xf32>,
    %c6_i32 = arith.constant 6 : i32
    %c0_147 = arith.constant 0 : index
    %c0_148 = arith.constant 0 : index
    %362 = vector.load %arg10[%c0_147, %c0_148] : memref<8x128xf32, #tpu.memory_space<vmem>>, vector<8x128xf32>
    %c0_149 = arith.constant 0 : index
    %c0_150 = arith.constant 0 : index
    %363 = vector.load %arg11[%c0_149, %c0_150] : memref<8x128xf32, #tpu.memory_space<vmem>>, vector<8x128xf32>
    %364 = arith.index_cast %c6_i32 : i32 to index
    %c0_151 = arith.constant 0 : index
    %c0_152 = arith.constant 0 : index
    %365 = vector.load %arg9[%364, %c0_151, %c0_152] : memref<8x8x512xf32, #tpu.memory_space<vmem>>, vector<1x8x512xf32>
    %366 = vector.shape_cast %365 : vector<1x8x512xf32> to vector<8x512xf32>
    %c0_153 = arith.constant 0 : index
    %c0_154 = arith.constant 0 : index
    %367 = vector.load %arg4[%c0_153, %c0_154] : memref<128x512xf32, #tpu.memory_space<vmem>>, vector<128x512xf32>
    %cst_155 = arith.constant dense<0.000000e+00> : vector<8x512xf32>
    %368 = tpu.matmul %362, %367, %cst_155 {dimension_numbers = #tpu.dot_dimension_numbers<[1], [0], [0], [1], [0, 0, 1, 1], [], []>} : vector<8x128xf32>, vector<128x512xf32>, vector<8x512xf32> -> vector<8x512xf32>
    %369 = arith.addf %366, %368 : vector<8x512xf32>
    %370 = vector.extract_strided_slice %369 {offsets = [0, 0], sizes = [8, 128], strides = [1, 1]} : vector<8x512xf32> to vector<8x128xf32>
    %371 = arith.negf %370 : vector<8x128xf32>
    %372 = math.exp %371 : vector<8x128xf32>
    %cst_156 = arith.constant 1.000000e+00 : f32
    %373 = vector.broadcast %cst_156 : f32 to vector<8x128xf32>
    %374 = arith.addf %373, %372 : vector<8x128xf32>
    %375 = arith.divf %373, %374 : vector<8x128xf32>
    %376 = vector.extract_strided_slice %369 {offsets = [0, 128], sizes = [8, 128], strides = [1, 1]} : vector<8x512xf32> to vector<8x128xf32>
    %377 = arith.negf %376 : vector<8x128xf32>
    %378 = math.exp %377 : vector<8x128xf32>
    %cst_157 = arith.constant 1.000000e+00 : f32
    %379 = vector.broadcast %cst_157 : f32 to vector<8x128xf32>
    %380 = arith.addf %379, %378 : vector<8x128xf32>
    %381 = arith.divf %379, %380 : vector<8x128xf32>
    %382 = vector.extract_strided_slice %369 {offsets = [0, 256], sizes = [8, 128], strides = [1, 1]} : vector<8x512xf32> to vector<8x128xf32>
    %383 = math.tanh %382 : vector<8x128xf32>
    %384 = vector.extract_strided_slice %369 {offsets = [0, 384], sizes = [8, 128], strides = [1, 1]} : vector<8x512xf32> to vector<8x128xf32>
    %385 = arith.negf %384 : vector<8x128xf32>
    %386 = math.exp %385 : vector<8x128xf32>
    %cst_158 = arith.constant 1.000000e+00 : f32
    %387 = vector.broadcast %cst_158 : f32 to vector<8x128xf32>
    %388 = arith.addf %387, %386 : vector<8x128xf32>
    %389 = arith.divf %387, %388 : vector<8x128xf32>
    %390 = arith.mulf %381, %363 : vector<8x128xf32>
    %391 = arith.mulf %375, %383 : vector<8x128xf32>
    %392 = arith.addf %390, %391 : vector<8x128xf32>
    %393 = math.tanh %392 : vector<8x128xf32>
    %394 = arith.mulf %389, %393 : vector<8x128xf32>
    %395 = arith.index_cast %c6_i32 : i32 to index
    %c0_159 = arith.constant 0 : index
    %c0_160 = arith.constant 0 : index
    %396 = vector.load %arg2[%395, %c0_159, %c0_160] : memref<8x8x1xf32, #tpu.memory_space<vmem>>, vector<1x8x1xf32>
    %397 = vector.shape_cast %396 : vector<1x8x1xf32> to vector<8x1xf32>
    %398 = vector.broadcast %397 : vector<8x1xf32> to vector<8x128xf32>
    %399 = arith.mulf %398, %394 : vector<8x128xf32>
    %cst_161 = arith.constant 1.000000e+00 : f32
    %400 = vector.broadcast %cst_161 : f32 to vector<8x1xf32>
    %401 = arith.subf %400, %397 : vector<8x1xf32>
    %402 = vector.broadcast %401 : vector<8x1xf32> to vector<8x128xf32>
    %403 = arith.mulf %402, %362 : vector<8x128xf32>
    %404 = arith.addf %399, %403 : vector<8x128xf32>
    %c0_162 = arith.constant 0 : index
    %c0_163 = arith.constant 0 : index
    %405 = vector.load %arg10[%c0_162, %c0_163] : memref<8x128xf32, #tpu.memory_space<vmem>>, vector<8x128xf32>
    tpu.vector_store %arg10[%c0_162, %c0_163], %404 {strides = array<i32>} : memref<8x128xf32, #tpu.memory_space<vmem>>, vector<8x128xf32>,
    %406 = vector.broadcast %397 : vector<8x1xf32> to vector<8x128xf32>
    %407 = arith.mulf %406, %392 : vector<8x128xf32>
    %cst_164 = arith.constant 1.000000e+00 : f32
    %408 = vector.broadcast %cst_164 : f32 to vector<8x1xf32>
    %409 = arith.subf %408, %397 : vector<8x1xf32>
    %410 = vector.broadcast %409 : vector<8x1xf32> to vector<8x128xf32>
    %411 = arith.mulf %410, %363 : vector<8x128xf32>
    %412 = arith.addf %407, %411 : vector<8x128xf32>
    %c0_165 = arith.constant 0 : index
    %c0_166 = arith.constant 0 : index
    %413 = vector.load %arg11[%c0_165, %c0_166] : memref<8x128xf32, #tpu.memory_space<vmem>>, vector<8x128xf32>
    tpu.vector_store %arg11[%c0_165, %c0_166], %412 {strides = array<i32>} : memref<8x128xf32, #tpu.memory_space<vmem>>, vector<8x128xf32>,
    %414 = vector.broadcast %397 : vector<8x1xf32> to vector<8x128xf32>
    %415 = arith.mulf %414, %394 : vector<8x128xf32>
    %416 = arith.index_cast %c6_i32 : i32 to index
    %c0_167 = arith.constant 0 : index
    %c0_168 = arith.constant 0 : index
    %417 = vector.load %arg6[%416, %c0_167, %c0_168] : memref<8x8x128xf32, #tpu.memory_space<vmem>>, vector<1x8x128xf32>
    %418 = vector.shape_cast %417 : vector<1x8x128xf32> to vector<8x128xf32>
    %419 = vector.shape_cast %415 : vector<8x128xf32> to vector<1x8x128xf32>
    tpu.vector_store %arg6[%416, %c0_167, %c0_168], %419 {strides = array<i32>} : memref<8x8x128xf32, #tpu.memory_space<vmem>>, vector<1x8x128xf32>,
    %c7_i32 = arith.constant 7 : i32
    %c0_169 = arith.constant 0 : index
    %c0_170 = arith.constant 0 : index
    %420 = vector.load %arg10[%c0_169, %c0_170] : memref<8x128xf32, #tpu.memory_space<vmem>>, vector<8x128xf32>
    %c0_171 = arith.constant 0 : index
    %c0_172 = arith.constant 0 : index
    %421 = vector.load %arg11[%c0_171, %c0_172] : memref<8x128xf32, #tpu.memory_space<vmem>>, vector<8x128xf32>
    %422 = arith.index_cast %c7_i32 : i32 to index
    %c0_173 = arith.constant 0 : index
    %c0_174 = arith.constant 0 : index
    %423 = vector.load %arg9[%422, %c0_173, %c0_174] : memref<8x8x512xf32, #tpu.memory_space<vmem>>, vector<1x8x512xf32>
    %424 = vector.shape_cast %423 : vector<1x8x512xf32> to vector<8x512xf32>
    %c0_175 = arith.constant 0 : index
    %c0_176 = arith.constant 0 : index
    %425 = vector.load %arg4[%c0_175, %c0_176] : memref<128x512xf32, #tpu.memory_space<vmem>>, vector<128x512xf32>
    %cst_177 = arith.constant dense<0.000000e+00> : vector<8x512xf32>
    %426 = tpu.matmul %420, %425, %cst_177 {dimension_numbers = #tpu.dot_dimension_numbers<[1], [0], [0], [1], [0, 0, 1, 1], [], []>} : vector<8x128xf32>, vector<128x512xf32>, vector<8x512xf32> -> vector<8x512xf32>
    %427 = arith.addf %424, %426 : vector<8x512xf32>
    %428 = vector.extract_strided_slice %427 {offsets = [0, 0], sizes = [8, 128], strides = [1, 1]} : vector<8x512xf32> to vector<8x128xf32>
    %429 = arith.negf %428 : vector<8x128xf32>
    %430 = math.exp %429 : vector<8x128xf32>
    %cst_178 = arith.constant 1.000000e+00 : f32
    %431 = vector.broadcast %cst_178 : f32 to vector<8x128xf32>
    %432 = arith.addf %431, %430 : vector<8x128xf32>
    %433 = arith.divf %431, %432 : vector<8x128xf32>
    %434 = vector.extract_strided_slice %427 {offsets = [0, 128], sizes = [8, 128], strides = [1, 1]} : vector<8x512xf32> to vector<8x128xf32>
    %435 = arith.negf %434 : vector<8x128xf32>
    %436 = math.exp %435 : vector<8x128xf32>
    %cst_179 = arith.constant 1.000000e+00 : f32
    %437 = vector.broadcast %cst_179 : f32 to vector<8x128xf32>
    %438 = arith.addf %437, %436 : vector<8x128xf32>
    %439 = arith.divf %437, %438 : vector<8x128xf32>
    %440 = vector.extract_strided_slice %427 {offsets = [0, 256], sizes = [8, 128], strides = [1, 1]} : vector<8x512xf32> to vector<8x128xf32>
    %441 = math.tanh %440 : vector<8x128xf32>
    %442 = vector.extract_strided_slice %427 {offsets = [0, 384], sizes = [8, 128], strides = [1, 1]} : vector<8x512xf32> to vector<8x128xf32>
    %443 = arith.negf %442 : vector<8x128xf32>
    %444 = math.exp %443 : vector<8x128xf32>
    %cst_180 = arith.constant 1.000000e+00 : f32
    %445 = vector.broadcast %cst_180 : f32 to vector<8x128xf32>
    %446 = arith.addf %445, %444 : vector<8x128xf32>
    %447 = arith.divf %445, %446 : vector<8x128xf32>
    %448 = arith.mulf %439, %421 : vector<8x128xf32>
    %449 = arith.mulf %433, %441 : vector<8x128xf32>
    %450 = arith.addf %448, %449 : vector<8x128xf32>
    %451 = math.tanh %450 : vector<8x128xf32>
    %452 = arith.mulf %447, %451 : vector<8x128xf32>
    %453 = arith.index_cast %c7_i32 : i32 to index
    %c0_181 = arith.constant 0 : index
    %c0_182 = arith.constant 0 : index
    %454 = vector.load %arg2[%453, %c0_181, %c0_182] : memref<8x8x1xf32, #tpu.memory_space<vmem>>, vector<1x8x1xf32>
    %455 = vector.shape_cast %454 : vector<1x8x1xf32> to vector<8x1xf32>
    %456 = vector.broadcast %455 : vector<8x1xf32> to vector<8x128xf32>
    %457 = arith.mulf %456, %452 : vector<8x128xf32>
    %cst_183 = arith.constant 1.000000e+00 : f32
    %458 = vector.broadcast %cst_183 : f32 to vector<8x1xf32>
    %459 = arith.subf %458, %455 : vector<8x1xf32>
    %460 = vector.broadcast %459 : vector<8x1xf32> to vector<8x128xf32>
    %461 = arith.mulf %460, %420 : vector<8x128xf32>
    %462 = arith.addf %457, %461 : vector<8x128xf32>
    %c0_184 = arith.constant 0 : index
    %c0_185 = arith.constant 0 : index
    %463 = vector.load %arg10[%c0_184, %c0_185] : memref<8x128xf32, #tpu.memory_space<vmem>>, vector<8x128xf32>
    tpu.vector_store %arg10[%c0_184, %c0_185], %462 {strides = array<i32>} : memref<8x128xf32, #tpu.memory_space<vmem>>, vector<8x128xf32>,
    %464 = vector.broadcast %455 : vector<8x1xf32> to vector<8x128xf32>
    %465 = arith.mulf %464, %450 : vector<8x128xf32>
    %cst_186 = arith.constant 1.000000e+00 : f32
    %466 = vector.broadcast %cst_186 : f32 to vector<8x1xf32>
    %467 = arith.subf %466, %455 : vector<8x1xf32>
    %468 = vector.broadcast %467 : vector<8x1xf32> to vector<8x128xf32>
    %469 = arith.mulf %468, %421 : vector<8x128xf32>
    %470 = arith.addf %465, %469 : vector<8x128xf32>
    %c0_187 = arith.constant 0 : index
    %c0_188 = arith.constant 0 : index
    %471 = vector.load %arg11[%c0_187, %c0_188] : memref<8x128xf32, #tpu.memory_space<vmem>>, vector<8x128xf32>
    tpu.vector_store %arg11[%c0_187, %c0_188], %470 {strides = array<i32>} : memref<8x128xf32, #tpu.memory_space<vmem>>, vector<8x128xf32>,
    %472 = vector.broadcast %455 : vector<8x1xf32> to vector<8x128xf32>
    %473 = arith.mulf %472, %452 : vector<8x128xf32>
    %474 = arith.index_cast %c7_i32 : i32 to index
    %c0_189 = arith.constant 0 : index
    %c0_190 = arith.constant 0 : index
    %475 = vector.load %arg6[%474, %c0_189, %c0_190] : memref<8x8x128xf32, #tpu.memory_space<vmem>>, vector<1x8x128xf32>
    %476 = vector.shape_cast %475 : vector<1x8x128xf32> to vector<8x128xf32>
    %477 = vector.shape_cast %473 : vector<8x128xf32> to vector<1x8x128xf32>
    tpu.vector_store %arg6[%474, %c0_189, %c0_190], %477 {strides = array<i32>} : memref<8x8x128xf32, #tpu.memory_space<vmem>>, vector<1x8x128xf32>,
    %c8_i32 = arith.constant 8 : i32
    %c0_191 = arith.constant 0 : index
    %c0_192 = arith.constant 0 : index
    %478 = vector.load %arg10[%c0_191, %c0_192] : memref<8x128xf32, #tpu.memory_space<vmem>>, vector<8x128xf32>
    %c0_193 = arith.constant 0 : index
    %c0_194 = arith.constant 0 : index
    %479 = vector.load %arg7[%c0_193, %c0_194] : memref<8x128xf32, #tpu.memory_space<vmem>>, vector<8x128xf32>
    tpu.vector_store %arg7[%c0_193, %c0_194], %478 {strides = array<i32>} : memref<8x128xf32, #tpu.memory_space<vmem>>, vector<8x128xf32>,
    %c0_195 = arith.constant 0 : index
    %c0_196 = arith.constant 0 : index
    %480 = vector.load %arg11[%c0_195, %c0_196] : memref<8x128xf32, #tpu.memory_space<vmem>>, vector<8x128xf32>
    %c0_197 = arith.constant 0 : index
    %c0_198 = arith.constant 0 : index
    %481 = vector.load %arg8[%c0_197, %c0_198] : memref<8x128xf32, #tpu.memory_space<vmem>>, vector<8x128xf32>
    tpu.vector_store %arg8[%c0_197, %c0_198], %480 {strides = array<i32>} : memref<8x128xf32, #tpu.memory_space<vmem>>, vector<8x128xf32>,
    return
  }
  func.func @transform_0(%arg0: i32) -> (i32, i32, i32) {
    %c0_i32 = arith.constant 0 : i32
    %c0_i32_0 = arith.constant 0 : i32
    %c0_i32_1 = arith.constant 0 : i32
    return %c0_i32, %arg0, %c0_i32_0 : i32, i32, i32
  }
  func.func @transform_1(%arg0: i32) -> (i32, i32, i32) {
    %c0_i32 = arith.constant 0 : i32
    %c0_i32_0 = arith.constant 0 : i32
    %c0_i32_1 = arith.constant 0 : i32
    return %c0_i32, %arg0, %c0_i32_0 : i32, i32, i32
  }
  func.func @transform_2(%arg0: i32) -> (i32, i32) {
    %c0_i32 = arith.constant 0 : i32
    %c0_i32_0 = arith.constant 0 : i32
    %c0_i32_1 = arith.constant 0 : i32
    return %c0_i32, %c0_i32_0 : i32, i32
  }
  func.func @transform_3(%arg0: i32) -> (i32, i32) {
    %c0_i32 = arith.constant 0 : i32
    %c0_i32_0 = arith.constant 0 : i32
    %c0_i32_1 = arith.constant 0 : i32
    return %c0_i32, %c0_i32_0 : i32, i32
  }
  func.func @transform_4(%arg0: i32) -> (i32, i32) {
    %c0_i32 = arith.constant 0 : i32
    %c0_i32_0 = arith.constant 0 : i32
    %c0_i32_1 = arith.constant 0 : i32
    return %c0_i32, %c0_i32_0 : i32, i32
  }
  func.func @transform_5(%arg0: i32) -> (i32, i32, i32) {
    %c0_i32 = arith.constant 0 : i32
    %c0_i32_0 = arith.constant 0 : i32
    %c0_i32_1 = arith.constant 0 : i32
    return %c0_i32, %arg0, %c0_i32_0 : i32, i32, i32
  }
  func.func @transform_6(%arg0: i32) -> (i32, i32) {
    %c0_i32 = arith.constant 0 : i32
    %c0_i32_0 = arith.constant 0 : i32
    return %arg0, %c0_i32 : i32, i32
  }
  func.func @transform_7(%arg0: i32) -> (i32, i32) {
    %c0_i32 = arith.constant 0 : i32
    %c0_i32_0 = arith.constant 0 : i32
    return %arg0, %c0_i32 : i32, i32
  }
}

module attributes {stable_mosaic.version = 11 : i64} {
  func.func @decoder_kernel(%arg0: i32, %arg1: memref<6x8x16xf32, #tpu.memory_space<vmem>>, %arg2: memref<8x8x128xf32, #tpu.memory_space<vmem>>, %arg3: memref<8x8xf32, #tpu.memory_space<vmem>>, %arg4: memref<8x128xf32, #tpu.memory_space<vmem>>, %arg5: memref<8x128xf32, #tpu.memory_space<vmem>>, %arg6: memref<128x128xf32, #tpu.memory_space<vmem>>, %arg7: memref<16x512xf32, #tpu.memory_space<vmem>>, %arg8: memref<128x512xf32, #tpu.memory_space<vmem>>, %arg9: memref<128x512xf32, #tpu.memory_space<vmem>>, %arg10: memref<1x512xf32, #tpu.memory_space<vmem>>, %arg11: memref<128x128xf32, #tpu.memory_space<vmem>>, %arg12: memref<1x128xf32, #tpu.memory_space<vmem>>, %arg13: memref<6x8x128xf32, #tpu.memory_space<vmem>>, %arg14: memref<6x8x512xf32, #tpu.memory_space<vmem>>, %arg15: memref<8x8x128xf32, #tpu.memory_space<vmem>>, %arg16: memref<8x128xf32, #tpu.memory_space<vmem>>, %arg17: memref<8x128xf32, #tpu.memory_space<vmem>>) attributes {dimension_semantics = [#tpu.dimension_semantics<parallel>], iteration_bounds = array<i64: 1>, scalar_prefetch = 0 : i64, scratch_operands = 4 : i64, tpu.core_type = #tpu.core_type<tc>, window_params = [{transform_indices = @transform_0, window_bounds = array<i64: 6, 8, 16>}, {transform_indices = @transform_1, window_bounds = array<i64: 8, 8, 128>}, {transform_indices = @transform_2, window_bounds = array<i64: 8, 8>}, {transform_indices = @transform_3, window_bounds = array<i64: 8, 128>}, {transform_indices = @transform_4, window_bounds = array<i64: 8, 128>}, {pipeline_mode = #tpu.pipeline_mode<synchronous>, transform_indices = @transform_5, window_bounds = array<i64: 128, 128>}, {pipeline_mode = #tpu.pipeline_mode<synchronous>, transform_indices = @transform_6, window_bounds = array<i64: 16, 512>}, {pipeline_mode = #tpu.pipeline_mode<synchronous>, transform_indices = @transform_7, window_bounds = array<i64: 128, 512>}, {pipeline_mode = #tpu.pipeline_mode<synchronous>, transform_indices = @transform_8, window_bounds = array<i64: 128, 512>}, {pipeline_mode = #tpu.pipeline_mode<synchronous>, transform_indices = @transform_9, window_bounds = array<i64: 1, 512>}, {pipeline_mode = #tpu.pipeline_mode<synchronous>, transform_indices = @transform_10, window_bounds = array<i64: 128, 128>}, {pipeline_mode = #tpu.pipeline_mode<synchronous>, transform_indices = @transform_11, window_bounds = array<i64: 1, 128>}, {transform_indices = @transform_12, window_bounds = array<i64: 6, 8, 128>}]} {
    %c0 = arith.constant 0 : index
    %c0_0 = arith.constant 0 : index
    %c0_1 = arith.constant 0 : index
    %0 = vector.load %arg1[%c0, %c0_0, %c0_1] : memref<6x8x16xf32, #tpu.memory_space<vmem>>, vector<6x8x16xf32>
    %1 = vector.shape_cast %0 : vector<6x8x16xf32> to vector<48x16xf32>
    %c0_2 = arith.constant 0 : index
    %c0_3 = arith.constant 0 : index
    %2 = vector.load %arg7[%c0_2, %c0_3] : memref<16x512xf32, #tpu.memory_space<vmem>>, vector<16x512xf32>
    %cst = arith.constant dense<0.000000e+00> : vector<48x512xf32>
    %3 = tpu.matmul %1, %2, %cst {dimension_numbers = #tpu.dot_dimension_numbers<[1], [0], [0], [1], [0, 0, 1, 1], [], []>} : vector<48x16xf32>, vector<16x512xf32>, vector<48x512xf32> -> vector<48x512xf32>
    %4 = vector.shape_cast %3 : vector<48x512xf32> to vector<6x8x512xf32>
    %c0_4 = arith.constant 0 : index
    %c0_5 = arith.constant 0 : index
    %5 = vector.load %arg10[%c0_4, %c0_5] : memref<1x512xf32, #tpu.memory_space<vmem>>, vector<1x512xf32>
    %6 = vector.shape_cast %5 : vector<1x512xf32> to vector<1x1x512xf32>
    %7 = vector.broadcast %6 : vector<1x1x512xf32> to vector<6x8x512xf32>
    %8 = arith.addf %4, %7 : vector<6x8x512xf32>
    %c0_6 = arith.constant 0 : index
    %c0_7 = arith.constant 0 : index
    %c0_8 = arith.constant 0 : index
    %9 = vector.load %arg14[%c0_6, %c0_7, %c0_8] : memref<6x8x512xf32, #tpu.memory_space<vmem>>, vector<6x8x512xf32>
    tpu.vector_store %arg14[%c0_6, %c0_7, %c0_8], %8 {strides = array<i32>} : memref<6x8x512xf32, #tpu.memory_space<vmem>>, vector<6x8x512xf32>,
    %c0_9 = arith.constant 0 : index
    %c0_10 = arith.constant 0 : index
    %c0_11 = arith.constant 0 : index
    %10 = vector.load %arg2[%c0_9, %c0_10, %c0_11] : memref<8x8x128xf32, #tpu.memory_space<vmem>>, vector<8x8x128xf32>
    %11 = vector.shape_cast %10 : vector<8x8x128xf32> to vector<64x128xf32>
    %c0_12 = arith.constant 0 : index
    %c0_13 = arith.constant 0 : index
    %12 = vector.load %arg6[%c0_12, %c0_13] : memref<128x128xf32, #tpu.memory_space<vmem>>, vector<128x128xf32>
    %cst_14 = arith.constant dense<0.000000e+00> : vector<64x128xf32>
    %13 = tpu.matmul %11, %12, %cst_14 {dimension_numbers = #tpu.dot_dimension_numbers<[1], [0], [0], [1], [0, 0, 1, 1], [], []>} : vector<64x128xf32>, vector<128x128xf32>, vector<64x128xf32> -> vector<64x128xf32>
    %14 = vector.shape_cast %13 : vector<64x128xf32> to vector<8x8x128xf32>
    %c0_15 = arith.constant 0 : index
    %c0_16 = arith.constant 0 : index
    %c0_17 = arith.constant 0 : index
    %15 = vector.load %arg15[%c0_15, %c0_16, %c0_17] : memref<8x8x128xf32, #tpu.memory_space<vmem>>, vector<8x8x128xf32>
    tpu.vector_store %arg15[%c0_15, %c0_16, %c0_17], %14 {strides = array<i32>} : memref<8x8x128xf32, #tpu.memory_space<vmem>>, vector<8x8x128xf32>,
    %c0_18 = arith.constant 0 : index
    %c0_19 = arith.constant 0 : index
    %16 = vector.load %arg4[%c0_18, %c0_19] : memref<8x128xf32, #tpu.memory_space<vmem>>, vector<8x128xf32>
    %c0_20 = arith.constant 0 : index
    %c0_21 = arith.constant 0 : index
    %17 = vector.load %arg16[%c0_20, %c0_21] : memref<8x128xf32, #tpu.memory_space<vmem>>, vector<8x128xf32>
    tpu.vector_store %arg16[%c0_20, %c0_21], %16 {strides = array<i32>} : memref<8x128xf32, #tpu.memory_space<vmem>>, vector<8x128xf32>,
    %c0_22 = arith.constant 0 : index
    %c0_23 = arith.constant 0 : index
    %18 = vector.load %arg5[%c0_22, %c0_23] : memref<8x128xf32, #tpu.memory_space<vmem>>, vector<8x128xf32>
    %c0_24 = arith.constant 0 : index
    %c0_25 = arith.constant 0 : index
    %19 = vector.load %arg17[%c0_24, %c0_25] : memref<8x128xf32, #tpu.memory_space<vmem>>, vector<8x128xf32>
    tpu.vector_store %arg17[%c0_24, %c0_25], %18 {strides = array<i32>} : memref<8x128xf32, #tpu.memory_space<vmem>>, vector<8x128xf32>,
    %c0_26 = arith.constant 0 : index
    %c0_27 = arith.constant 0 : index
    %20 = vector.load %arg3[%c0_26, %c0_27] : memref<8x8xf32, #tpu.memory_space<vmem>>, vector<8x8xf32>
    %cst_28 = arith.constant 0.000000e+00 : f32
    %21 = vector.broadcast %cst_28 : f32 to vector<8x8xf32>
    %22 = arith.cmpf ogt, %20, %21 : vector<8x8xf32>
    %23 = vector.shape_cast %22 : vector<8x8xi1> to vector<8x1x8xi1>
    %c0_29 = arith.constant 0 : index
    %c0_30 = arith.constant 0 : index
    %24 = vector.load %arg12[%c0_29, %c0_30] : memref<1x128xf32, #tpu.memory_space<vmem>>, vector<1x128xf32>
    %25 = vector.shape_cast %24 : vector<1x128xf32> to vector<1x128xf32>
    %26 = vector.broadcast %25 : vector<1x128xf32> to vector<8x128xf32>
    %cst_31 = arith.constant -1.000000e+30 : f32
    %c0_i32 = arith.constant 0 : i32
    %c0_32 = arith.constant 0 : index
    %c0_33 = arith.constant 0 : index
    %27 = vector.load %arg16[%c0_32, %c0_33] : memref<8x128xf32, #tpu.memory_space<vmem>>, vector<8x128xf32>
    %c0_34 = arith.constant 0 : index
    %c0_35 = arith.constant 0 : index
    %28 = vector.load %arg17[%c0_34, %c0_35] : memref<8x128xf32, #tpu.memory_space<vmem>>, vector<8x128xf32>
    %29 = vector.shape_cast %27 : vector<8x128xf32> to vector<8x1x128xf32>
    %c0_36 = arith.constant 0 : index
    %c0_37 = arith.constant 0 : index
    %c0_38 = arith.constant 0 : index
    %30 = vector.load %arg15[%c0_36, %c0_37, %c0_38] : memref<8x8x128xf32, #tpu.memory_space<vmem>>, vector<8x8x128xf32>
    "tpu.trace_start"() <{level = 10 : i32, message = "bqk,btk->bqt"}> : () -> ()
    %cst_39 = arith.constant dense<0.000000e+00> : vector<8x1x8xf32>
    %31 = tpu.matmul %29, %30, %cst_39 {dimension_numbers = #tpu.dot_dimension_numbers<[2], [2], [1], [1], [0, 0, 0, 1, 1, 1], [0], [0]>} : vector<8x1x128xf32>, vector<8x8x128xf32>, vector<8x1x8xf32> -> vector<8x1x8xf32>
    "tpu.trace_stop"() : () -> ()
    %32 = vector.broadcast %cst_31 : f32 to vector<8x1x8xf32>
    %33 = arith.select %23, %31, %32 : vector<8x1x8xi1>, vector<8x1x8xf32>
    %cst_40 = arith.constant dense<0xFF800000> : vector<8x1xf32>
    %34 = vector.multi_reduction <maximumf>, %33, %cst_40 [2] : vector<8x1x8xf32> to vector<8x1xf32>
    %35 = vector.shape_cast %34 : vector<8x1xf32> to vector<8x1x1xf32>
    %36 = vector.broadcast %35 : vector<8x1x1xf32> to vector<8x1x8xf32>
    %37 = arith.subf %33, %36 : vector<8x1x8xf32>
    %38 = math.exp %37 : vector<8x1x8xf32>
    %cst_41 = arith.constant dense<0.000000e+00> : vector<8x1xf32>
    %39 = vector.multi_reduction <add>, %38, %cst_41 [2] : vector<8x1x8xf32> to vector<8x1xf32>
    %40 = vector.shape_cast %39 : vector<8x1xf32> to vector<8x1x1xf32>
    %41 = vector.broadcast %40 : vector<8x1x1xf32> to vector<8x1x8xf32>
    %42 = arith.divf %38, %41 : vector<8x1x8xf32>
    %c0_42 = arith.constant 0 : index
    %c0_43 = arith.constant 0 : index
    %c0_44 = arith.constant 0 : index
    %43 = vector.load %arg2[%c0_42, %c0_43, %c0_44] : memref<8x8x128xf32, #tpu.memory_space<vmem>>, vector<8x8x128xf32>
    "tpu.trace_start"() <{level = 10 : i32, message = "bqt,bth->bqh"}> : () -> ()
    %cst_45 = arith.constant dense<0.000000e+00> : vector<8x1x128xf32>
    %44 = tpu.matmul %42, %43, %cst_45 {dimension_numbers = #tpu.dot_dimension_numbers<[2], [1], [1], [2], [0, 0, 0, 1, 1, 2], [0], [0]>} : vector<8x1x8xf32>, vector<8x8x128xf32>, vector<8x1x128xf32> -> vector<8x1x128xf32>
    "tpu.trace_stop"() : () -> ()
    %45 = vector.shape_cast %44 : vector<8x1x128xf32> to vector<8x128xf32>
    %46 = arith.index_cast %c0_i32 : i32 to index
    %c0_46 = arith.constant 0 : index
    %c0_47 = arith.constant 0 : index
    %47 = vector.load %arg14[%46, %c0_46, %c0_47] : memref<6x8x512xf32, #tpu.memory_space<vmem>>, vector<1x8x512xf32>
    %48 = vector.shape_cast %47 : vector<1x8x512xf32> to vector<8x512xf32>
    %c0_48 = arith.constant 0 : index
    %c0_49 = arith.constant 0 : index
    %49 = vector.load %arg8[%c0_48, %c0_49] : memref<128x512xf32, #tpu.memory_space<vmem>>, vector<128x512xf32>
    %cst_50 = arith.constant dense<0.000000e+00> : vector<8x512xf32>
    %50 = tpu.matmul %45, %49, %cst_50 {dimension_numbers = #tpu.dot_dimension_numbers<[1], [0], [0], [1], [0, 0, 1, 1], [], []>} : vector<8x128xf32>, vector<128x512xf32>, vector<8x512xf32> -> vector<8x512xf32>
    %51 = arith.addf %48, %50 : vector<8x512xf32>
    %c0_51 = arith.constant 0 : index
    %c0_52 = arith.constant 0 : index
    %52 = vector.load %arg9[%c0_51, %c0_52] : memref<128x512xf32, #tpu.memory_space<vmem>>, vector<128x512xf32>
    %cst_53 = arith.constant dense<0.000000e+00> : vector<8x512xf32>
    %53 = tpu.matmul %27, %52, %cst_53 {dimension_numbers = #tpu.dot_dimension_numbers<[1], [0], [0], [1], [0, 0, 1, 1], [], []>} : vector<8x128xf32>, vector<128x512xf32>, vector<8x512xf32> -> vector<8x512xf32>
    %54 = arith.addf %51, %53 : vector<8x512xf32>
    %55 = vector.extract_strided_slice %54 {offsets = [0, 0], sizes = [8, 128], strides = [1, 1]} : vector<8x512xf32> to vector<8x128xf32>
    %56 = arith.negf %55 : vector<8x128xf32>
    %57 = math.exp %56 : vector<8x128xf32>
    %cst_54 = arith.constant 1.000000e+00 : f32
    %58 = vector.broadcast %cst_54 : f32 to vector<8x128xf32>
    %59 = arith.addf %58, %57 : vector<8x128xf32>
    %60 = arith.divf %58, %59 : vector<8x128xf32>
    %61 = vector.extract_strided_slice %54 {offsets = [0, 128], sizes = [8, 128], strides = [1, 1]} : vector<8x512xf32> to vector<8x128xf32>
    %62 = arith.negf %61 : vector<8x128xf32>
    %63 = math.exp %62 : vector<8x128xf32>
    %cst_55 = arith.constant 1.000000e+00 : f32
    %64 = vector.broadcast %cst_55 : f32 to vector<8x128xf32>
    %65 = arith.addf %64, %63 : vector<8x128xf32>
    %66 = arith.divf %64, %65 : vector<8x128xf32>
    %67 = vector.extract_strided_slice %54 {offsets = [0, 256], sizes = [8, 128], strides = [1, 1]} : vector<8x512xf32> to vector<8x128xf32>
    %68 = math.tanh %67 : vector<8x128xf32>
    %69 = vector.extract_strided_slice %54 {offsets = [0, 384], sizes = [8, 128], strides = [1, 1]} : vector<8x512xf32> to vector<8x128xf32>
    %70 = arith.negf %69 : vector<8x128xf32>
    %71 = math.exp %70 : vector<8x128xf32>
    %cst_56 = arith.constant 1.000000e+00 : f32
    %72 = vector.broadcast %cst_56 : f32 to vector<8x128xf32>
    %73 = arith.addf %72, %71 : vector<8x128xf32>
    %74 = arith.divf %72, %73 : vector<8x128xf32>
    %75 = arith.mulf %66, %28 : vector<8x128xf32>
    %76 = arith.mulf %60, %68 : vector<8x128xf32>
    %77 = arith.addf %75, %76 : vector<8x128xf32>
    %78 = math.tanh %77 : vector<8x128xf32>
    %79 = arith.mulf %74, %78 : vector<8x128xf32>
    %c0_57 = arith.constant 0 : index
    %c0_58 = arith.constant 0 : index
    %80 = vector.load %arg16[%c0_57, %c0_58] : memref<8x128xf32, #tpu.memory_space<vmem>>, vector<8x128xf32>
    tpu.vector_store %arg16[%c0_57, %c0_58], %79 {strides = array<i32>} : memref<8x128xf32, #tpu.memory_space<vmem>>, vector<8x128xf32>,
    %c0_59 = arith.constant 0 : index
    %c0_60 = arith.constant 0 : index
    %81 = vector.load %arg17[%c0_59, %c0_60] : memref<8x128xf32, #tpu.memory_space<vmem>>, vector<8x128xf32>
    tpu.vector_store %arg17[%c0_59, %c0_60], %77 {strides = array<i32>} : memref<8x128xf32, #tpu.memory_space<vmem>>, vector<8x128xf32>,
    %c0_61 = arith.constant 0 : index
    %c0_62 = arith.constant 0 : index
    %82 = vector.load %arg11[%c0_61, %c0_62] : memref<128x128xf32, #tpu.memory_space<vmem>>, vector<128x128xf32>
    %cst_63 = arith.constant dense<0.000000e+00> : vector<8x128xf32>
    %83 = tpu.matmul %79, %82, %cst_63 {dimension_numbers = #tpu.dot_dimension_numbers<[1], [0], [0], [1], [0, 0, 1, 1], [], []>} : vector<8x128xf32>, vector<128x128xf32>, vector<8x128xf32> -> vector<8x128xf32>
    %84 = arith.addf %83, %26 : vector<8x128xf32>
    %85 = arith.index_cast %c0_i32 : i32 to index
    %c0_64 = arith.constant 0 : index
    %c0_65 = arith.constant 0 : index
    %86 = vector.load %arg13[%85, %c0_64, %c0_65] : memref<6x8x128xf32, #tpu.memory_space<vmem>>, vector<1x8x128xf32>
    %87 = vector.shape_cast %86 : vector<1x8x128xf32> to vector<8x128xf32>
    %88 = vector.shape_cast %84 : vector<8x128xf32> to vector<1x8x128xf32>
    tpu.vector_store %arg13[%85, %c0_64, %c0_65], %88 {strides = array<i32>} : memref<6x8x128xf32, #tpu.memory_space<vmem>>, vector<1x8x128xf32>,
    %c1_i32 = arith.constant 1 : i32
    %c0_66 = arith.constant 0 : index
    %c0_67 = arith.constant 0 : index
    %89 = vector.load %arg16[%c0_66, %c0_67] : memref<8x128xf32, #tpu.memory_space<vmem>>, vector<8x128xf32>
    %c0_68 = arith.constant 0 : index
    %c0_69 = arith.constant 0 : index
    %90 = vector.load %arg17[%c0_68, %c0_69] : memref<8x128xf32, #tpu.memory_space<vmem>>, vector<8x128xf32>
    %91 = vector.shape_cast %89 : vector<8x128xf32> to vector<8x1x128xf32>
    %c0_70 = arith.constant 0 : index
    %c0_71 = arith.constant 0 : index
    %c0_72 = arith.constant 0 : index
    %92 = vector.load %arg15[%c0_70, %c0_71, %c0_72] : memref<8x8x128xf32, #tpu.memory_space<vmem>>, vector<8x8x128xf32>
    "tpu.trace_start"() <{level = 10 : i32, message = "bqk,btk->bqt"}> : () -> ()
    %cst_73 = arith.constant dense<0.000000e+00> : vector<8x1x8xf32>
    %93 = tpu.matmul %91, %92, %cst_73 {dimension_numbers = #tpu.dot_dimension_numbers<[2], [2], [1], [1], [0, 0, 0, 1, 1, 1], [0], [0]>} : vector<8x1x128xf32>, vector<8x8x128xf32>, vector<8x1x8xf32> -> vector<8x1x8xf32>
    "tpu.trace_stop"() : () -> ()
    %94 = vector.broadcast %cst_31 : f32 to vector<8x1x8xf32>
    %95 = arith.select %23, %93, %94 : vector<8x1x8xi1>, vector<8x1x8xf32>
    %cst_74 = arith.constant dense<0xFF800000> : vector<8x1xf32>
    %96 = vector.multi_reduction <maximumf>, %95, %cst_74 [2] : vector<8x1x8xf32> to vector<8x1xf32>
    %97 = vector.shape_cast %96 : vector<8x1xf32> to vector<8x1x1xf32>
    %98 = vector.broadcast %97 : vector<8x1x1xf32> to vector<8x1x8xf32>
    %99 = arith.subf %95, %98 : vector<8x1x8xf32>
    %100 = math.exp %99 : vector<8x1x8xf32>
    %cst_75 = arith.constant dense<0.000000e+00> : vector<8x1xf32>
    %101 = vector.multi_reduction <add>, %100, %cst_75 [2] : vector<8x1x8xf32> to vector<8x1xf32>
    %102 = vector.shape_cast %101 : vector<8x1xf32> to vector<8x1x1xf32>
    %103 = vector.broadcast %102 : vector<8x1x1xf32> to vector<8x1x8xf32>
    %104 = arith.divf %100, %103 : vector<8x1x8xf32>
    %c0_76 = arith.constant 0 : index
    %c0_77 = arith.constant 0 : index
    %c0_78 = arith.constant 0 : index
    %105 = vector.load %arg2[%c0_76, %c0_77, %c0_78] : memref<8x8x128xf32, #tpu.memory_space<vmem>>, vector<8x8x128xf32>
    "tpu.trace_start"() <{level = 10 : i32, message = "bqt,bth->bqh"}> : () -> ()
    %cst_79 = arith.constant dense<0.000000e+00> : vector<8x1x128xf32>
    %106 = tpu.matmul %104, %105, %cst_79 {dimension_numbers = #tpu.dot_dimension_numbers<[2], [1], [1], [2], [0, 0, 0, 1, 1, 2], [0], [0]>} : vector<8x1x8xf32>, vector<8x8x128xf32>, vector<8x1x128xf32> -> vector<8x1x128xf32>
    "tpu.trace_stop"() : () -> ()
    %107 = vector.shape_cast %106 : vector<8x1x128xf32> to vector<8x128xf32>
    %108 = arith.index_cast %c1_i32 : i32 to index
    %c0_80 = arith.constant 0 : index
    %c0_81 = arith.constant 0 : index
    %109 = vector.load %arg14[%108, %c0_80, %c0_81] : memref<6x8x512xf32, #tpu.memory_space<vmem>>, vector<1x8x512xf32>
    %110 = vector.shape_cast %109 : vector<1x8x512xf32> to vector<8x512xf32>
    %c0_82 = arith.constant 0 : index
    %c0_83 = arith.constant 0 : index
    %111 = vector.load %arg8[%c0_82, %c0_83] : memref<128x512xf32, #tpu.memory_space<vmem>>, vector<128x512xf32>
    %cst_84 = arith.constant dense<0.000000e+00> : vector<8x512xf32>
    %112 = tpu.matmul %107, %111, %cst_84 {dimension_numbers = #tpu.dot_dimension_numbers<[1], [0], [0], [1], [0, 0, 1, 1], [], []>} : vector<8x128xf32>, vector<128x512xf32>, vector<8x512xf32> -> vector<8x512xf32>
    %113 = arith.addf %110, %112 : vector<8x512xf32>
    %c0_85 = arith.constant 0 : index
    %c0_86 = arith.constant 0 : index
    %114 = vector.load %arg9[%c0_85, %c0_86] : memref<128x512xf32, #tpu.memory_space<vmem>>, vector<128x512xf32>
    %cst_87 = arith.constant dense<0.000000e+00> : vector<8x512xf32>
    %115 = tpu.matmul %89, %114, %cst_87 {dimension_numbers = #tpu.dot_dimension_numbers<[1], [0], [0], [1], [0, 0, 1, 1], [], []>} : vector<8x128xf32>, vector<128x512xf32>, vector<8x512xf32> -> vector<8x512xf32>
    %116 = arith.addf %113, %115 : vector<8x512xf32>
    %117 = vector.extract_strided_slice %116 {offsets = [0, 0], sizes = [8, 128], strides = [1, 1]} : vector<8x512xf32> to vector<8x128xf32>
    %118 = arith.negf %117 : vector<8x128xf32>
    %119 = math.exp %118 : vector<8x128xf32>
    %cst_88 = arith.constant 1.000000e+00 : f32
    %120 = vector.broadcast %cst_88 : f32 to vector<8x128xf32>
    %121 = arith.addf %120, %119 : vector<8x128xf32>
    %122 = arith.divf %120, %121 : vector<8x128xf32>
    %123 = vector.extract_strided_slice %116 {offsets = [0, 128], sizes = [8, 128], strides = [1, 1]} : vector<8x512xf32> to vector<8x128xf32>
    %124 = arith.negf %123 : vector<8x128xf32>
    %125 = math.exp %124 : vector<8x128xf32>
    %cst_89 = arith.constant 1.000000e+00 : f32
    %126 = vector.broadcast %cst_89 : f32 to vector<8x128xf32>
    %127 = arith.addf %126, %125 : vector<8x128xf32>
    %128 = arith.divf %126, %127 : vector<8x128xf32>
    %129 = vector.extract_strided_slice %116 {offsets = [0, 256], sizes = [8, 128], strides = [1, 1]} : vector<8x512xf32> to vector<8x128xf32>
    %130 = math.tanh %129 : vector<8x128xf32>
    %131 = vector.extract_strided_slice %116 {offsets = [0, 384], sizes = [8, 128], strides = [1, 1]} : vector<8x512xf32> to vector<8x128xf32>
    %132 = arith.negf %131 : vector<8x128xf32>
    %133 = math.exp %132 : vector<8x128xf32>
    %cst_90 = arith.constant 1.000000e+00 : f32
    %134 = vector.broadcast %cst_90 : f32 to vector<8x128xf32>
    %135 = arith.addf %134, %133 : vector<8x128xf32>
    %136 = arith.divf %134, %135 : vector<8x128xf32>
    %137 = arith.mulf %128, %90 : vector<8x128xf32>
    %138 = arith.mulf %122, %130 : vector<8x128xf32>
    %139 = arith.addf %137, %138 : vector<8x128xf32>
    %140 = math.tanh %139 : vector<8x128xf32>
    %141 = arith.mulf %136, %140 : vector<8x128xf32>
    %c0_91 = arith.constant 0 : index
    %c0_92 = arith.constant 0 : index
    %142 = vector.load %arg16[%c0_91, %c0_92] : memref<8x128xf32, #tpu.memory_space<vmem>>, vector<8x128xf32>
    tpu.vector_store %arg16[%c0_91, %c0_92], %141 {strides = array<i32>} : memref<8x128xf32, #tpu.memory_space<vmem>>, vector<8x128xf32>,
    %c0_93 = arith.constant 0 : index
    %c0_94 = arith.constant 0 : index
    %143 = vector.load %arg17[%c0_93, %c0_94] : memref<8x128xf32, #tpu.memory_space<vmem>>, vector<8x128xf32>
    tpu.vector_store %arg17[%c0_93, %c0_94], %139 {strides = array<i32>} : memref<8x128xf32, #tpu.memory_space<vmem>>, vector<8x128xf32>,
    %c0_95 = arith.constant 0 : index
    %c0_96 = arith.constant 0 : index
    %144 = vector.load %arg11[%c0_95, %c0_96] : memref<128x128xf32, #tpu.memory_space<vmem>>, vector<128x128xf32>
    %cst_97 = arith.constant dense<0.000000e+00> : vector<8x128xf32>
    %145 = tpu.matmul %141, %144, %cst_97 {dimension_numbers = #tpu.dot_dimension_numbers<[1], [0], [0], [1], [0, 0, 1, 1], [], []>} : vector<8x128xf32>, vector<128x128xf32>, vector<8x128xf32> -> vector<8x128xf32>
    %146 = arith.addf %145, %26 : vector<8x128xf32>
    %147 = arith.index_cast %c1_i32 : i32 to index
    %c0_98 = arith.constant 0 : index
    %c0_99 = arith.constant 0 : index
    %148 = vector.load %arg13[%147, %c0_98, %c0_99] : memref<6x8x128xf32, #tpu.memory_space<vmem>>, vector<1x8x128xf32>
    %149 = vector.shape_cast %148 : vector<1x8x128xf32> to vector<8x128xf32>
    %150 = vector.shape_cast %146 : vector<8x128xf32> to vector<1x8x128xf32>
    tpu.vector_store %arg13[%147, %c0_98, %c0_99], %150 {strides = array<i32>} : memref<6x8x128xf32, #tpu.memory_space<vmem>>, vector<1x8x128xf32>,
    %c2_i32 = arith.constant 2 : i32
    %c0_100 = arith.constant 0 : index
    %c0_101 = arith.constant 0 : index
    %151 = vector.load %arg16[%c0_100, %c0_101] : memref<8x128xf32, #tpu.memory_space<vmem>>, vector<8x128xf32>
    %c0_102 = arith.constant 0 : index
    %c0_103 = arith.constant 0 : index
    %152 = vector.load %arg17[%c0_102, %c0_103] : memref<8x128xf32, #tpu.memory_space<vmem>>, vector<8x128xf32>
    %153 = vector.shape_cast %151 : vector<8x128xf32> to vector<8x1x128xf32>
    %c0_104 = arith.constant 0 : index
    %c0_105 = arith.constant 0 : index
    %c0_106 = arith.constant 0 : index
    %154 = vector.load %arg15[%c0_104, %c0_105, %c0_106] : memref<8x8x128xf32, #tpu.memory_space<vmem>>, vector<8x8x128xf32>
    "tpu.trace_start"() <{level = 10 : i32, message = "bqk,btk->bqt"}> : () -> ()
    %cst_107 = arith.constant dense<0.000000e+00> : vector<8x1x8xf32>
    %155 = tpu.matmul %153, %154, %cst_107 {dimension_numbers = #tpu.dot_dimension_numbers<[2], [2], [1], [1], [0, 0, 0, 1, 1, 1], [0], [0]>} : vector<8x1x128xf32>, vector<8x8x128xf32>, vector<8x1x8xf32> -> vector<8x1x8xf32>
    "tpu.trace_stop"() : () -> ()
    %156 = vector.broadcast %cst_31 : f32 to vector<8x1x8xf32>
    %157 = arith.select %23, %155, %156 : vector<8x1x8xi1>, vector<8x1x8xf32>
    %cst_108 = arith.constant dense<0xFF800000> : vector<8x1xf32>
    %158 = vector.multi_reduction <maximumf>, %157, %cst_108 [2] : vector<8x1x8xf32> to vector<8x1xf32>
    %159 = vector.shape_cast %158 : vector<8x1xf32> to vector<8x1x1xf32>
    %160 = vector.broadcast %159 : vector<8x1x1xf32> to vector<8x1x8xf32>
    %161 = arith.subf %157, %160 : vector<8x1x8xf32>
    %162 = math.exp %161 : vector<8x1x8xf32>
    %cst_109 = arith.constant dense<0.000000e+00> : vector<8x1xf32>
    %163 = vector.multi_reduction <add>, %162, %cst_109 [2] : vector<8x1x8xf32> to vector<8x1xf32>
    %164 = vector.shape_cast %163 : vector<8x1xf32> to vector<8x1x1xf32>
    %165 = vector.broadcast %164 : vector<8x1x1xf32> to vector<8x1x8xf32>
    %166 = arith.divf %162, %165 : vector<8x1x8xf32>
    %c0_110 = arith.constant 0 : index
    %c0_111 = arith.constant 0 : index
    %c0_112 = arith.constant 0 : index
    %167 = vector.load %arg2[%c0_110, %c0_111, %c0_112] : memref<8x8x128xf32, #tpu.memory_space<vmem>>, vector<8x8x128xf32>
    "tpu.trace_start"() <{level = 10 : i32, message = "bqt,bth->bqh"}> : () -> ()
    %cst_113 = arith.constant dense<0.000000e+00> : vector<8x1x128xf32>
    %168 = tpu.matmul %166, %167, %cst_113 {dimension_numbers = #tpu.dot_dimension_numbers<[2], [1], [1], [2], [0, 0, 0, 1, 1, 2], [0], [0]>} : vector<8x1x8xf32>, vector<8x8x128xf32>, vector<8x1x128xf32> -> vector<8x1x128xf32>
    "tpu.trace_stop"() : () -> ()
    %169 = vector.shape_cast %168 : vector<8x1x128xf32> to vector<8x128xf32>
    %170 = arith.index_cast %c2_i32 : i32 to index
    %c0_114 = arith.constant 0 : index
    %c0_115 = arith.constant 0 : index
    %171 = vector.load %arg14[%170, %c0_114, %c0_115] : memref<6x8x512xf32, #tpu.memory_space<vmem>>, vector<1x8x512xf32>
    %172 = vector.shape_cast %171 : vector<1x8x512xf32> to vector<8x512xf32>
    %c0_116 = arith.constant 0 : index
    %c0_117 = arith.constant 0 : index
    %173 = vector.load %arg8[%c0_116, %c0_117] : memref<128x512xf32, #tpu.memory_space<vmem>>, vector<128x512xf32>
    %cst_118 = arith.constant dense<0.000000e+00> : vector<8x512xf32>
    %174 = tpu.matmul %169, %173, %cst_118 {dimension_numbers = #tpu.dot_dimension_numbers<[1], [0], [0], [1], [0, 0, 1, 1], [], []>} : vector<8x128xf32>, vector<128x512xf32>, vector<8x512xf32> -> vector<8x512xf32>
    %175 = arith.addf %172, %174 : vector<8x512xf32>
    %c0_119 = arith.constant 0 : index
    %c0_120 = arith.constant 0 : index
    %176 = vector.load %arg9[%c0_119, %c0_120] : memref<128x512xf32, #tpu.memory_space<vmem>>, vector<128x512xf32>
    %cst_121 = arith.constant dense<0.000000e+00> : vector<8x512xf32>
    %177 = tpu.matmul %151, %176, %cst_121 {dimension_numbers = #tpu.dot_dimension_numbers<[1], [0], [0], [1], [0, 0, 1, 1], [], []>} : vector<8x128xf32>, vector<128x512xf32>, vector<8x512xf32> -> vector<8x512xf32>
    %178 = arith.addf %175, %177 : vector<8x512xf32>
    %179 = vector.extract_strided_slice %178 {offsets = [0, 0], sizes = [8, 128], strides = [1, 1]} : vector<8x512xf32> to vector<8x128xf32>
    %180 = arith.negf %179 : vector<8x128xf32>
    %181 = math.exp %180 : vector<8x128xf32>
    %cst_122 = arith.constant 1.000000e+00 : f32
    %182 = vector.broadcast %cst_122 : f32 to vector<8x128xf32>
    %183 = arith.addf %182, %181 : vector<8x128xf32>
    %184 = arith.divf %182, %183 : vector<8x128xf32>
    %185 = vector.extract_strided_slice %178 {offsets = [0, 128], sizes = [8, 128], strides = [1, 1]} : vector<8x512xf32> to vector<8x128xf32>
    %186 = arith.negf %185 : vector<8x128xf32>
    %187 = math.exp %186 : vector<8x128xf32>
    %cst_123 = arith.constant 1.000000e+00 : f32
    %188 = vector.broadcast %cst_123 : f32 to vector<8x128xf32>
    %189 = arith.addf %188, %187 : vector<8x128xf32>
    %190 = arith.divf %188, %189 : vector<8x128xf32>
    %191 = vector.extract_strided_slice %178 {offsets = [0, 256], sizes = [8, 128], strides = [1, 1]} : vector<8x512xf32> to vector<8x128xf32>
    %192 = math.tanh %191 : vector<8x128xf32>
    %193 = vector.extract_strided_slice %178 {offsets = [0, 384], sizes = [8, 128], strides = [1, 1]} : vector<8x512xf32> to vector<8x128xf32>
    %194 = arith.negf %193 : vector<8x128xf32>
    %195 = math.exp %194 : vector<8x128xf32>
    %cst_124 = arith.constant 1.000000e+00 : f32
    %196 = vector.broadcast %cst_124 : f32 to vector<8x128xf32>
    %197 = arith.addf %196, %195 : vector<8x128xf32>
    %198 = arith.divf %196, %197 : vector<8x128xf32>
    %199 = arith.mulf %190, %152 : vector<8x128xf32>
    %200 = arith.mulf %184, %192 : vector<8x128xf32>
    %201 = arith.addf %199, %200 : vector<8x128xf32>
    %202 = math.tanh %201 : vector<8x128xf32>
    %203 = arith.mulf %198, %202 : vector<8x128xf32>
    %c0_125 = arith.constant 0 : index
    %c0_126 = arith.constant 0 : index
    %204 = vector.load %arg16[%c0_125, %c0_126] : memref<8x128xf32, #tpu.memory_space<vmem>>, vector<8x128xf32>
    tpu.vector_store %arg16[%c0_125, %c0_126], %203 {strides = array<i32>} : memref<8x128xf32, #tpu.memory_space<vmem>>, vector<8x128xf32>,
    %c0_127 = arith.constant 0 : index
    %c0_128 = arith.constant 0 : index
    %205 = vector.load %arg17[%c0_127, %c0_128] : memref<8x128xf32, #tpu.memory_space<vmem>>, vector<8x128xf32>
    tpu.vector_store %arg17[%c0_127, %c0_128], %201 {strides = array<i32>} : memref<8x128xf32, #tpu.memory_space<vmem>>, vector<8x128xf32>,
    %c0_129 = arith.constant 0 : index
    %c0_130 = arith.constant 0 : index
    %206 = vector.load %arg11[%c0_129, %c0_130] : memref<128x128xf32, #tpu.memory_space<vmem>>, vector<128x128xf32>
    %cst_131 = arith.constant dense<0.000000e+00> : vector<8x128xf32>
    %207 = tpu.matmul %203, %206, %cst_131 {dimension_numbers = #tpu.dot_dimension_numbers<[1], [0], [0], [1], [0, 0, 1, 1], [], []>} : vector<8x128xf32>, vector<128x128xf32>, vector<8x128xf32> -> vector<8x128xf32>
    %208 = arith.addf %207, %26 : vector<8x128xf32>
    %209 = arith.index_cast %c2_i32 : i32 to index
    %c0_132 = arith.constant 0 : index
    %c0_133 = arith.constant 0 : index
    %210 = vector.load %arg13[%209, %c0_132, %c0_133] : memref<6x8x128xf32, #tpu.memory_space<vmem>>, vector<1x8x128xf32>
    %211 = vector.shape_cast %210 : vector<1x8x128xf32> to vector<8x128xf32>
    %212 = vector.shape_cast %208 : vector<8x128xf32> to vector<1x8x128xf32>
    tpu.vector_store %arg13[%209, %c0_132, %c0_133], %212 {strides = array<i32>} : memref<6x8x128xf32, #tpu.memory_space<vmem>>, vector<1x8x128xf32>,
    %c3_i32 = arith.constant 3 : i32
    %c0_134 = arith.constant 0 : index
    %c0_135 = arith.constant 0 : index
    %213 = vector.load %arg16[%c0_134, %c0_135] : memref<8x128xf32, #tpu.memory_space<vmem>>, vector<8x128xf32>
    %c0_136 = arith.constant 0 : index
    %c0_137 = arith.constant 0 : index
    %214 = vector.load %arg17[%c0_136, %c0_137] : memref<8x128xf32, #tpu.memory_space<vmem>>, vector<8x128xf32>
    %215 = vector.shape_cast %213 : vector<8x128xf32> to vector<8x1x128xf32>
    %c0_138 = arith.constant 0 : index
    %c0_139 = arith.constant 0 : index
    %c0_140 = arith.constant 0 : index
    %216 = vector.load %arg15[%c0_138, %c0_139, %c0_140] : memref<8x8x128xf32, #tpu.memory_space<vmem>>, vector<8x8x128xf32>
    "tpu.trace_start"() <{level = 10 : i32, message = "bqk,btk->bqt"}> : () -> ()
    %cst_141 = arith.constant dense<0.000000e+00> : vector<8x1x8xf32>
    %217 = tpu.matmul %215, %216, %cst_141 {dimension_numbers = #tpu.dot_dimension_numbers<[2], [2], [1], [1], [0, 0, 0, 1, 1, 1], [0], [0]>} : vector<8x1x128xf32>, vector<8x8x128xf32>, vector<8x1x8xf32> -> vector<8x1x8xf32>
    "tpu.trace_stop"() : () -> ()
    %218 = vector.broadcast %cst_31 : f32 to vector<8x1x8xf32>
    %219 = arith.select %23, %217, %218 : vector<8x1x8xi1>, vector<8x1x8xf32>
    %cst_142 = arith.constant dense<0xFF800000> : vector<8x1xf32>
    %220 = vector.multi_reduction <maximumf>, %219, %cst_142 [2] : vector<8x1x8xf32> to vector<8x1xf32>
    %221 = vector.shape_cast %220 : vector<8x1xf32> to vector<8x1x1xf32>
    %222 = vector.broadcast %221 : vector<8x1x1xf32> to vector<8x1x8xf32>
    %223 = arith.subf %219, %222 : vector<8x1x8xf32>
    %224 = math.exp %223 : vector<8x1x8xf32>
    %cst_143 = arith.constant dense<0.000000e+00> : vector<8x1xf32>
    %225 = vector.multi_reduction <add>, %224, %cst_143 [2] : vector<8x1x8xf32> to vector<8x1xf32>
    %226 = vector.shape_cast %225 : vector<8x1xf32> to vector<8x1x1xf32>
    %227 = vector.broadcast %226 : vector<8x1x1xf32> to vector<8x1x8xf32>
    %228 = arith.divf %224, %227 : vector<8x1x8xf32>
    %c0_144 = arith.constant 0 : index
    %c0_145 = arith.constant 0 : index
    %c0_146 = arith.constant 0 : index
    %229 = vector.load %arg2[%c0_144, %c0_145, %c0_146] : memref<8x8x128xf32, #tpu.memory_space<vmem>>, vector<8x8x128xf32>
    "tpu.trace_start"() <{level = 10 : i32, message = "bqt,bth->bqh"}> : () -> ()
    %cst_147 = arith.constant dense<0.000000e+00> : vector<8x1x128xf32>
    %230 = tpu.matmul %228, %229, %cst_147 {dimension_numbers = #tpu.dot_dimension_numbers<[2], [1], [1], [2], [0, 0, 0, 1, 1, 2], [0], [0]>} : vector<8x1x8xf32>, vector<8x8x128xf32>, vector<8x1x128xf32> -> vector<8x1x128xf32>
    "tpu.trace_stop"() : () -> ()
    %231 = vector.shape_cast %230 : vector<8x1x128xf32> to vector<8x128xf32>
    %232 = arith.index_cast %c3_i32 : i32 to index
    %c0_148 = arith.constant 0 : index
    %c0_149 = arith.constant 0 : index
    %233 = vector.load %arg14[%232, %c0_148, %c0_149] : memref<6x8x512xf32, #tpu.memory_space<vmem>>, vector<1x8x512xf32>
    %234 = vector.shape_cast %233 : vector<1x8x512xf32> to vector<8x512xf32>
    %c0_150 = arith.constant 0 : index
    %c0_151 = arith.constant 0 : index
    %235 = vector.load %arg8[%c0_150, %c0_151] : memref<128x512xf32, #tpu.memory_space<vmem>>, vector<128x512xf32>
    %cst_152 = arith.constant dense<0.000000e+00> : vector<8x512xf32>
    %236 = tpu.matmul %231, %235, %cst_152 {dimension_numbers = #tpu.dot_dimension_numbers<[1], [0], [0], [1], [0, 0, 1, 1], [], []>} : vector<8x128xf32>, vector<128x512xf32>, vector<8x512xf32> -> vector<8x512xf32>
    %237 = arith.addf %234, %236 : vector<8x512xf32>
    %c0_153 = arith.constant 0 : index
    %c0_154 = arith.constant 0 : index
    %238 = vector.load %arg9[%c0_153, %c0_154] : memref<128x512xf32, #tpu.memory_space<vmem>>, vector<128x512xf32>
    %cst_155 = arith.constant dense<0.000000e+00> : vector<8x512xf32>
    %239 = tpu.matmul %213, %238, %cst_155 {dimension_numbers = #tpu.dot_dimension_numbers<[1], [0], [0], [1], [0, 0, 1, 1], [], []>} : vector<8x128xf32>, vector<128x512xf32>, vector<8x512xf32> -> vector<8x512xf32>
    %240 = arith.addf %237, %239 : vector<8x512xf32>
    %241 = vector.extract_strided_slice %240 {offsets = [0, 0], sizes = [8, 128], strides = [1, 1]} : vector<8x512xf32> to vector<8x128xf32>
    %242 = arith.negf %241 : vector<8x128xf32>
    %243 = math.exp %242 : vector<8x128xf32>
    %cst_156 = arith.constant 1.000000e+00 : f32
    %244 = vector.broadcast %cst_156 : f32 to vector<8x128xf32>
    %245 = arith.addf %244, %243 : vector<8x128xf32>
    %246 = arith.divf %244, %245 : vector<8x128xf32>
    %247 = vector.extract_strided_slice %240 {offsets = [0, 128], sizes = [8, 128], strides = [1, 1]} : vector<8x512xf32> to vector<8x128xf32>
    %248 = arith.negf %247 : vector<8x128xf32>
    %249 = math.exp %248 : vector<8x128xf32>
    %cst_157 = arith.constant 1.000000e+00 : f32
    %250 = vector.broadcast %cst_157 : f32 to vector<8x128xf32>
    %251 = arith.addf %250, %249 : vector<8x128xf32>
    %252 = arith.divf %250, %251 : vector<8x128xf32>
    %253 = vector.extract_strided_slice %240 {offsets = [0, 256], sizes = [8, 128], strides = [1, 1]} : vector<8x512xf32> to vector<8x128xf32>
    %254 = math.tanh %253 : vector<8x128xf32>
    %255 = vector.extract_strided_slice %240 {offsets = [0, 384], sizes = [8, 128], strides = [1, 1]} : vector<8x512xf32> to vector<8x128xf32>
    %256 = arith.negf %255 : vector<8x128xf32>
    %257 = math.exp %256 : vector<8x128xf32>
    %cst_158 = arith.constant 1.000000e+00 : f32
    %258 = vector.broadcast %cst_158 : f32 to vector<8x128xf32>
    %259 = arith.addf %258, %257 : vector<8x128xf32>
    %260 = arith.divf %258, %259 : vector<8x128xf32>
    %261 = arith.mulf %252, %214 : vector<8x128xf32>
    %262 = arith.mulf %246, %254 : vector<8x128xf32>
    %263 = arith.addf %261, %262 : vector<8x128xf32>
    %264 = math.tanh %263 : vector<8x128xf32>
    %265 = arith.mulf %260, %264 : vector<8x128xf32>
    %c0_159 = arith.constant 0 : index
    %c0_160 = arith.constant 0 : index
    %266 = vector.load %arg16[%c0_159, %c0_160] : memref<8x128xf32, #tpu.memory_space<vmem>>, vector<8x128xf32>
    tpu.vector_store %arg16[%c0_159, %c0_160], %265 {strides = array<i32>} : memref<8x128xf32, #tpu.memory_space<vmem>>, vector<8x128xf32>,
    %c0_161 = arith.constant 0 : index
    %c0_162 = arith.constant 0 : index
    %267 = vector.load %arg17[%c0_161, %c0_162] : memref<8x128xf32, #tpu.memory_space<vmem>>, vector<8x128xf32>
    tpu.vector_store %arg17[%c0_161, %c0_162], %263 {strides = array<i32>} : memref<8x128xf32, #tpu.memory_space<vmem>>, vector<8x128xf32>,
    %c0_163 = arith.constant 0 : index
    %c0_164 = arith.constant 0 : index
    %268 = vector.load %arg11[%c0_163, %c0_164] : memref<128x128xf32, #tpu.memory_space<vmem>>, vector<128x128xf32>
    %cst_165 = arith.constant dense<0.000000e+00> : vector<8x128xf32>
    %269 = tpu.matmul %265, %268, %cst_165 {dimension_numbers = #tpu.dot_dimension_numbers<[1], [0], [0], [1], [0, 0, 1, 1], [], []>} : vector<8x128xf32>, vector<128x128xf32>, vector<8x128xf32> -> vector<8x128xf32>
    %270 = arith.addf %269, %26 : vector<8x128xf32>
    %271 = arith.index_cast %c3_i32 : i32 to index
    %c0_166 = arith.constant 0 : index
    %c0_167 = arith.constant 0 : index
    %272 = vector.load %arg13[%271, %c0_166, %c0_167] : memref<6x8x128xf32, #tpu.memory_space<vmem>>, vector<1x8x128xf32>
    %273 = vector.shape_cast %272 : vector<1x8x128xf32> to vector<8x128xf32>
    %274 = vector.shape_cast %270 : vector<8x128xf32> to vector<1x8x128xf32>
    tpu.vector_store %arg13[%271, %c0_166, %c0_167], %274 {strides = array<i32>} : memref<6x8x128xf32, #tpu.memory_space<vmem>>, vector<1x8x128xf32>,
    %c4_i32 = arith.constant 4 : i32
    %c0_168 = arith.constant 0 : index
    %c0_169 = arith.constant 0 : index
    %275 = vector.load %arg16[%c0_168, %c0_169] : memref<8x128xf32, #tpu.memory_space<vmem>>, vector<8x128xf32>
    %c0_170 = arith.constant 0 : index
    %c0_171 = arith.constant 0 : index
    %276 = vector.load %arg17[%c0_170, %c0_171] : memref<8x128xf32, #tpu.memory_space<vmem>>, vector<8x128xf32>
    %277 = vector.shape_cast %275 : vector<8x128xf32> to vector<8x1x128xf32>
    %c0_172 = arith.constant 0 : index
    %c0_173 = arith.constant 0 : index
    %c0_174 = arith.constant 0 : index
    %278 = vector.load %arg15[%c0_172, %c0_173, %c0_174] : memref<8x8x128xf32, #tpu.memory_space<vmem>>, vector<8x8x128xf32>
    "tpu.trace_start"() <{level = 10 : i32, message = "bqk,btk->bqt"}> : () -> ()
    %cst_175 = arith.constant dense<0.000000e+00> : vector<8x1x8xf32>
    %279 = tpu.matmul %277, %278, %cst_175 {dimension_numbers = #tpu.dot_dimension_numbers<[2], [2], [1], [1], [0, 0, 0, 1, 1, 1], [0], [0]>} : vector<8x1x128xf32>, vector<8x8x128xf32>, vector<8x1x8xf32> -> vector<8x1x8xf32>
    "tpu.trace_stop"() : () -> ()
    %280 = vector.broadcast %cst_31 : f32 to vector<8x1x8xf32>
    %281 = arith.select %23, %279, %280 : vector<8x1x8xi1>, vector<8x1x8xf32>
    %cst_176 = arith.constant dense<0xFF800000> : vector<8x1xf32>
    %282 = vector.multi_reduction <maximumf>, %281, %cst_176 [2] : vector<8x1x8xf32> to vector<8x1xf32>
    %283 = vector.shape_cast %282 : vector<8x1xf32> to vector<8x1x1xf32>
    %284 = vector.broadcast %283 : vector<8x1x1xf32> to vector<8x1x8xf32>
    %285 = arith.subf %281, %284 : vector<8x1x8xf32>
    %286 = math.exp %285 : vector<8x1x8xf32>
    %cst_177 = arith.constant dense<0.000000e+00> : vector<8x1xf32>
    %287 = vector.multi_reduction <add>, %286, %cst_177 [2] : vector<8x1x8xf32> to vector<8x1xf32>
    %288 = vector.shape_cast %287 : vector<8x1xf32> to vector<8x1x1xf32>
    %289 = vector.broadcast %288 : vector<8x1x1xf32> to vector<8x1x8xf32>
    %290 = arith.divf %286, %289 : vector<8x1x8xf32>
    %c0_178 = arith.constant 0 : index
    %c0_179 = arith.constant 0 : index
    %c0_180 = arith.constant 0 : index
    %291 = vector.load %arg2[%c0_178, %c0_179, %c0_180] : memref<8x8x128xf32, #tpu.memory_space<vmem>>, vector<8x8x128xf32>
    "tpu.trace_start"() <{level = 10 : i32, message = "bqt,bth->bqh"}> : () -> ()
    %cst_181 = arith.constant dense<0.000000e+00> : vector<8x1x128xf32>
    %292 = tpu.matmul %290, %291, %cst_181 {dimension_numbers = #tpu.dot_dimension_numbers<[2], [1], [1], [2], [0, 0, 0, 1, 1, 2], [0], [0]>} : vector<8x1x8xf32>, vector<8x8x128xf32>, vector<8x1x128xf32> -> vector<8x1x128xf32>
    "tpu.trace_stop"() : () -> ()
    %293 = vector.shape_cast %292 : vector<8x1x128xf32> to vector<8x128xf32>
    %294 = arith.index_cast %c4_i32 : i32 to index
    %c0_182 = arith.constant 0 : index
    %c0_183 = arith.constant 0 : index
    %295 = vector.load %arg14[%294, %c0_182, %c0_183] : memref<6x8x512xf32, #tpu.memory_space<vmem>>, vector<1x8x512xf32>
    %296 = vector.shape_cast %295 : vector<1x8x512xf32> to vector<8x512xf32>
    %c0_184 = arith.constant 0 : index
    %c0_185 = arith.constant 0 : index
    %297 = vector.load %arg8[%c0_184, %c0_185] : memref<128x512xf32, #tpu.memory_space<vmem>>, vector<128x512xf32>
    %cst_186 = arith.constant dense<0.000000e+00> : vector<8x512xf32>
    %298 = tpu.matmul %293, %297, %cst_186 {dimension_numbers = #tpu.dot_dimension_numbers<[1], [0], [0], [1], [0, 0, 1, 1], [], []>} : vector<8x128xf32>, vector<128x512xf32>, vector<8x512xf32> -> vector<8x512xf32>
    %299 = arith.addf %296, %298 : vector<8x512xf32>
    %c0_187 = arith.constant 0 : index
    %c0_188 = arith.constant 0 : index
    %300 = vector.load %arg9[%c0_187, %c0_188] : memref<128x512xf32, #tpu.memory_space<vmem>>, vector<128x512xf32>
    %cst_189 = arith.constant dense<0.000000e+00> : vector<8x512xf32>
    %301 = tpu.matmul %275, %300, %cst_189 {dimension_numbers = #tpu.dot_dimension_numbers<[1], [0], [0], [1], [0, 0, 1, 1], [], []>} : vector<8x128xf32>, vector<128x512xf32>, vector<8x512xf32> -> vector<8x512xf32>
    %302 = arith.addf %299, %301 : vector<8x512xf32>
    %303 = vector.extract_strided_slice %302 {offsets = [0, 0], sizes = [8, 128], strides = [1, 1]} : vector<8x512xf32> to vector<8x128xf32>
    %304 = arith.negf %303 : vector<8x128xf32>
    %305 = math.exp %304 : vector<8x128xf32>
    %cst_190 = arith.constant 1.000000e+00 : f32
    %306 = vector.broadcast %cst_190 : f32 to vector<8x128xf32>
    %307 = arith.addf %306, %305 : vector<8x128xf32>
    %308 = arith.divf %306, %307 : vector<8x128xf32>
    %309 = vector.extract_strided_slice %302 {offsets = [0, 128], sizes = [8, 128], strides = [1, 1]} : vector<8x512xf32> to vector<8x128xf32>
    %310 = arith.negf %309 : vector<8x128xf32>
    %311 = math.exp %310 : vector<8x128xf32>
    %cst_191 = arith.constant 1.000000e+00 : f32
    %312 = vector.broadcast %cst_191 : f32 to vector<8x128xf32>
    %313 = arith.addf %312, %311 : vector<8x128xf32>
    %314 = arith.divf %312, %313 : vector<8x128xf32>
    %315 = vector.extract_strided_slice %302 {offsets = [0, 256], sizes = [8, 128], strides = [1, 1]} : vector<8x512xf32> to vector<8x128xf32>
    %316 = math.tanh %315 : vector<8x128xf32>
    %317 = vector.extract_strided_slice %302 {offsets = [0, 384], sizes = [8, 128], strides = [1, 1]} : vector<8x512xf32> to vector<8x128xf32>
    %318 = arith.negf %317 : vector<8x128xf32>
    %319 = math.exp %318 : vector<8x128xf32>
    %cst_192 = arith.constant 1.000000e+00 : f32
    %320 = vector.broadcast %cst_192 : f32 to vector<8x128xf32>
    %321 = arith.addf %320, %319 : vector<8x128xf32>
    %322 = arith.divf %320, %321 : vector<8x128xf32>
    %323 = arith.mulf %314, %276 : vector<8x128xf32>
    %324 = arith.mulf %308, %316 : vector<8x128xf32>
    %325 = arith.addf %323, %324 : vector<8x128xf32>
    %326 = math.tanh %325 : vector<8x128xf32>
    %327 = arith.mulf %322, %326 : vector<8x128xf32>
    %c0_193 = arith.constant 0 : index
    %c0_194 = arith.constant 0 : index
    %328 = vector.load %arg16[%c0_193, %c0_194] : memref<8x128xf32, #tpu.memory_space<vmem>>, vector<8x128xf32>
    tpu.vector_store %arg16[%c0_193, %c0_194], %327 {strides = array<i32>} : memref<8x128xf32, #tpu.memory_space<vmem>>, vector<8x128xf32>,
    %c0_195 = arith.constant 0 : index
    %c0_196 = arith.constant 0 : index
    %329 = vector.load %arg17[%c0_195, %c0_196] : memref<8x128xf32, #tpu.memory_space<vmem>>, vector<8x128xf32>
    tpu.vector_store %arg17[%c0_195, %c0_196], %325 {strides = array<i32>} : memref<8x128xf32, #tpu.memory_space<vmem>>, vector<8x128xf32>,
    %c0_197 = arith.constant 0 : index
    %c0_198 = arith.constant 0 : index
    %330 = vector.load %arg11[%c0_197, %c0_198] : memref<128x128xf32, #tpu.memory_space<vmem>>, vector<128x128xf32>
    %cst_199 = arith.constant dense<0.000000e+00> : vector<8x128xf32>
    %331 = tpu.matmul %327, %330, %cst_199 {dimension_numbers = #tpu.dot_dimension_numbers<[1], [0], [0], [1], [0, 0, 1, 1], [], []>} : vector<8x128xf32>, vector<128x128xf32>, vector<8x128xf32> -> vector<8x128xf32>
    %332 = arith.addf %331, %26 : vector<8x128xf32>
    %333 = arith.index_cast %c4_i32 : i32 to index
    %c0_200 = arith.constant 0 : index
    %c0_201 = arith.constant 0 : index
    %334 = vector.load %arg13[%333, %c0_200, %c0_201] : memref<6x8x128xf32, #tpu.memory_space<vmem>>, vector<1x8x128xf32>
    %335 = vector.shape_cast %334 : vector<1x8x128xf32> to vector<8x128xf32>
    %336 = vector.shape_cast %332 : vector<8x128xf32> to vector<1x8x128xf32>
    tpu.vector_store %arg13[%333, %c0_200, %c0_201], %336 {strides = array<i32>} : memref<6x8x128xf32, #tpu.memory_space<vmem>>, vector<1x8x128xf32>,
    %c5_i32 = arith.constant 5 : i32
    %c0_202 = arith.constant 0 : index
    %c0_203 = arith.constant 0 : index
    %337 = vector.load %arg16[%c0_202, %c0_203] : memref<8x128xf32, #tpu.memory_space<vmem>>, vector<8x128xf32>
    %c0_204 = arith.constant 0 : index
    %c0_205 = arith.constant 0 : index
    %338 = vector.load %arg17[%c0_204, %c0_205] : memref<8x128xf32, #tpu.memory_space<vmem>>, vector<8x128xf32>
    %339 = vector.shape_cast %337 : vector<8x128xf32> to vector<8x1x128xf32>
    %c0_206 = arith.constant 0 : index
    %c0_207 = arith.constant 0 : index
    %c0_208 = arith.constant 0 : index
    %340 = vector.load %arg15[%c0_206, %c0_207, %c0_208] : memref<8x8x128xf32, #tpu.memory_space<vmem>>, vector<8x8x128xf32>
    "tpu.trace_start"() <{level = 10 : i32, message = "bqk,btk->bqt"}> : () -> ()
    %cst_209 = arith.constant dense<0.000000e+00> : vector<8x1x8xf32>
    %341 = tpu.matmul %339, %340, %cst_209 {dimension_numbers = #tpu.dot_dimension_numbers<[2], [2], [1], [1], [0, 0, 0, 1, 1, 1], [0], [0]>} : vector<8x1x128xf32>, vector<8x8x128xf32>, vector<8x1x8xf32> -> vector<8x1x8xf32>
    "tpu.trace_stop"() : () -> ()
    %342 = vector.broadcast %cst_31 : f32 to vector<8x1x8xf32>
    %343 = arith.select %23, %341, %342 : vector<8x1x8xi1>, vector<8x1x8xf32>
    %cst_210 = arith.constant dense<0xFF800000> : vector<8x1xf32>
    %344 = vector.multi_reduction <maximumf>, %343, %cst_210 [2] : vector<8x1x8xf32> to vector<8x1xf32>
    %345 = vector.shape_cast %344 : vector<8x1xf32> to vector<8x1x1xf32>
    %346 = vector.broadcast %345 : vector<8x1x1xf32> to vector<8x1x8xf32>
    %347 = arith.subf %343, %346 : vector<8x1x8xf32>
    %348 = math.exp %347 : vector<8x1x8xf32>
    %cst_211 = arith.constant dense<0.000000e+00> : vector<8x1xf32>
    %349 = vector.multi_reduction <add>, %348, %cst_211 [2] : vector<8x1x8xf32> to vector<8x1xf32>
    %350 = vector.shape_cast %349 : vector<8x1xf32> to vector<8x1x1xf32>
    %351 = vector.broadcast %350 : vector<8x1x1xf32> to vector<8x1x8xf32>
    %352 = arith.divf %348, %351 : vector<8x1x8xf32>
    %c0_212 = arith.constant 0 : index
    %c0_213 = arith.constant 0 : index
    %c0_214 = arith.constant 0 : index
    %353 = vector.load %arg2[%c0_212, %c0_213, %c0_214] : memref<8x8x128xf32, #tpu.memory_space<vmem>>, vector<8x8x128xf32>
    "tpu.trace_start"() <{level = 10 : i32, message = "bqt,bth->bqh"}> : () -> ()
    %cst_215 = arith.constant dense<0.000000e+00> : vector<8x1x128xf32>
    %354 = tpu.matmul %352, %353, %cst_215 {dimension_numbers = #tpu.dot_dimension_numbers<[2], [1], [1], [2], [0, 0, 0, 1, 1, 2], [0], [0]>} : vector<8x1x8xf32>, vector<8x8x128xf32>, vector<8x1x128xf32> -> vector<8x1x128xf32>
    "tpu.trace_stop"() : () -> ()
    %355 = vector.shape_cast %354 : vector<8x1x128xf32> to vector<8x128xf32>
    %356 = arith.index_cast %c5_i32 : i32 to index
    %c0_216 = arith.constant 0 : index
    %c0_217 = arith.constant 0 : index
    %357 = vector.load %arg14[%356, %c0_216, %c0_217] : memref<6x8x512xf32, #tpu.memory_space<vmem>>, vector<1x8x512xf32>
    %358 = vector.shape_cast %357 : vector<1x8x512xf32> to vector<8x512xf32>
    %c0_218 = arith.constant 0 : index
    %c0_219 = arith.constant 0 : index
    %359 = vector.load %arg8[%c0_218, %c0_219] : memref<128x512xf32, #tpu.memory_space<vmem>>, vector<128x512xf32>
    %cst_220 = arith.constant dense<0.000000e+00> : vector<8x512xf32>
    %360 = tpu.matmul %355, %359, %cst_220 {dimension_numbers = #tpu.dot_dimension_numbers<[1], [0], [0], [1], [0, 0, 1, 1], [], []>} : vector<8x128xf32>, vector<128x512xf32>, vector<8x512xf32> -> vector<8x512xf32>
    %361 = arith.addf %358, %360 : vector<8x512xf32>
    %c0_221 = arith.constant 0 : index
    %c0_222 = arith.constant 0 : index
    %362 = vector.load %arg9[%c0_221, %c0_222] : memref<128x512xf32, #tpu.memory_space<vmem>>, vector<128x512xf32>
    %cst_223 = arith.constant dense<0.000000e+00> : vector<8x512xf32>
    %363 = tpu.matmul %337, %362, %cst_223 {dimension_numbers = #tpu.dot_dimension_numbers<[1], [0], [0], [1], [0, 0, 1, 1], [], []>} : vector<8x128xf32>, vector<128x512xf32>, vector<8x512xf32> -> vector<8x512xf32>
    %364 = arith.addf %361, %363 : vector<8x512xf32>
    %365 = vector.extract_strided_slice %364 {offsets = [0, 0], sizes = [8, 128], strides = [1, 1]} : vector<8x512xf32> to vector<8x128xf32>
    %366 = arith.negf %365 : vector<8x128xf32>
    %367 = math.exp %366 : vector<8x128xf32>
    %cst_224 = arith.constant 1.000000e+00 : f32
    %368 = vector.broadcast %cst_224 : f32 to vector<8x128xf32>
    %369 = arith.addf %368, %367 : vector<8x128xf32>
    %370 = arith.divf %368, %369 : vector<8x128xf32>
    %371 = vector.extract_strided_slice %364 {offsets = [0, 128], sizes = [8, 128], strides = [1, 1]} : vector<8x512xf32> to vector<8x128xf32>
    %372 = arith.negf %371 : vector<8x128xf32>
    %373 = math.exp %372 : vector<8x128xf32>
    %cst_225 = arith.constant 1.000000e+00 : f32
    %374 = vector.broadcast %cst_225 : f32 to vector<8x128xf32>
    %375 = arith.addf %374, %373 : vector<8x128xf32>
    %376 = arith.divf %374, %375 : vector<8x128xf32>
    %377 = vector.extract_strided_slice %364 {offsets = [0, 256], sizes = [8, 128], strides = [1, 1]} : vector<8x512xf32> to vector<8x128xf32>
    %378 = math.tanh %377 : vector<8x128xf32>
    %379 = vector.extract_strided_slice %364 {offsets = [0, 384], sizes = [8, 128], strides = [1, 1]} : vector<8x512xf32> to vector<8x128xf32>
    %380 = arith.negf %379 : vector<8x128xf32>
    %381 = math.exp %380 : vector<8x128xf32>
    %cst_226 = arith.constant 1.000000e+00 : f32
    %382 = vector.broadcast %cst_226 : f32 to vector<8x128xf32>
    %383 = arith.addf %382, %381 : vector<8x128xf32>
    %384 = arith.divf %382, %383 : vector<8x128xf32>
    %385 = arith.mulf %376, %338 : vector<8x128xf32>
    %386 = arith.mulf %370, %378 : vector<8x128xf32>
    %387 = arith.addf %385, %386 : vector<8x128xf32>
    %388 = math.tanh %387 : vector<8x128xf32>
    %389 = arith.mulf %384, %388 : vector<8x128xf32>
    %c0_227 = arith.constant 0 : index
    %c0_228 = arith.constant 0 : index
    %390 = vector.load %arg16[%c0_227, %c0_228] : memref<8x128xf32, #tpu.memory_space<vmem>>, vector<8x128xf32>
    tpu.vector_store %arg16[%c0_227, %c0_228], %389 {strides = array<i32>} : memref<8x128xf32, #tpu.memory_space<vmem>>, vector<8x128xf32>,
    %c0_229 = arith.constant 0 : index
    %c0_230 = arith.constant 0 : index
    %391 = vector.load %arg17[%c0_229, %c0_230] : memref<8x128xf32, #tpu.memory_space<vmem>>, vector<8x128xf32>
    tpu.vector_store %arg17[%c0_229, %c0_230], %387 {strides = array<i32>} : memref<8x128xf32, #tpu.memory_space<vmem>>, vector<8x128xf32>,
    %c0_231 = arith.constant 0 : index
    %c0_232 = arith.constant 0 : index
    %392 = vector.load %arg11[%c0_231, %c0_232] : memref<128x128xf32, #tpu.memory_space<vmem>>, vector<128x128xf32>
    %cst_233 = arith.constant dense<0.000000e+00> : vector<8x128xf32>
    %393 = tpu.matmul %389, %392, %cst_233 {dimension_numbers = #tpu.dot_dimension_numbers<[1], [0], [0], [1], [0, 0, 1, 1], [], []>} : vector<8x128xf32>, vector<128x128xf32>, vector<8x128xf32> -> vector<8x128xf32>
    %394 = arith.addf %393, %26 : vector<8x128xf32>
    %395 = arith.index_cast %c5_i32 : i32 to index
    %c0_234 = arith.constant 0 : index
    %c0_235 = arith.constant 0 : index
    %396 = vector.load %arg13[%395, %c0_234, %c0_235] : memref<6x8x128xf32, #tpu.memory_space<vmem>>, vector<1x8x128xf32>
    %397 = vector.shape_cast %396 : vector<1x8x128xf32> to vector<8x128xf32>
    %398 = vector.shape_cast %394 : vector<8x128xf32> to vector<1x8x128xf32>
    tpu.vector_store %arg13[%395, %c0_234, %c0_235], %398 {strides = array<i32>} : memref<6x8x128xf32, #tpu.memory_space<vmem>>, vector<1x8x128xf32>,
    %c6_i32 = arith.constant 6 : i32
    return
  }
  func.func @transform_0(%arg0: i32) -> (i32, i32, i32) {
    %c0_i32 = arith.constant 0 : i32
    %c0_i32_0 = arith.constant 0 : i32
    %c0_i32_1 = arith.constant 0 : i32
    return %c0_i32, %arg0, %c0_i32_0 : i32, i32, i32
  }
  func.func @transform_1(%arg0: i32) -> (i32, i32, i32) {
    %c0_i32 = arith.constant 0 : i32
    %c0_i32_0 = arith.constant 0 : i32
    %c0_i32_1 = arith.constant 0 : i32
    return %arg0, %c0_i32, %c0_i32_0 : i32, i32, i32
  }
  func.func @transform_2(%arg0: i32) -> (i32, i32) {
    %c0_i32 = arith.constant 0 : i32
    %c0_i32_0 = arith.constant 0 : i32
    return %arg0, %c0_i32 : i32, i32
  }
  func.func @transform_3(%arg0: i32) -> (i32, i32) {
    %c0_i32 = arith.constant 0 : i32
    %c0_i32_0 = arith.constant 0 : i32
    return %arg0, %c0_i32 : i32, i32
  }
  func.func @transform_4(%arg0: i32) -> (i32, i32) {
    %c0_i32 = arith.constant 0 : i32
    %c0_i32_0 = arith.constant 0 : i32
    return %arg0, %c0_i32 : i32, i32
  }
  func.func @transform_5(%arg0: i32) -> (i32, i32) {
    %c0_i32 = arith.constant 0 : i32
    %c0_i32_0 = arith.constant 0 : i32
    %c0_i32_1 = arith.constant 0 : i32
    return %c0_i32, %c0_i32_0 : i32, i32
  }
  func.func @transform_6(%arg0: i32) -> (i32, i32) {
    %c0_i32 = arith.constant 0 : i32
    %c0_i32_0 = arith.constant 0 : i32
    %c0_i32_1 = arith.constant 0 : i32
    return %c0_i32, %c0_i32_0 : i32, i32
  }
  func.func @transform_7(%arg0: i32) -> (i32, i32) {
    %c0_i32 = arith.constant 0 : i32
    %c0_i32_0 = arith.constant 0 : i32
    %c0_i32_1 = arith.constant 0 : i32
    return %c0_i32, %c0_i32_0 : i32, i32
  }
  func.func @transform_8(%arg0: i32) -> (i32, i32) {
    %c0_i32 = arith.constant 0 : i32
    %c0_i32_0 = arith.constant 0 : i32
    %c0_i32_1 = arith.constant 0 : i32
    return %c0_i32, %c0_i32_0 : i32, i32
  }
  func.func @transform_9(%arg0: i32) -> (i32, i32) {
    %c0_i32 = arith.constant 0 : i32
    %c0_i32_0 = arith.constant 0 : i32
    %c0_i32_1 = arith.constant 0 : i32
    return %c0_i32, %c0_i32_0 : i32, i32
  }
  func.func @transform_10(%arg0: i32) -> (i32, i32) {
    %c0_i32 = arith.constant 0 : i32
    %c0_i32_0 = arith.constant 0 : i32
    %c0_i32_1 = arith.constant 0 : i32
    return %c0_i32, %c0_i32_0 : i32, i32
  }
  func.func @transform_11(%arg0: i32) -> (i32, i32) {
    %c0_i32 = arith.constant 0 : i32
    %c0_i32_0 = arith.constant 0 : i32
    %c0_i32_1 = arith.constant 0 : i32
    return %c0_i32, %c0_i32_0 : i32, i32
  }
  func.func @transform_12(%arg0: i32) -> (i32, i32, i32) {
    %c0_i32 = arith.constant 0 : i32
    %c0_i32_0 = arith.constant 0 : i32
    %c0_i32_1 = arith.constant 0 : i32
    return %c0_i32, %arg0, %c0_i32_0 : i32, i32, i32
  }
}

</mosaic_0001>

<llo_original>
// kernel: encoder_decoder_lstm_ma.2
$region0: #{encoder_decoder_lstm_ma.2}
  #allocation0 [shape = 'u32[]', space=smem, size = 0x4, offset = 0x4, fixed_abs, tag = 'smem constant byte address 0x4 - core index']
  #allocation1 [shape = 'u32[72,128]{1,0:T(1,128)}', space=vmem, size = 0x9000, scoped, tag = 'internal scratch']
  #allocation2 [shape = 'f32[8,8,512]{2,1,0:T(8,128)}', space=vmem, size = 0x20000, scoped, tag = 'scratch operand']
  #allocation3 [shape = 'f32[8,128]{1,0:T(8,128)}', space=vmem, size = 0x1000, scoped, tag = 'scratch operand']
  #allocation4 [shape = 'f32[8,128]{1,0:T(8,128)}', space=vmem, size = 0x1000, scoped, tag = 'scratch operand']
  %s0 = inlined_call_operand.vmem [shape: f32[8,8,16], index: 0, kind: input, shape index: {}]
  %s1 = inlined_call_operand.vmem [shape: f32[8,8,1], index: 1, kind: input, shape index: {}]
  %s2 = inlined_call_operand.vmem [shape: f32[16,512], index: 2, kind: input, shape index: {}]
  %s3 = inlined_call_operand.vmem [shape: f32[128,512], index: 3, kind: input, shape index: {}]
  %s4 = inlined_call_operand.vmem [shape: f32[1,512], index: 4, kind: input, shape index: {}]
  %s5 = inlined_call_operand.vmem [shape: f32[8,8,128], index: 5, kind: output, shape index: {0}]
  %s6 = inlined_call_operand.vmem [shape: f32[8,128], index: 6, kind: output, shape index: {1}]
  %s7 = inlined_call_operand.vmem [shape: f32[8,128], index: 7, kind: output, shape index: {2}]
  %8 = xla_tuple %s5, %s6, %s7
  %s9 = sld [smem:[#allocation0]]
  $region46: #{encoder_decoder_lstm_ma.2} parent=0
    _
  %s11 = ssub.s32 1, %s9
  %s12 = scalar_select 0, %s11, %s9
  // Predicated region
  $region2: #{encoder_decoder_lstm_ma.2} parent=0 // pred_check
    _
  $region3: #{encoder_decoder_lstm_ma.2} parent=0 // pred_check_branch
    %14 = sbr.rel (0) target = $region5
  $region4: #{encoder_decoder_lstm_ma.2} parent=0 // pred_region
    _
  $region5: #{encoder_decoder_lstm_ma.2} parent=0 // pred_fallthru
    _
  // Predicated region
  $region6: #{encoder_decoder_lstm_ma.2} parent=0 // pred_check
    _
  $region7: #{encoder_decoder_lstm_ma.2} parent=0 // pred_check_branch
    %16 = sbr.rel (0) target = $region9
  $region8: #{encoder_decoder_lstm_ma.2} parent=0 // pred_region
    _
  $region9: #{encoder_decoder_lstm_ma.2} parent=0 // pred_fallthru
    _
  // Predicated region
  $region10: #{encoder_decoder_lstm_ma.2} parent=0 // pred_check
    _
  $region11: #{encoder_decoder_lstm_ma.2} parent=0 // pred_check_branch
    %18 = sbr.rel (0) target = $region13
  $region12: #{encoder_decoder_lstm_ma.2} parent=0 // pred_region
    _
  $region13: #{encoder_decoder_lstm_ma.2} parent=0 // pred_fallthru
    _
  // Predicated region
  $region14: #{encoder_decoder_lstm_ma.2} parent=0 // pred_check
    _
  $region15: #{encoder_decoder_lstm_ma.2} parent=0 // pred_check_branch
    %20 = sbr.rel (0) target = $region17
  $region16: #{encoder_decoder_lstm_ma.2} parent=0 // pred_region
    _
  $region17: #{encoder_decoder_lstm_ma.2} parent=0 // pred_fallthru
    _
  // Predicated region
  $region18: #{encoder_decoder_lstm_ma.2} parent=0 // pred_check
    _
  $region19: #{encoder_decoder_lstm_ma.2} parent=0 // pred_check_branch
    %22 = sbr.rel (0) target = $region21
  $region20: #{encoder_decoder_lstm_ma.2} parent=0 // pred_region
    _
  $region21: #{encoder_decoder_lstm_ma.2} parent=0 // pred_fallthru
    _
  %v23 = vld [vmem:[%s0] sm:$0xff]
  %v24 = vld [vmem:[%s0 + $0x8] sm:$0xff]
  %v25 = vld [vmem:[%s0 + $0x10] sm:$0xff]
  %v26 = vld [vmem:[%s0 + $0x18] sm:$0xff]
  %v27 = vld [vmem:[%s0 + $0x20] sm:$0xff]
  %v28 = vld [vmem:[%s0 + $0x28] sm:$0xff]
  %v29 = vld [vmem:[%s0 + $0x30] sm:$0xff]
  %v30 = vld [vmem:[%s0 + $0x38] sm:$0xff]
  %v31 = vld [vmem:[%s2] sm:$0xff]
  %v32 = vld [vmem:[%s2 + $0x8] sm:$0xff]
  %v33 = vld [vmem:[%s2 + $0x10] sm:$0xff]
  %v34 = vld [vmem:[%s2 + $0x18] sm:$0xff]
  %v35 = vld [vmem:[%s2 + $0x20] sm:$0xff]
  %v36 = vld [vmem:[%s2 + $0x28] sm:$0xff]
  %v37 = vld [vmem:[%s2 + $0x30] sm:$0xff]
  %v38 = vld [vmem:[%s2 + $0x38] sm:$0xff]
  %vm39 = vcmask 130048
  %v41 = vsel %vm39, %v23, 0
  %v44 = vsel %vm39, %v24, 0
  %v47 = vsel %vm39, %v25, 0
  %v50 = vsel %vm39, %v26, 0
  %v53 = vsel %vm39, %v27, 0
  %v56 = vsel %vm39, %v28, 0
  %v59 = vsel %vm39, %v29, 0
  %v62 = vsel %vm39, %v30, 0
  %64 = vmatpush.msra.mxu0 0.0
  %65 = vmatpush.msra.mxu0 0.0
  %66 = vmatpush.msra.mxu0 0.0
  %67 = vmatpush.msra.mxu0 0.0
  %68 = vmatpush.msra.mxu0 0.0
  %69 = vmatpush.msra.mxu0 0.0
  %70 = vmatpush.msra.mxu0 0.0
  %71 = vmatpush.msra.mxu0 0.0
  %72 = vmatpush.msra.mxu0 0.0
  %73 = vmatpush.msra.mxu0 0.0
  %74 = vmatpush.msra.mxu0 0.0
  %75 = vmatpush.msra.mxu0 0.0
  %76 = vmatpush.msra.mxu0 0.0
  %77 = vmatpush.msra.mxu0 0.0
  %78 = vmatpush.msra.mxu0 %v35
  %79 = vmatpush.msra.mxu0 %v31
  %80 = vmatmul.f32.gmra.mxu0 %v41
  %v81 = vpop.f32.mrf.mxu0
  %v82 = vadd.f32 0.0, %v81
  %83 = vmatmul.f32.gmra.mxu0 %v44
  %v84 = vpop.f32.mrf.mxu0
  %v85 = vadd.f32 0.0, %v84
  %86 = vmatmul.f32.gmra.mxu0 %v47
  %v87 = vpop.f32.mrf.mxu0
  %v88 = vadd.f32 0.0, %v87
  %89 = vmatmul.f32.gmra.mxu0 %v50
  %v90 = vpop.f32.mrf.mxu0
  %v91 = vadd.f32 0.0, %v90
  %92 = vmatmul.f32.gmra.mxu0 %v53
  %v93 = vpop.f32.mrf.mxu0
  %v94 = vadd.f32 0.0, %v93
  %95 = vmatmul.f32.gmra.mxu0 %v56
  %v96 = vpop.f32.mrf.mxu0
  %v97 = vadd.f32 0.0, %v96
  %98 = vmatmul.f32.gmra.mxu0 %v59
  %v99 = vpop.f32.mrf.mxu0
  %v100 = vadd.f32 0.0, %v99
  %101 = vmatmul.f32.gmra.mxu0 %v62
  %v102 = vpop.f32.mrf.mxu0
  %v103 = vadd.f32 0.0, %v102
  %104 = vdwg.mxu0
  %105 = vmatpush.msra.mxu0 0.0
  %106 = vmatpush.msra.mxu0 0.0
  %107 = vmatpush.msra.mxu0 0.0
  %108 = vmatpush.msra.mxu0 0.0
  %109 = vmatpush.msra.mxu0 0.0
  %110 = vmatpush.msra.mxu0 0.0
  %111 = vmatpush.msra.mxu0 0.0
  %112 = vmatpush.msra.mxu0 0.0
  %113 = vmatpush.msra.mxu0 0.0
  %114 = vmatpush.msra.mxu0 0.0
  %115 = vmatpush.msra.mxu0 0.0
  %116 = vmatpush.msra.mxu0 0.0
  %117 = vmatpush.msra.mxu0 0.0
  %118 = vmatpush.msra.mxu0 0.0
  %119 = vmatpush.msra.mxu0 %v36
  %120 = vmatpush.msra.mxu0 %v32
  %121 = vmatmul.f32.gmra.mxu0 %v41
  %v122 = vpop.f32.mrf.mxu0
  %v123 = vadd.f32 0.0, %v122
  %124 = vmatmul.f32.gmra.mxu0 %v44
  %v125 = vpop.f32.mrf.mxu0
  %v126 = vadd.f32 0.0, %v125
  %127 = vmatmul.f32.gmra.mxu0 %v47
  %v128 = vpop.f32.mrf.mxu0
  %v129 = vadd.f32 0.0, %v128
  %130 = vmatmul.f32.gmra.mxu0 %v50
  %v131 = vpop.f32.mrf.mxu0
  %v132 = vadd.f32 0.0, %v131
  %133 = vmatmul.f32.gmra.mxu0 %v53
  %v134 = vpop.f32.mrf.mxu0
  %v135 = vadd.f32 0.0, %v134
  %136 = vmatmul.f32.gmra.mxu0 %v56
  %v137 = vpop.f32.mrf.mxu0
  %v138 = vadd.f32 0.0, %v137
  %139 = vmatmul.f32.gmra.mxu0 %v59
  %v140 = vpop.f32.mrf.mxu0
  %v141 = vadd.f32 0.0, %v140
  %142 = vmatmul.f32.gmra.mxu0 %v62
  %v143 = vpop.f32.mrf.mxu0
  %v144 = vadd.f32 0.0, %v143
  %145 = vdwg.mxu0
  %146 = vmatpush.msra.mxu0 0.0
  %147 = vmatpush.msra.mxu0 0.0
  %148 = vmatpush.msra.mxu0 0.0
  %149 = vmatpush.msra.mxu0 0.0
  %150 = vmatpush.msra.mxu0 0.0
  %151 = vmatpush.msra.mxu0 0.0
  %152 = vmatpush.msra.mxu0 0.0
  %153 = vmatpush.msra.mxu0 0.0
  %154 = vmatpush.msra.mxu0 0.0
  %155 = vmatpush.msra.mxu0 0.0
  %156 = vmatpush.msra.mxu0 0.0
  %157 = vmatpush.msra.mxu0 0.0
  %158 = vmatpush.msra.mxu0 0.0
  %159 = vmatpush.msra.mxu0 0.0
  %160 = vmatpush.msra.mxu0 %v37
  %161 = vmatpush.msra.mxu0 %v33
  %162 = vmatmul.f32.gmra.mxu0 %v41
  %v163 = vpop.f32.mrf.mxu0
  %v164 = vadd.f32 0.0, %v163
  %165 = vmatmul.f32.gmra.mxu0 %v44
  %v166 = vpop.f32.mrf.mxu0
  %v167 = vadd.f32 0.0, %v166
  %168 = vmatmul.f32.gmra.mxu0 %v47
  %v169 = vpop.f32.mrf.mxu0
  %v170 = vadd.f32 0.0, %v169
  %171 = vmatmul.f32.gmra.mxu0 %v50
  %v172 = vpop.f32.mrf.mxu0
  %v173 = vadd.f32 0.0, %v172
  %174 = vmatmul.f32.gmra.mxu0 %v53
  %v175 = vpop.f32.mrf.mxu0
  %v176 = vadd.f32 0.0, %v175
  %177 = vmatmul.f32.gmra.mxu0 %v56
  %v178 = vpop.f32.mrf.mxu0
  %v179 = vadd.f32 0.0, %v178
  %180 = vmatmul.f32.gmra.mxu0 %v59
  %v181 = vpop.f32.mrf.mxu0
  %v182 = vadd.f32 0.0, %v181
  %183 = vmatmul.f32.gmra.mxu0 %v62
  %v184 = vpop.f32.mrf.mxu0
  %v185 = vadd.f32 0.0, %v184
  %186 = vdwg.mxu0
  %187 = vmatpush.msra.mxu0 0.0
  %188 = vmatpush.msra.mxu0 0.0
  %189 = vmatpush.msra.mxu0 0.0
  %190 = vmatpush.msra.mxu0 0.0
  %191 = vmatpush.msra.mxu0 0.0
  %192 = vmatpush.msra.mxu0 0.0
  %193 = vmatpush.msra.mxu0 0.0
  %194 = vmatpush.msra.mxu0 0.0
  %195 = vmatpush.msra.mxu0 0.0
  %196 = vmatpush.msra.mxu0 0.0
  %197 = vmatpush.msra.mxu0 0.0
  %198 = vmatpush.msra.mxu0 0.0
  %199 = vmatpush.msra.mxu0 0.0
  %200 = vmatpush.msra.mxu0 0.0
  %201 = vmatpush.msra.mxu0 %v38
  %202 = vmatpush.msra.mxu0 %v34
  %203 = vmatmul.f32.gmra.mxu0 %v41
  %v204 = vpop.f32.mrf.mxu0
  %v205 = vadd.f32 0.0, %v204
  %206 = vmatmul.f32.gmra.mxu0 %v44
  %v207 = vpop.f32.mrf.mxu0
  %v208 = vadd.f32 0.0, %v207
  %209 = vmatmul.f32.gmra.mxu0 %v47
  %v210 = vpop.f32.mrf.mxu0
  %v211 = vadd.f32 0.0, %v210
  %212 = vmatmul.f32.gmra.mxu0 %v50
  %v213 = vpop.f32.mrf.mxu0
  %v214 = vadd.f32 0.0, %v213
  %215 = vmatmul.f32.gmra.mxu0 %v53
  %v216 = vpop.f32.mrf.mxu0
  %v217 = vadd.f32 0.0, %v216
  %218 = vmatmul.f32.gmra.mxu0 %v56
  %v219 = vpop.f32.mrf.mxu0
  %v220 = vadd.f32 0.0, %v219
  %221 = vmatmul.f32.gmra.mxu0 %v59
  %v222 = vpop.f32.mrf.mxu0
  %v223 = vadd.f32 0.0, %v222
  %224 = vmatmul.f32.gmra.mxu0 %v62
  %v225 = vpop.f32.mrf.mxu0
  %v226 = vadd.f32 0.0, %v225
  %227 = vdwg.mxu0
  %v228 = vld [vmem:[%s4] sm:$0xf]
  %v230 = vperm.slane %v228, 0
  %v231 = vperm.slane %v228, 1
  %v232 = vperm.slane %v228, 2
  %v233 = vperm.slane %v228, 3
  %v238 = vadd.f32 %v82, %v230
  %v239 = vadd.f32 %v123, %v231
  %v240 = vadd.f32 %v164, %v232
  %v241 = vadd.f32 %v205, %v233
  %v242 = vadd.f32 %v85, %v230
  %v243 = vadd.f32 %v126, %v231
  %v244 = vadd.f32 %v167, %v232
  %v245 = vadd.f32 %v208, %v233
  %v246 = vadd.f32 %v88, %v230
  %v247 = vadd.f32 %v129, %v231
  %v248 = vadd.f32 %v170, %v232
  %v249 = vadd.f32 %v211, %v233
  %v250 = vadd.f32 %v91, %v230
  %v251 = vadd.f32 %v132, %v231
  %v252 = vadd.f32 %v173, %v232
  %v253 = vadd.f32 %v214, %v233
  %v254 = vadd.f32 %v94, %v230
  %v255 = vadd.f32 %v135, %v231
  %v256 = vadd.f32 %v176, %v232
  %v257 = vadd.f32 %v217, %v233
  %v258 = vadd.f32 %v97, %v230
  %v259 = vadd.f32 %v138, %v231
  %v260 = vadd.f32 %v179, %v232
  %v261 = vadd.f32 %v220, %v233
  %v262 = vadd.f32 %v100, %v230
  %v263 = vadd.f32 %v141, %v231
  %v264 = vadd.f32 %v182, %v232
  %v265 = vadd.f32 %v223, %v233
  %v266 = vadd.f32 %v103, %v230
  %v267 = vadd.f32 %v144, %v231
  %v268 = vadd.f32 %v185, %v232
  %v269 = vadd.f32 %v226, %v233
  %270 = vst [vmem:[#allocation2] sm:$0xff] %v238
  %271 = vst [vmem:[#allocation2 + $0x8] sm:$0xff] %v239
  %272 = vst [vmem:[#allocation2 + $0x10] sm:$0xff] %v240
  %273 = vst [vmem:[#allocation2 + $0x18] sm:$0xff] %v241
  %274 = vst [vmem:[#allocation2 + $0x20] sm:$0xff] %v242
  %275 = vst [vmem:[#allocation2 + $0x28] sm:$0xff] %v243
  %276 = vst [vmem:[#allocation2 + $0x30] sm:$0xff] %v244
  %277 = vst [vmem:[#allocation2 + $0x38] sm:$0xff] %v245
  %278 = vst [vmem:[#allocation2 + $0x40] sm:$0xff] %v246
  %279 = vst [vmem:[#allocation2 + $0x48] sm:$0xff] %v247
  %280 = vst [vmem:[#allocation2 + $0x50] sm:$0xff] %v248
  %281 = vst [vmem:[#allocation2 + $0x58] sm:$0xff] %v249
  %282 = vst [vmem:[#allocation2 + $0x60] sm:$0xff] %v250
  %283 = vst [vmem:[#allocation2 + $0x68] sm:$0xff] %v251
  %284 = vst [vmem:[#allocation2 + $0x70] sm:$0xff] %v252
  %285 = vst [vmem:[#allocation2 + $0x78] sm:$0xff] %v253
  %286 = vst [vmem:[#allocation2 + $0x80] sm:$0xff] %v254
  %287 = vst [vmem:[#allocation2 + $0x88] sm:$0xff] %v255
  %288 = vst [vmem:[#allocation2 + $0x90] sm:$0xff] %v256
  %289 = vst [vmem:[#allocation2 + $0x98] sm:$0xff] %v257
  %290 = vst [vmem:[#allocation2 + $0xa0] sm:$0xff] %v258
  %291 = vst [vmem:[#allocation2 + $0xa8] sm:$0xff] %v259
  %292 = vst [vmem:[#allocation2 + $0xb0] sm:$0xff] %v260
  %293 = vst [vmem:[#allocation2 + $0xb8] sm:$0xff] %v261
  %294 = vst [vmem:[#allocation2 + $0xc0] sm:$0xff] %v262
  %295 = vst [vmem:[#allocation2 + $0xc8] sm:$0xff] %v263
  %296 = vst [vmem:[#allocation2 + $0xd0] sm:$0xff] %v264
  %297 = vst [vmem:[#allocation2 + $0xd8] sm:$0xff] %v265
  %298 = vst [vmem:[#allocation2 + $0xe0] sm:$0xff] %v266
  %299 = vst [vmem:[#allocation2 + $0xe8] sm:$0xff] %v267
  %300 = vst [vmem:[#allocation2 + $0xf0] sm:$0xff] %v268
  %301 = vst [vmem:[#allocation2 + $0xf8] sm:$0xff] %v269
  %302 = vst [vmem:[#allocation3] sm:$0xff] 0.0
  %303 = vst [vmem:[#allocation4] sm:$0xff] 0.0
  %v304 = vld [vmem:[#allocation3] sm:$0xff]
  %v305 = vld [vmem:[#allocation4] sm:$0xff]
  %v306 = vld [vmem:[#allocation2] sm:$0xff]
  %v307 = vld [vmem:[#allocation2 + $0x8] sm:$0xff]
  %v308 = vld [vmem:[#allocation2 + $0x10] sm:$0xff]
  %v309 = vld [vmem:[#allocation2 + $0x18] sm:$0xff]
  %v310 = vld [vmem:[%s3] sm:$0xff]
  %v311 = vld [vmem:[%s3 + $0x8] sm:$0xff]
  %v312 = vld [vmem:[%s3 + $0x10] sm:$0xff]
  %v313 = vld [vmem:[%s3 + $0x18] sm:$0xff]
  %v314 = vld [vmem:[%s3 + $0x20] sm:$0xff]
  %v315 = vld [vmem:[%s3 + $0x28] sm:$0xff]
  %v316 = vld [vmem:[%s3 + $0x30] sm:$0xff]
  %v317 = vld [vmem:[%s3 + $0x38] sm:$0xff]
  %v318 = vld [vmem:[%s3 + $0x40] sm:$0xff]
  %v319 = vld [vmem:[%s3 + $0x48] sm:$0xff]
  %v320 = vld [vmem:[%s3 + $0x50] sm:$0xff]
  %v321 = vld [vmem:[%s3 + $0x58] sm:$0xff]
  %v322 = vld [vmem:[%s3 + $0x60] sm:$0xff]
  %v323 = vld [vmem:[%s3 + $0x68] sm:$0xff]
  %v324 = vld [vmem:[%s3 + $0x70] sm:$0xff]
  %v325 = vld [vmem:[%s3 + $0x78] sm:$0xff]
  %v326 = vld [vmem:[%s3 + $0x80] sm:$0xff]
  %v327 = vld [vmem:[%s3 + $0x88] sm:$0xff]
  %v328 = vld [vmem:[%s3 + $0x90] sm:$0xff]
  %v329 = vld [vmem:[%s3 + $0x98] sm:$0xff]
  %v330 = vld [vmem:[%s3 + $0xa0] sm:$0xff]
  %v331 = vld [vmem:[%s3 + $0xa8] sm:$0xff]
  %v332 = vld [vmem:[%s3 + $0xb0] sm:$0xff]
  %v333 = vld [vmem:[%s3 + $0xb8] sm:$0xff]
  %v334 = vld [vmem:[%s3 + $0xc0] sm:$0xff]
  %v335 = vld [vmem:[%s3 + $0xc8] sm:$0xff]
  %v336 = vld [vmem:[%s3 + $0xd0] sm:$0xff]
  %v337 = vld [vmem:[%s3 + $0xd8] sm:$0xff]
  %v338 = vld [vmem:[%s3 + $0xe0] sm:$0xff]
  %v339 = vld [vmem:[%s3 + $0xe8] sm:$0xff]
  %v340 = vld [vmem:[%s3 + $0xf0] sm:$0xff]
  %v341 = vld [vmem:[%s3 + $0xf8] sm:$0xff]
  %v342 = vld [vmem:[%s3 + $0x100] sm:$0xff]
  %v343 = vld [vmem:[%s3 + $0x108] sm:$0xff]
  %v344 = vld [vmem:[%s3 + $0x110] sm:$0xff]
  %v345 = vld [vmem:[%s3 + $0x118] sm:$0xff]
  %v346 = vld [vmem:[%s3 + $0x120] sm:$0xff]
  %v347 = vld [vmem:[%s3 + $0x128] sm:$0xff]
  %v348 = vld [vmem:[%s3 + $0x130] sm:$0xff]
  %v349 = vld [vmem:[%s3 + $0x138] sm:$0xff]
  %v350 = vld [vmem:[%s3 + $0x140] sm:$0xff]
  %v351 = vld [vmem:[%s3 + $0x148] sm:$0xff]
  %v352 = vld [vmem:[%s3 + $0x150] sm:$0xff]
  %v353 = vld [vmem:[%s3 + $0x158] sm:$0xff]
  %v354 = vld [vmem:[%s3 + $0x160] sm:$0xff]
  %v355 = vld [vmem:[%s3 + $0x168] sm:$0xff]
  %v356 = vld [vmem:[%s3 + $0x170] sm:$0xff]
  %v357 = vld [vmem:[%s3 + $0x178] sm:$0xff]
  %v358 = vld [vmem:[%s3 + $0x180] sm:$0xff]
  %v359 = vld [vmem:[%s3 + $0x188] sm:$0xff]
  %v360 = vld [vmem:[%s3 + $0x190] sm:$0xff]
  %v361 = vld [vmem:[%s3 + $0x198] sm:$0xff]
  %v362 = vld [vmem:[%s3 + $0x1a0] sm:$0xff]
  %v363 = vld [vmem:[%s3 + $0x1a8] sm:$0xff]
  %v364 = vld [vmem:[%s3 + $0x1b0] sm:$0xff]
  %v365 = vld [vmem:[%s3 + $0x1b8] sm:$0xff]
  %v366 = vld [vmem:[%s3 + $0x1c0] sm:$0xff]
  %v367 = vld [vmem:[%s3 + $0x1c8] sm:$0xff]
  %v368 = vld [vmem:[%s3 + $0x1d0] sm:$0xff]
  %v369 = vld [vmem:[%s3 + $0x1d8] sm:$0xff]
  %v370 = vld [vmem:[%s3 + $0x1e0] sm:$0xff]
  %v371 = vld [vmem:[%s3 + $0x1e8] sm:$0xff]
  %v372 = vld [vmem:[%s3 + $0x1f0] sm:$0xff]
  %v373 = vld [vmem:[%s3 + $0x1f8] sm:$0xff]
  %374 = vmatpush.msra.mxu0 %v370
  %375 = vmatpush.msra.mxu0 %v366
  %376 = vmatpush.msra.mxu0 %v362
  %377 = vmatpush.msra.mxu0 %v358
  %378 = vmatpush.msra.mxu0 %v354
  %379 = vmatpush.msra.mxu0 %v350
  %380 = vmatpush.msra.mxu0 %v346
  %381 = vmatpush.msra.mxu0 %v342
  %382 = vmatpush.msra.mxu0 %v338
  %383 = vmatpush.msra.mxu0 %v334
  %384 = vmatpush.msra.mxu0 %v330
  %385 = vmatpush.msra.mxu0 %v326
  %386 = vmatpush.msra.mxu0 %v322
  %387 = vmatpush.msra.mxu0 %v318
  %388 = vmatpush.msra.mxu0 %v314
  %389 = vmatpush.msra.mxu0 %v310
  %390 = vmatmul.f32.gmra.mxu0 %v304
  %v391 = vpop.f32.mrf.mxu0
  %v392 = vadd.f32 0.0, %v391
  %393 = vdwg.mxu0
  %394 = vmatpush.msra.mxu0 %v371
  %395 = vmatpush.msra.mxu0 %v367
  %396 = vmatpush.msra.mxu0 %v363
  %397 = vmatpush.msra.mxu0 %v359
  %398 = vmatpush.msra.mxu0 %v355
  %399 = vmatpush.msra.mxu0 %v351
  %400 = vmatpush.msra.mxu0 %v347
  %401 = vmatpush.msra.mxu0 %v343
  %402 = vmatpush.msra.mxu0 %v339
  %403 = vmatpush.msra.mxu0 %v335
  %404 = vmatpush.msra.mxu0 %v331
  %405 = vmatpush.msra.mxu0 %v327
  %406 = vmatpush.msra.mxu0 %v323
  %407 = vmatpush.msra.mxu0 %v319
  %408 = vmatpush.msra.mxu0 %v315
  %409 = vmatpush.msra.mxu0 %v311
  %410 = vmatmul.f32.gmra.mxu0 %v304
  %v411 = vpop.f32.mrf.mxu0
  %v412 = vadd.f32 0.0, %v411
  %413 = vdwg.mxu0
  %414 = vmatpush.msra.mxu0 %v372
  %415 = vmatpush.msra.mxu0 %v368
  %416 = vmatpush.msra.mxu0 %v364
  %417 = vmatpush.msra.mxu0 %v360
  %418 = vmatpush.msra.mxu0 %v356
  %419 = vmatpush.msra.mxu0 %v352
  %420 = vmatpush.msra.mxu0 %v348
  %421 = vmatpush.msra.mxu0 %v344
  %422 = vmatpush.msra.mxu0 %v340
  %423 = vmatpush.msra.mxu0 %v336
  %424 = vmatpush.msra.mxu0 %v332
  %425 = vmatpush.msra.mxu0 %v328
  %426 = vmatpush.msra.mxu0 %v324
  %427 = vmatpush.msra.mxu0 %v320
  %428 = vmatpush.msra.mxu0 %v316
  %429 = vmatpush.msra.mxu0 %v312
  %430 = vmatmul.f32.gmra.mxu0 %v304
  %v431 = vpop.f32.mrf.mxu0
  %v432 = vadd.f32 0.0, %v431
  %433 = vdwg.mxu0
  %434 = vmatpush.msra.mxu0 %v373
  %435 = vmatpush.msra.mxu0 %v369
  %436 = vmatpush.msra.mxu0 %v365
  %437 = vmatpush.msra.mxu0 %v361
  %438 = vmatpush.msra.mxu0 %v357
  %439 = vmatpush.msra.mxu0 %v353
  %440 = vmatpush.msra.mxu0 %v349
  %441 = vmatpush.msra.mxu0 %v345
  %442 = vmatpush.msra.mxu0 %v341
  %443 = vmatpush.msra.mxu0 %v337
  %444 = vmatpush.msra.mxu0 %v333
  %445 = vmatpush.msra.mxu0 %v329
  %446 = vmatpush.msra.mxu0 %v325
  %447 = vmatpush.msra.mxu0 %v321
  %448 = vmatpush.msra.mxu0 %v317
  %449 = vmatpush.msra.mxu0 %v313
  %450 = vmatmul.f32.gmra.mxu0 %v304
  %v451 = vpop.f32.mrf.mxu0
  %v452 = vadd.f32 0.0, %v451
  %453 = vdwg.mxu0
  %v454 = vadd.f32 %v306, %v392
  %v455 = vadd.f32 %v307, %v412
  %v456 = vadd.f32 %v308, %v432
  %v457 = vadd.f32 %v309, %v452
  %v458 = vxor.u32 %v454, 2147483648
  %v459 = vmul.f32 %v458, 1.442695
  %v460 = vpow.pop %v459
  %v461 = vadd.f32 %v460, 1.0
  %v462 = vrcp.pop %v461
  %v463 = vmul.f32 %v461, %v462
  %v464 = vsub.f32 1.0, %v463
  %v465 = vmul.f32 %v462, %v464
  %v466 = vadd.f32 %v462, %v465
  %vm467 = vweird.f32 %v461
  %vm468 = vweird.f32 %v462
  %vm469 = vmor %vm467, %vm468
  %v470 = vsel %vm469, %v462, %v466
  %v471 = vand.u32 2147483647, %v461
  %vm472 = vcmp.eq.f32.partialorder %v471, 8.507059e+37
  %v473 = vand.u32 %v461, 2147483648
  %v474 = vor.u32 1.1754944e-38, %v473
  %v475 = vsel %vm472, %v474, %v470
  %v476 = vmul.f32 1.0, %v475
  %v477 = vxor.u32 %v455, 2147483648
  %v478 = vmul.f32 %v477, 1.442695
  %v479 = vpow.pop %v478
  %v480 = vadd.f32 %v479, 1.0
  %v481 = vrcp.pop %v480
  %v482 = vmul.f32 %v480, %v481
  %v483 = vsub.f32 1.0, %v482
  %v484 = vmul.f32 %v481, %v483
  %v485 = vadd.f32 %v481, %v484
  %vm486 = vweird.f32 %v480
  %vm487 = vweird.f32 %v481
  %vm488 = vmor %vm486, %vm487
  %v489 = vsel %vm488, %v481, %v485
  %v490 = vand.u32 2147483647, %v480
  %vm491 = vcmp.eq.f32.partialorder %v490, 8.507059e+37
  %v492 = vand.u32 %v480, 2147483648
  %v493 = vor.u32 1.1754944e-38, %v492
  %v494 = vsel %vm491, %v493, %v489
  %v495 = vmul.f32 1.0, %v494
  %v496 = vtanh.pop %v456
  %v497 = vxor.u32 %v457, 2147483648
  %v498 = vmul.f32 %v497, 1.442695
  %v499 = vpow.pop %v498
  %v500 = vadd.f32 %v499, 1.0
  %v501 = vrcp.pop %v500
  %v502 = vmul.f32 %v500, %v501
  %v503 = vsub.f32 1.0, %v502
  %v504 = vmul.f32 %v501, %v503
  %v505 = vadd.f32 %v501, %v504
  %vm506 = vweird.f32 %v500
  %vm507 = vweird.f32 %v501
  %vm508 = vmor %vm506, %vm507
  %v509 = vsel %vm508, %v501, %v505
  %v510 = vand.u32 2147483647, %v500
  %vm511 = vcmp.eq.f32.partialorder %v510, 8.507059e+37
  %v512 = vand.u32 %v500, 2147483648
  %v513 = vor.u32 1.1754944e-38, %v512
  %v514 = vsel %vm511, %v513, %v509
  %v515 = vmul.f32 1.0, %v514
  %v516 = vmul.f32 %v495, %v305
  %v517 = vmul.f32 %v476, %v496
  %v518 = vadd.f32 %v516, %v517
  %v519 = vtanh.pop %v518
  %v520 = vmul.f32 %v515, %v519
  %v521 = vld [vmem:[%s1] sm:$0xff]
  %523 = vset.pattern.permute.xlu0 0
  %524 = vperm.xlu0 %523, %v521
  %v525 = vpop.permute.xlu0 %524
  %v527 = vmul.f32 %v525, %v520
  %v528 = vsub.f32 1.0, %v521
  %530 = vset.pattern.permute.xlu0 0
  %531 = vperm.xlu0 %530, %v528
  %v532 = vpop.permute.xlu0 %531
  %v534 = vmul.f32 %v532, %v304
  %v535 = vadd.f32 %v527, %v534
  %536 = vst [vmem:[#allocation3] sm:$0xff] %v535
  %v537 = vmul.f32 %v525, %v518
  %v538 = vmul.f32 %v532, %v305
  %v539 = vadd.f32 %v537, %v538
  %540 = vst [vmem:[#allocation4] sm:$0xff] %v539
  %541 = vst [vmem:[%s5] sm:$0xff] %v527
  %v542 = vld [vmem:[#allocation3] sm:$0xff]
  %v543 = vld [vmem:[#allocation4] sm:$0xff]
  %s544 = scalar_lea.vmem [#allocation2], 32
  %v545 = vld [vmem:[%s544] sm:$0xff]
  %v546 = vld [vmem:[%s544 + $0x8] sm:$0xff]
  %v547 = vld [vmem:[%s544 + $0x10] sm:$0xff]
  %v548 = vld [vmem:[%s544 + $0x18] sm:$0xff]
  %v549 = vld [vmem:[%s3] sm:$0xff]
  %v550 = vld [vmem:[%s3 + $0x8] sm:$0xff]
  %v551 = vld [vmem:[%s3 + $0x10] sm:$0xff]
  %v552 = vld [vmem:[%s3 + $0x18] sm:$0xff]
  %v553 = vld [vmem:[%s3 + $0x20] sm:$0xff]
  %v554 = vld [vmem:[%s3 + $0x28] sm:$0xff]
  %v555 = vld [vmem:[%s3 + $0x30] sm:$0xff]
  %v556 = vld [vmem:[%s3 + $0x38] sm:$0xff]
  %v557 = vld [vmem:[%s3 + $0x40] sm:$0xff]
  %v558 = vld [vmem:[%s3 + $0x48] sm:$0xff]
  %v559 = vld [vmem:[%s3 + $0x50] sm:$0xff]
  %v560 = vld [vmem:[%s3 + $0x58] sm:$0xff]
  %v561 = vld [vmem:[%s3 + $0x60] sm:$0xff]
  %v562 = vld [vmem:[%s3 + $0x68] sm:$0xff]
  %v563 = vld [vmem:[%s3 + $0x70] sm:$0xff]
  %v564 = vld [vmem:[%s3 + $0x78] sm:$0xff]
  %v565 = vld [vmem:[%s3 + $0x80] sm:$0xff]
  %v566 = vld [vmem:[%s3 + $0x88] sm:$0xff]
  %v567 = vld [vmem:[%s3 + $0x90] sm:$0xff]
  %v568 = vld [vmem:[%s3 + $0x98] sm:$0xff]
  %v569 = vld [vmem:[%s3 + $0xa0] sm:$0xff]
  %v570 = vld [vmem:[%s3 + $0xa8] sm:$0xff]
  %v571 = vld [vmem:[%s3 + $0xb0] sm:$0xff]
  %v572 = vld [vmem:[%s3 + $0xb8] sm:$0xff]
  %v573 = vld [vmem:[%s3 + $0xc0] sm:$0xff]
  %v574 = vld [vmem:[%s3 + $0xc8] sm:$0xff]
  %v575 = vld [vmem:[%s3 + $0xd0] sm:$0xff]
  %v576 = vld [vmem:[%s3 + $0xd8] sm:$0xff]
  %v577 = vld [vmem:[%s3 + $0xe0] sm:$0xff]
  %v578 = vld [vmem:[%s3 + $0xe8] sm:$0xff]
  %v579 = vld [vmem:[%s3 + $0xf0] sm:$0xff]
  %v580 = vld [vmem:[%s3 + $0xf8] sm:$0xff]
  %v581 = vld [vmem:[%s3 + $0x100] sm:$0xff]
  %v582 = vld [vmem:[%s3 + $0x108] sm:$0xff]
  %v583 = vld [vmem:[%s3 + $0x110] sm:$0xff]
  %v584 = vld [vmem:[%s3 + $0x118] sm:$0xff]
  %v585 = vld [vmem:[%s3 + $0x120] sm:$0xff]
  %v586 = vld [vmem:[%s3 + $0x128] sm:$0xff]
  %v587 = vld [vmem:[%s3 + $0x130] sm:$0xff]
  %v588 = vld [vmem:[%s3 + $0x138] sm:$0xff]
  %v589 = vld [vmem:[%s3 + $0x140] sm:$0xff]
  %v590 = vld [vmem:[%s3 + $0x148] sm:$0xff]
  %v591 = vld [vmem:[%s3 + $0x150] sm:$0xff]
  %v592 = vld [vmem:[%s3 + $0x158] sm:$0xff]
  %v593 = vld [vmem:[%s3 + $0x160] sm:$0xff]
  %v594 = vld [vmem:[%s3 + $0x168] sm:$0xff]
  %v595 = vld [vmem:[%s3 + $0x170] sm:$0xff]
  %v596 = vld [vmem:[%s3 + $0x178] sm:$0xff]
  %v597 = vld [vmem:[%s3 + $0x180] sm:$0xff]
  %v598 = vld [vmem:[%s3 + $0x188] sm:$0xff]
  %v599 = vld [vmem:[%s3 + $0x190] sm:$0xff]
  %v600 = vld [vmem:[%s3 + $0x198] sm:$0xff]
  %v601 = vld [vmem:[%s3 + $0x1a0] sm:$0xff]
  %v602 = vld [vmem:[%s3 + $0x1a8] sm:$0xff]
  %v603 = vld [vmem:[%s3 + $0x1b0] sm:$0xff]
  %v604 = vld [vmem:[%s3 + $0x1b8] sm:$0xff]
  %v605 = vld [vmem:[%s3 + $0x1c0] sm:$0xff]
  %v606 = vld [vmem:[%s3 + $0x1c8] sm:$0xff]
  %v607 = vld [vmem:[%s3 + $0x1d0] sm:$0xff]
  %v608 = vld [vmem:[%s3 + $0x1d8] sm:$0xff]
  %v609 = vld [vmem:[%s3 + $0x1e0] sm:$0xff]
  %v610 = vld [vmem:[%s3 + $0x1e8] sm:$0xff]
  %v611 = vld [vmem:[%s3 + $0x1f0] sm:$0xff]
  %v612 = vld [vmem:[%s3 + $0x1f8] sm:$0xff]
  %613 = vmatpush.msra.mxu0 %v609
  %614 = vmatpush.msra.mxu0 %v605
  %615 = vmatpush.msra.mxu0 %v601
  %616 = vmatpush.msra.mxu0 %v597
  %617 = vmatpush.msra.mxu0 %v593
  %618 = vmatpush.msra.mxu0 %v589
  %619 = vmatpush.msra.mxu0 %v585
  %620 = vmatpush.msra.mxu0 %v581
  %621 = vmatpush.msra.mxu0 %v577
  %622 = vmatpush.msra.mxu0 %v573
  %623 = vmatpush.msra.mxu0 %v569
  %624 = vmatpush.msra.mxu0 %v565
  %625 = vmatpush.msra.mxu0 %v561
  %626 = vmatpush.msra.mxu0 %v557
  %627 = vmatpush.msra.mxu0 %v553
  %628 = vmatpush.msra.mxu0 %v549
  %629 = vmatmul.f32.gmra.mxu0 %v542
  %v630 = vpop.f32.mrf.mxu0
  %v631 = vadd.f32 0.0, %v630
  %632 = vdwg.mxu0
  %633 = vmatpush.msra.mxu0 %v610
  %634 = vmatpush.msra.mxu0 %v606
  %635 = vmatpush.msra.mxu0 %v602
  %636 = vmatpush.msra.mxu0 %v598
  %637 = vmatpush.msra.mxu0 %v594
  %638 = vmatpush.msra.mxu0 %v590
  %639 = vmatpush.msra.mxu0 %v586
  %640 = vmatpush.msra.mxu0 %v582
  %641 = vmatpush.msra.mxu0 %v578
  %642 = vmatpush.msra.mxu0 %v574
  %643 = vmatpush.msra.mxu0 %v570
  %644 = vmatpush.msra.mxu0 %v566
  %645 = vmatpush.msra.mxu0 %v562
  %646 = vmatpush.msra.mxu0 %v558
  %647 = vmatpush.msra.mxu0 %v554
  %648 = vmatpush.msra.mxu0 %v550
  %649 = vmatmul.f32.gmra.mxu0 %v542
  %v650 = vpop.f32.mrf.mxu0
  %v651 = vadd.f32 0.0, %v650
  %652 = vdwg.mxu0
  %653 = vmatpush.msra.mxu0 %v611
  %654 = vmatpush.msra.mxu0 %v607
  %655 = vmatpush.msra.mxu0 %v603
  %656 = vmatpush.msra.mxu0 %v599
  %657 = vmatpush.msra.mxu0 %v595
  %658 = vmatpush.msra.mxu0 %v591
  %659 = vmatpush.msra.mxu0 %v587
  %660 = vmatpush.msra.mxu0 %v583
  %661 = vmatpush.msra.mxu0 %v579
  %662 = vmatpush.msra.mxu0 %v575
  %663 = vmatpush.msra.mxu0 %v571
  %664 = vmatpush.msra.mxu0 %v567
  %665 = vmatpush.msra.mxu0 %v563
  %666 = vmatpush.msra.mxu0 %v559
  %667 = vmatpush.msra.mxu0 %v555
  %668 = vmatpush.msra.mxu0 %v551
  %669 = vmatmul.f32.gmra.mxu0 %v542
  %v670 = vpop.f32.mrf.mxu0
  %v671 = vadd.f32 0.0, %v670
  %672 = vdwg.mxu0
  %673 = vmatpush.msra.mxu0 %v612
  %674 = vmatpush.msra.mxu0 %v608
  %675 = vmatpush.msra.mxu0 %v604
  %676 = vmatpush.msra.mxu0 %v600
  %677 = vmatpush.msra.mxu0 %v596
  %678 = vmatpush.msra.mxu0 %v592
  %679 = vmatpush.msra.mxu0 %v588
  %680 = vmatpush.msra.mxu0 %v584
  %681 = vmatpush.msra.mxu0 %v580
  %682 = vmatpush.msra.mxu0 %v576
  %683 = vmatpush.msra.mxu0 %v572
  %684 = vmatpush.msra.mxu0 %v568
  %685 = vmatpush.msra.mxu0 %v564
  %686 = vmatpush.msra.mxu0 %v560
  %687 = vmatpush.msra.mxu0 %v556
  %688 = vmatpush.msra.mxu0 %v552
  %689 = vmatmul.f32.gmra.mxu0 %v542
  %v690 = vpop.f32.mrf.mxu0
  %v691 = vadd.f32 0.0, %v690
  %692 = vdwg.mxu0
  %v693 = vadd.f32 %v545, %v631
  %v694 = vadd.f32 %v546, %v651
  %v695 = vadd.f32 %v547, %v671
  %v696 = vadd.f32 %v548, %v691
  %v697 = vxor.u32 %v693, 2147483648
  %v698 = vmul.f32 %v697, 1.442695
  %v699 = vpow.pop %v698
  %v700 = vadd.f32 %v699, 1.0
  %v701 = vrcp.pop %v700
  %v702 = vmul.f32 %v700, %v701
  %v703 = vsub.f32 1.0, %v702
  %v704 = vmul.f32 %v701, %v703
  %v705 = vadd.f32 %v701, %v704
  %vm706 = vweird.f32 %v700
  %vm707 = vweird.f32 %v701
  %vm708 = vmor %vm706, %vm707
  %v709 = vsel %vm708, %v701, %v705
  %v710 = vand.u32 2147483647, %v700
  %vm711 = vcmp.eq.f32.partialorder %v710, 8.507059e+37
  %v712 = vand.u32 %v700, 2147483648
  %v713 = vor.u32 1.1754944e-38, %v712
  %v714 = vsel %vm711, %v713, %v709
  %v715 = vmul.f32 1.0, %v714
  %v716 = vxor.u32 %v694, 2147483648
  %v717 = vmul.f32 %v716, 1.442695
  %v718 = vpow.pop %v717
  %v719 = vadd.f32 %v718, 1.0
  %v720 = vrcp.pop %v719
  %v721 = vmul.f32 %v719, %v720
  %v722 = vsub.f32 1.0, %v721
  %v723 = vmul.f32 %v720, %v722
  %v724 = vadd.f32 %v720, %v723
  %vm725 = vweird.f32 %v719
  %vm726 = vweird.f32 %v720
  %vm727 = vmor %vm725, %vm726
  %v728 = vsel %vm727, %v720, %v724
  %v729 = vand.u32 2147483647, %v719
  %vm730 = vcmp.eq.f32.partialorder %v729, 8.507059e+37
  %v731 = vand.u32 %v719, 2147483648
  %v732 = vor.u32 1.1754944e-38, %v731
  %v733 = vsel %vm730, %v732, %v728
  %v734 = vmul.f32 1.0, %v733
  %v735 = vtanh.pop %v695
  %v736 = vxor.u32 %v696, 2147483648
  %v737 = vmul.f32 %v736, 1.442695
  %v738 = vpow.pop %v737
  %v739 = vadd.f32 %v738, 1.0
  %v740 = vrcp.pop %v739
  %v741 = vmul.f32 %v739, %v740
  %v742 = vsub.f32 1.0, %v741
  %v743 = vmul.f32 %v740, %v742
  %v744 = vadd.f32 %v740, %v743
  %vm745 = vweird.f32 %v739
  %vm746 = vweird.f32 %v740
  %vm747 = vmor %vm745, %vm746
  %v748 = vsel %vm747, %v740, %v744
  %v749 = vand.u32 2147483647, %v739
  %vm750 = vcmp.eq.f32.partialorder %v749, 8.507059e+37
  %v751 = vand.u32 %v739, 2147483648
  %v752 = vor.u32 1.1754944e-38, %v751
  %v753 = vsel %vm750, %v752, %v748
  %v754 = vmul.f32 1.0, %v753
  %v755 = vmul.f32 %v734, %v543
  %v756 = vmul.f32 %v715, %v735
  %v757 = vadd.f32 %v755, %v756
  %v758 = vtanh.pop %v757
  %v759 = vmul.f32 %v754, %v758
  %s760 = scalar_lea.vmem %s1, 8
  %v761 = vld [vmem:[%s760] sm:$0xff]
  %763 = vset.pattern.permute.xlu0 0
  %764 = vperm.xlu0 %763, %v761
  %v765 = vpop.permute.xlu0 %764
  %v767 = vmul.f32 %v765, %v759
  %v768 = vsub.f32 1.0, %v761
  %770 = vset.pattern.permute.xlu0 0
  %771 = vperm.xlu0 %770, %v768
  %v772 = vpop.permute.xlu0 %771
  %v774 = vmul.f32 %v772, %v542
  %v775 = vadd.f32 %v767, %v774
  %776 = vst [vmem:[#allocation3] sm:$0xff] %v775
  %v777 = vmul.f32 %v765, %v757
  %v778 = vmul.f32 %v772, %v543
  %v779 = vadd.f32 %v777, %v778
  %780 = vst [vmem:[#allocation4] sm:$0xff] %v779
  %s781 = scalar_lea.vmem %s5, 8
  %782 = vst [vmem:[%s781] sm:$0xff] %v767
  %v783 = vld [vmem:[#allocation3] sm:$0xff]
  %v784 = vld [vmem:[#allocation4] sm:$0xff]
  %s785 = scalar_lea.vmem [#allocation2], 64
  %v786 = vld [vmem:[%s785] sm:$0xff]
  %v787 = vld [vmem:[%s785 + $0x8] sm:$0xff]
  %v788 = vld [vmem:[%s785 + $0x10] sm:$0xff]
  %v789 = vld [vmem:[%s785 + $0x18] sm:$0xff]
  %v790 = vld [vmem:[%s3] sm:$0xff]
  %v791 = vld [vmem:[%s3 + $0x8] sm:$0xff]
  %v792 = vld [vmem:[%s3 + $0x10] sm:$0xff]
  %v793 = vld [vmem:[%s3 + $0x18] sm:$0xff]
  %v794 = vld [vmem:[%s3 + $0x20] sm:$0xff]
  %v795 = vld [vmem:[%s3 + $0x28] sm:$0xff]
  %v796 = vld [vmem:[%s3 + $0x30] sm:$0xff]
  %v797 = vld [vmem:[%s3 + $0x38] sm:$0xff]
  %v798 = vld [vmem:[%s3 + $0x40] sm:$0xff]
  %v799 = vld [vmem:[%s3 + $0x48] sm:$0xff]
  %v800 = vld [vmem:[%s3 + $0x50] sm:$0xff]
  %v801 = vld [vmem:[%s3 + $0x58] sm:$0xff]
  %v802 = vld [vmem:[%s3 + $0x60] sm:$0xff]
  %v803 = vld [vmem:[%s3 + $0x68] sm:$0xff]
  %v804 = vld [vmem:[%s3 + $0x70] sm:$0xff]
  %v805 = vld [vmem:[%s3 + $0x78] sm:$0xff]
  %v806 = vld [vmem:[%s3 + $0x80] sm:$0xff]
  %v807 = vld [vmem:[%s3 + $0x88] sm:$0xff]
  %v808 = vld [vmem:[%s3 + $0x90] sm:$0xff]
  %v809 = vld [vmem:[%s3 + $0x98] sm:$0xff]
  %v810 = vld [vmem:[%s3 + $0xa0] sm:$0xff]
  %v811 = vld [vmem:[%s3 + $0xa8] sm:$0xff]
  %v812 = vld [vmem:[%s3 + $0xb0] sm:$0xff]
  %v813 = vld [vmem:[%s3 + $0xb8] sm:$0xff]
  %v814 = vld [vmem:[%s3 + $0xc0] sm:$0xff]
  %v815 = vld [vmem:[%s3 + $0xc8] sm:$0xff]
  %v816 = vld [vmem:[%s3 + $0xd0] sm:$0xff]
  %v817 = vld [vmem:[%s3 + $0xd8] sm:$0xff]
  %v818 = vld [vmem:[%s3 + $0xe0] sm:$0xff]
  %v819 = vld [vmem:[%s3 + $0xe8] sm:$0xff]
  %v820 = vld [vmem:[%s3 + $0xf0] sm:$0xff]
  %v821 = vld [vmem:[%s3 + $0xf8] sm:$0xff]
  %v822 = vld [vmem:[%s3 + $0x100] sm:$0xff]
  %v823 = vld [vmem:[%s3 + $0x108] sm:$0xff]
  %v824 = vld [vmem:[%s3 + $0x110] sm:$0xff]
  %v825 = vld [vmem:[%s3 + $0x118] sm:$0xff]
  %v826 = vld [vmem:[%s3 + $0x120] sm:$0xff]
  %v827 = vld [vmem:[%s3 + $0x128] sm:$0xff]
  %v828 = vld [vmem:[%s3 + $0x130] sm:$0xff]
  %v829 = vld [vmem:[%s3 + $0x138] sm:$0xff]
  %v830 = vld [vmem:[%s3 + $0x140] sm:$0xff]
  %v831 = vld [vmem:[%s3 + $0x148] sm:$0xff]
  %v832 = vld [vmem:[%s3 + $0x150] sm:$0xff]
  %v833 = vld [vmem:[%s3 + $0x158] sm:$0xff]
  %v834 = vld [vmem:[%s3 + $0x160] sm:$0xff]
  %v835 = vld [vmem:[%s3 + $0x168] sm:$0xff]
  %v836 = vld [vmem:[%s3 + $0x170] sm:$0xff]
  %v837 = vld [vmem:[%s3 + $0x178] sm:$0xff]
  %v838 = vld [vmem:[%s3 + $0x180] sm:$0xff]
  %v839 = vld [vmem:[%s3 + $0x188] sm:$0xff]
  %v840 = vld [vmem:[%s3 + $0x190] sm:$0xff]
  %v841 = vld [vmem:[%s3 + $0x198] sm:$0xff]
  %v842 = vld [vmem:[%s3 + $0x1a0] sm:$0xff]
  %v843 = vld [vmem:[%s3 + $0x1a8] sm:$0xff]
  %v844 = vld [vmem:[%s3 + $0x1b0] sm:$0xff]
  %v845 = vld [vmem:[%s3 + $0x1b8] sm:$0xff]
  %v846 = vld [vmem:[%s3 + $0x1c0] sm:$0xff]
  %v847 = vld [vmem:[%s3 + $0x1c8] sm:$0xff]
  %v848 = vld [vmem:[%s3 + $0x1d0] sm:$0xff]
  %v849 = vld [vmem:[%s3 + $0x1d8] sm:$0xff]
  %v850 = vld [vmem:[%s3 + $0x1e0] sm:$0xff]
  %v851 = vld [vmem:[%s3 + $0x1e8] sm:$0xff]
  %v852 = vld [vmem:[%s3 + $0x1f0] sm:$0xff]
  %v853 = vld [vmem:[%s3 + $0x1f8] sm:$0xff]
  %854 = vmatpush.msra.mxu0 %v850
  %855 = vmatpush.msra.mxu0 %v846
  %856 = vmatpush.msra.mxu0 %v842
  %857 = vmatpush.msra.mxu0 %v838
  %858 = vmatpush.msra.mxu0 %v834
  %859 = vmatpush.msra.mxu0 %v830
  %860 = vmatpush.msra.mxu0 %v826
  %861 = vmatpush.msra.mxu0 %v822
  %862 = vmatpush.msra.mxu0 %v818
  %863 = vmatpush.msra.mxu0 %v814
  %864 = vmatpush.msra.mxu0 %v810
  %865 = vmatpush.msra.mxu0 %v806
  %866 = vmatpush.msra.mxu0 %v802
  %867 = vmatpush.msra.mxu0 %v798
  %868 = vmatpush.msra.mxu0 %v794
  %869 = vmatpush.msra.mxu0 %v790
  %870 = vmatmul.f32.gmra.mxu0 %v783
  %v871 = vpop.f32.mrf.mxu0
  %v872 = vadd.f32 0.0, %v871
  %873 = vdwg.mxu0
  %874 = vmatpush.msra.mxu0 %v851
  %875 = vmatpush.msra.mxu0 %v847
  %876 = vmatpush.msra.mxu0 %v843
  %877 = vmatpush.msra.mxu0 %v839
  %878 = vmatpush.msra.mxu0 %v835
  %879 = vmatpush.msra.mxu0 %v831
  %880 = vmatpush.msra.mxu0 %v827
  %881 = vmatpush.msra.mxu0 %v823
  %882 = vmatpush.msra.mxu0 %v819
  %883 = vmatpush.msra.mxu0 %v815
  %884 = vmatpush.msra.mxu0 %v811
  %885 = vmatpush.msra.mxu0 %v807
  %886 = vmatpush.msra.mxu0 %v803
  %887 = vmatpush.msra.mxu0 %v799
  %888 = vmatpush.msra.mxu0 %v795
  %889 = vmatpush.msra.mxu0 %v791
  %890 = vmatmul.f32.gmra.mxu0 %v783
  %v891 = vpop.f32.mrf.mxu0
  %v892 = vadd.f32 0.0, %v891
  %893 = vdwg.mxu0
  %894 = vmatpush.msra.mxu0 %v852
  %895 = vmatpush.msra.mxu0 %v848
  %896 = vmatpush.msra.mxu0 %v844
  %897 = vmatpush.msra.mxu0 %v840
  %898 = vmatpush.msra.mxu0 %v836
  %899 = vmatpush.msra.mxu0 %v832
  %900 = vmatpush.msra.mxu0 %v828
  %901 = vmatpush.msra.mxu0 %v824
  %902 = vmatpush.msra.mxu0 %v820
  %903 = vmatpush.msra.mxu0 %v816
  %904 = vmatpush.msra.mxu0 %v812
  %905 = vmatpush.msra.mxu0 %v808
  %906 = vmatpush.msra.mxu0 %v804
  %907 = vmatpush.msra.mxu0 %v800
  %908 = vmatpush.msra.mxu0 %v796
  %909 = vmatpush.msra.mxu0 %v792
  %910 = vmatmul.f32.gmra.mxu0 %v783
  %v911 = vpop.f32.mrf.mxu0
  %v912 = vadd.f32 0.0, %v911
  %913 = vdwg.mxu0
  %914 = vmatpush.msra.mxu0 %v853
  %915 = vmatpush.msra.mxu0 %v849
  %916 = vmatpush.msra.mxu0 %v845
  %917 = vmatpush.msra.mxu0 %v841
  %918 = vmatpush.msra.mxu0 %v837
  %919 = vmatpush.msra.mxu0 %v833
  %920 = vmatpush.msra.mxu0 %v829
  %921 = vmatpush.msra.mxu0 %v825
  %922 = vmatpush.msra.mxu0 %v821
  %923 = vmatpush.msra.mxu0 %v817
  %924 = vmatpush.msra.mxu0 %v813
  %925 = vmatpush.msra.mxu0 %v809
  %926 = vmatpush.msra.mxu0 %v805
  %927 = vmatpush.msra.mxu0 %v801
  %928 = vmatpush.msra.mxu0 %v797
  %929 = vmatpush.msra.mxu0 %v793
  %930 = vmatmul.f32.gmra.mxu0 %v783
  %v931 = vpop.f32.mrf.mxu0
  %v932 = vadd.f32 0.0, %v931
  %933 = vdwg.mxu0
  %v934 = vadd.f32 %v786, %v872
  %v935 = vadd.f32 %v787, %v892
  %v936 = vadd.f32 %v788, %v912
  %v937 = vadd.f32 %v789, %v932
  %v938 = vxor.u32 %v934, 2147483648
  %v939 = vmul.f32 %v938, 1.442695
  %v940 = vpow.pop %v939
  %v941 = vadd.f32 %v940, 1.0
  %v942 = vrcp.pop %v941
  %v943 = vmul.f32 %v941, %v942
  %v944 = vsub.f32 1.0, %v943
  %v945 = vmul.f32 %v942, %v944
  %v946 = vadd.f32 %v942, %v945
  %vm947 = vweird.f32 %v941
  %vm948 = vweird.f32 %v942
  %vm949 = vmor %vm947, %vm948
  %v950 = vsel %vm949, %v942, %v946
  %v951 = vand.u32 2147483647, %v941
  %vm952 = vcmp.eq.f32.partialorder %v951, 8.507059e+37
  %v953 = vand.u32 %v941, 2147483648
  %v954 = vor.u32 1.1754944e-38, %v953
  %v955 = vsel %vm952, %v954, %v950
  %v956 = vmul.f32 1.0, %v955
  %v957 = vxor.u32 %v935, 2147483648
  %v958 = vmul.f32 %v957, 1.442695
  %v959 = vpow.pop %v958
  %v960 = vadd.f32 %v959, 1.0
  %v961 = vrcp.pop %v960
  %v962 = vmul.f32 %v960, %v961
  %v963 = vsub.f32 1.0, %v962
  %v964 = vmul.f32 %v961, %v963
  %v965 = vadd.f32 %v961, %v964
  %vm966 = vweird.f32 %v960
  %vm967 = vweird.f32 %v961
  %vm968 = vmor %vm966, %vm967
  %v969 = vsel %vm968, %v961, %v965
  %v970 = vand.u32 2147483647, %v960
  %vm971 = vcmp.eq.f32.partialorder %v970, 8.507059e+37
  %v972 = vand.u32 %v960, 2147483648
  %v973 = vor.u32 1.1754944e-38, %v972
  %v974 = vsel %vm971, %v973, %v969
  %v975 = vmul.f32 1.0, %v974
  %v976 = vtanh.pop %v936
  %v977 = vxor.u32 %v937, 2147483648
  %v978 = vmul.f32 %v977, 1.442695
  %v979 = vpow.pop %v978
  %v980 = vadd.f32 %v979, 1.0
  %v981 = vrcp.pop %v980
  %v982 = vmul.f32 %v980, %v981
  %v983 = vsub.f32 1.0, %v982
  %v984 = vmul.f32 %v981, %v983
  %v985 = vadd.f32 %v981, %v984
  %vm986 = vweird.f32 %v980
  %vm987 = vweird.f32 %v981
  %vm988 = vmor %vm986, %vm987
  %v989 = vsel %vm988, %v981, %v985
  %v990 = vand.u32 2147483647, %v980
  %vm991 = vcmp.eq.f32.partialorder %v990, 8.507059e+37
  %v992 = vand.u32 %v980, 2147483648
  %v993 = vor.u32 1.1754944e-38, %v992
  %v994 = vsel %vm991, %v993, %v989
  %v995 = vmul.f32 1.0, %v994
  %v996 = vmul.f32 %v975, %v784
  %v997 = vmul.f32 %v956, %v976
  %v998 = vadd.f32 %v996, %v997
  %v999 = vtanh.pop %v998
  %v1000 = vmul.f32 %v995, %v999
  %s1001 = scalar_lea.vmem %s1, 16
  %v1002 = vld [vmem:[%s1001] sm:$0xff]
  %1004 = vset.pattern.permute.xlu0 0
  %1005 = vperm.xlu0 %1004, %v1002
  %v1006 = vpop.permute.xlu0 %1005
  %v1008 = vmul.f32 %v1006, %v1000
  %v1009 = vsub.f32 1.0, %v1002
  %1011 = vset.pattern.permute.xlu0 0
  %1012 = vperm.xlu0 %1011, %v1009
  %v1013 = vpop.permute.xlu0 %1012
  %v1015 = vmul.f32 %v1013, %v783
  %v1016 = vadd.f32 %v1008, %v1015
  %1017 = vst [vmem:[#allocation3] sm:$0xff] %v1016
  %v1018 = vmul.f32 %v1006, %v998
  %v1019 = vmul.f32 %v1013, %v784
  %v1020 = vadd.f32 %v1018, %v1019
  %1021 = vst [vmem:[#allocation4] sm:$0xff] %v1020
  %s1022 = scalar_lea.vmem %s5, 16
  %1023 = vst [vmem:[%s1022] sm:$0xff] %v1008
  %v1024 = vld [vmem:[#allocation3] sm:$0xff]
  %v1025 = vld [vmem:[#allocation4] sm:$0xff]
  %s1026 = scalar_lea.vmem [#allocation2], 96
  %v1027 = vld [vmem:[%s1026] sm:$0xff]
  %v1028 = vld [vmem:[%s1026 + $0x8] sm:$0xff]
  %v1029 = vld [vmem:[%s1026 + $0x10] sm:$0xff]
  %v1030 = vld [vmem:[%s1026 + $0x18] sm:$0xff]
  %v1031 = vld [vmem:[%s3] sm:$0xff]
  %v1032 = vld [vmem:[%s3 + $0x8] sm:$0xff]
  %v1033 = vld [vmem:[%s3 + $0x10] sm:$0xff]
  %v1034 = vld [vmem:[%s3 + $0x18] sm:$0xff]
  %v1035 = vld [vmem:[%s3 + $0x20] sm:$0xff]
  %v1036 = vld [vmem:[%s3 + $0x28] sm:$0xff]
  %v1037 = vld [vmem:[%s3 + $0x30] sm:$0xff]
  %v1038 = vld [vmem:[%s3 + $0x38] sm:$0xff]
  %v1039 = vld [vmem:[%s3 + $0x40] sm:$0xff]
  %v1040 = vld [vmem:[%s3 + $0x48] sm:$0xff]
  %v1041 = vld [vmem:[%s3 + $0x50] sm:$0xff]
  %v1042 = vld [vmem:[%s3 + $0x58] sm:$0xff]
  %v1043 = vld [vmem:[%s3 + $0x60] sm:$0xff]
  %v1044 = vld [vmem:[%s3 + $0x68] sm:$0xff]
  %v1045 = vld [vmem:[%s3 + $0x70] sm:$0xff]
  %v1046 = vld [vmem:[%s3 + $0x78] sm:$0xff]
  %v1047 = vld [vmem:[%s3 + $0x80] sm:$0xff]
  %v1048 = vld [vmem:[%s3 + $0x88] sm:$0xff]
  %v1049 = vld [vmem:[%s3 + $0x90] sm:$0xff]
  %v1050 = vld [vmem:[%s3 + $0x98] sm:$0xff]
  %v1051 = vld [vmem:[%s3 + $0xa0] sm:$0xff]
  %v1052 = vld [vmem:[%s3 + $0xa8] sm:$0xff]
  %v1053 = vld [vmem:[%s3 + $0xb0] sm:$0xff]
  %v1054 = vld [vmem:[%s3 + $0xb8] sm:$0xff]
  %v1055 = vld [vmem:[%s3 + $0xc0] sm:$0xff]
  %v1056 = vld [vmem:[%s3 + $0xc8] sm:$0xff]
  %v1057 = vld [vmem:[%s3 + $0xd0] sm:$0xff]
  %v1058 = vld [vmem:[%s3 + $0xd8] sm:$0xff]
  %v1059 = vld [vmem:[%s3 + $0xe0] sm:$0xff]
  %v1060 = vld [vmem:[%s3 + $0xe8] sm:$0xff]
  %v1061 = vld [vmem:[%s3 + $0xf0] sm:$0xff]
  %v1062 = vld [vmem:[%s3 + $0xf8] sm:$0xff]
  %v1063 = vld [vmem:[%s3 + $0x100] sm:$0xff]
  %v1064 = vld [vmem:[%s3 + $0x108] sm:$0xff]
  %v1065 = vld [vmem:[%s3 + $0x110] sm:$0xff]
  %v1066 = vld [vmem:[%s3 + $0x118] sm:$0xff]
  %v1067 = vld [vmem:[%s3 + $0x120] sm:$0xff]
  %v1068 = vld [vmem:[%s3 + $0x128] sm:$0xff]
  %v1069 = vld [vmem:[%s3 + $0x130] sm:$0xff]
  %v1070 = vld [vmem:[%s3 + $0x138] sm:$0xff]
  %v1071 = vld [vmem:[%s3 + $0x140] sm:$0xff]
  %v1072 = vld [vmem:[%s3 + $0x148] sm:$0xff]
  %v1073 = vld [vmem:[%s3 + $0x150] sm:$0xff]
  %v1074 = vld [vmem:[%s3 + $0x158] sm:$0xff]
  %v1075 = vld [vmem:[%s3 + $0x160] sm:$0xff]
  %v1076 = vld [vmem:[%s3 + $0x168] sm:$0xff]
  %v1077 = vld [vmem:[%s3 + $0x170] sm:$0xff]
  %v1078 = vld [vmem:[%s3 + $0x178] sm:$0xff]
  %v1079 = vld [vmem:[%s3 + $0x180] sm:$0xff]
  %v1080 = vld [vmem:[%s3 + $0x188] sm:$0xff]
  %v1081 = vld [vmem:[%s3 + $0x190] sm:$0xff]
  %v1082 = vld [vmem:[%s3 + $0x198] sm:$0xff]
  %v1083 = vld [vmem:[%s3 + $0x1a0] sm:$0xff]
  %v1084 = vld [vmem:[%s3 + $0x1a8] sm:$0xff]
  %v1085 = vld [vmem:[%s3 + $0x1b0] sm:$0xff]
  %v1086 = vld [vmem:[%s3 + $0x1b8] sm:$0xff]
  %v1087 = vld [vmem:[%s3 + $0x1c0] sm:$0xff]
  %v1088 = vld [vmem:[%s3 + $0x1c8] sm:$0xff]
  %v1089 = vld [vmem:[%s3 + $0x1d0] sm:$0xff]
  %v1090 = vld [vmem:[%s3 + $0x1d8] sm:$0xff]
  %v1091 = vld [vmem:[%s3 + $0x1e0] sm:$0xff]
  %v1092 = vld [vmem:[%s3 + $0x1e8] sm:$0xff]
  %v1093 = vld [vmem:[%s3 + $0x1f0] sm:$0xff]
  %v1094 = vld [vmem:[%s3 + $0x1f8] sm:$0xff]
  %1095 = vmatpush.msra.mxu0 %v1091
  %1096 = vmatpush.msra.mxu0 %v1087
  %1097 = vmatpush.msra.mxu0 %v1083
  %1098 = vmatpush.msra.mxu0 %v1079
  %1099 = vmatpush.msra.mxu0 %v1075
  %1100 = vmatpush.msra.mxu0 %v1071
  %1101 = vmatpush.msra.mxu0 %v1067
  %1102 = vmatpush.msra.mxu0 %v1063
  %1103 = vmatpush.msra.mxu0 %v1059
  %1104 = vmatpush.msra.mxu0 %v1055
  %1105 = vmatpush.msra.mxu0 %v1051
  %1106 = vmatpush.msra.mxu0 %v1047
  %1107 = vmatpush.msra.mxu0 %v1043
  %1108 = vmatpush.msra.mxu0 %v1039
  %1109 = vmatpush.msra.mxu0 %v1035
  %1110 = vmatpush.msra.mxu0 %v1031
  %1111 = vmatmul.f32.gmra.mxu0 %v1024
  %v1112 = vpop.f32.mrf.mxu0
  %v1113 = vadd.f32 0.0, %v1112
  %1114 = vdwg.mxu0
  %1115 = vmatpush.msra.mxu0 %v1092
  %1116 = vmatpush.msra.mxu0 %v1088
  %1117 = vmatpush.msra.mxu0 %v1084
  %1118 = vmatpush.msra.mxu0 %v1080
  %1119 = vmatpush.msra.mxu0 %v1076
  %1120 = vmatpush.msra.mxu0 %v1072
  %1121 = vmatpush.msra.mxu0 %v1068
  %1122 = vmatpush.msra.mxu0 %v1064
  %1123 = vmatpush.msra.mxu0 %v1060
  %1124 = vmatpush.msra.mxu0 %v1056
  %1125 = vmatpush.msra.mxu0 %v1052
  %1126 = vmatpush.msra.mxu0 %v1048
  %1127 = vmatpush.msra.mxu0 %v1044
  %1128 = vmatpush.msra.mxu0 %v1040
  %1129 = vmatpush.msra.mxu0 %v1036
  %1130 = vmatpush.msra.mxu0 %v1032
  %1131 = vmatmul.f32.gmra.mxu0 %v1024
  %v1132 = vpop.f32.mrf.mxu0
  %v1133 = vadd.f32 0.0, %v1132
  %1134 = vdwg.mxu0
  %1135 = vmatpush.msra.mxu0 %v1093
  %1136 = vmatpush.msra.mxu0 %v1089
  %1137 = vmatpush.msra.mxu0 %v1085
  %1138 = vmatpush.msra.mxu0 %v1081
  %1139 = vmatpush.msra.mxu0 %v1077
  %1140 = vmatpush.msra.mxu0 %v1073
  %1141 = vmatpush.msra.mxu0 %v1069
  %1142 = vmatpush.msra.mxu0 %v1065
  %1143 = vmatpush.msra.mxu0 %v1061
  %1144 = vmatpush.msra.mxu0 %v1057
  %1145 = vmatpush.msra.mxu0 %v1053
  %1146 = vmatpush.msra.mxu0 %v1049
  %1147 = vmatpush.msra.mxu0 %v1045
  %1148 = vmatpush.msra.mxu0 %v1041
  %1149 = vmatpush.msra.mxu0 %v1037
  %1150 = vmatpush.msra.mxu0 %v1033
  %1151 = vmatmul.f32.gmra.mxu0 %v1024
  %v1152 = vpop.f32.mrf.mxu0
  %v1153 = vadd.f32 0.0, %v1152
  %1154 = vdwg.mxu0
  %1155 = vmatpush.msra.mxu0 %v1094
  %1156 = vmatpush.msra.mxu0 %v1090
  %1157 = vmatpush.msra.mxu0 %v1086
  %1158 = vmatpush.msra.mxu0 %v1082
  %1159 = vmatpush.msra.mxu0 %v1078
  %1160 = vmatpush.msra.mxu0 %v1074
  %1161 = vmatpush.msra.mxu0 %v1070
  %1162 = vmatpush.msra.mxu0 %v1066
  %1163 = vmatpush.msra.mxu0 %v1062
  %1164 = vmatpush.msra.mxu0 %v1058
  %1165 = vmatpush.msra.mxu0 %v1054
  %1166 = vmatpush.msra.mxu0 %v1050
  %1167 = vmatpush.msra.mxu0 %v1046
  %1168 = vmatpush.msra.mxu0 %v1042
  %1169 = vmatpush.msra.mxu0 %v1038
  %1170 = vmatpush.msra.mxu0 %v1034
  %1171 = vmatmul.f32.gmra.mxu0 %v1024
  %v1172 = vpop.f32.mrf.mxu0
  %v1173 = vadd.f32 0.0, %v1172
  %1174 = vdwg.mxu0
  %v1175 = vadd.f32 %v1027, %v1113
  %v1176 = vadd.f32 %v1028, %v1133
  %v1177 = vadd.f32 %v1029, %v1153
  %v1178 = vadd.f32 %v1030, %v1173
  %v1179 = vxor.u32 %v1175, 2147483648
  %v1180 = vmul.f32 %v1179, 1.442695
  %v1181 = vpow.pop %v1180
  %v1182 = vadd.f32 %v1181, 1.0
  %v1183 = vrcp.pop %v1182
  %v1184 = vmul.f32 %v1182, %v1183
  %v1185 = vsub.f32 1.0, %v1184
  %v1186 = vmul.f32 %v1183, %v1185
  %v1187 = vadd.f32 %v1183, %v1186
  %vm1188 = vweird.f32 %v1182
  %vm1189 = vweird.f32 %v1183
  %vm1190 = vmor %vm1188, %vm1189
  %v1191 = vsel %vm1190, %v1183, %v1187
  %v1192 = vand.u32 2147483647, %v1182
  %vm1193 = vcmp.eq.f32.partialorder %v1192, 8.507059e+37
  %v1194 = vand.u32 %v1182, 2147483648
  %v1195 = vor.u32 1.1754944e-38, %v1194
  %v1196 = vsel %vm1193, %v1195, %v1191
  %v1197 = vmul.f32 1.0, %v1196
  %v1198 = vxor.u32 %v1176, 2147483648
  %v1199 = vmul.f32 %v1198, 1.442695
  %v1200 = vpow.pop %v1199
  %v1201 = vadd.f32 %v1200, 1.0
  %v1202 = vrcp.pop %v1201
  %v1203 = vmul.f32 %v1201, %v1202
  %v1204 = vsub.f32 1.0, %v1203
  %v1205 = vmul.f32 %v1202, %v1204
  %v1206 = vadd.f32 %v1202, %v1205
  %vm1207 = vweird.f32 %v1201
  %vm1208 = vweird.f32 %v1202
  %vm1209 = vmor %vm1207, %vm1208
  %v1210 = vsel %vm1209, %v1202, %v1206
  %v1211 = vand.u32 2147483647, %v1201
  %vm1212 = vcmp.eq.f32.partialorder %v1211, 8.507059e+37
  %v1213 = vand.u32 %v1201, 2147483648
  %v1214 = vor.u32 1.1754944e-38, %v1213
  %v1215 = vsel %vm1212, %v1214, %v1210
  %v1216 = vmul.f32 1.0, %v1215
  %v1217 = vtanh.pop %v1177
  %v1218 = vxor.u32 %v1178, 2147483648
  %v1219 = vmul.f32 %v1218, 1.442695
  %v1220 = vpow.pop %v1219
  %v1221 = vadd.f32 %v1220, 1.0
  %v1222 = vrcp.pop %v1221
  %v1223 = vmul.f32 %v1221, %v1222
  %v1224 = vsub.f32 1.0, %v1223
  %v1225 = vmul.f32 %v1222, %v1224
  %v1226 = vadd.f32 %v1222, %v1225
  %vm1227 = vweird.f32 %v1221
  %vm1228 = vweird.f32 %v1222
  %vm1229 = vmor %vm1227, %vm1228
  %v1230 = vsel %vm1229, %v1222, %v1226
  %v1231 = vand.u32 2147483647, %v1221
  %vm1232 = vcmp.eq.f32.partialorder %v1231, 8.507059e+37
  %v1233 = vand.u32 %v1221, 2147483648
  %v1234 = vor.u32 1.1754944e-38, %v1233
  %v1235 = vsel %vm1232, %v1234, %v1230
  %v1236 = vmul.f32 1.0, %v1235
  %v1237 = vmul.f32 %v1216, %v1025
  %v1238 = vmul.f32 %v1197, %v1217
  %v1239 = vadd.f32 %v1237, %v1238
  %v1240 = vtanh.pop %v1239
  %v1241 = vmul.f32 %v1236, %v1240
  %s1242 = scalar_lea.vmem %s1, 24
  %v1243 = vld [vmem:[%s1242] sm:$0xff]
  %1245 = vset.pattern.permute.xlu0 0
  %1246 = vperm.xlu0 %1245, %v1243
  %v1247 = vpop.permute.xlu0 %1246
  %v1249 = vmul.f32 %v1247, %v1241
  %v1250 = vsub.f32 1.0, %v1243
  %1252 = vset.pattern.permute.xlu0 0
  %1253 = vperm.xlu0 %1252, %v1250
  %v1254 = vpop.permute.xlu0 %1253
  %v1256 = vmul.f32 %v1254, %v1024
  %v1257 = vadd.f32 %v1249, %v1256
  %1258 = vst [vmem:[#allocation3] sm:$0xff] %v1257
  %v1259 = vmul.f32 %v1247, %v1239
  %v1260 = vmul.f32 %v1254, %v1025
  %v1261 = vadd.f32 %v1259, %v1260
  %1262 = vst [vmem:[#allocation4] sm:$0xff] %v1261
  %s1263 = scalar_lea.vmem %s5, 24
  %1264 = vst [vmem:[%s1263] sm:$0xff] %v1249
  %v1265 = vld [vmem:[#allocation3] sm:$0xff]
  %v1266 = vld [vmem:[#allocation4] sm:$0xff]
  %s1267 = scalar_lea.vmem [#allocation2], 128
  %v1268 = vld [vmem:[%s1267] sm:$0xff]
  %v1269 = vld [vmem:[%s1267 + $0x8] sm:$0xff]
  %v1270 = vld [vmem:[%s1267 + $0x10] sm:$0xff]
  %v1271 = vld [vmem:[%s1267 + $0x18] sm:$0xff]
  %v1272 = vld [vmem:[%s3] sm:$0xff]
  %v1273 = vld [vmem:[%s3 + $0x8] sm:$0xff]
  %v1274 = vld [vmem:[%s3 + $0x10] sm:$0xff]
  %v1275 = vld [vmem:[%s3 + $0x18] sm:$0xff]
  %v1276 = vld [vmem:[%s3 + $0x20] sm:$0xff]
  %v1277 = vld [vmem:[%s3 + $0x28] sm:$0xff]
  %v1278 = vld [vmem:[%s3 + $0x30] sm:$0xff]
  %v1279 = vld [vmem:[%s3 + $0x38] sm:$0xff]
  %v1280 = vld [vmem:[%s3 + $0x40] sm:$0xff]
  %v1281 = vld [vmem:[%s3 + $0x48] sm:$0xff]
  %v1282 = vld [vmem:[%s3 + $0x50] sm:$0xff]
  %v1283 = vld [vmem:[%s3 + $0x58] sm:$0xff]
  %v1284 = vld [vmem:[%s3 + $0x60] sm:$0xff]
  %v1285 = vld [vmem:[%s3 + $0x68] sm:$0xff]
  %v1286 = vld [vmem:[%s3 + $0x70] sm:$0xff]
  %v1287 = vld [vmem:[%s3 + $0x78] sm:$0xff]
  %v1288 = vld [vmem:[%s3 + $0x80] sm:$0xff]
  %v1289 = vld [vmem:[%s3 + $0x88] sm:$0xff]
  %v1290 = vld [vmem:[%s3 + $0x90] sm:$0xff]
  %v1291 = vld [vmem:[%s3 + $0x98] sm:$0xff]
  %v1292 = vld [vmem:[%s3 + $0xa0] sm:$0xff]
  %v1293 = vld [vmem:[%s3 + $0xa8] sm:$0xff]
  %v1294 = vld [vmem:[%s3 + $0xb0] sm:$0xff]
  %v1295 = vld [vmem:[%s3 + $0xb8] sm:$0xff]
  %v1296 = vld [vmem:[%s3 + $0xc0] sm:$0xff]
  %v1297 = vld [vmem:[%s3 + $0xc8] sm:$0xff]
  %v1298 = vld [vmem:[%s3 + $0xd0] sm:$0xff]
  %v1299 = vld [vmem:[%s3 + $0xd8] sm:$0xff]
  %v1300 = vld [vmem:[%s3 + $0xe0] sm:$0xff]
  %v1301 = vld [vmem:[%s3 + $0xe8] sm:$0xff]
  %v1302 = vld [vmem:[%s3 + $0xf0] sm:$0xff]
  %v1303 = vld [vmem:[%s3 + $0xf8] sm:$0xff]
  %v1304 = vld [vmem:[%s3 + $0x100] sm:$0xff]
  %v1305 = vld [vmem:[%s3 + $0x108] sm:$0xff]
  %v1306 = vld [vmem:[%s3 + $0x110] sm:$0xff]
  %v1307 = vld [vmem:[%s3 + $0x118] sm:$0xff]
  %v1308 = vld [vmem:[%s3 + $0x120] sm:$0xff]
  %v1309 = vld [vmem:[%s3 + $0x128] sm:$0xff]
  %v1310 = vld [vmem:[%s3 + $0x130] sm:$0xff]
  %v1311 = vld [vmem:[%s3 + $0x138] sm:$0xff]
  %v1312 = vld [vmem:[%s3 + $0x140] sm:$0xff]
  %v1313 = vld [vmem:[%s3 + $0x148] sm:$0xff]
  %v1314 = vld [vmem:[%s3 + $0x150] sm:$0xff]
  %v1315 = vld [vmem:[%s3 + $0x158] sm:$0xff]
  %v1316 = vld [vmem:[%s3 + $0x160] sm:$0xff]
  %v1317 = vld [vmem:[%s3 + $0x168] sm:$0xff]
  %v1318 = vld [vmem:[%s3 + $0x170] sm:$0xff]
  %v1319 = vld [vmem:[%s3 + $0x178] sm:$0xff]
  %v1320 = vld [vmem:[%s3 + $0x180] sm:$0xff]
  %v1321 = vld [vmem:[%s3 + $0x188] sm:$0xff]
  %v1322 = vld [vmem:[%s3 + $0x190] sm:$0xff]
  %v1323 = vld [vmem:[%s3 + $0x198] sm:$0xff]
  %v1324 = vld [vmem:[%s3 + $0x1a0] sm:$0xff]
  %v1325 = vld [vmem:[%s3 + $0x1a8] sm:$0xff]
  %v1326 = vld [vmem:[%s3 + $0x1b0] sm:$0xff]
  %v1327 = vld [vmem:[%s3 + $0x1b8] sm:$0xff]
  %v1328 = vld [vmem:[%s3 + $0x1c0] sm:$0xff]
  %v1329 = vld [vmem:[%s3 + $0x1c8] sm:$0xff]
  %v1330 = vld [vmem:[%s3 + $0x1d0] sm:$0xff]
  %v1331 = vld [vmem:[%s3 + $0x1d8] sm:$0xff]
  %v1332 = vld [vmem:[%s3 + $0x1e0] sm:$0xff]
  %v1333 = vld [vmem:[%s3 + $0x1e8] sm:$0xff]
  %v1334 = vld [vmem:[%s3 + $0x1f0] sm:$0xff]
  %v1335 = vld [vmem:[%s3 + $0x1f8] sm:$0xff]
  %1336 = vmatpush.msra.mxu0 %v1332
  %1337 = vmatpush.msra.mxu0 %v1328
  %1338 = vmatpush.msra.mxu0 %v1324
  %1339 = vmatpush.msra.mxu0 %v1320
  %1340 = vmatpush.msra.mxu0 %v1316
  %1341 = vmatpush.msra.mxu0 %v1312
  %1342 = vmatpush.msra.mxu0 %v1308
  %1343 = vmatpush.msra.mxu0 %v1304
  %1344 = vmatpush.msra.mxu0 %v1300
  %1345 = vmatpush.msra.mxu0 %v1296
  %1346 = vmatpush.msra.mxu0 %v1292
  %1347 = vmatpush.msra.mxu0 %v1288
  %1348 = vmatpush.msra.mxu0 %v1284
  %1349 = vmatpush.msra.mxu0 %v1280
  %1350 = vmatpush.msra.mxu0 %v1276
  %1351 = vmatpush.msra.mxu0 %v1272
  %1352 = vmatmul.f32.gmra.mxu0 %v1265
  %v1353 = vpop.f32.mrf.mxu0
  %v1354 = vadd.f32 0.0, %v1353
  %1355 = vdwg.mxu0
  %1356 = vmatpush.msra.mxu0 %v1333
  %1357 = vmatpush.msra.mxu0 %v1329
  %1358 = vmatpush.msra.mxu0 %v1325
  %1359 = vmatpush.msra.mxu0 %v1321
  %1360 = vmatpush.msra.mxu0 %v1317
  %1361 = vmatpush.msra.mxu0 %v1313
  %1362 = vmatpush.msra.mxu0 %v1309
  %1363 = vmatpush.msra.mxu0 %v1305
  %1364 = vmatpush.msra.mxu0 %v1301
  %1365 = vmatpush.msra.mxu0 %v1297
  %1366 = vmatpush.msra.mxu0 %v1293
  %1367 = vmatpush.msra.mxu0 %v1289
  %1368 = vmatpush.msra.mxu0 %v1285
  %1369 = vmatpush.msra.mxu0 %v1281
  %1370 = vmatpush.msra.mxu0 %v1277
  %1371 = vmatpush.msra.mxu0 %v1273
  %1372 = vmatmul.f32.gmra.mxu0 %v1265
  %v1373 = vpop.f32.mrf.mxu0
  %v1374 = vadd.f32 0.0, %v1373
  %1375 = vdwg.mxu0
  %1376 = vmatpush.msra.mxu0 %v1334
  %1377 = vmatpush.msra.mxu0 %v1330
  %1378 = vmatpush.msra.mxu0 %v1326
  %1379 = vmatpush.msra.mxu0 %v1322
  %1380 = vmatpush.msra.mxu0 %v1318
  %1381 = vmatpush.msra.mxu0 %v1314
  %1382 = vmatpush.msra.mxu0 %v1310
  %1383 = vmatpush.msra.mxu0 %v1306
  %1384 = vmatpush.msra.mxu0 %v1302
  %1385 = vmatpush.msra.mxu0 %v1298
  %1386 = vmatpush.msra.mxu0 %v1294
  %1387 = vmatpush.msra.mxu0 %v1290
  %1388 = vmatpush.msra.mxu0 %v1286
  %1389 = vmatpush.msra.mxu0 %v1282
  %1390 = vmatpush.msra.mxu0 %v1278
  %1391 = vmatpush.msra.mxu0 %v1274
  %1392 = vmatmul.f32.gmra.mxu0 %v1265
  %v1393 = vpop.f32.mrf.mxu0
  %v1394 = vadd.f32 0.0, %v1393
  %1395 = vdwg.mxu0
  %1396 = vmatpush.msra.mxu0 %v1335
  %1397 = vmatpush.msra.mxu0 %v1331
  %1398 = vmatpush.msra.mxu0 %v1327
  %1399 = vmatpush.msra.mxu0 %v1323
  %1400 = vmatpush.msra.mxu0 %v1319
  %1401 = vmatpush.msra.mxu0 %v1315
  %1402 = vmatpush.msra.mxu0 %v1311
  %1403 = vmatpush.msra.mxu0 %v1307
  %1404 = vmatpush.msra.mxu0 %v1303
  %1405 = vmatpush.msra.mxu0 %v1299
  %1406 = vmatpush.msra.mxu0 %v1295
  %1407 = vmatpush.msra.mxu0 %v1291
  %1408 = vmatpush.msra.mxu0 %v1287
  %1409 = vmatpush.msra.mxu0 %v1283
  %1410 = vmatpush.msra.mxu0 %v1279
  %1411 = vmatpush.msra.mxu0 %v1275
  %1412 = vmatmul.f32.gmra.mxu0 %v1265
  %v1413 = vpop.f32.mrf.mxu0
  %v1414 = vadd.f32 0.0, %v1413
  %1415 = vdwg.mxu0
  %v1416 = vadd.f32 %v1268, %v1354
  %v1417 = vadd.f32 %v1269, %v1374
  %v1418 = vadd.f32 %v1270, %v1394
  %v1419 = vadd.f32 %v1271, %v1414
  %v1420 = vxor.u32 %v1416, 2147483648
  %v1421 = vmul.f32 %v1420, 1.442695
  %v1422 = vpow.pop %v1421
  %v1423 = vadd.f32 %v1422, 1.0
  %v1424 = vrcp.pop %v1423
  %v1425 = vmul.f32 %v1423, %v1424
  %v1426 = vsub.f32 1.0, %v1425
  %v1427 = vmul.f32 %v1424, %v1426
  %v1428 = vadd.f32 %v1424, %v1427
  %vm1429 = vweird.f32 %v1423
  %vm1430 = vweird.f32 %v1424
  %vm1431 = vmor %vm1429, %vm1430
  %v1432 = vsel %vm1431, %v1424, %v1428
  %v1433 = vand.u32 2147483647, %v1423
  %vm1434 = vcmp.eq.f32.partialorder %v1433, 8.507059e+37
  %v1435 = vand.u32 %v1423, 2147483648
  %v1436 = vor.u32 1.1754944e-38, %v1435
  %v1437 = vsel %vm1434, %v1436, %v1432
  %v1438 = vmul.f32 1.0, %v1437
  %v1439 = vxor.u32 %v1417, 2147483648
  %v1440 = vmul.f32 %v1439, 1.442695
  %v1441 = vpow.pop %v1440
  %v1442 = vadd.f32 %v1441, 1.0
  %v1443 = vrcp.pop %v1442
  %v1444 = vmul.f32 %v1442, %v1443
  %v1445 = vsub.f32 1.0, %v1444
  %v1446 = vmul.f32 %v1443, %v1445
  %v1447 = vadd.f32 %v1443, %v1446
  %vm1448 = vweird.f32 %v1442
  %vm1449 = vweird.f32 %v1443
  %vm1450 = vmor %vm1448, %vm1449
  %v1451 = vsel %vm1450, %v1443, %v1447
  %v1452 = vand.u32 2147483647, %v1442
  %vm1453 = vcmp.eq.f32.partialorder %v1452, 8.507059e+37
  %v1454 = vand.u32 %v1442, 2147483648
  %v1455 = vor.u32 1.1754944e-38, %v1454
  %v1456 = vsel %vm1453, %v1455, %v1451
  %v1457 = vmul.f32 1.0, %v1456
  %v1458 = vtanh.pop %v1418
  %v1459 = vxor.u32 %v1419, 2147483648
  %v1460 = vmul.f32 %v1459, 1.442695
  %v1461 = vpow.pop %v1460
  %v1462 = vadd.f32 %v1461, 1.0
  %v1463 = vrcp.pop %v1462
  %v1464 = vmul.f32 %v1462, %v1463
  %v1465 = vsub.f32 1.0, %v1464
  %v1466 = vmul.f32 %v1463, %v1465
  %v1467 = vadd.f32 %v1463, %v1466
  %vm1468 = vweird.f32 %v1462
  %vm1469 = vweird.f32 %v1463
  %vm1470 = vmor %vm1468, %vm1469
  %v1471 = vsel %vm1470, %v1463, %v1467
  %v1472 = vand.u32 2147483647, %v1462
  %vm1473 = vcmp.eq.f32.partialorder %v1472, 8.507059e+37
  %v1474 = vand.u32 %v1462, 2147483648
  %v1475 = vor.u32 1.1754944e-38, %v1474
  %v1476 = vsel %vm1473, %v1475, %v1471
  %v1477 = vmul.f32 1.0, %v1476
  %v1478 = vmul.f32 %v1457, %v1266
  %v1479 = vmul.f32 %v1438, %v1458
  %v1480 = vadd.f32 %v1478, %v1479
  %v1481 = vtanh.pop %v1480
  %v1482 = vmul.f32 %v1477, %v1481
  %s1483 = scalar_lea.vmem %s1, 32
  %v1484 = vld [vmem:[%s1483] sm:$0xff]
  %1486 = vset.pattern.permute.xlu0 0
  %1487 = vperm.xlu0 %1486, %v1484
  %v1488 = vpop.permute.xlu0 %1487
  %v1490 = vmul.f32 %v1488, %v1482
  %v1491 = vsub.f32 1.0, %v1484
  %1493 = vset.pattern.permute.xlu0 0
  %1494 = vperm.xlu0 %1493, %v1491
  %v1495 = vpop.permute.xlu0 %1494
  %v1497 = vmul.f32 %v1495, %v1265
  %v1498 = vadd.f32 %v1490, %v1497
  %1499 = vst [vmem:[#allocation3] sm:$0xff] %v1498
  %v1500 = vmul.f32 %v1488, %v1480
  %v1501 = vmul.f32 %v1495, %v1266
  %v1502 = vadd.f32 %v1500, %v1501
  %1503 = vst [vmem:[#allocation4] sm:$0xff] %v1502
  %s1504 = scalar_lea.vmem %s5, 32
  %1505 = vst [vmem:[%s1504] sm:$0xff] %v1490
  %v1506 = vld [vmem:[#allocation3] sm:$0xff]
  %v1507 = vld [vmem:[#allocation4] sm:$0xff]
  %s1508 = scalar_lea.vmem [#allocation2], 160
  %v1509 = vld [vmem:[%s1508] sm:$0xff]
  %v1510 = vld [vmem:[%s1508 + $0x8] sm:$0xff]
  %v1511 = vld [vmem:[%s1508 + $0x10] sm:$0xff]
  %v1512 = vld [vmem:[%s1508 + $0x18] sm:$0xff]
  %v1513 = vld [vmem:[%s3] sm:$0xff]
  %v1514 = vld [vmem:[%s3 + $0x8] sm:$0xff]
  %v1515 = vld [vmem:[%s3 + $0x10] sm:$0xff]
  %v1516 = vld [vmem:[%s3 + $0x18] sm:$0xff]
  %v1517 = vld [vmem:[%s3 + $0x20] sm:$0xff]
  %v1518 = vld [vmem:[%s3 + $0x28] sm:$0xff]
  %v1519 = vld [vmem:[%s3 + $0x30] sm:$0xff]
  %v1520 = vld [vmem:[%s3 + $0x38] sm:$0xff]
  %v1521 = vld [vmem:[%s3 + $0x40] sm:$0xff]
  %v1522 = vld [vmem:[%s3 + $0x48] sm:$0xff]
  %v1523 = vld [vmem:[%s3 + $0x50] sm:$0xff]
  %v1524 = vld [vmem:[%s3 + $0x58] sm:$0xff]
  %v1525 = vld [vmem:[%s3 + $0x60] sm:$0xff]
  %v1526 = vld [vmem:[%s3 + $0x68] sm:$0xff]
  %v1527 = vld [vmem:[%s3 + $0x70] sm:$0xff]
  %v1528 = vld [vmem:[%s3 + $0x78] sm:$0xff]
  %v1529 = vld [vmem:[%s3 + $0x80] sm:$0xff]
  %v1530 = vld [vmem:[%s3 + $0x88] sm:$0xff]
  %v1531 = vld [vmem:[%s3 + $0x90] sm:$0xff]
  %v1532 = vld [vmem:[%s3 + $0x98] sm:$0xff]
  %v1533 = vld [vmem:[%s3 + $0xa0] sm:$0xff]
  %v1534 = vld [vmem:[%s3 + $0xa8] sm:$0xff]
  %v1535 = vld [vmem:[%s3 + $0xb0] sm:$0xff]
  %v1536 = vld [vmem:[%s3 + $0xb8] sm:$0xff]
  %v1537 = vld [vmem:[%s3 + $0xc0] sm:$0xff]
  %v1538 = vld [vmem:[%s3 + $0xc8] sm:$0xff]
  %v1539 = vld [vmem:[%s3 + $0xd0] sm:$0xff]
  %v1540 = vld [vmem:[%s3 + $0xd8] sm:$0xff]
  %v1541 = vld [vmem:[%s3 + $0xe0] sm:$0xff]
  %v1542 = vld [vmem:[%s3 + $0xe8] sm:$0xff]
  %v1543 = vld [vmem:[%s3 + $0xf0] sm:$0xff]
  %v1544 = vld [vmem:[%s3 + $0xf8] sm:$0xff]
  %v1545 = vld [vmem:[%s3 + $0x100] sm:$0xff]
  %v1546 = vld [vmem:[%s3 + $0x108] sm:$0xff]
  %v1547 = vld [vmem:[%s3 + $0x110] sm:$0xff]
  %v1548 = vld [vmem:[%s3 + $0x118] sm:$0xff]
  %v1549 = vld [vmem:[%s3 + $0x120] sm:$0xff]
  %v1550 = vld [vmem:[%s3 + $0x128] sm:$0xff]
  %v1551 = vld [vmem:[%s3 + $0x130] sm:$0xff]
  %v1552 = vld [vmem:[%s3 + $0x138] sm:$0xff]
  %v1553 = vld [vmem:[%s3 + $0x140] sm:$0xff]
  %v1554 = vld [vmem:[%s3 + $0x148] sm:$0xff]
  %v1555 = vld [vmem:[%s3 + $0x150] sm:$0xff]
  %v1556 = vld [vmem:[%s3 + $0x158] sm:$0xff]
  %v1557 = vld [vmem:[%s3 + $0x160] sm:$0xff]
  %v1558 = vld [vmem:[%s3 + $0x168] sm:$0xff]
  %v1559 = vld [vmem:[%s3 + $0x170] sm:$0xff]
  %v1560 = vld [vmem:[%s3 + $0x178] sm:$0xff]
  %v1561 = vld [vmem:[%s3 + $0x180] sm:$0xff]
  %v1562 = vld [vmem:[%s3 + $0x188] sm:$0xff]
  %v1563 = vld [vmem:[%s3 + $0x190] sm:$0xff]
  %v1564 = vld [vmem:[%s3 + $0x198] sm:$0xff]
  %v1565 = vld [vmem:[%s3 + $0x1a0] sm:$0xff]
  %v1566 = vld [vmem:[%s3 + $0x1a8] sm:$0xff]
  %v1567 = vld [vmem:[%s3 + $0x1b0] sm:$0xff]
  %v1568 = vld [vmem:[%s3 + $0x1b8] sm:$0xff]
  %v1569 = vld [vmem:[%s3 + $0x1c0] sm:$0xff]
  %v1570 = vld [vmem:[%s3 + $0x1c8] sm:$0xff]
  %v1571 = vld [vmem:[%s3 + $0x1d0] sm:$0xff]
  %v1572 = vld [vmem:[%s3 + $0x1d8] sm:$0xff]
  %v1573 = vld [vmem:[%s3 + $0x1e0] sm:$0xff]
  %v1574 = vld [vmem:[%s3 + $0x1e8] sm:$0xff]
  %v1575 = vld [vmem:[%s3 + $0x1f0] sm:$0xff]
  %v1576 = vld [vmem:[%s3 + $0x1f8] sm:$0xff]
  %1577 = vmatpush.msra.mxu0 %v1573
  %1578 = vmatpush.msra.mxu0 %v1569
  %1579 = vmatpush.msra.mxu0 %v1565
  %1580 = vmatpush.msra.mxu0 %v1561
  %1581 = vmatpush.msra.mxu0 %v1557
  %1582 = vmatpush.msra.mxu0 %v1553
  %1583 = vmatpush.msra.mxu0 %v1549
  %1584 = vmatpush.msra.mxu0 %v1545
  %1585 = vmatpush.msra.mxu0 %v1541
  %1586 = vmatpush.msra.mxu0 %v1537
  %1587 = vmatpush.msra.mxu0 %v1533
  %1588 = vmatpush.msra.mxu0 %v1529
  %1589 = vmatpush.msra.mxu0 %v1525
  %1590 = vmatpush.msra.mxu0 %v1521
  %1591 = vmatpush.msra.mxu0 %v1517
  %1592 = vmatpush.msra.mxu0 %v1513
  %1593 = vmatmul.f32.gmra.mxu0 %v1506
  %v1594 = vpop.f32.mrf.mxu0
  %v1595 = vadd.f32 0.0, %v1594
  %1596 = vdwg.mxu0
  %1597 = vmatpush.msra.mxu0 %v1574
  %1598 = vmatpush.msra.mxu0 %v1570
  %1599 = vmatpush.msra.mxu0 %v1566
  %1600 = vmatpush.msra.mxu0 %v1562
  %1601 = vmatpush.msra.mxu0 %v1558
  %1602 = vmatpush.msra.mxu0 %v1554
  %1603 = vmatpush.msra.mxu0 %v1550
  %1604 = vmatpush.msra.mxu0 %v1546
  %1605 = vmatpush.msra.mxu0 %v1542
  %1606 = vmatpush.msra.mxu0 %v1538
  %1607 = vmatpush.msra.mxu0 %v1534
  %1608 = vmatpush.msra.mxu0 %v1530
  %1609 = vmatpush.msra.mxu0 %v1526
  %1610 = vmatpush.msra.mxu0 %v1522
  %1611 = vmatpush.msra.mxu0 %v1518
  %1612 = vmatpush.msra.mxu0 %v1514
  %1613 = vmatmul.f32.gmra.mxu0 %v1506
  %v1614 = vpop.f32.mrf.mxu0
  %v1615 = vadd.f32 0.0, %v1614
  %1616 = vdwg.mxu0
  %1617 = vmatpush.msra.mxu0 %v1575
  %1618 = vmatpush.msra.mxu0 %v1571
  %1619 = vmatpush.msra.mxu0 %v1567
  %1620 = vmatpush.msra.mxu0 %v1563
  %1621 = vmatpush.msra.mxu0 %v1559
  %1622 = vmatpush.msra.mxu0 %v1555
  %1623 = vmatpush.msra.mxu0 %v1551
  %1624 = vmatpush.msra.mxu0 %v1547
  %1625 = vmatpush.msra.mxu0 %v1543
  %1626 = vmatpush.msra.mxu0 %v1539
  %1627 = vmatpush.msra.mxu0 %v1535
  %1628 = vmatpush.msra.mxu0 %v1531
  %1629 = vmatpush.msra.mxu0 %v1527
  %1630 = vmatpush.msra.mxu0 %v1523
  %1631 = vmatpush.msra.mxu0 %v1519
  %1632 = vmatpush.msra.mxu0 %v1515
  %1633 = vmatmul.f32.gmra.mxu0 %v1506
  %v1634 = vpop.f32.mrf.mxu0
  %v1635 = vadd.f32 0.0, %v1634
  %1636 = vdwg.mxu0
  %1637 = vmatpush.msra.mxu0 %v1576
  %1638 = vmatpush.msra.mxu0 %v1572
  %1639 = vmatpush.msra.mxu0 %v1568
  %1640 = vmatpush.msra.mxu0 %v1564
  %1641 = vmatpush.msra.mxu0 %v1560
  %1642 = vmatpush.msra.mxu0 %v1556
  %1643 = vmatpush.msra.mxu0 %v1552
  %1644 = vmatpush.msra.mxu0 %v1548
  %1645 = vmatpush.msra.mxu0 %v1544
  %1646 = vmatpush.msra.mxu0 %v1540
  %1647 = vmatpush.msra.mxu0 %v1536
  %1648 = vmatpush.msra.mxu0 %v1532
  %1649 = vmatpush.msra.mxu0 %v1528
  %1650 = vmatpush.msra.mxu0 %v1524
  %1651 = vmatpush.msra.mxu0 %v1520
  %1652 = vmatpush.msra.mxu0 %v1516
  %1653 = vmatmul.f32.gmra.mxu0 %v1506
  %v1654 = vpop.f32.mrf.mxu0
  %v1655 = vadd.f32 0.0, %v1654
  %1656 = vdwg.mxu0
  %v1657 = vadd.f32 %v1509, %v1595
  %v1658 = vadd.f32 %v1510, %v1615
  %v1659 = vadd.f32 %v1511, %v1635
  %v1660 = vadd.f32 %v1512, %v1655
  %v1661 = vxor.u32 %v1657, 2147483648
  %v1662 = vmul.f32 %v1661, 1.442695
  %v1663 = vpow.pop %v1662
  %v1664 = vadd.f32 %v1663, 1.0
  %v1665 = vrcp.pop %v1664
  %v1666 = vmul.f32 %v1664, %v1665
  %v1667 = vsub.f32 1.0, %v1666
  %v1668 = vmul.f32 %v1665, %v1667
  %v1669 = vadd.f32 %v1665, %v1668
  %vm1670 = vweird.f32 %v1664
  %vm1671 = vweird.f32 %v1665
  %vm1672 = vmor %vm1670, %vm1671
  %v1673 = vsel %vm1672, %v1665, %v1669
  %v1674 = vand.u32 2147483647, %v1664
  %vm1675 = vcmp.eq.f32.partialorder %v1674, 8.507059e+37
  %v1676 = vand.u32 %v1664, 2147483648
  %v1677 = vor.u32 1.1754944e-38, %v1676
  %v1678 = vsel %vm1675, %v1677, %v1673
  %v1679 = vmul.f32 1.0, %v1678
  %v1680 = vxor.u32 %v1658, 2147483648
  %v1681 = vmul.f32 %v1680, 1.442695
  %v1682 = vpow.pop %v1681
  %v1683 = vadd.f32 %v1682, 1.0
  %v1684 = vrcp.pop %v1683
  %v1685 = vmul.f32 %v1683, %v1684
  %v1686 = vsub.f32 1.0, %v1685
  %v1687 = vmul.f32 %v1684, %v1686
  %v1688 = vadd.f32 %v1684, %v1687
  %vm1689 = vweird.f32 %v1683
  %vm1690 = vweird.f32 %v1684
  %vm1691 = vmor %vm1689, %vm1690
  %v1692 = vsel %vm1691, %v1684, %v1688
  %v1693 = vand.u32 2147483647, %v1683
  %vm1694 = vcmp.eq.f32.partialorder %v1693, 8.507059e+37
  %v1695 = vand.u32 %v1683, 2147483648
  %v1696 = vor.u32 1.1754944e-38, %v1695
  %v1697 = vsel %vm1694, %v1696, %v1692
  %v1698 = vmul.f32 1.0, %v1697
  %v1699 = vtanh.pop %v1659
  %v1700 = vxor.u32 %v1660, 2147483648
  %v1701 = vmul.f32 %v1700, 1.442695
  %v1702 = vpow.pop %v1701
  %v1703 = vadd.f32 %v1702, 1.0
  %v1704 = vrcp.pop %v1703
  %v1705 = vmul.f32 %v1703, %v1704
  %v1706 = vsub.f32 1.0, %v1705
  %v1707 = vmul.f32 %v1704, %v1706
  %v1708 = vadd.f32 %v1704, %v1707
  %vm1709 = vweird.f32 %v1703
  %vm1710 = vweird.f32 %v1704
  %vm1711 = vmor %vm1709, %vm1710
  %v1712 = vsel %vm1711, %v1704, %v1708
  %v1713 = vand.u32 2147483647, %v1703
  %vm1714 = vcmp.eq.f32.partialorder %v1713, 8.507059e+37
  %v1715 = vand.u32 %v1703, 2147483648
  %v1716 = vor.u32 1.1754944e-38, %v1715
  %v1717 = vsel %vm1714, %v1716, %v1712
  %v1718 = vmul.f32 1.0, %v1717
  %v1719 = vmul.f32 %v1698, %v1507
  %v1720 = vmul.f32 %v1679, %v1699
  %v1721 = vadd.f32 %v1719, %v1720
  %v1722 = vtanh.pop %v1721
  %v1723 = vmul.f32 %v1718, %v1722
  %s1724 = scalar_lea.vmem %s1, 40
  %v1725 = vld [vmem:[%s1724] sm:$0xff]
  %1727 = vset.pattern.permute.xlu0 0
  %1728 = vperm.xlu0 %1727, %v1725
  %v1729 = vpop.permute.xlu0 %1728
  %v1731 = vmul.f32 %v1729, %v1723
  %v1732 = vsub.f32 1.0, %v1725
  %1734 = vset.pattern.permute.xlu0 0
  %1735 = vperm.xlu0 %1734, %v1732
  %v1736 = vpop.permute.xlu0 %1735
  %v1738 = vmul.f32 %v1736, %v1506
  %v1739 = vadd.f32 %v1731, %v1738
  %1740 = vst [vmem:[#allocation3] sm:$0xff] %v1739
  %v1741 = vmul.f32 %v1729, %v1721
  %v1742 = vmul.f32 %v1736, %v1507
  %v1743 = vadd.f32 %v1741, %v1742
  %1744 = vst [vmem:[#allocation4] sm:$0xff] %v1743
  %s1745 = scalar_lea.vmem %s5, 40
  %1746 = vst [vmem:[%s1745] sm:$0xff] %v1731
  %v1747 = vld [vmem:[#allocation3] sm:$0xff]
  %v1748 = vld [vmem:[#allocation4] sm:$0xff]
  %s1749 = scalar_lea.vmem [#allocation2], 192
  %v1750 = vld [vmem:[%s1749] sm:$0xff]
  %v1751 = vld [vmem:[%s1749 + $0x8] sm:$0xff]
  %v1752 = vld [vmem:[%s1749 + $0x10] sm:$0xff]
  %v1753 = vld [vmem:[%s1749 + $0x18] sm:$0xff]
  %v1754 = vld [vmem:[%s3] sm:$0xff]
  %v1755 = vld [vmem:[%s3 + $0x8] sm:$0xff]
  %v1756 = vld [vmem:[%s3 + $0x10] sm:$0xff]
  %v1757 = vld [vmem:[%s3 + $0x18] sm:$0xff]
  %v1758 = vld [vmem:[%s3 + $0x20] sm:$0xff]
  %v1759 = vld [vmem:[%s3 + $0x28] sm:$0xff]
  %v1760 = vld [vmem:[%s3 + $0x30] sm:$0xff]
  %v1761 = vld [vmem:[%s3 + $0x38] sm:$0xff]
  %v1762 = vld [vmem:[%s3 + $0x40] sm:$0xff]
  %v1763 = vld [vmem:[%s3 + $0x48] sm:$0xff]
  %v1764 = vld [vmem:[%s3 + $0x50] sm:$0xff]
  %v1765 = vld [vmem:[%s3 + $0x58] sm:$0xff]
  %v1766 = vld [vmem:[%s3 + $0x60] sm:$0xff]
  %v1767 = vld [vmem:[%s3 + $0x68] sm:$0xff]
  %v1768 = vld [vmem:[%s3 + $0x70] sm:$0xff]
  %v1769 = vld [vmem:[%s3 + $0x78] sm:$0xff]
  %v1770 = vld [vmem:[%s3 + $0x80] sm:$0xff]
  %v1771 = vld [vmem:[%s3 + $0x88] sm:$0xff]
  %v1772 = vld [vmem:[%s3 + $0x90] sm:$0xff]
  %v1773 = vld [vmem:[%s3 + $0x98] sm:$0xff]
  %v1774 = vld [vmem:[%s3 + $0xa0] sm:$0xff]
  %v1775 = vld [vmem:[%s3 + $0xa8] sm:$0xff]
  %v1776 = vld [vmem:[%s3 + $0xb0] sm:$0xff]
  %v1777 = vld [vmem:[%s3 + $0xb8] sm:$0xff]
  %v1778 = vld [vmem:[%s3 + $0xc0] sm:$0xff]
  %v1779 = vld [vmem:[%s3 + $0xc8] sm:$0xff]
  %v1780 = vld [vmem:[%s3 + $0xd0] sm:$0xff]
  %v1781 = vld [vmem:[%s3 + $0xd8] sm:$0xff]
  %v1782 = vld [vmem:[%s3 + $0xe0] sm:$0xff]
  %v1783 = vld [vmem:[%s3 + $0xe8] sm:$0xff]
  %v1784 = vld [vmem:[%s3 + $0xf0] sm:$0xff]
  %v1785 = vld [vmem:[%s3 + $0xf8] sm:$0xff]
  %v1786 = vld [vmem:[%s3 + $0x100] sm:$0xff]
  %v1787 = vld [vmem:[%s3 + $0x108] sm:$0xff]
  %v1788 = vld [vmem:[%s3 + $0x110] sm:$0xff]
  %v1789 = vld [vmem:[%s3 + $0x118] sm:$0xff]
  %v1790 = vld [vmem:[%s3 + $0x120] sm:$0xff]
  %v1791 = vld [vmem:[%s3 + $0x128] sm:$0xff]
  %v1792 = vld [vmem:[%s3 + $0x130] sm:$0xff]
  %v1793 = vld [vmem:[%s3 + $0x138] sm:$0xff]
  %v1794 = vld [vmem:[%s3 + $0x140] sm:$0xff]
  %v1795 = vld [vmem:[%s3 + $0x148] sm:$0xff]
  %v1796 = vld [vmem:[%s3 + $0x150] sm:$0xff]
  %v1797 = vld [vmem:[%s3 + $0x158] sm:$0xff]
  %v1798 = vld [vmem:[%s3 + $0x160] sm:$0xff]
  %v1799 = vld [vmem:[%s3 + $0x168] sm:$0xff]
  %v1800 = vld [vmem:[%s3 + $0x170] sm:$0xff]
  %v1801 = vld [vmem:[%s3 + $0x178] sm:$0xff]
  %v1802 = vld [vmem:[%s3 + $0x180] sm:$0xff]
  %v1803 = vld [vmem:[%s3 + $0x188] sm:$0xff]
  %v1804 = vld [vmem:[%s3 + $0x190] sm:$0xff]
  %v1805 = vld [vmem:[%s3 + $0x198] sm:$0xff]
  %v1806 = vld [vmem:[%s3 + $0x1a0] sm:$0xff]
  %v1807 = vld [vmem:[%s3 + $0x1a8] sm:$0xff]
  %v1808 = vld [vmem:[%s3 + $0x1b0] sm:$0xff]
  %v1809 = vld [vmem:[%s3 + $0x1b8] sm:$0xff]
  %v1810 = vld [vmem:[%s3 + $0x1c0] sm:$0xff]
  %v1811 = vld [vmem:[%s3 + $0x1c8] sm:$0xff]
  %v1812 = vld [vmem:[%s3 + $0x1d0] sm:$0xff]
  %v1813 = vld [vmem:[%s3 + $0x1d8] sm:$0xff]
  %v1814 = vld [vmem:[%s3 + $0x1e0] sm:$0xff]
  %v1815 = vld [vmem:[%s3 + $0x1e8] sm:$0xff]
  %v1816 = vld [vmem:[%s3 + $0x1f0] sm:$0xff]
  %v1817 = vld [vmem:[%s3 + $0x1f8] sm:$0xff]
  %1818 = vmatpush.msra.mxu0 %v1814
  %1819 = vmatpush.msra.mxu0 %v1810
  %1820 = vmatpush.msra.mxu0 %v1806
  %1821 = vmatpush.msra.mxu0 %v1802
  %1822 = vmatpush.msra.mxu0 %v1798
  %1823 = vmatpush.msra.mxu0 %v1794
  %1824 = vmatpush.msra.mxu0 %v1790
  %1825 = vmatpush.msra.mxu0 %v1786
  %1826 = vmatpush.msra.mxu0 %v1782
  %1827 = vmatpush.msra.mxu0 %v1778
  %1828 = vmatpush.msra.mxu0 %v1774
  %1829 = vmatpush.msra.mxu0 %v1770
  %1830 = vmatpush.msra.mxu0 %v1766
  %1831 = vmatpush.msra.mxu0 %v1762
  %1832 = vmatpush.msra.mxu0 %v1758
  %1833 = vmatpush.msra.mxu0 %v1754
  %1834 = vmatmul.f32.gmra.mxu0 %v1747
  %v1835 = vpop.f32.mrf.mxu0
  %v1836 = vadd.f32 0.0, %v1835
  %1837 = vdwg.mxu0
  %1838 = vmatpush.msra.mxu0 %v1815
  %1839 = vmatpush.msra.mxu0 %v1811
  %1840 = vmatpush.msra.mxu0 %v1807
  %1841 = vmatpush.msra.mxu0 %v1803
  %1842 = vmatpush.msra.mxu0 %v1799
  %1843 = vmatpush.msra.mxu0 %v1795
  %1844 = vmatpush.msra.mxu0 %v1791
  %1845 = vmatpush.msra.mxu0 %v1787
  %1846 = vmatpush.msra.mxu0 %v1783
  %1847 = vmatpush.msra.mxu0 %v1779
  %1848 = vmatpush.msra.mxu0 %v1775
  %1849 = vmatpush.msra.mxu0 %v1771
  %1850 = vmatpush.msra.mxu0 %v1767
  %1851 = vmatpush.msra.mxu0 %v1763
  %1852 = vmatpush.msra.mxu0 %v1759
  %1853 = vmatpush.msra.mxu0 %v1755
  %1854 = vmatmul.f32.gmra.mxu0 %v1747
  %v1855 = vpop.f32.mrf.mxu0
  %v1856 = vadd.f32 0.0, %v1855
  %1857 = vdwg.mxu0
  %1858 = vmatpush.msra.mxu0 %v1816
  %1859 = vmatpush.msra.mxu0 %v1812
  %1860 = vmatpush.msra.mxu0 %v1808
  %1861 = vmatpush.msra.mxu0 %v1804
  %1862 = vmatpush.msra.mxu0 %v1800
  %1863 = vmatpush.msra.mxu0 %v1796
  %1864 = vmatpush.msra.mxu0 %v1792
  %1865 = vmatpush.msra.mxu0 %v1788
  %1866 = vmatpush.msra.mxu0 %v1784
  %1867 = vmatpush.msra.mxu0 %v1780
  %1868 = vmatpush.msra.mxu0 %v1776
  %1869 = vmatpush.msra.mxu0 %v1772
  %1870 = vmatpush.msra.mxu0 %v1768
  %1871 = vmatpush.msra.mxu0 %v1764
  %1872 = vmatpush.msra.mxu0 %v1760
  %1873 = vmatpush.msra.mxu0 %v1756
  %1874 = vmatmul.f32.gmra.mxu0 %v1747
  %v1875 = vpop.f32.mrf.mxu0
  %v1876 = vadd.f32 0.0, %v1875
  %1877 = vdwg.mxu0
  %1878 = vmatpush.msra.mxu0 %v1817
  %1879 = vmatpush.msra.mxu0 %v1813
  %1880 = vmatpush.msra.mxu0 %v1809
  %1881 = vmatpush.msra.mxu0 %v1805
  %1882 = vmatpush.msra.mxu0 %v1801
  %1883 = vmatpush.msra.mxu0 %v1797
  %1884 = vmatpush.msra.mxu0 %v1793
  %1885 = vmatpush.msra.mxu0 %v1789
  %1886 = vmatpush.msra.mxu0 %v1785
  %1887 = vmatpush.msra.mxu0 %v1781
  %1888 = vmatpush.msra.mxu0 %v1777
  %1889 = vmatpush.msra.mxu0 %v1773
  %1890 = vmatpush.msra.mxu0 %v1769
  %1891 = vmatpush.msra.mxu0 %v1765
  %1892 = vmatpush.msra.mxu0 %v1761
  %1893 = vmatpush.msra.mxu0 %v1757
  %1894 = vmatmul.f32.gmra.mxu0 %v1747
  %v1895 = vpop.f32.mrf.mxu0
  %v1896 = vadd.f32 0.0, %v1895
  %1897 = vdwg.mxu0
  %v1898 = vadd.f32 %v1750, %v1836
  %v1899 = vadd.f32 %v1751, %v1856
  %v1900 = vadd.f32 %v1752, %v1876
  %v1901 = vadd.f32 %v1753, %v1896
  %v1902 = vxor.u32 %v1898, 2147483648
  %v1903 = vmul.f32 %v1902, 1.442695
  %v1904 = vpow.pop %v1903
  %v1905 = vadd.f32 %v1904, 1.0
  %v1906 = vrcp.pop %v1905
  %v1907 = vmul.f32 %v1905, %v1906
  %v1908 = vsub.f32 1.0, %v1907
  %v1909 = vmul.f32 %v1906, %v1908
  %v1910 = vadd.f32 %v1906, %v1909
  %vm1911 = vweird.f32 %v1905
  %vm1912 = vweird.f32 %v1906
  %vm1913 = vmor %vm1911, %vm1912
  %v1914 = vsel %vm1913, %v1906, %v1910
  %v1915 = vand.u32 2147483647, %v1905
  %vm1916 = vcmp.eq.f32.partialorder %v1915, 8.507059e+37
  %v1917 = vand.u32 %v1905, 2147483648
  %v1918 = vor.u32 1.1754944e-38, %v1917
  %v1919 = vsel %vm1916, %v1918, %v1914
  %v1920 = vmul.f32 1.0, %v1919
  %v1921 = vxor.u32 %v1899, 2147483648
  %v1922 = vmul.f32 %v1921, 1.442695
  %v1923 = vpow.pop %v1922
  %v1924 = vadd.f32 %v1923, 1.0
  %v1925 = vrcp.pop %v1924
  %v1926 = vmul.f32 %v1924, %v1925
  %v1927 = vsub.f32 1.0, %v1926
  %v1928 = vmul.f32 %v1925, %v1927
  %v1929 = vadd.f32 %v1925, %v1928
  %vm1930 = vweird.f32 %v1924
  %vm1931 = vweird.f32 %v1925
  %vm1932 = vmor %vm1930, %vm1931
  %v1933 = vsel %vm1932, %v1925, %v1929
  %v1934 = vand.u32 2147483647, %v1924
  %vm1935 = vcmp.eq.f32.partialorder %v1934, 8.507059e+37
  %v1936 = vand.u32 %v1924, 2147483648
  %v1937 = vor.u32 1.1754944e-38, %v1936
  %v1938 = vsel %vm1935, %v1937, %v1933
  %v1939 = vmul.f32 1.0, %v1938
  %v1940 = vtanh.pop %v1900
  %v1941 = vxor.u32 %v1901, 2147483648
  %v1942 = vmul.f32 %v1941, 1.442695
  %v1943 = vpow.pop %v1942
  %v1944 = vadd.f32 %v1943, 1.0
  %v1945 = vrcp.pop %v1944
  %v1946 = vmul.f32 %v1944, %v1945
  %v1947 = vsub.f32 1.0, %v1946
  %v1948 = vmul.f32 %v1945, %v1947
  %v1949 = vadd.f32 %v1945, %v1948
  %vm1950 = vweird.f32 %v1944
  %vm1951 = vweird.f32 %v1945
  %vm1952 = vmor %vm1950, %vm1951
  %v1953 = vsel %vm1952, %v1945, %v1949
  %v1954 = vand.u32 2147483647, %v1944
  %vm1955 = vcmp.eq.f32.partialorder %v1954, 8.507059e+37
  %v1956 = vand.u32 %v1944, 2147483648
  %v1957 = vor.u32 1.1754944e-38, %v1956
  %v1958 = vsel %vm1955, %v1957, %v1953
  %v1959 = vmul.f32 1.0, %v1958
  %v1960 = vmul.f32 %v1939, %v1748
  %v1961 = vmul.f32 %v1920, %v1940
  %v1962 = vadd.f32 %v1960, %v1961
  %v1963 = vtanh.pop %v1962
  %v1964 = vmul.f32 %v1959, %v1963
  %s1965 = scalar_lea.vmem %s1, 48
  %v1966 = vld [vmem:[%s1965] sm:$0xff]
  %1968 = vset.pattern.permute.xlu0 0
  %1969 = vperm.xlu0 %1968, %v1966
  %v1970 = vpop.permute.xlu0 %1969
  %v1972 = vmul.f32 %v1970, %v1964
  %v1973 = vsub.f32 1.0, %v1966
  %1975 = vset.pattern.permute.xlu0 0
  %1976 = vperm.xlu0 %1975, %v1973
  %v1977 = vpop.permute.xlu0 %1976
  %v1979 = vmul.f32 %v1977, %v1747
  %v1980 = vadd.f32 %v1972, %v1979
  %1981 = vst [vmem:[#allocation3] sm:$0xff] %v1980
  %v1982 = vmul.f32 %v1970, %v1962
  %v1983 = vmul.f32 %v1977, %v1748
  %v1984 = vadd.f32 %v1982, %v1983
  %1985 = vst [vmem:[#allocation4] sm:$0xff] %v1984
  %s1986 = scalar_lea.vmem %s5, 48
  %1987 = vst [vmem:[%s1986] sm:$0xff] %v1972
  %v1988 = vld [vmem:[#allocation3] sm:$0xff]
  %v1989 = vld [vmem:[#allocation4] sm:$0xff]
  %s1990 = scalar_lea.vmem [#allocation2], 224
  %v1991 = vld [vmem:[%s1990] sm:$0xff]
  %v1992 = vld [vmem:[%s1990 + $0x8] sm:$0xff]
  %v1993 = vld [vmem:[%s1990 + $0x10] sm:$0xff]
  %v1994 = vld [vmem:[%s1990 + $0x18] sm:$0xff]
  %v1995 = vld [vmem:[%s3] sm:$0xff]
  %v1996 = vld [vmem:[%s3 + $0x8] sm:$0xff]
  %v1997 = vld [vmem:[%s3 + $0x10] sm:$0xff]
  %v1998 = vld [vmem:[%s3 + $0x18] sm:$0xff]
  %v1999 = vld [vmem:[%s3 + $0x20] sm:$0xff]
  %v2000 = vld [vmem:[%s3 + $0x28] sm:$0xff]
  %v2001 = vld [vmem:[%s3 + $0x30] sm:$0xff]
  %v2002 = vld [vmem:[%s3 + $0x38] sm:$0xff]
  %v2003 = vld [vmem:[%s3 + $0x40] sm:$0xff]
  %v2004 = vld [vmem:[%s3 + $0x48] sm:$0xff]
  %v2005 = vld [vmem:[%s3 + $0x50] sm:$0xff]
  %v2006 = vld [vmem:[%s3 + $0x58] sm:$0xff]
  %v2007 = vld [vmem:[%s3 + $0x60] sm:$0xff]
  %v2008 = vld [vmem:[%s3 + $0x68] sm:$0xff]
  %v2009 = vld [vmem:[%s3 + $0x70] sm:$0xff]
  %v2010 = vld [vmem:[%s3 + $0x78] sm:$0xff]
  %v2011 = vld [vmem:[%s3 + $0x80] sm:$0xff]
  %v2012 = vld [vmem:[%s3 + $0x88] sm:$0xff]
  %v2013 = vld [vmem:[%s3 + $0x90] sm:$0xff]
  %v2014 = vld [vmem:[%s3 + $0x98] sm:$0xff]
  %v2015 = vld [vmem:[%s3 + $0xa0] sm:$0xff]
  %v2016 = vld [vmem:[%s3 + $0xa8] sm:$0xff]
  %v2017 = vld [vmem:[%s3 + $0xb0] sm:$0xff]
  %v2018 = vld [vmem:[%s3 + $0xb8] sm:$0xff]
  %v2019 = vld [vmem:[%s3 + $0xc0] sm:$0xff]
  %v2020 = vld [vmem:[%s3 + $0xc8] sm:$0xff]
  %v2021 = vld [vmem:[%s3 + $0xd0] sm:$0xff]
  %v2022 = vld [vmem:[%s3 + $0xd8] sm:$0xff]
  %v2023 = vld [vmem:[%s3 + $0xe0] sm:$0xff]
  %v2024 = vld [vmem:[%s3 + $0xe8] sm:$0xff]
  %v2025 = vld [vmem:[%s3 + $0xf0] sm:$0xff]
  %v2026 = vld [vmem:[%s3 + $0xf8] sm:$0xff]
  %v2027 = vld [vmem:[%s3 + $0x100] sm:$0xff]
  %v2028 = vld [vmem:[%s3 + $0x108] sm:$0xff]
  %v2029 = vld [vmem:[%s3 + $0x110] sm:$0xff]
  %v2030 = vld [vmem:[%s3 + $0x118] sm:$0xff]
  %v2031 = vld [vmem:[%s3 + $0x120] sm:$0xff]
  %v2032 = vld [vmem:[%s3 + $0x128] sm:$0xff]
  %v2033 = vld [vmem:[%s3 + $0x130] sm:$0xff]
  %v2034 = vld [vmem:[%s3 + $0x138] sm:$0xff]
  %v2035 = vld [vmem:[%s3 + $0x140] sm:$0xff]
  %v2036 = vld [vmem:[%s3 + $0x148] sm:$0xff]
  %v2037 = vld [vmem:[%s3 + $0x150] sm:$0xff]
  %v2038 = vld [vmem:[%s3 + $0x158] sm:$0xff]
  %v2039 = vld [vmem:[%s3 + $0x160] sm:$0xff]
  %v2040 = vld [vmem:[%s3 + $0x168] sm:$0xff]
  %v2041 = vld [vmem:[%s3 + $0x170] sm:$0xff]
  %v2042 = vld [vmem:[%s3 + $0x178] sm:$0xff]
  %v2043 = vld [vmem:[%s3 + $0x180] sm:$0xff]
  %v2044 = vld [vmem:[%s3 + $0x188] sm:$0xff]
  %v2045 = vld [vmem:[%s3 + $0x190] sm:$0xff]
  %v2046 = vld [vmem:[%s3 + $0x198] sm:$0xff]
  %v2047 = vld [vmem:[%s3 + $0x1a0] sm:$0xff]
  %v2048 = vld [vmem:[%s3 + $0x1a8] sm:$0xff]
  %v2049 = vld [vmem:[%s3 + $0x1b0] sm:$0xff]
  %v2050 = vld [vmem:[%s3 + $0x1b8] sm:$0xff]
  %v2051 = vld [vmem:[%s3 + $0x1c0] sm:$0xff]
  %v2052 = vld [vmem:[%s3 + $0x1c8] sm:$0xff]
  %v2053 = vld [vmem:[%s3 + $0x1d0] sm:$0xff]
  %v2054 = vld [vmem:[%s3 + $0x1d8] sm:$0xff]
  %v2055 = vld [vmem:[%s3 + $0x1e0] sm:$0xff]
  %v2056 = vld [vmem:[%s3 + $0x1e8] sm:$0xff]
  %v2057 = vld [vmem:[%s3 + $0x1f0] sm:$0xff]
  %v2058 = vld [vmem:[%s3 + $0x1f8] sm:$0xff]
  %2059 = vmatpush.msra.mxu0 %v2055
  %2060 = vmatpush.msra.mxu0 %v2051
  %2061 = vmatpush.msra.mxu0 %v2047
  %2062 = vmatpush.msra.mxu0 %v2043
  %2063 = vmatpush.msra.mxu0 %v2039
  %2064 = vmatpush.msra.mxu0 %v2035
  %2065 = vmatpush.msra.mxu0 %v2031
  %2066 = vmatpush.msra.mxu0 %v2027
  %2067 = vmatpush.msra.mxu0 %v2023
  %2068 = vmatpush.msra.mxu0 %v2019
  %2069 = vmatpush.msra.mxu0 %v2015
  %2070 = vmatpush.msra.mxu0 %v2011
  %2071 = vmatpush.msra.mxu0 %v2007
  %2072 = vmatpush.msra.mxu0 %v2003
  %2073 = vmatpush.msra.mxu0 %v1999
  %2074 = vmatpush.msra.mxu0 %v1995
  %2075 = vmatmul.f32.gmra.mxu0 %v1988
  %v2076 = vpop.f32.mrf.mxu0
  %v2077 = vadd.f32 0.0, %v2076
  %2078 = vdwg.mxu0
  %2079 = vmatpush.msra.mxu0 %v2056
  %2080 = vmatpush.msra.mxu0 %v2052
  %2081 = vmatpush.msra.mxu0 %v2048
  %2082 = vmatpush.msra.mxu0 %v2044
  %2083 = vmatpush.msra.mxu0 %v2040
  %2084 = vmatpush.msra.mxu0 %v2036
  %2085 = vmatpush.msra.mxu0 %v2032
  %2086 = vmatpush.msra.mxu0 %v2028
  %2087 = vmatpush.msra.mxu0 %v2024
  %2088 = vmatpush.msra.mxu0 %v2020
  %2089 = vmatpush.msra.mxu0 %v2016
  %2090 = vmatpush.msra.mxu0 %v2012
  %2091 = vmatpush.msra.mxu0 %v2008
  %2092 = vmatpush.msra.mxu0 %v2004
  %2093 = vmatpush.msra.mxu0 %v2000
  %2094 = vmatpush.msra.mxu0 %v1996
  %2095 = vmatmul.f32.gmra.mxu0 %v1988
  %v2096 = vpop.f32.mrf.mxu0
  %v2097 = vadd.f32 0.0, %v2096
  %2098 = vdwg.mxu0
  %2099 = vmatpush.msra.mxu0 %v2057
  %2100 = vmatpush.msra.mxu0 %v2053
  %2101 = vmatpush.msra.mxu0 %v2049
  %2102 = vmatpush.msra.mxu0 %v2045
  %2103 = vmatpush.msra.mxu0 %v2041
  %2104 = vmatpush.msra.mxu0 %v2037
  %2105 = vmatpush.msra.mxu0 %v2033
  %2106 = vmatpush.msra.mxu0 %v2029
  %2107 = vmatpush.msra.mxu0 %v2025
  %2108 = vmatpush.msra.mxu0 %v2021
  %2109 = vmatpush.msra.mxu0 %v2017
  %2110 = vmatpush.msra.mxu0 %v2013
  %2111 = vmatpush.msra.mxu0 %v2009
  %2112 = vmatpush.msra.mxu0 %v2005
  %2113 = vmatpush.msra.mxu0 %v2001
  %2114 = vmatpush.msra.mxu0 %v1997
  %2115 = vmatmul.f32.gmra.mxu0 %v1988
  %v2116 = vpop.f32.mrf.mxu0
  %v2117 = vadd.f32 0.0, %v2116
  %2118 = vdwg.mxu0
  %2119 = vmatpush.msra.mxu0 %v2058
  %2120 = vmatpush.msra.mxu0 %v2054
  %2121 = vmatpush.msra.mxu0 %v2050
  %2122 = vmatpush.msra.mxu0 %v2046
  %2123 = vmatpush.msra.mxu0 %v2042
  %2124 = vmatpush.msra.mxu0 %v2038
  %2125 = vmatpush.msra.mxu0 %v2034
  %2126 = vmatpush.msra.mxu0 %v2030
  %2127 = vmatpush.msra.mxu0 %v2026
  %2128 = vmatpush.msra.mxu0 %v2022
  %2129 = vmatpush.msra.mxu0 %v2018
  %2130 = vmatpush.msra.mxu0 %v2014
  %2131 = vmatpush.msra.mxu0 %v2010
  %2132 = vmatpush.msra.mxu0 %v2006
  %2133 = vmatpush.msra.mxu0 %v2002
  %2134 = vmatpush.msra.mxu0 %v1998
  %2135 = vmatmul.f32.gmra.mxu0 %v1988
  %v2136 = vpop.f32.mrf.mxu0
  %v2137 = vadd.f32 0.0, %v2136
  %2138 = vdwg.mxu0
  %v2139 = vadd.f32 %v1991, %v2077
  %v2140 = vadd.f32 %v1992, %v2097
  %v2141 = vadd.f32 %v1993, %v2117
  %v2142 = vadd.f32 %v1994, %v2137
  %v2143 = vxor.u32 %v2139, 2147483648
  %v2144 = vmul.f32 %v2143, 1.442695
  %v2145 = vpow.pop %v2144
  %v2146 = vadd.f32 %v2145, 1.0
  %v2147 = vrcp.pop %v2146
  %v2148 = vmul.f32 %v2146, %v2147
  %v2149 = vsub.f32 1.0, %v2148
  %v2150 = vmul.f32 %v2147, %v2149
  %v2151 = vadd.f32 %v2147, %v2150
  %vm2152 = vweird.f32 %v2146
  %vm2153 = vweird.f32 %v2147
  %vm2154 = vmor %vm2152, %vm2153
  %v2155 = vsel %vm2154, %v2147, %v2151
  %v2156 = vand.u32 2147483647, %v2146
  %vm2157 = vcmp.eq.f32.partialorder %v2156, 8.507059e+37
  %v2158 = vand.u32 %v2146, 2147483648
  %v2159 = vor.u32 1.1754944e-38, %v2158
  %v2160 = vsel %vm2157, %v2159, %v2155
  %v2161 = vmul.f32 1.0, %v2160
  %v2162 = vxor.u32 %v2140, 2147483648
  %v2163 = vmul.f32 %v2162, 1.442695
  %v2164 = vpow.pop %v2163
  %v2165 = vadd.f32 %v2164, 1.0
  %v2166 = vrcp.pop %v2165
  %v2167 = vmul.f32 %v2165, %v2166
  %v2168 = vsub.f32 1.0, %v2167
  %v2169 = vmul.f32 %v2166, %v2168
  %v2170 = vadd.f32 %v2166, %v2169
  %vm2171 = vweird.f32 %v2165
  %vm2172 = vweird.f32 %v2166
  %vm2173 = vmor %vm2171, %vm2172
  %v2174 = vsel %vm2173, %v2166, %v2170
  %v2175 = vand.u32 2147483647, %v2165
  %vm2176 = vcmp.eq.f32.partialorder %v2175, 8.507059e+37
  %v2177 = vand.u32 %v2165, 2147483648
  %v2178 = vor.u32 1.1754944e-38, %v2177
  %v2179 = vsel %vm2176, %v2178, %v2174
  %v2180 = vmul.f32 1.0, %v2179
  %v2181 = vtanh.pop %v2141
  %v2182 = vxor.u32 %v2142, 2147483648
  %v2183 = vmul.f32 %v2182, 1.442695
  %v2184 = vpow.pop %v2183
  %v2185 = vadd.f32 %v2184, 1.0
  %v2186 = vrcp.pop %v2185
  %v2187 = vmul.f32 %v2185, %v2186
  %v2188 = vsub.f32 1.0, %v2187
  %v2189 = vmul.f32 %v2186, %v2188
  %v2190 = vadd.f32 %v2186, %v2189
  %vm2191 = vweird.f32 %v2185
  %vm2192 = vweird.f32 %v2186
  %vm2193 = vmor %vm2191, %vm2192
  %v2194 = vsel %vm2193, %v2186, %v2190
  %v2195 = vand.u32 2147483647, %v2185
  %vm2196 = vcmp.eq.f32.partialorder %v2195, 8.507059e+37
  %v2197 = vand.u32 %v2185, 2147483648
  %v2198 = vor.u32 1.1754944e-38, %v2197
  %v2199 = vsel %vm2196, %v2198, %v2194
  %v2200 = vmul.f32 1.0, %v2199
  %v2201 = vmul.f32 %v2180, %v1989
  %v2202 = vmul.f32 %v2161, %v2181
  %v2203 = vadd.f32 %v2201, %v2202
  %v2204 = vtanh.pop %v2203
  %v2205 = vmul.f32 %v2200, %v2204
  %s2206 = scalar_lea.vmem %s1, 56
  %v2207 = vld [vmem:[%s2206] sm:$0xff]
  %2209 = vset.pattern.permute.xlu0 0
  %2210 = vperm.xlu0 %2209, %v2207
  %v2211 = vpop.permute.xlu0 %2210
  %v2213 = vmul.f32 %v2211, %v2205
  %v2214 = vsub.f32 1.0, %v2207
  %2216 = vset.pattern.permute.xlu0 0
  %2217 = vperm.xlu0 %2216, %v2214
  %v2218 = vpop.permute.xlu0 %2217
  %v2220 = vmul.f32 %v2218, %v1988
  %v2221 = vadd.f32 %v2213, %v2220
  %2222 = vst [vmem:[#allocation3] sm:$0xff] %v2221
  %v2223 = vmul.f32 %v2211, %v2203
  %v2224 = vmul.f32 %v2218, %v1989
  %v2225 = vadd.f32 %v2223, %v2224
  %2226 = vst [vmem:[#allocation4] sm:$0xff] %v2225
  %s2227 = scalar_lea.vmem %s5, 56
  %2228 = vst [vmem:[%s2227] sm:$0xff] %v2213
  %v2229 = vld [vmem:[#allocation3] sm:$0xff]
  %2230 = vst [vmem:[%s6] sm:$0xff] %v2229
  %v2231 = vld [vmem:[#allocation4] sm:$0xff]
  %2232 = vst [vmem:[%s7] sm:$0xff] %v2231
  // Predicated region
  $region22: #{encoder_decoder_lstm_ma.2} parent=0 // pred_check
    _
  $region23: #{encoder_decoder_lstm_ma.2} parent=0 // pred_check_branch
    %2234 = sbr.rel (0) target = $region25
  $region24: #{encoder_decoder_lstm_ma.2} parent=0 // pred_region
    _
  $region25: #{encoder_decoder_lstm_ma.2} parent=0 // pred_fallthru
    _
  // Predicated region
  $region26: #{encoder_decoder_lstm_ma.2} parent=0 // pred_check
    _
  $region27: #{encoder_decoder_lstm_ma.2} parent=0 // pred_check_branch
    %2236 = sbr.rel (0) target = $region29
  $region28: #{encoder_decoder_lstm_ma.2} parent=0 // pred_region
    _
  $region29: #{encoder_decoder_lstm_ma.2} parent=0 // pred_fallthru
    _
  // Predicated region
  $region30: #{encoder_decoder_lstm_ma.2} parent=0 // pred_check
    _
  $region31: #{encoder_decoder_lstm_ma.2} parent=0 // pred_check_branch
    %2238 = sbr.rel (0) target = $region33
  $region32: #{encoder_decoder_lstm_ma.2} parent=0 // pred_region
    _
  $region33: #{encoder_decoder_lstm_ma.2} parent=0 // pred_fallthru
    _
  // Predicated region
  $region34: #{encoder_decoder_lstm_ma.2} parent=0 // pred_check
    _
  $region35: #{encoder_decoder_lstm_ma.2} parent=0 // pred_check_branch
    %2240 = sbr.rel (0) target = $region37
  $region36: #{encoder_decoder_lstm_ma.2} parent=0 // pred_region
    _
  $region37: #{encoder_decoder_lstm_ma.2} parent=0 // pred_fallthru
    _
  // Predicated region
  $region38: #{encoder_decoder_lstm_ma.2} parent=0 // pred_check
    _
  $region39: #{encoder_decoder_lstm_ma.2} parent=0 // pred_check_branch
    %2242 = sbr.rel (0) target = $region41
  $region40: #{encoder_decoder_lstm_ma.2} parent=0 // pred_region
    _
  $region41: #{encoder_decoder_lstm_ma.2} parent=0 // pred_fallthru
    _
  // Predicated region
  $region42: #{encoder_decoder_lstm_ma.2} parent=0 // pred_check
    _
  $region43: #{encoder_decoder_lstm_ma.2} parent=0 // pred_check_branch
    %2244 = sbr.rel (0) target = $region45
  $region44: #{encoder_decoder_lstm_ma.2} parent=0 // pred_region
    _
  $region45: #{encoder_decoder_lstm_ma.2} parent=0 // pred_fallthru
    _

// kernel: encoder_decoder_lstm_ma.3
$region0: #{encoder_decoder_lstm_ma.3}
  #allocation0 [shape = 'u32[]', space=smem, size = 0x4, offset = 0x4, fixed_abs, tag = 'smem constant byte address 0x4 - core index']
  #allocation1 [shape = 'u32[72,128]{1,0:T(1,128)}', space=vmem, size = 0x9000, scoped, tag = 'internal scratch']
  #allocation2 [shape = 'f32[6,8,512]{2,1,0:T(8,128)}', space=vmem, size = 0x18000, scoped, tag = 'scratch operand']
  #allocation3 [shape = 'f32[8,8,128]{2,1,0:T(8,128)}', space=vmem, size = 0x8000, scoped, tag = 'scratch operand']
  #allocation4 [shape = 'f32[8,128]{1,0:T(8,128)}', space=vmem, size = 0x1000, scoped, tag = 'scratch operand']
  #allocation5 [shape = 'f32[8,128]{1,0:T(8,128)}', space=vmem, size = 0x1000, scoped, tag = 'scratch operand']
  %s0 = inlined_call_operand.vmem [shape: f32[6,8,16], index: 0, kind: input, shape index: {}]
  %s1 = inlined_call_operand.vmem [shape: f32[8,8,128], index: 1, kind: input, shape index: {}]
  %s2 = inlined_call_operand.vmem [shape: f32[8,8], index: 2, kind: input, shape index: {}]
  %s3 = inlined_call_operand.vmem [shape: f32[8,128], index: 3, kind: input, shape index: {}]
  %s4 = inlined_call_operand.vmem [shape: f32[8,128], index: 4, kind: input, shape index: {}]
  %s5 = inlined_call_operand.vmem [shape: f32[128,128], index: 5, kind: input, shape index: {}]
  %s6 = inlined_call_operand.vmem [shape: f32[16,512], index: 6, kind: input, shape index: {}]
  %s7 = inlined_call_operand.vmem [shape: f32[128,512], index: 7, kind: input, shape index: {}]
  %s8 = inlined_call_operand.vmem [shape: f32[128,512], index: 8, kind: input, shape index: {}]
  %s9 = inlined_call_operand.vmem [shape: f32[1,512], index: 9, kind: input, shape index: {}]
  %s10 = inlined_call_operand.vmem [shape: f32[128,128], index: 10, kind: input, shape index: {}]
  %s11 = inlined_call_operand.vmem [shape: f32[1,128], index: 11, kind: input, shape index: {}]
  %s12 = inlined_call_operand.vmem [shape: f32[6,8,128], index: 12, kind: output, shape index: {}]
  %s13 = sld [smem:[#allocation0]]
  $region58: #{encoder_decoder_lstm_ma.3} parent=0
    _
  %s15 = ssub.s32 1, %s13
  %s16 = scalar_select 0, %s15, %s13
  // Predicated region
  $region2: #{encoder_decoder_lstm_ma.3} parent=0 // pred_check
    _
  $region3: #{encoder_decoder_lstm_ma.3} parent=0 // pred_check_branch
    %18 = sbr.rel (0) target = $region5
  $region4: #{encoder_decoder_lstm_ma.3} parent=0 // pred_region
    _
  $region5: #{encoder_decoder_lstm_ma.3} parent=0 // pred_fallthru
    _
  // Predicated region
  $region6: #{encoder_decoder_lstm_ma.3} parent=0 // pred_check
    _
  $region7: #{encoder_decoder_lstm_ma.3} parent=0 // pred_check_branch
    %20 = sbr.rel (0) target = $region9
  $region8: #{encoder_decoder_lstm_ma.3} parent=0 // pred_region
    _
  $region9: #{encoder_decoder_lstm_ma.3} parent=0 // pred_fallthru
    _
  // Predicated region
  $region10: #{encoder_decoder_lstm_ma.3} parent=0 // pred_check
    _
  $region11: #{encoder_decoder_lstm_ma.3} parent=0 // pred_check_branch
    %22 = sbr.rel (0) target = $region13
  $region12: #{encoder_decoder_lstm_ma.3} parent=0 // pred_region
    _
  $region13: #{encoder_decoder_lstm_ma.3} parent=0 // pred_fallthru
    _
  // Predicated region
  $region14: #{encoder_decoder_lstm_ma.3} parent=0 // pred_check
    _
  $region15: #{encoder_decoder_lstm_ma.3} parent=0 // pred_check_branch
    %24 = sbr.rel (0) target = $region17
  $region16: #{encoder_decoder_lstm_ma.3} parent=0 // pred_region
    _
  $region17: #{encoder_decoder_lstm_ma.3} parent=0 // pred_fallthru
    _
  // Predicated region
  $region18: #{encoder_decoder_lstm_ma.3} parent=0 // pred_check
    _
  $region19: #{encoder_decoder_lstm_ma.3} parent=0 // pred_check_branch
    %26 = sbr.rel (0) target = $region21
  $region20: #{encoder_decoder_lstm_ma.3} parent=0 // pred_region
    _
  $region21: #{encoder_decoder_lstm_ma.3} parent=0 // pred_fallthru
    _
  // Predicated region
  $region22: #{encoder_decoder_lstm_ma.3} parent=0 // pred_check
    _
  $region23: #{encoder_decoder_lstm_ma.3} parent=0 // pred_check_branch
    %28 = sbr.rel (0) target = $region25
  $region24: #{encoder_decoder_lstm_ma.3} parent=0 // pred_region
    _
  $region25: #{encoder_decoder_lstm_ma.3} parent=0 // pred_fallthru
    _
  // Predicated region
  $region26: #{encoder_decoder_lstm_ma.3} parent=0 // pred_check
    _
  $region27: #{encoder_decoder_lstm_ma.3} parent=0 // pred_check_branch
    %30 = sbr.rel (0) target = $region29
  $region28: #{encoder_decoder_lstm_ma.3} parent=0 // pred_region
    _
  $region29: #{encoder_decoder_lstm_ma.3} parent=0 // pred_fallthru
    _
  // Predicated region
  $region30: #{encoder_decoder_lstm_ma.3} parent=0 // pred_check
    _
  $region31: #{encoder_decoder_lstm_ma.3} parent=0 // pred_check_branch
    %32 = sbr.rel (0) target = $region33
  $region32: #{encoder_decoder_lstm_ma.3} parent=0 // pred_region
    _
  $region33: #{encoder_decoder_lstm_ma.3} parent=0 // pred_fallthru
    _
  // Predicated region
  $region34: #{encoder_decoder_lstm_ma.3} parent=0 // pred_check
    _
  $region35: #{encoder_decoder_lstm_ma.3} parent=0 // pred_check_branch
    %34 = sbr.rel (0) target = $region37
  $region36: #{encoder_decoder_lstm_ma.3} parent=0 // pred_region
    _
  $region37: #{encoder_decoder_lstm_ma.3} parent=0 // pred_fallthru
    _
  // Predicated region
  $region38: #{encoder_decoder_lstm_ma.3} parent=0 // pred_check
    _
  $region39: #{encoder_decoder_lstm_ma.3} parent=0 // pred_check_branch
    %36 = sbr.rel (0) target = $region41
  $region40: #{encoder_decoder_lstm_ma.3} parent=0 // pred_region
    _
  $region41: #{encoder_decoder_lstm_ma.3} parent=0 // pred_fallthru
    _
  // Predicated region
  $region42: #{encoder_decoder_lstm_ma.3} parent=0 // pred_check
    _
  $region43: #{encoder_decoder_lstm_ma.3} parent=0 // pred_check_branch
    %38 = sbr.rel (0) target = $region45
  $region44: #{encoder_decoder_lstm_ma.3} parent=0 // pred_region
    _
  $region45: #{encoder_decoder_lstm_ma.3} parent=0 // pred_fallthru
    _
  // Predicated region
  $region46: #{encoder_decoder_lstm_ma.3} parent=0 // pred_check
    _
  $region47: #{encoder_decoder_lstm_ma.3} parent=0 // pred_check_branch
    %40 = sbr.rel (0) target = $region49
  $region48: #{encoder_decoder_lstm_ma.3} parent=0 // pred_region
    _
  $region49: #{encoder_decoder_lstm_ma.3} parent=0 // pred_fallthru
    _
  %v41 = vld [vmem:[%s0] sm:$0xff]
  %v42 = vld [vmem:[%s0 + $0x8] sm:$0xff]
  %v43 = vld [vmem:[%s0 + $0x10] sm:$0xff]
  %v44 = vld [vmem:[%s0 + $0x18] sm:$0xff]
  %v45 = vld [vmem:[%s0 + $0x20] sm:$0xff]
  %v46 = vld [vmem:[%s0 + $0x28] sm:$0xff]
  %v47 = vld [vmem:[%s6] sm:$0xff]
  %v48 = vld [vmem:[%s6 + $0x8] sm:$0xff]
  %v49 = vld [vmem:[%s6 + $0x10] sm:$0xff]
  %v50 = vld [vmem:[%s6 + $0x18] sm:$0xff]
  %v51 = vld [vmem:[%s6 + $0x20] sm:$0xff]
  %v52 = vld [vmem:[%s6 + $0x28] sm:$0xff]
  %v53 = vld [vmem:[%s6 + $0x30] sm:$0xff]
  %v54 = vld [vmem:[%s6 + $0x38] sm:$0xff]
  %vm55 = vcmask 130048
  %v57 = vsel %vm55, %v41, 0
  %v60 = vsel %vm55, %v42, 0
  %v63 = vsel %vm55, %v43, 0
  %v66 = vsel %vm55, %v44, 0
  %v69 = vsel %vm55, %v45, 0
  %v72 = vsel %vm55, %v46, 0
  %74 = vmatpush.msra.mxu0 0.0
  %75 = vmatpush.msra.mxu0 0.0
  %76 = vmatpush.msra.mxu0 0.0
  %77 = vmatpush.msra.mxu0 0.0
  %78 = vmatpush.msra.mxu0 0.0
  %79 = vmatpush.msra.mxu0 0.0
  %80 = vmatpush.msra.mxu0 0.0
  %81 = vmatpush.msra.mxu0 0.0
  %82 = vmatpush.msra.mxu0 0.0
  %83 = vmatpush.msra.mxu0 0.0
  %84 = vmatpush.msra.mxu0 0.0
  %85 = vmatpush.msra.mxu0 0.0
  %86 = vmatpush.msra.mxu0 0.0
  %87 = vmatpush.msra.mxu0 0.0
  %88 = vmatpush.msra.mxu0 %v51
  %89 = vmatpush.msra.mxu0 %v47
  %90 = vmatmul.f32.gmra.mxu0 %v57
  %v91 = vpop.f32.mrf.mxu0
  %v92 = vadd.f32 0.0, %v91
  %93 = vmatmul.f32.gmra.mxu0 %v60
  %v94 = vpop.f32.mrf.mxu0
  %v95 = vadd.f32 0.0, %v94
  %96 = vmatmul.f32.gmra.mxu0 %v63
  %v97 = vpop.f32.mrf.mxu0
  %v98 = vadd.f32 0.0, %v97
  %99 = vmatmul.f32.gmra.mxu0 %v66
  %v100 = vpop.f32.mrf.mxu0
  %v101 = vadd.f32 0.0, %v100
  %102 = vmatmul.f32.gmra.mxu0 %v69
  %v103 = vpop.f32.mrf.mxu0
  %v104 = vadd.f32 0.0, %v103
  %105 = vmatmul.f32.gmra.mxu0 %v72
  %v106 = vpop.f32.mrf.mxu0
  %v107 = vadd.f32 0.0, %v106
  %108 = vdwg.mxu0
  %109 = vmatpush.msra.mxu0 0.0
  %110 = vmatpush.msra.mxu0 0.0
  %111 = vmatpush.msra.mxu0 0.0
  %112 = vmatpush.msra.mxu0 0.0
  %113 = vmatpush.msra.mxu0 0.0
  %114 = vmatpush.msra.mxu0 0.0
  %115 = vmatpush.msra.mxu0 0.0
  %116 = vmatpush.msra.mxu0 0.0
  %117 = vmatpush.msra.mxu0 0.0
  %118 = vmatpush.msra.mxu0 0.0
  %119 = vmatpush.msra.mxu0 0.0
  %120 = vmatpush.msra.mxu0 0.0
  %121 = vmatpush.msra.mxu0 0.0
  %122 = vmatpush.msra.mxu0 0.0
  %123 = vmatpush.msra.mxu0 %v52
  %124 = vmatpush.msra.mxu0 %v48
  %125 = vmatmul.f32.gmra.mxu0 %v57
  %v126 = vpop.f32.mrf.mxu0
  %v127 = vadd.f32 0.0, %v126
  %128 = vmatmul.f32.gmra.mxu0 %v60
  %v129 = vpop.f32.mrf.mxu0
  %v130 = vadd.f32 0.0, %v129
  %131 = vmatmul.f32.gmra.mxu0 %v63
  %v132 = vpop.f32.mrf.mxu0
  %v133 = vadd.f32 0.0, %v132
  %134 = vmatmul.f32.gmra.mxu0 %v66
  %v135 = vpop.f32.mrf.mxu0
  %v136 = vadd.f32 0.0, %v135
  %137 = vmatmul.f32.gmra.mxu0 %v69
  %v138 = vpop.f32.mrf.mxu0
  %v139 = vadd.f32 0.0, %v138
  %140 = vmatmul.f32.gmra.mxu0 %v72
  %v141 = vpop.f32.mrf.mxu0
  %v142 = vadd.f32 0.0, %v141
  %143 = vdwg.mxu0
  %144 = vmatpush.msra.mxu0 0.0
  %145 = vmatpush.msra.mxu0 0.0
  %146 = vmatpush.msra.mxu0 0.0
  %147 = vmatpush.msra.mxu0 0.0
  %148 = vmatpush.msra.mxu0 0.0
  %149 = vmatpush.msra.mxu0 0.0
  %150 = vmatpush.msra.mxu0 0.0
  %151 = vmatpush.msra.mxu0 0.0
  %152 = vmatpush.msra.mxu0 0.0
  %153 = vmatpush.msra.mxu0 0.0
  %154 = vmatpush.msra.mxu0 0.0
  %155 = vmatpush.msra.mxu0 0.0
  %156 = vmatpush.msra.mxu0 0.0
  %157 = vmatpush.msra.mxu0 0.0
  %158 = vmatpush.msra.mxu0 %v53
  %159 = vmatpush.msra.mxu0 %v49
  %160 = vmatmul.f32.gmra.mxu0 %v57
  %v161 = vpop.f32.mrf.mxu0
  %v162 = vadd.f32 0.0, %v161
  %163 = vmatmul.f32.gmra.mxu0 %v60
  %v164 = vpop.f32.mrf.mxu0
  %v165 = vadd.f32 0.0, %v164
  %166 = vmatmul.f32.gmra.mxu0 %v63
  %v167 = vpop.f32.mrf.mxu0
  %v168 = vadd.f32 0.0, %v167
  %169 = vmatmul.f32.gmra.mxu0 %v66
  %v170 = vpop.f32.mrf.mxu0
  %v171 = vadd.f32 0.0, %v170
  %172 = vmatmul.f32.gmra.mxu0 %v69
  %v173 = vpop.f32.mrf.mxu0
  %v174 = vadd.f32 0.0, %v173
  %175 = vmatmul.f32.gmra.mxu0 %v72
  %v176 = vpop.f32.mrf.mxu0
  %v177 = vadd.f32 0.0, %v176
  %178 = vdwg.mxu0
  %179 = vmatpush.msra.mxu0 0.0
  %180 = vmatpush.msra.mxu0 0.0
  %181 = vmatpush.msra.mxu0 0.0
  %182 = vmatpush.msra.mxu0 0.0
  %183 = vmatpush.msra.mxu0 0.0
  %184 = vmatpush.msra.mxu0 0.0
  %185 = vmatpush.msra.mxu0 0.0
  %186 = vmatpush.msra.mxu0 0.0
  %187 = vmatpush.msra.mxu0 0.0
  %188 = vmatpush.msra.mxu0 0.0
  %189 = vmatpush.msra.mxu0 0.0
  %190 = vmatpush.msra.mxu0 0.0
  %191 = vmatpush.msra.mxu0 0.0
  %192 = vmatpush.msra.mxu0 0.0
  %193 = vmatpush.msra.mxu0 %v54
  %194 = vmatpush.msra.mxu0 %v50
  %195 = vmatmul.f32.gmra.mxu0 %v57
  %v196 = vpop.f32.mrf.mxu0
  %v197 = vadd.f32 0.0, %v196
  %198 = vmatmul.f32.gmra.mxu0 %v60
  %v199 = vpop.f32.mrf.mxu0
  %v200 = vadd.f32 0.0, %v199
  %201 = vmatmul.f32.gmra.mxu0 %v63
  %v202 = vpop.f32.mrf.mxu0
  %v203 = vadd.f32 0.0, %v202
  %204 = vmatmul.f32.gmra.mxu0 %v66
  %v205 = vpop.f32.mrf.mxu0
  %v206 = vadd.f32 0.0, %v205
  %207 = vmatmul.f32.gmra.mxu0 %v69
  %v208 = vpop.f32.mrf.mxu0
  %v209 = vadd.f32 0.0, %v208
  %210 = vmatmul.f32.gmra.mxu0 %v72
  %v211 = vpop.f32.mrf.mxu0
  %v212 = vadd.f32 0.0, %v211
  %213 = vdwg.mxu0
  %v214 = vld [vmem:[%s9] sm:$0xf]
  %v216 = vperm.slane %v214, 0
  %v217 = vperm.slane %v214, 1
  %v218 = vperm.slane %v214, 2
  %v219 = vperm.slane %v214, 3
  %v224 = vadd.f32 %v92, %v216
  %v225 = vadd.f32 %v127, %v217
  %v226 = vadd.f32 %v162, %v218
  %v227 = vadd.f32 %v197, %v219
  %v228 = vadd.f32 %v95, %v216
  %v229 = vadd.f32 %v130, %v217
  %v230 = vadd.f32 %v165, %v218
  %v231 = vadd.f32 %v200, %v219
  %v232 = vadd.f32 %v98, %v216
  %v233 = vadd.f32 %v133, %v217
  %v234 = vadd.f32 %v168, %v218
  %v235 = vadd.f32 %v203, %v219
  %v236 = vadd.f32 %v101, %v216
  %v237 = vadd.f32 %v136, %v217
  %v238 = vadd.f32 %v171, %v218
  %v239 = vadd.f32 %v206, %v219
  %v240 = vadd.f32 %v104, %v216
  %v241 = vadd.f32 %v139, %v217
  %v242 = vadd.f32 %v174, %v218
  %v243 = vadd.f32 %v209, %v219
  %v244 = vadd.f32 %v107, %v216
  %v245 = vadd.f32 %v142, %v217
  %v246 = vadd.f32 %v177, %v218
  %v247 = vadd.f32 %v212, %v219
  %248 = vst [vmem:[#allocation2] sm:$0xff] %v224
  %249 = vst [vmem:[#allocation2 + $0x8] sm:$0xff] %v225
  %250 = vst [vmem:[#allocation2 + $0x10] sm:$0xff] %v226
  %251 = vst [vmem:[#allocation2 + $0x18] sm:$0xff] %v227
  %252 = vst [vmem:[#allocation2 + $0x20] sm:$0xff] %v228
  %253 = vst [vmem:[#allocation2 + $0x28] sm:$0xff] %v229
  %254 = vst [vmem:[#allocation2 + $0x30] sm:$0xff] %v230
  %255 = vst [vmem:[#allocation2 + $0x38] sm:$0xff] %v231
  %256 = vst [vmem:[#allocation2 + $0x40] sm:$0xff] %v232
  %257 = vst [vmem:[#allocation2 + $0x48] sm:$0xff] %v233
  %258 = vst [vmem:[#allocation2 + $0x50] sm:$0xff] %v234
  %259 = vst [vmem:[#allocation2 + $0x58] sm:$0xff] %v235
  %260 = vst [vmem:[#allocation2 + $0x60] sm:$0xff] %v236
  %261 = vst [vmem:[#allocation2 + $0x68] sm:$0xff] %v237
  %262 = vst [vmem:[#allocation2 + $0x70] sm:$0xff] %v238
  %263 = vst [vmem:[#allocation2 + $0x78] sm:$0xff] %v239
  %264 = vst [vmem:[#allocation2 + $0x80] sm:$0xff] %v240
  %265 = vst [vmem:[#allocation2 + $0x88] sm:$0xff] %v241
  %266 = vst [vmem:[#allocation2 + $0x90] sm:$0xff] %v242
  %267 = vst [vmem:[#allocation2 + $0x98] sm:$0xff] %v243
  %268 = vst [vmem:[#allocation2 + $0xa0] sm:$0xff] %v244
  %269 = vst [vmem:[#allocation2 + $0xa8] sm:$0xff] %v245
  %270 = vst [vmem:[#allocation2 + $0xb0] sm:$0xff] %v246
  %271 = vst [vmem:[#allocation2 + $0xb8] sm:$0xff] %v247
  %v272 = vld [vmem:[%s1] sm:$0xff]
  %v273 = vld [vmem:[%s1 + $0x8] sm:$0xff]
  %v274 = vld [vmem:[%s1 + $0x10] sm:$0xff]
  %v275 = vld [vmem:[%s1 + $0x18] sm:$0xff]
  %v276 = vld [vmem:[%s1 + $0x20] sm:$0xff]
  %v277 = vld [vmem:[%s1 + $0x28] sm:$0xff]
  %v278 = vld [vmem:[%s1 + $0x30] sm:$0xff]
  %v279 = vld [vmem:[%s1 + $0x38] sm:$0xff]
  %v280 = vld [vmem:[%s5] sm:$0xff]
  %v281 = vld [vmem:[%s5 + $0x8] sm:$0xff]
  %v282 = vld [vmem:[%s5 + $0x10] sm:$0xff]
  %v283 = vld [vmem:[%s5 + $0x18] sm:$0xff]
  %v284 = vld [vmem:[%s5 + $0x20] sm:$0xff]
  %v285 = vld [vmem:[%s5 + $0x28] sm:$0xff]
  %v286 = vld [vmem:[%s5 + $0x30] sm:$0xff]
  %v287 = vld [vmem:[%s5 + $0x38] sm:$0xff]
  %v288 = vld [vmem:[%s5 + $0x40] sm:$0xff]
  %v289 = vld [vmem:[%s5 + $0x48] sm:$0xff]
  %v290 = vld [vmem:[%s5 + $0x50] sm:$0xff]
  %v291 = vld [vmem:[%s5 + $0x58] sm:$0xff]
  %v292 = vld [vmem:[%s5 + $0x60] sm:$0xff]
  %v293 = vld [vmem:[%s5 + $0x68] sm:$0xff]
  %v294 = vld [vmem:[%s5 + $0x70] sm:$0xff]
  %v295 = vld [vmem:[%s5 + $0x78] sm:$0xff]
  %296 = vmatpush.msra.mxu0 %v295
  %297 = vmatpush.msra.mxu0 %v294
  %298 = vmatpush.msra.mxu0 %v293
  %299 = vmatpush.msra.mxu0 %v292
  %300 = vmatpush.msra.mxu0 %v291
  %301 = vmatpush.msra.mxu0 %v290
  %302 = vmatpush.msra.mxu0 %v289
  %303 = vmatpush.msra.mxu0 %v288
  %304 = vmatpush.msra.mxu0 %v287
  %305 = vmatpush.msra.mxu0 %v286
  %306 = vmatpush.msra.mxu0 %v285
  %307 = vmatpush.msra.mxu0 %v284
  %308 = vmatpush.msra.mxu0 %v283
  %309 = vmatpush.msra.mxu0 %v282
  %310 = vmatpush.msra.mxu0 %v281
  %311 = vmatpush.msra.mxu0 %v280
  %312 = vmatmul.f32.gmra.mxu0 %v272
  %v313 = vpop.f32.mrf.mxu0
  %v314 = vadd.f32 0.0, %v313
  %315 = vmatmul.f32.gmra.mxu0 %v273
  %v316 = vpop.f32.mrf.mxu0
  %v317 = vadd.f32 0.0, %v316
  %318 = vmatmul.f32.gmra.mxu0 %v274
  %v319 = vpop.f32.mrf.mxu0
  %v320 = vadd.f32 0.0, %v319
  %321 = vmatmul.f32.gmra.mxu0 %v275
  %v322 = vpop.f32.mrf.mxu0
  %v323 = vadd.f32 0.0, %v322
  %324 = vmatmul.f32.gmra.mxu0 %v276
  %v325 = vpop.f32.mrf.mxu0
  %v326 = vadd.f32 0.0, %v325
  %327 = vmatmul.f32.gmra.mxu0 %v277
  %v328 = vpop.f32.mrf.mxu0
  %v329 = vadd.f32 0.0, %v328
  %330 = vmatmul.f32.gmra.mxu0 %v278
  %v331 = vpop.f32.mrf.mxu0
  %v332 = vadd.f32 0.0, %v331
  %333 = vmatmul.f32.gmra.mxu0 %v279
  %v334 = vpop.f32.mrf.mxu0
  %v335 = vadd.f32 0.0, %v334
  %336 = vdwg.mxu0
  %337 = vst [vmem:[#allocation3] sm:$0xff] %v314
  %338 = vst [vmem:[#allocation3 + $0x8] sm:$0xff] %v317
  %339 = vst [vmem:[#allocation3 + $0x10] sm:$0xff] %v320
  %340 = vst [vmem:[#allocation3 + $0x18] sm:$0xff] %v323
  %341 = vst [vmem:[#allocation3 + $0x20] sm:$0xff] %v326
  %342 = vst [vmem:[#allocation3 + $0x28] sm:$0xff] %v329
  %343 = vst [vmem:[#allocation3 + $0x30] sm:$0xff] %v332
  %344 = vst [vmem:[#allocation3 + $0x38] sm:$0xff] %v335
  %v345 = vld [vmem:[%s3] sm:$0xff]
  %346 = vst [vmem:[#allocation4] sm:$0xff] %v345
  %v347 = vld [vmem:[%s4] sm:$0xff]
  %348 = vst [vmem:[#allocation5] sm:$0xff] %v347
  %v349 = vld [vmem:[%s2] sm:$0xff]
  %vm350 = vcmp.gt.f32.partialorder %v349, 0.0
  %v351 = vsel %vm350, 1, 0
  %v352 = vrot.slane %v351, 1
  %v353 = vrot.slane %v351, 2
  %v354 = vrot.slane %v351, 3
  %v355 = vrot.slane %v351, 4
  %v356 = vrot.slane %v351, 5
  %v357 = vrot.slane %v351, 6
  %v358 = vrot.slane %v351, 7
  %vm359 = vcmp.ne.s32.totalorder %v352, 0
  %vm360 = vcmp.ne.s32.totalorder %v353, 0
  %vm361 = vcmp.ne.s32.totalorder %v354, 0
  %vm362 = vcmp.ne.s32.totalorder %v355, 0
  %vm363 = vcmp.ne.s32.totalorder %v356, 0
  %vm364 = vcmp.ne.s32.totalorder %v357, 0
  %vm365 = vcmp.ne.s32.totalorder %v358, 0
  %v366 = vld [vmem:[%s11] sm:$0x1]
  %v368 = vperm.slane %v366, 0
  %v370 = vld [vmem:[#allocation4] sm:$0xff]
  %v371 = vld [vmem:[#allocation5] sm:$0xff]
  %v373 = vrot.slane %v370, 1
  %v374 = vrot.slane %v370, 2
  %v375 = vrot.slane %v370, 3
  %v376 = vrot.slane %v370, 4
  %v377 = vrot.slane %v370, 5
  %v378 = vrot.slane %v370, 6
  %v379 = vrot.slane %v370, 7
  %v387 = vld [vmem:[#allocation3] sm:$0xff]
  %v388 = vld [vmem:[#allocation3 + $0x8] sm:$0xff]
  %v389 = vld [vmem:[#allocation3 + $0x10] sm:$0xff]
  %v390 = vld [vmem:[#allocation3 + $0x18] sm:$0xff]
  %v391 = vld [vmem:[#allocation3 + $0x20] sm:$0xff]
  %v392 = vld [vmem:[#allocation3 + $0x28] sm:$0xff]
  %v393 = vld [vmem:[#allocation3 + $0x30] sm:$0xff]
  %v394 = vld [vmem:[#allocation3 + $0x38] sm:$0xff]
  %395 = vmatpush.xpose.msra.mxu0 0.0
  %396 = vmatpush.xpose.msra.mxu0 0.0
  %397 = vmatpush.xpose.msra.mxu0 0.0
  %398 = vmatpush.xpose.msra.mxu0 0.0
  %399 = vmatpush.xpose.msra.mxu0 0.0
  %400 = vmatpush.xpose.msra.mxu0 0.0
  %401 = vmatpush.xpose.msra.mxu0 0.0
  %402 = vmatpush.xpose.msra.mxu0 0.0
  %403 = vmatpush.xpose.msra.mxu0 0.0
  %404 = vmatpush.xpose.msra.mxu0 0.0
  %405 = vmatpush.xpose.msra.mxu0 0.0
  %406 = vmatpush.xpose.msra.mxu0 0.0
  %407 = vmatpush.xpose.msra.mxu0 0.0
  %408 = vmatpush.xpose.msra.mxu0 0.0
  %409 = vmatpush.xpose.msra.mxu0 0.0
  %410 = vmatpush.xpose.msra.mxu0 %v387
  %411 = vmatmul.f32.gmra.mxu0 %v370
  %v412 = vpop.f32.mrf.mxu0
  %v413 = vadd.f32 0.0, %v412
  %414 = vdwg.mxu0
  %415 = vmatpush.xpose.msra.mxu0 0.0
  %416 = vmatpush.xpose.msra.mxu0 0.0
  %417 = vmatpush.xpose.msra.mxu0 0.0
  %418 = vmatpush.xpose.msra.mxu0 0.0
  %419 = vmatpush.xpose.msra.mxu0 0.0
  %420 = vmatpush.xpose.msra.mxu0 0.0
  %421 = vmatpush.xpose.msra.mxu0 0.0
  %422 = vmatpush.xpose.msra.mxu0 0.0
  %423 = vmatpush.xpose.msra.mxu0 0.0
  %424 = vmatpush.xpose.msra.mxu0 0.0
  %425 = vmatpush.xpose.msra.mxu0 0.0
  %426 = vmatpush.xpose.msra.mxu0 0.0
  %427 = vmatpush.xpose.msra.mxu0 0.0
  %428 = vmatpush.xpose.msra.mxu0 0.0
  %429 = vmatpush.xpose.msra.mxu0 0.0
  %430 = vmatpush.xpose.msra.mxu0 %v388
  %431 = vmatmul.f32.gmra.mxu0 %v373
  %v432 = vpop.f32.mrf.mxu0
  %v433 = vadd.f32 0.0, %v432
  %434 = vdwg.mxu0
  %435 = vmatpush.xpose.msra.mxu0 0.0
  %436 = vmatpush.xpose.msra.mxu0 0.0
  %437 = vmatpush.xpose.msra.mxu0 0.0
  %438 = vmatpush.xpose.msra.mxu0 0.0
  %439 = vmatpush.xpose.msra.mxu0 0.0
  %440 = vmatpush.xpose.msra.mxu0 0.0
  %441 = vmatpush.xpose.msra.mxu0 0.0
  %442 = vmatpush.xpose.msra.mxu0 0.0
  %443 = vmatpush.xpose.msra.mxu0 0.0
  %444 = vmatpush.xpose.msra.mxu0 0.0
  %445 = vmatpush.xpose.msra.mxu0 0.0
  %446 = vmatpush.xpose.msra.mxu0 0.0
  %447 = vmatpush.xpose.msra.mxu0 0.0
  %448 = vmatpush.xpose.msra.mxu0 0.0
  %449 = vmatpush.xpose.msra.mxu0 0.0
  %450 = vmatpush.xpose.msra.mxu0 %v389
  %451 = vmatmul.f32.gmra.mxu0 %v374
  %v452 = vpop.f32.mrf.mxu0
  %v453 = vadd.f32 0.0, %v452
  %454 = vdwg.mxu0
  %455 = vmatpush.xpose.msra.mxu0 0.0
  %456 = vmatpush.xpose.msra.mxu0 0.0
  %457 = vmatpush.xpose.msra.mxu0 0.0
  %458 = vmatpush.xpose.msra.mxu0 0.0
  %459 = vmatpush.xpose.msra.mxu0 0.0
  %460 = vmatpush.xpose.msra.mxu0 0.0
  %461 = vmatpush.xpose.msra.mxu0 0.0
  %462 = vmatpush.xpose.msra.mxu0 0.0
  %463 = vmatpush.xpose.msra.mxu0 0.0
  %464 = vmatpush.xpose.msra.mxu0 0.0
  %465 = vmatpush.xpose.msra.mxu0 0.0
  %466 = vmatpush.xpose.msra.mxu0 0.0
  %467 = vmatpush.xpose.msra.mxu0 0.0
  %468 = vmatpush.xpose.msra.mxu0 0.0
  %469 = vmatpush.xpose.msra.mxu0 0.0
  %470 = vmatpush.xpose.msra.mxu0 %v390
  %471 = vmatmul.f32.gmra.mxu0 %v375
  %v472 = vpop.f32.mrf.mxu0
  %v473 = vadd.f32 0.0, %v472
  %474 = vdwg.mxu0
  %475 = vmatpush.xpose.msra.mxu0 0.0
  %476 = vmatpush.xpose.msra.mxu0 0.0
  %477 = vmatpush.xpose.msra.mxu0 0.0
  %478 = vmatpush.xpose.msra.mxu0 0.0
  %479 = vmatpush.xpose.msra.mxu0 0.0
  %480 = vmatpush.xpose.msra.mxu0 0.0
  %481 = vmatpush.xpose.msra.mxu0 0.0
  %482 = vmatpush.xpose.msra.mxu0 0.0
  %483 = vmatpush.xpose.msra.mxu0 0.0
  %484 = vmatpush.xpose.msra.mxu0 0.0
  %485 = vmatpush.xpose.msra.mxu0 0.0
  %486 = vmatpush.xpose.msra.mxu0 0.0
  %487 = vmatpush.xpose.msra.mxu0 0.0
  %488 = vmatpush.xpose.msra.mxu0 0.0
  %489 = vmatpush.xpose.msra.mxu0 0.0
  %490 = vmatpush.xpose.msra.mxu0 %v391
  %491 = vmatmul.f32.gmra.mxu0 %v376
  %v492 = vpop.f32.mrf.mxu0
  %v493 = vadd.f32 0.0, %v492
  %494 = vdwg.mxu0
  %495 = vmatpush.xpose.msra.mxu0 0.0
  %496 = vmatpush.xpose.msra.mxu0 0.0
  %497 = vmatpush.xpose.msra.mxu0 0.0
  %498 = vmatpush.xpose.msra.mxu0 0.0
  %499 = vmatpush.xpose.msra.mxu0 0.0
  %500 = vmatpush.xpose.msra.mxu0 0.0
  %501 = vmatpush.xpose.msra.mxu0 0.0
  %502 = vmatpush.xpose.msra.mxu0 0.0
  %503 = vmatpush.xpose.msra.mxu0 0.0
  %504 = vmatpush.xpose.msra.mxu0 0.0
  %505 = vmatpush.xpose.msra.mxu0 0.0
  %506 = vmatpush.xpose.msra.mxu0 0.0
  %507 = vmatpush.xpose.msra.mxu0 0.0
  %508 = vmatpush.xpose.msra.mxu0 0.0
  %509 = vmatpush.xpose.msra.mxu0 0.0
  %510 = vmatpush.xpose.msra.mxu0 %v392
  %511 = vmatmul.f32.gmra.mxu0 %v377
  %v512 = vpop.f32.mrf.mxu0
  %v513 = vadd.f32 0.0, %v512
  %514 = vdwg.mxu0
  %515 = vmatpush.xpose.msra.mxu0 0.0
  %516 = vmatpush.xpose.msra.mxu0 0.0
  %517 = vmatpush.xpose.msra.mxu0 0.0
  %518 = vmatpush.xpose.msra.mxu0 0.0
  %519 = vmatpush.xpose.msra.mxu0 0.0
  %520 = vmatpush.xpose.msra.mxu0 0.0
  %521 = vmatpush.xpose.msra.mxu0 0.0
  %522 = vmatpush.xpose.msra.mxu0 0.0
  %523 = vmatpush.xpose.msra.mxu0 0.0
  %524 = vmatpush.xpose.msra.mxu0 0.0
  %525 = vmatpush.xpose.msra.mxu0 0.0
  %526 = vmatpush.xpose.msra.mxu0 0.0
  %527 = vmatpush.xpose.msra.mxu0 0.0
  %528 = vmatpush.xpose.msra.mxu0 0.0
  %529 = vmatpush.xpose.msra.mxu0 0.0
  %530 = vmatpush.xpose.msra.mxu0 %v393
  %531 = vmatmul.f32.gmra.mxu0 %v378
  %v532 = vpop.f32.mrf.mxu0
  %v533 = vadd.f32 0.0, %v532
  %534 = vdwg.mxu0
  %535 = vmatpush.xpose.msra.mxu0 0.0
  %536 = vmatpush.xpose.msra.mxu0 0.0
  %537 = vmatpush.xpose.msra.mxu0 0.0
  %538 = vmatpush.xpose.msra.mxu0 0.0
  %539 = vmatpush.xpose.msra.mxu0 0.0
  %540 = vmatpush.xpose.msra.mxu0 0.0
  %541 = vmatpush.xpose.msra.mxu0 0.0
  %542 = vmatpush.xpose.msra.mxu0 0.0
  %543 = vmatpush.xpose.msra.mxu0 0.0
  %544 = vmatpush.xpose.msra.mxu0 0.0
  %545 = vmatpush.xpose.msra.mxu0 0.0
  %546 = vmatpush.xpose.msra.mxu0 0.0
  %547 = vmatpush.xpose.msra.mxu0 0.0
  %548 = vmatpush.xpose.msra.mxu0 0.0
  %549 = vmatpush.xpose.msra.mxu0 0.0
  %550 = vmatpush.xpose.msra.mxu0 %v394
  %551 = vmatmul.f32.gmra.mxu0 %v379
  %v552 = vpop.f32.mrf.mxu0
  %v553 = vadd.f32 0.0, %v552
  %554 = vdwg.mxu0
  %v555 = vsel %vm350, %v413, -1e+30
  %v556 = vsel %vm359, %v433, -1e+30
  %v557 = vsel %vm360, %v453, -1e+30
  %v558 = vsel %vm361, %v473, -1e+30
  %v559 = vsel %vm362, %v493, -1e+30
  %v560 = vsel %vm363, %v513, -1e+30
  %v561 = vsel %vm364, %v533, -1e+30
  %v562 = vsel %vm365, %v553, -1e+30
  %vm563 = vcmask 57344
  %v564 = vsel %vm563, %v555, -inf
  %565 = vmax.xlane.f32.xlu0 %v564
  %v566 = vpop.xlane.xlu0 %565
  %v567 = vsel %vm563, %v556, -inf
  %568 = vmax.xlane.f32.xlu0 %v567
  %v569 = vpop.xlane.xlu0 %568
  %v570 = vsel %vm563, %v557, -inf
  %571 = vmax.xlane.f32.xlu0 %v570
  %v572 = vpop.xlane.xlu0 %571
  %v573 = vsel %vm563, %v558, -inf
  %574 = vmax.xlane.f32.xlu0 %v573
  %v575 = vpop.xlane.xlu0 %574
  %v576 = vsel %vm563, %v559, -inf
  %577 = vmax.xlane.f32.xlu0 %v576
  %v578 = vpop.xlane.xlu0 %577
  %v579 = vsel %vm563, %v560, -inf
  %580 = vmax.xlane.f32.xlu0 %v579
  %v581 = vpop.xlane.xlu0 %580
  %v582 = vsel %vm563, %v561, -inf
  %583 = vmax.xlane.f32.xlu0 %v582
  %v584 = vpop.xlane.xlu0 %583
  %v585 = vsel %vm563, %v562, -inf
  %586 = vmax.xlane.f32.xlu0 %v585
  %v587 = vpop.xlane.xlu0 %586
  %v588 = vsub.f32 %v555, %v566
  %v589 = vsub.f32 %v556, %v569
  %v590 = vsub.f32 %v557, %v572
  %v591 = vsub.f32 %v558, %v575
  %v592 = vsub.f32 %v559, %v578
  %v593 = vsub.f32 %v560, %v581
  %v594 = vsub.f32 %v561, %v584
  %v595 = vsub.f32 %v562, %v587
  %v596 = vmul.f32 %v588, 1.442695
  %v597 = vpow.pop %v596
  %v598 = vmul.f32 %v589, 1.442695
  %v599 = vpow.pop %v598
  %v600 = vmul.f32 %v590, 1.442695
  %v601 = vpow.pop %v600
  %v602 = vmul.f32 %v591, 1.442695
  %v603 = vpow.pop %v602
  %v604 = vmul.f32 %v592, 1.442695
  %v605 = vpow.pop %v604
  %v606 = vmul.f32 %v593, 1.442695
  %v607 = vpow.pop %v606
  %v608 = vmul.f32 %v594, 1.442695
  %v609 = vpow.pop %v608
  %v610 = vmul.f32 %v595, 1.442695
  %v611 = vpow.pop %v610
  %v612 = vsel %vm563, %v597, 0.0
  %613 = vadd.xlane.f32.xlu0 %v612
  %v614 = vpop.xlane.xlu0 %613
  %v615 = vsel %vm563, %v599, 0.0
  %616 = vadd.xlane.f32.xlu0 %v615
  %v617 = vpop.xlane.xlu0 %616
  %v618 = vsel %vm563, %v601, 0.0
  %619 = vadd.xlane.f32.xlu0 %v618
  %v620 = vpop.xlane.xlu0 %619
  %v621 = vsel %vm563, %v603, 0.0
  %622 = vadd.xlane.f32.xlu0 %v621
  %v623 = vpop.xlane.xlu0 %622
  %v624 = vsel %vm563, %v605, 0.0
  %625 = vadd.xlane.f32.xlu0 %v624
  %v626 = vpop.xlane.xlu0 %625
  %v627 = vsel %vm563, %v607, 0.0
  %628 = vadd.xlane.f32.xlu0 %v627
  %v629 = vpop.xlane.xlu0 %628
  %v630 = vsel %vm563, %v609, 0.0
  %631 = vadd.xlane.f32.xlu0 %v630
  %v632 = vpop.xlane.xlu0 %631
  %v633 = vsel %vm563, %v611, 0.0
  %634 = vadd.xlane.f32.xlu0 %v633
  %v635 = vpop.xlane.xlu0 %634
  %v636 = vrcp.pop %v614
  %v637 = vmul.f32 %v614, %v636
  %v638 = vsub.f32 1.0, %v637
  %v639 = vmul.f32 %v636, %v638
  %v640 = vadd.f32 %v636, %v639
  %vm641 = vweird.f32 %v614
  %vm642 = vweird.f32 %v636
  %vm643 = vmor %vm641, %vm642
  %v644 = vsel %vm643, %v636, %v640
  %v645 = vand.u32 2147483647, %v614
  %vm646 = vcmp.eq.f32.partialorder %v645, 8.507059e+37
  %v647 = vand.u32 %v614, 2147483648
  %v648 = vor.u32 1.1754944e-38, %v647
  %v649 = vsel %vm646, %v648, %v644
  %v650 = vmul.f32 %v597, %v649
  %v651 = vrcp.pop %v617
  %v652 = vmul.f32 %v617, %v651
  %v653 = vsub.f32 1.0, %v652
  %v654 = vmul.f32 %v651, %v653
  %v655 = vadd.f32 %v651, %v654
  %vm656 = vweird.f32 %v617
  %vm657 = vweird.f32 %v651
  %vm658 = vmor %vm656, %vm657
  %v659 = vsel %vm658, %v651, %v655
  %v660 = vand.u32 2147483647, %v617
  %vm661 = vcmp.eq.f32.partialorder %v660, 8.507059e+37
  %v662 = vand.u32 %v617, 2147483648
  %v663 = vor.u32 1.1754944e-38, %v662
  %v664 = vsel %vm661, %v663, %v659
  %v665 = vmul.f32 %v599, %v664
  %v666 = vrcp.pop %v620
  %v667 = vmul.f32 %v620, %v666
  %v668 = vsub.f32 1.0, %v667
  %v669 = vmul.f32 %v666, %v668
  %v670 = vadd.f32 %v666, %v669
  %vm671 = vweird.f32 %v620
  %vm672 = vweird.f32 %v666
  %vm673 = vmor %vm671, %vm672
  %v674 = vsel %vm673, %v666, %v670
  %v675 = vand.u32 2147483647, %v620
  %vm676 = vcmp.eq.f32.partialorder %v675, 8.507059e+37
  %v677 = vand.u32 %v620, 2147483648
  %v678 = vor.u32 1.1754944e-38, %v677
  %v679 = vsel %vm676, %v678, %v674
  %v680 = vmul.f32 %v601, %v679
  %v681 = vrcp.pop %v623
  %v682 = vmul.f32 %v623, %v681
  %v683 = vsub.f32 1.0, %v682
  %v684 = vmul.f32 %v681, %v683
  %v685 = vadd.f32 %v681, %v684
  %vm686 = vweird.f32 %v623
  %vm687 = vweird.f32 %v681
  %vm688 = vmor %vm686, %vm687
  %v689 = vsel %vm688, %v681, %v685
  %v690 = vand.u32 2147483647, %v623
  %vm691 = vcmp.eq.f32.partialorder %v690, 8.507059e+37
  %v692 = vand.u32 %v623, 2147483648
  %v693 = vor.u32 1.1754944e-38, %v692
  %v694 = vsel %vm691, %v693, %v689
  %v695 = vmul.f32 %v603, %v694
  %v696 = vrcp.pop %v626
  %v697 = vmul.f32 %v626, %v696
  %v698 = vsub.f32 1.0, %v697
  %v699 = vmul.f32 %v696, %v698
  %v700 = vadd.f32 %v696, %v699
  %vm701 = vweird.f32 %v626
  %vm702 = vweird.f32 %v696
  %vm703 = vmor %vm701, %vm702
  %v704 = vsel %vm703, %v696, %v700
  %v705 = vand.u32 2147483647, %v626
  %vm706 = vcmp.eq.f32.partialorder %v705, 8.507059e+37
  %v707 = vand.u32 %v626, 2147483648
  %v708 = vor.u32 1.1754944e-38, %v707
  %v709 = vsel %vm706, %v708, %v704
  %v710 = vmul.f32 %v605, %v709
  %v711 = vrcp.pop %v629
  %v712 = vmul.f32 %v629, %v711
  %v713 = vsub.f32 1.0, %v712
  %v714 = vmul.f32 %v711, %v713
  %v715 = vadd.f32 %v711, %v714
  %vm716 = vweird.f32 %v629
  %vm717 = vweird.f32 %v711
  %vm718 = vmor %vm716, %vm717
  %v719 = vsel %vm718, %v711, %v715
  %v720 = vand.u32 2147483647, %v629
  %vm721 = vcmp.eq.f32.partialorder %v720, 8.507059e+37
  %v722 = vand.u32 %v629, 2147483648
  %v723 = vor.u32 1.1754944e-38, %v722
  %v724 = vsel %vm721, %v723, %v719
  %v725 = vmul.f32 %v607, %v724
  %v726 = vrcp.pop %v632
  %v727 = vmul.f32 %v632, %v726
  %v728 = vsub.f32 1.0, %v727
  %v729 = vmul.f32 %v726, %v728
  %v730 = vadd.f32 %v726, %v729
  %vm731 = vweird.f32 %v632
  %vm732 = vweird.f32 %v726
  %vm733 = vmor %vm731, %vm732
  %v734 = vsel %vm733, %v726, %v730
  %v735 = vand.u32 2147483647, %v632
  %vm736 = vcmp.eq.f32.partialorder %v735, 8.507059e+37
  %v737 = vand.u32 %v632, 2147483648
  %v738 = vor.u32 1.1754944e-38, %v737
  %v739 = vsel %vm736, %v738, %v734
  %v740 = vmul.f32 %v609, %v739
  %v741 = vrcp.pop %v635
  %v742 = vmul.f32 %v635, %v741
  %v743 = vsub.f32 1.0, %v742
  %v744 = vmul.f32 %v741, %v743
  %v745 = vadd.f32 %v741, %v744
  %vm746 = vweird.f32 %v635
  %vm747 = vweird.f32 %v741
  %vm748 = vmor %vm746, %vm747
  %v749 = vsel %vm748, %v741, %v745
  %v750 = vand.u32 2147483647, %v635
  %vm751 = vcmp.eq.f32.partialorder %v750, 8.507059e+37
  %v752 = vand.u32 %v635, 2147483648
  %v753 = vor.u32 1.1754944e-38, %v752
  %v754 = vsel %vm751, %v753, %v749
  %v755 = vmul.f32 %v611, %v754
  %v756 = vld [vmem:[%s1] sm:$0xff]
  %v757 = vld [vmem:[%s1 + $0x8] sm:$0xff]
  %v758 = vld [vmem:[%s1 + $0x10] sm:$0xff]
  %v759 = vld [vmem:[%s1 + $0x18] sm:$0xff]
  %v760 = vld [vmem:[%s1 + $0x20] sm:$0xff]
  %v761 = vld [vmem:[%s1 + $0x28] sm:$0xff]
  %v762 = vld [vmem:[%s1 + $0x30] sm:$0xff]
  %v763 = vld [vmem:[%s1 + $0x38] sm:$0xff]
  %vm764 = vcmask 64512
  %v766 = vsel %vm764, %v650, 0
  %768 = vmatpush.msra.mxu0 0.0
  %769 = vmatpush.msra.mxu0 0.0
  %770 = vmatpush.msra.mxu0 0.0
  %771 = vmatpush.msra.mxu0 0.0
  %772 = vmatpush.msra.mxu0 0.0
  %773 = vmatpush.msra.mxu0 0.0
  %774 = vmatpush.msra.mxu0 0.0
  %775 = vmatpush.msra.mxu0 0.0
  %776 = vmatpush.msra.mxu0 0.0
  %777 = vmatpush.msra.mxu0 0.0
  %778 = vmatpush.msra.mxu0 0.0
  %779 = vmatpush.msra.mxu0 0.0
  %780 = vmatpush.msra.mxu0 0.0
  %781 = vmatpush.msra.mxu0 0.0
  %782 = vmatpush.msra.mxu0 0.0
  %783 = vmatpush.msra.mxu0 %v756
  %784 = vmatmul.f32.gmra.mxu0 %v766
  %v785 = vpop.f32.mrf.mxu0
  %v786 = vadd.f32 0.0, %v785
  %787 = vdwg.mxu0
  %v789 = vsel %vm764, %v665, 0
  %791 = vmatpush.msra.mxu0 0.0
  %792 = vmatpush.msra.mxu0 0.0
  %793 = vmatpush.msra.mxu0 0.0
  %794 = vmatpush.msra.mxu0 0.0
  %795 = vmatpush.msra.mxu0 0.0
  %796 = vmatpush.msra.mxu0 0.0
  %797 = vmatpush.msra.mxu0 0.0
  %798 = vmatpush.msra.mxu0 0.0
  %799 = vmatpush.msra.mxu0 0.0
  %800 = vmatpush.msra.mxu0 0.0
  %801 = vmatpush.msra.mxu0 0.0
  %802 = vmatpush.msra.mxu0 0.0
  %803 = vmatpush.msra.mxu0 0.0
  %804 = vmatpush.msra.mxu0 0.0
  %805 = vmatpush.msra.mxu0 0.0
  %806 = vmatpush.msra.mxu0 %v757
  %807 = vmatmul.f32.gmra.mxu0 %v789
  %v808 = vpop.f32.mrf.mxu0
  %v809 = vadd.f32 0.0, %v808
  %810 = vdwg.mxu0
  %v812 = vsel %vm764, %v680, 0
  %814 = vmatpush.msra.mxu0 0.0
  %815 = vmatpush.msra.mxu0 0.0
  %816 = vmatpush.msra.mxu0 0.0
  %817 = vmatpush.msra.mxu0 0.0
  %818 = vmatpush.msra.mxu0 0.0
  %819 = vmatpush.msra.mxu0 0.0
  %820 = vmatpush.msra.mxu0 0.0
  %821 = vmatpush.msra.mxu0 0.0
  %822 = vmatpush.msra.mxu0 0.0
  %823 = vmatpush.msra.mxu0 0.0
  %824 = vmatpush.msra.mxu0 0.0
  %825 = vmatpush.msra.mxu0 0.0
  %826 = vmatpush.msra.mxu0 0.0
  %827 = vmatpush.msra.mxu0 0.0
  %828 = vmatpush.msra.mxu0 0.0
  %829 = vmatpush.msra.mxu0 %v758
  %830 = vmatmul.f32.gmra.mxu0 %v812
  %v831 = vpop.f32.mrf.mxu0
  %v832 = vadd.f32 0.0, %v831
  %833 = vdwg.mxu0
  %v835 = vsel %vm764, %v695, 0
  %837 = vmatpush.msra.mxu0 0.0
  %838 = vmatpush.msra.mxu0 0.0
  %839 = vmatpush.msra.mxu0 0.0
  %840 = vmatpush.msra.mxu0 0.0
  %841 = vmatpush.msra.mxu0 0.0
  %842 = vmatpush.msra.mxu0 0.0
  %843 = vmatpush.msra.mxu0 0.0
  %844 = vmatpush.msra.mxu0 0.0
  %845 = vmatpush.msra.mxu0 0.0
  %846 = vmatpush.msra.mxu0 0.0
  %847 = vmatpush.msra.mxu0 0.0
  %848 = vmatpush.msra.mxu0 0.0
  %849 = vmatpush.msra.mxu0 0.0
  %850 = vmatpush.msra.mxu0 0.0
  %851 = vmatpush.msra.mxu0 0.0
  %852 = vmatpush.msra.mxu0 %v759
  %853 = vmatmul.f32.gmra.mxu0 %v835
  %v854 = vpop.f32.mrf.mxu0
  %v855 = vadd.f32 0.0, %v854
  %856 = vdwg.mxu0
  %v858 = vsel %vm764, %v710, 0
  %860 = vmatpush.msra.mxu0 0.0
  %861 = vmatpush.msra.mxu0 0.0
  %862 = vmatpush.msra.mxu0 0.0
  %863 = vmatpush.msra.mxu0 0.0
  %864 = vmatpush.msra.mxu0 0.0
  %865 = vmatpush.msra.mxu0 0.0
  %866 = vmatpush.msra.mxu0 0.0
  %867 = vmatpush.msra.mxu0 0.0
  %868 = vmatpush.msra.mxu0 0.0
  %869 = vmatpush.msra.mxu0 0.0
  %870 = vmatpush.msra.mxu0 0.0
  %871 = vmatpush.msra.mxu0 0.0
  %872 = vmatpush.msra.mxu0 0.0
  %873 = vmatpush.msra.mxu0 0.0
  %874 = vmatpush.msra.mxu0 0.0
  %875 = vmatpush.msra.mxu0 %v760
  %876 = vmatmul.f32.gmra.mxu0 %v858
  %v877 = vpop.f32.mrf.mxu0
  %v878 = vadd.f32 0.0, %v877
  %879 = vdwg.mxu0
  %v881 = vsel %vm764, %v725, 0
  %883 = vmatpush.msra.mxu0 0.0
  %884 = vmatpush.msra.mxu0 0.0
  %885 = vmatpush.msra.mxu0 0.0
  %886 = vmatpush.msra.mxu0 0.0
  %887 = vmatpush.msra.mxu0 0.0
  %888 = vmatpush.msra.mxu0 0.0
  %889 = vmatpush.msra.mxu0 0.0
  %890 = vmatpush.msra.mxu0 0.0
  %891 = vmatpush.msra.mxu0 0.0
  %892 = vmatpush.msra.mxu0 0.0
  %893 = vmatpush.msra.mxu0 0.0
  %894 = vmatpush.msra.mxu0 0.0
  %895 = vmatpush.msra.mxu0 0.0
  %896 = vmatpush.msra.mxu0 0.0
  %897 = vmatpush.msra.mxu0 0.0
  %898 = vmatpush.msra.mxu0 %v761
  %899 = vmatmul.f32.gmra.mxu0 %v881
  %v900 = vpop.f32.mrf.mxu0
  %v901 = vadd.f32 0.0, %v900
  %902 = vdwg.mxu0
  %v904 = vsel %vm764, %v740, 0
  %906 = vmatpush.msra.mxu0 0.0
  %907 = vmatpush.msra.mxu0 0.0
  %908 = vmatpush.msra.mxu0 0.0
  %909 = vmatpush.msra.mxu0 0.0
  %910 = vmatpush.msra.mxu0 0.0
  %911 = vmatpush.msra.mxu0 0.0
  %912 = vmatpush.msra.mxu0 0.0
  %913 = vmatpush.msra.mxu0 0.0
  %914 = vmatpush.msra.mxu0 0.0
  %915 = vmatpush.msra.mxu0 0.0
  %916 = vmatpush.msra.mxu0 0.0
  %917 = vmatpush.msra.mxu0 0.0
  %918 = vmatpush.msra.mxu0 0.0
  %919 = vmatpush.msra.mxu0 0.0
  %920 = vmatpush.msra.mxu0 0.0
  %921 = vmatpush.msra.mxu0 %v762
  %922 = vmatmul.f32.gmra.mxu0 %v904
  %v923 = vpop.f32.mrf.mxu0
  %v924 = vadd.f32 0.0, %v923
  %925 = vdwg.mxu0
  %v927 = vsel %vm764, %v755, 0
  %929 = vmatpush.msra.mxu0 0.0
  %930 = vmatpush.msra.mxu0 0.0
  %931 = vmatpush.msra.mxu0 0.0
  %932 = vmatpush.msra.mxu0 0.0
  %933 = vmatpush.msra.mxu0 0.0
  %934 = vmatpush.msra.mxu0 0.0
  %935 = vmatpush.msra.mxu0 0.0
  %936 = vmatpush.msra.mxu0 0.0
  %937 = vmatpush.msra.mxu0 0.0
  %938 = vmatpush.msra.mxu0 0.0
  %939 = vmatpush.msra.mxu0 0.0
  %940 = vmatpush.msra.mxu0 0.0
  %941 = vmatpush.msra.mxu0 0.0
  %942 = vmatpush.msra.mxu0 0.0
  %943 = vmatpush.msra.mxu0 0.0
  %944 = vmatpush.msra.mxu0 %v763
  %945 = vmatmul.f32.gmra.mxu0 %v927
  %v946 = vpop.f32.mrf.mxu0
  %v947 = vadd.f32 0.0, %v946
  %948 = vdwg.mxu0
  %v949 = vld [vmem:[#allocation2] sm:$0xff]
  %v950 = vld [vmem:[#allocation2 + $0x8] sm:$0xff]
  %v951 = vld [vmem:[#allocation2 + $0x10] sm:$0xff]
  %v952 = vld [vmem:[#allocation2 + $0x18] sm:$0xff]
  %v953 = vld [vmem:[%s7] sm:$0xff]
  %v954 = vld [vmem:[%s7 + $0x8] sm:$0xff]
  %v955 = vld [vmem:[%s7 + $0x10] sm:$0xff]
  %v956 = vld [vmem:[%s7 + $0x18] sm:$0xff]
  %v957 = vld [vmem:[%s7 + $0x20] sm:$0xff]
  %v958 = vld [vmem:[%s7 + $0x28] sm:$0xff]
  %v959 = vld [vmem:[%s7 + $0x30] sm:$0xff]
  %v960 = vld [vmem:[%s7 + $0x38] sm:$0xff]
  %v961 = vld [vmem:[%s7 + $0x40] sm:$0xff]
  %v962 = vld [vmem:[%s7 + $0x48] sm:$0xff]
  %v963 = vld [vmem:[%s7 + $0x50] sm:$0xff]
  %v964 = vld [vmem:[%s7 + $0x58] sm:$0xff]
  %v965 = vld [vmem:[%s7 + $0x60] sm:$0xff]
  %v966 = vld [vmem:[%s7 + $0x68] sm:$0xff]
  %v967 = vld [vmem:[%s7 + $0x70] sm:$0xff]
  %v968 = vld [vmem:[%s7 + $0x78] sm:$0xff]
  %v969 = vld [vmem:[%s7 + $0x80] sm:$0xff]
  %v970 = vld [vmem:[%s7 + $0x88] sm:$0xff]
  %v971 = vld [vmem:[%s7 + $0x90] sm:$0xff]
  %v972 = vld [vmem:[%s7 + $0x98] sm:$0xff]
  %v973 = vld [vmem:[%s7 + $0xa0] sm:$0xff]
  %v974 = vld [vmem:[%s7 + $0xa8] sm:$0xff]
  %v975 = vld [vmem:[%s7 + $0xb0] sm:$0xff]
  %v976 = vld [vmem:[%s7 + $0xb8] sm:$0xff]
  %v977 = vld [vmem:[%s7 + $0xc0] sm:$0xff]
  %v978 = vld [vmem:[%s7 + $0xc8] sm:$0xff]
  %v979 = vld [vmem:[%s7 + $0xd0] sm:$0xff]
  %v980 = vld [vmem:[%s7 + $0xd8] sm:$0xff]
  %v981 = vld [vmem:[%s7 + $0xe0] sm:$0xff]
  %v982 = vld [vmem:[%s7 + $0xe8] sm:$0xff]
  %v983 = vld [vmem:[%s7 + $0xf0] sm:$0xff]
  %v984 = vld [vmem:[%s7 + $0xf8] sm:$0xff]
  %v985 = vld [vmem:[%s7 + $0x100] sm:$0xff]
  %v986 = vld [vmem:[%s7 + $0x108] sm:$0xff]
  %v987 = vld [vmem:[%s7 + $0x110] sm:$0xff]
  %v988 = vld [vmem:[%s7 + $0x118] sm:$0xff]
  %v989 = vld [vmem:[%s7 + $0x120] sm:$0xff]
  %v990 = vld [vmem:[%s7 + $0x128] sm:$0xff]
  %v991 = vld [vmem:[%s7 + $0x130] sm:$0xff]
  %v992 = vld [vmem:[%s7 + $0x138] sm:$0xff]
  %v993 = vld [vmem:[%s7 + $0x140] sm:$0xff]
  %v994 = vld [vmem:[%s7 + $0x148] sm:$0xff]
  %v995 = vld [vmem:[%s7 + $0x150] sm:$0xff]
  %v996 = vld [vmem:[%s7 + $0x158] sm:$0xff]
  %v997 = vld [vmem:[%s7 + $0x160] sm:$0xff]
  %v998 = vld [vmem:[%s7 + $0x168] sm:$0xff]
  %v999 = vld [vmem:[%s7 + $0x170] sm:$0xff]
  %v1000 = vld [vmem:[%s7 + $0x178] sm:$0xff]
  %v1001 = vld [vmem:[%s7 + $0x180] sm:$0xff]
  %v1002 = vld [vmem:[%s7 + $0x188] sm:$0xff]
  %v1003 = vld [vmem:[%s7 + $0x190] sm:$0xff]
  %v1004 = vld [vmem:[%s7 + $0x198] sm:$0xff]
  %v1005 = vld [vmem:[%s7 + $0x1a0] sm:$0xff]
  %v1006 = vld [vmem:[%s7 + $0x1a8] sm:$0xff]
  %v1007 = vld [vmem:[%s7 + $0x1b0] sm:$0xff]
  %v1008 = vld [vmem:[%s7 + $0x1b8] sm:$0xff]
  %v1009 = vld [vmem:[%s7 + $0x1c0] sm:$0xff]
  %v1010 = vld [vmem:[%s7 + $0x1c8] sm:$0xff]
  %v1011 = vld [vmem:[%s7 + $0x1d0] sm:$0xff]
  %v1012 = vld [vmem:[%s7 + $0x1d8] sm:$0xff]
  %v1013 = vld [vmem:[%s7 + $0x1e0] sm:$0xff]
  %v1014 = vld [vmem:[%s7 + $0x1e8] sm:$0xff]
  %v1015 = vld [vmem:[%s7 + $0x1f0] sm:$0xff]
  %v1016 = vld [vmem:[%s7 + $0x1f8] sm:$0xff]
  %v1025 = vrot.slane %v809, 7
  %vm1026 = vcmask 1041409
  %v1027 = vsel %vm1026, %v1025, %v786
  %v1028 = vrot.slane %v832, 6
  %vm1029 = vcmask 1042434
  %v1030 = vsel %vm1029, %v1028, %v1027
  %v1031 = vrot.slane %v855, 5
  %vm1032 = vcmask 1043459
  %v1033 = vsel %vm1032, %v1031, %v1030
  %v1034 = vrot.slane %v878, 4
  %vm1035 = vcmask 1044484
  %v1036 = vsel %vm1035, %v1034, %v1033
  %v1037 = vrot.slane %v901, 3
  %vm1038 = vcmask 1045509
  %v1039 = vsel %vm1038, %v1037, %v1036
  %v1040 = vrot.slane %v924, 2
  %vm1041 = vcmask 1046534
  %v1042 = vsel %vm1041, %v1040, %v1039
  %v1043 = vrot.slane %v947, 1
  %vm1044 = vcmask 1047559
  %v1045 = vsel %vm1044, %v1043, %v1042
  %1047 = vmatpush.msra.mxu0 %v1013
  %1048 = vmatpush.msra.mxu0 %v1009
  %1049 = vmatpush.msra.mxu0 %v1005
  %1050 = vmatpush.msra.mxu0 %v1001
  %1051 = vmatpush.msra.mxu0 %v997
  %1052 = vmatpush.msra.mxu0 %v993
  %1053 = vmatpush.msra.mxu0 %v989
  %1054 = vmatpush.msra.mxu0 %v985
  %1055 = vmatpush.msra.mxu0 %v981
  %1056 = vmatpush.msra.mxu0 %v977
  %1057 = vmatpush.msra.mxu0 %v973
  %1058 = vmatpush.msra.mxu0 %v969
  %1059 = vmatpush.msra.mxu0 %v965
  %1060 = vmatpush.msra.mxu0 %v961
  %1061 = vmatpush.msra.mxu0 %v957
  %1062 = vmatpush.msra.mxu0 %v953
  %1063 = vmatmul.f32.gmra.mxu0 %v1045
  %v1064 = vpop.f32.mrf.mxu0
  %v1065 = vadd.f32 0.0, %v1064
  %1066 = vdwg.mxu0
  %1067 = vmatpush.msra.mxu0 %v1014
  %1068 = vmatpush.msra.mxu0 %v1010
  %1069 = vmatpush.msra.mxu0 %v1006
  %1070 = vmatpush.msra.mxu0 %v1002
  %1071 = vmatpush.msra.mxu0 %v998
  %1072 = vmatpush.msra.mxu0 %v994
  %1073 = vmatpush.msra.mxu0 %v990
  %1074 = vmatpush.msra.mxu0 %v986
  %1075 = vmatpush.msra.mxu0 %v982
  %1076 = vmatpush.msra.mxu0 %v978
  %1077 = vmatpush.msra.mxu0 %v974
  %1078 = vmatpush.msra.mxu0 %v970
  %1079 = vmatpush.msra.mxu0 %v966
  %1080 = vmatpush.msra.mxu0 %v962
  %1081 = vmatpush.msra.mxu0 %v958
  %1082 = vmatpush.msra.mxu0 %v954
  %1083 = vmatmul.f32.gmra.mxu0 %v1045
  %v1084 = vpop.f32.mrf.mxu0
  %v1085 = vadd.f32 0.0, %v1084
  %1086 = vdwg.mxu0
  %1087 = vmatpush.msra.mxu0 %v1015
  %1088 = vmatpush.msra.mxu0 %v1011
  %1089 = vmatpush.msra.mxu0 %v1007
  %1090 = vmatpush.msra.mxu0 %v1003
  %1091 = vmatpush.msra.mxu0 %v999
  %1092 = vmatpush.msra.mxu0 %v995
  %1093 = vmatpush.msra.mxu0 %v991
  %1094 = vmatpush.msra.mxu0 %v987
  %1095 = vmatpush.msra.mxu0 %v983
  %1096 = vmatpush.msra.mxu0 %v979
  %1097 = vmatpush.msra.mxu0 %v975
  %1098 = vmatpush.msra.mxu0 %v971
  %1099 = vmatpush.msra.mxu0 %v967
  %1100 = vmatpush.msra.mxu0 %v963
  %1101 = vmatpush.msra.mxu0 %v959
  %1102 = vmatpush.msra.mxu0 %v955
  %1103 = vmatmul.f32.gmra.mxu0 %v1045
  %v1104 = vpop.f32.mrf.mxu0
  %v1105 = vadd.f32 0.0, %v1104
  %1106 = vdwg.mxu0
  %1107 = vmatpush.msra.mxu0 %v1016
  %1108 = vmatpush.msra.mxu0 %v1012
  %1109 = vmatpush.msra.mxu0 %v1008
  %1110 = vmatpush.msra.mxu0 %v1004
  %1111 = vmatpush.msra.mxu0 %v1000
  %1112 = vmatpush.msra.mxu0 %v996
  %1113 = vmatpush.msra.mxu0 %v992
  %1114 = vmatpush.msra.mxu0 %v988
  %1115 = vmatpush.msra.mxu0 %v984
  %1116 = vmatpush.msra.mxu0 %v980
  %1117 = vmatpush.msra.mxu0 %v976
  %1118 = vmatpush.msra.mxu0 %v972
  %1119 = vmatpush.msra.mxu0 %v968
  %1120 = vmatpush.msra.mxu0 %v964
  %1121 = vmatpush.msra.mxu0 %v960
  %1122 = vmatpush.msra.mxu0 %v956
  %1123 = vmatmul.f32.gmra.mxu0 %v1045
  %v1124 = vpop.f32.mrf.mxu0
  %v1125 = vadd.f32 0.0, %v1124
  %1126 = vdwg.mxu0
  %v1127 = vadd.f32 %v949, %v1065
  %v1128 = vadd.f32 %v950, %v1085
  %v1129 = vadd.f32 %v951, %v1105
  %v1130 = vadd.f32 %v952, %v1125
  %v1131 = vld [vmem:[%s8] sm:$0xff]
  %v1132 = vld [vmem:[%s8 + $0x8] sm:$0xff]
  %v1133 = vld [vmem:[%s8 + $0x10] sm:$0xff]
  %v1134 = vld [vmem:[%s8 + $0x18] sm:$0xff]
  %v1135 = vld [vmem:[%s8 + $0x20] sm:$0xff]
  %v1136 = vld [vmem:[%s8 + $0x28] sm:$0xff]
  %v1137 = vld [vmem:[%s8 + $0x30] sm:$0xff]
  %v1138 = vld [vmem:[%s8 + $0x38] sm:$0xff]
  %v1139 = vld [vmem:[%s8 + $0x40] sm:$0xff]
  %v1140 = vld [vmem:[%s8 + $0x48] sm:$0xff]
  %v1141 = vld [vmem:[%s8 + $0x50] sm:$0xff]
  %v1142 = vld [vmem:[%s8 + $0x58] sm:$0xff]
  %v1143 = vld [vmem:[%s8 + $0x60] sm:$0xff]
  %v1144 = vld [vmem:[%s8 + $0x68] sm:$0xff]
  %v1145 = vld [vmem:[%s8 + $0x70] sm:$0xff]
  %v1146 = vld [vmem:[%s8 + $0x78] sm:$0xff]
  %v1147 = vld [vmem:[%s8 + $0x80] sm:$0xff]
  %v1148 = vld [vmem:[%s8 + $0x88] sm:$0xff]
  %v1149 = vld [vmem:[%s8 + $0x90] sm:$0xff]
  %v1150 = vld [vmem:[%s8 + $0x98] sm:$0xff]
  %v1151 = vld [vmem:[%s8 + $0xa0] sm:$0xff]
  %v1152 = vld [vmem:[%s8 + $0xa8] sm:$0xff]
  %v1153 = vld [vmem:[%s8 + $0xb0] sm:$0xff]
  %v1154 = vld [vmem:[%s8 + $0xb8] sm:$0xff]
  %v1155 = vld [vmem:[%s8 + $0xc0] sm:$0xff]
  %v1156 = vld [vmem:[%s8 + $0xc8] sm:$0xff]
  %v1157 = vld [vmem:[%s8 + $0xd0] sm:$0xff]
  %v1158 = vld [vmem:[%s8 + $0xd8] sm:$0xff]
  %v1159 = vld [vmem:[%s8 + $0xe0] sm:$0xff]
  %v1160 = vld [vmem:[%s8 + $0xe8] sm:$0xff]
  %v1161 = vld [vmem:[%s8 + $0xf0] sm:$0xff]
  %v1162 = vld [vmem:[%s8 + $0xf8] sm:$0xff]
  %v1163 = vld [vmem:[%s8 + $0x100] sm:$0xff]
  %v1164 = vld [vmem:[%s8 + $0x108] sm:$0xff]
  %v1165 = vld [vmem:[%s8 + $0x110] sm:$0xff]
  %v1166 = vld [vmem:[%s8 + $0x118] sm:$0xff]
  %v1167 = vld [vmem:[%s8 + $0x120] sm:$0xff]
  %v1168 = vld [vmem:[%s8 + $0x128] sm:$0xff]
  %v1169 = vld [vmem:[%s8 + $0x130] sm:$0xff]
  %v1170 = vld [vmem:[%s8 + $0x138] sm:$0xff]
  %v1171 = vld [vmem:[%s8 + $0x140] sm:$0xff]
  %v1172 = vld [vmem:[%s8 + $0x148] sm:$0xff]
  %v1173 = vld [vmem:[%s8 + $0x150] sm:$0xff]
  %v1174 = vld [vmem:[%s8 + $0x158] sm:$0xff]
  %v1175 = vld [vmem:[%s8 + $0x160] sm:$0xff]
  %v1176 = vld [vmem:[%s8 + $0x168] sm:$0xff]
  %v1177 = vld [vmem:[%s8 + $0x170] sm:$0xff]
  %v1178 = vld [vmem:[%s8 + $0x178] sm:$0xff]
  %v1179 = vld [vmem:[%s8 + $0x180] sm:$0xff]
  %v1180 = vld [vmem:[%s8 + $0x188] sm:$0xff]
  %v1181 = vld [vmem:[%s8 + $0x190] sm:$0xff]
  %v1182 = vld [vmem:[%s8 + $0x198] sm:$0xff]
  %v1183 = vld [vmem:[%s8 + $0x1a0] sm:$0xff]
  %v1184 = vld [vmem:[%s8 + $0x1a8] sm:$0xff]
  %v1185 = vld [vmem:[%s8 + $0x1b0] sm:$0xff]
  %v1186 = vld [vmem:[%s8 + $0x1b8] sm:$0xff]
  %v1187 = vld [vmem:[%s8 + $0x1c0] sm:$0xff]
  %v1188 = vld [vmem:[%s8 + $0x1c8] sm:$0xff]
  %v1189 = vld [vmem:[%s8 + $0x1d0] sm:$0xff]
  %v1190 = vld [vmem:[%s8 + $0x1d8] sm:$0xff]
  %v1191 = vld [vmem:[%s8 + $0x1e0] sm:$0xff]
  %v1192 = vld [vmem:[%s8 + $0x1e8] sm:$0xff]
  %v1193 = vld [vmem:[%s8 + $0x1f0] sm:$0xff]
  %v1194 = vld [vmem:[%s8 + $0x1f8] sm:$0xff]
  %1195 = vmatpush.msra.mxu0 %v1191
  %1196 = vmatpush.msra.mxu0 %v1187
  %1197 = vmatpush.msra.mxu0 %v1183
  %1198 = vmatpush.msra.mxu0 %v1179
  %1199 = vmatpush.msra.mxu0 %v1175
  %1200 = vmatpush.msra.mxu0 %v1171
  %1201 = vmatpush.msra.mxu0 %v1167
  %1202 = vmatpush.msra.mxu0 %v1163
  %1203 = vmatpush.msra.mxu0 %v1159
  %1204 = vmatpush.msra.mxu0 %v1155
  %1205 = vmatpush.msra.mxu0 %v1151
  %1206 = vmatpush.msra.mxu0 %v1147
  %1207 = vmatpush.msra.mxu0 %v1143
  %1208 = vmatpush.msra.mxu0 %v1139
  %1209 = vmatpush.msra.mxu0 %v1135
  %1210 = vmatpush.msra.mxu0 %v1131
  %1211 = vmatmul.f32.gmra.mxu0 %v370
  %v1212 = vpop.f32.mrf.mxu0
  %v1213 = vadd.f32 0.0, %v1212
  %1214 = vdwg.mxu0
  %1215 = vmatpush.msra.mxu0 %v1192
  %1216 = vmatpush.msra.mxu0 %v1188
  %1217 = vmatpush.msra.mxu0 %v1184
  %1218 = vmatpush.msra.mxu0 %v1180
  %1219 = vmatpush.msra.mxu0 %v1176
  %1220 = vmatpush.msra.mxu0 %v1172
  %1221 = vmatpush.msra.mxu0 %v1168
  %1222 = vmatpush.msra.mxu0 %v1164
  %1223 = vmatpush.msra.mxu0 %v1160
  %1224 = vmatpush.msra.mxu0 %v1156
  %1225 = vmatpush.msra.mxu0 %v1152
  %1226 = vmatpush.msra.mxu0 %v1148
  %1227 = vmatpush.msra.mxu0 %v1144
  %1228 = vmatpush.msra.mxu0 %v1140
  %1229 = vmatpush.msra.mxu0 %v1136
  %1230 = vmatpush.msra.mxu0 %v1132
  %1231 = vmatmul.f32.gmra.mxu0 %v370
  %v1232 = vpop.f32.mrf.mxu0
  %v1233 = vadd.f32 0.0, %v1232
  %1234 = vdwg.mxu0
  %1235 = vmatpush.msra.mxu0 %v1193
  %1236 = vmatpush.msra.mxu0 %v1189
  %1237 = vmatpush.msra.mxu0 %v1185
  %1238 = vmatpush.msra.mxu0 %v1181
  %1239 = vmatpush.msra.mxu0 %v1177
  %1240 = vmatpush.msra.mxu0 %v1173
  %1241 = vmatpush.msra.mxu0 %v1169
  %1242 = vmatpush.msra.mxu0 %v1165
  %1243 = vmatpush.msra.mxu0 %v1161
  %1244 = vmatpush.msra.mxu0 %v1157
  %1245 = vmatpush.msra.mxu0 %v1153
  %1246 = vmatpush.msra.mxu0 %v1149
  %1247 = vmatpush.msra.mxu0 %v1145
  %1248 = vmatpush.msra.mxu0 %v1141
  %1249 = vmatpush.msra.mxu0 %v1137
  %1250 = vmatpush.msra.mxu0 %v1133
  %1251 = vmatmul.f32.gmra.mxu0 %v370
  %v1252 = vpop.f32.mrf.mxu0
  %v1253 = vadd.f32 0.0, %v1252
  %1254 = vdwg.mxu0
  %1255 = vmatpush.msra.mxu0 %v1194
  %1256 = vmatpush.msra.mxu0 %v1190
  %1257 = vmatpush.msra.mxu0 %v1186
  %1258 = vmatpush.msra.mxu0 %v1182
  %1259 = vmatpush.msra.mxu0 %v1178
  %1260 = vmatpush.msra.mxu0 %v1174
  %1261 = vmatpush.msra.mxu0 %v1170
  %1262 = vmatpush.msra.mxu0 %v1166
  %1263 = vmatpush.msra.mxu0 %v1162
  %1264 = vmatpush.msra.mxu0 %v1158
  %1265 = vmatpush.msra.mxu0 %v1154
  %1266 = vmatpush.msra.mxu0 %v1150
  %1267 = vmatpush.msra.mxu0 %v1146
  %1268 = vmatpush.msra.mxu0 %v1142
  %1269 = vmatpush.msra.mxu0 %v1138
  %1270 = vmatpush.msra.mxu0 %v1134
  %1271 = vmatmul.f32.gmra.mxu0 %v370
  %v1272 = vpop.f32.mrf.mxu0
  %v1273 = vadd.f32 0.0, %v1272
  %1274 = vdwg.mxu0
  %v1275 = vadd.f32 %v1127, %v1213
  %v1276 = vadd.f32 %v1128, %v1233
  %v1277 = vadd.f32 %v1129, %v1253
  %v1278 = vadd.f32 %v1130, %v1273
  %v1279 = vxor.u32 %v1275, 2147483648
  %v1280 = vmul.f32 %v1279, 1.442695
  %v1281 = vpow.pop %v1280
  %v1282 = vadd.f32 %v1281, 1.0
  %v1283 = vrcp.pop %v1282
  %v1284 = vmul.f32 %v1282, %v1283
  %v1285 = vsub.f32 1.0, %v1284
  %v1286 = vmul.f32 %v1283, %v1285
  %v1287 = vadd.f32 %v1283, %v1286
  %vm1288 = vweird.f32 %v1282
  %vm1289 = vweird.f32 %v1283
  %vm1290 = vmor %vm1288, %vm1289
  %v1291 = vsel %vm1290, %v1283, %v1287
  %v1292 = vand.u32 2147483647, %v1282
  %vm1293 = vcmp.eq.f32.partialorder %v1292, 8.507059e+37
  %v1294 = vand.u32 %v1282, 2147483648
  %v1295 = vor.u32 1.1754944e-38, %v1294
  %v1296 = vsel %vm1293, %v1295, %v1291
  %v1297 = vmul.f32 1.0, %v1296
  %v1298 = vxor.u32 %v1276, 2147483648
  %v1299 = vmul.f32 %v1298, 1.442695
  %v1300 = vpow.pop %v1299
  %v1301 = vadd.f32 %v1300, 1.0
  %v1302 = vrcp.pop %v1301
  %v1303 = vmul.f32 %v1301, %v1302
  %v1304 = vsub.f32 1.0, %v1303
  %v1305 = vmul.f32 %v1302, %v1304
  %v1306 = vadd.f32 %v1302, %v1305
  %vm1307 = vweird.f32 %v1301
  %vm1308 = vweird.f32 %v1302
  %vm1309 = vmor %vm1307, %vm1308
  %v1310 = vsel %vm1309, %v1302, %v1306
  %v1311 = vand.u32 2147483647, %v1301
  %vm1312 = vcmp.eq.f32.partialorder %v1311, 8.507059e+37
  %v1313 = vand.u32 %v1301, 2147483648
  %v1314 = vor.u32 1.1754944e-38, %v1313
  %v1315 = vsel %vm1312, %v1314, %v1310
  %v1316 = vmul.f32 1.0, %v1315
  %v1317 = vtanh.pop %v1277
  %v1318 = vxor.u32 %v1278, 2147483648
  %v1319 = vmul.f32 %v1318, 1.442695
  %v1320 = vpow.pop %v1319
  %v1321 = vadd.f32 %v1320, 1.0
  %v1322 = vrcp.pop %v1321
  %v1323 = vmul.f32 %v1321, %v1322
  %v1324 = vsub.f32 1.0, %v1323
  %v1325 = vmul.f32 %v1322, %v1324
  %v1326 = vadd.f32 %v1322, %v1325
  %vm1327 = vweird.f32 %v1321
  %vm1328 = vweird.f32 %v1322
  %vm1329 = vmor %vm1327, %vm1328
  %v1330 = vsel %vm1329, %v1322, %v1326
  %v1331 = vand.u32 2147483647, %v1321
  %vm1332 = vcmp.eq.f32.partialorder %v1331, 8.507059e+37
  %v1333 = vand.u32 %v1321, 2147483648
  %v1334 = vor.u32 1.1754944e-38, %v1333
  %v1335 = vsel %vm1332, %v1334, %v1330
  %v1336 = vmul.f32 1.0, %v1335
  %v1337 = vmul.f32 %v1316, %v371
  %v1338 = vmul.f32 %v1297, %v1317
  %v1339 = vadd.f32 %v1337, %v1338
  %v1340 = vtanh.pop %v1339
  %v1341 = vmul.f32 %v1336, %v1340
  %1342 = vst [vmem:[#allocation4] sm:$0xff] %v1341
  %1343 = vst [vmem:[#allocation5] sm:$0xff] %v1339
  %v1344 = vld [vmem:[%s10] sm:$0xff]
  %v1345 = vld [vmem:[%s10 + $0x8] sm:$0xff]
  %v1346 = vld [vmem:[%s10 + $0x10] sm:$0xff]
  %v1347 = vld [vmem:[%s10 + $0x18] sm:$0xff]
  %v1348 = vld [vmem:[%s10 + $0x20] sm:$0xff]
  %v1349 = vld [vmem:[%s10 + $0x28] sm:$0xff]
  %v1350 = vld [vmem:[%s10 + $0x30] sm:$0xff]
  %v1351 = vld [vmem:[%s10 + $0x38] sm:$0xff]
  %v1352 = vld [vmem:[%s10 + $0x40] sm:$0xff]
  %v1353 = vld [vmem:[%s10 + $0x48] sm:$0xff]
  %v1354 = vld [vmem:[%s10 + $0x50] sm:$0xff]
  %v1355 = vld [vmem:[%s10 + $0x58] sm:$0xff]
  %v1356 = vld [vmem:[%s10 + $0x60] sm:$0xff]
  %v1357 = vld [vmem:[%s10 + $0x68] sm:$0xff]
  %v1358 = vld [vmem:[%s10 + $0x70] sm:$0xff]
  %v1359 = vld [vmem:[%s10 + $0x78] sm:$0xff]
  %1360 = vmatpush.msra.mxu0 %v1359
  %1361 = vmatpush.msra.mxu0 %v1358
  %1362 = vmatpush.msra.mxu0 %v1357
  %1363 = vmatpush.msra.mxu0 %v1356
  %1364 = vmatpush.msra.mxu0 %v1355
  %1365 = vmatpush.msra.mxu0 %v1354
  %1366 = vmatpush.msra.mxu0 %v1353
  %1367 = vmatpush.msra.mxu0 %v1352
  %1368 = vmatpush.msra.mxu0 %v1351
  %1369 = vmatpush.msra.mxu0 %v1350
  %1370 = vmatpush.msra.mxu0 %v1349
  %1371 = vmatpush.msra.mxu0 %v1348
  %1372 = vmatpush.msra.mxu0 %v1347
  %1373 = vmatpush.msra.mxu0 %v1346
  %1374 = vmatpush.msra.mxu0 %v1345
  %1375 = vmatpush.msra.mxu0 %v1344
  %1376 = vmatmul.f32.gmra.mxu0 %v1341
  %v1377 = vpop.f32.mrf.mxu0
  %v1378 = vadd.f32 %v368, %v1377
  %1379 = vdwg.mxu0
  %1380 = vst [vmem:[%s12] sm:$0xff] %v1378
  %v1381 = vld [vmem:[#allocation4] sm:$0xff]
  %v1382 = vld [vmem:[#allocation5] sm:$0xff]
  %v1384 = vrot.slane %v1381, 1
  %v1385 = vrot.slane %v1381, 2
  %v1386 = vrot.slane %v1381, 3
  %v1387 = vrot.slane %v1381, 4
  %v1388 = vrot.slane %v1381, 5
  %v1389 = vrot.slane %v1381, 6
  %v1390 = vrot.slane %v1381, 7
  %v1398 = vld [vmem:[#allocation3] sm:$0xff]
  %v1399 = vld [vmem:[#allocation3 + $0x8] sm:$0xff]
  %v1400 = vld [vmem:[#allocation3 + $0x10] sm:$0xff]
  %v1401 = vld [vmem:[#allocation3 + $0x18] sm:$0xff]
  %v1402 = vld [vmem:[#allocation3 + $0x20] sm:$0xff]
  %v1403 = vld [vmem:[#allocation3 + $0x28] sm:$0xff]
  %v1404 = vld [vmem:[#allocation3 + $0x30] sm:$0xff]
  %v1405 = vld [vmem:[#allocation3 + $0x38] sm:$0xff]
  %1406 = vmatpush.xpose.msra.mxu0 0.0
  %1407 = vmatpush.xpose.msra.mxu0 0.0
  %1408 = vmatpush.xpose.msra.mxu0 0.0
  %1409 = vmatpush.xpose.msra.mxu0 0.0
  %1410 = vmatpush.xpose.msra.mxu0 0.0
  %1411 = vmatpush.xpose.msra.mxu0 0.0
  %1412 = vmatpush.xpose.msra.mxu0 0.0
  %1413 = vmatpush.xpose.msra.mxu0 0.0
  %1414 = vmatpush.xpose.msra.mxu0 0.0
  %1415 = vmatpush.xpose.msra.mxu0 0.0
  %1416 = vmatpush.xpose.msra.mxu0 0.0
  %1417 = vmatpush.xpose.msra.mxu0 0.0
  %1418 = vmatpush.xpose.msra.mxu0 0.0
  %1419 = vmatpush.xpose.msra.mxu0 0.0
  %1420 = vmatpush.xpose.msra.mxu0 0.0
  %1421 = vmatpush.xpose.msra.mxu0 %v1398
  %1422 = vmatmul.f32.gmra.mxu0 %v1381
  %v1423 = vpop.f32.mrf.mxu0
  %v1424 = vadd.f32 0.0, %v1423
  %1425 = vdwg.mxu0
  %1426 = vmatpush.xpose.msra.mxu0 0.0
  %1427 = vmatpush.xpose.msra.mxu0 0.0
  %1428 = vmatpush.xpose.msra.mxu0 0.0
  %1429 = vmatpush.xpose.msra.mxu0 0.0
  %1430 = vmatpush.xpose.msra.mxu0 0.0
  %1431 = vmatpush.xpose.msra.mxu0 0.0
  %1432 = vmatpush.xpose.msra.mxu0 0.0
  %1433 = vmatpush.xpose.msra.mxu0 0.0
  %1434 = vmatpush.xpose.msra.mxu0 0.0
  %1435 = vmatpush.xpose.msra.mxu0 0.0
  %1436 = vmatpush.xpose.msra.mxu0 0.0
  %1437 = vmatpush.xpose.msra.mxu0 0.0
  %1438 = vmatpush.xpose.msra.mxu0 0.0
  %1439 = vmatpush.xpose.msra.mxu0 0.0
  %1440 = vmatpush.xpose.msra.mxu0 0.0
  %1441 = vmatpush.xpose.msra.mxu0 %v1399
  %1442 = vmatmul.f32.gmra.mxu0 %v1384
  %v1443 = vpop.f32.mrf.mxu0
  %v1444 = vadd.f32 0.0, %v1443
  %1445 = vdwg.mxu0
  %1446 = vmatpush.xpose.msra.mxu0 0.0
  %1447 = vmatpush.xpose.msra.mxu0 0.0
  %1448 = vmatpush.xpose.msra.mxu0 0.0
  %1449 = vmatpush.xpose.msra.mxu0 0.0
  %1450 = vmatpush.xpose.msra.mxu0 0.0
  %1451 = vmatpush.xpose.msra.mxu0 0.0
  %1452 = vmatpush.xpose.msra.mxu0 0.0
  %1453 = vmatpush.xpose.msra.mxu0 0.0
  %1454 = vmatpush.xpose.msra.mxu0 0.0
  %1455 = vmatpush.xpose.msra.mxu0 0.0
  %1456 = vmatpush.xpose.msra.mxu0 0.0
  %1457 = vmatpush.xpose.msra.mxu0 0.0
  %1458 = vmatpush.xpose.msra.mxu0 0.0
  %1459 = vmatpush.xpose.msra.mxu0 0.0
  %1460 = vmatpush.xpose.msra.mxu0 0.0
  %1461 = vmatpush.xpose.msra.mxu0 %v1400
  %1462 = vmatmul.f32.gmra.mxu0 %v1385
  %v1463 = vpop.f32.mrf.mxu0
  %v1464 = vadd.f32 0.0, %v1463
  %1465 = vdwg.mxu0
  %1466 = vmatpush.xpose.msra.mxu0 0.0
  %1467 = vmatpush.xpose.msra.mxu0 0.0
  %1468 = vmatpush.xpose.msra.mxu0 0.0
  %1469 = vmatpush.xpose.msra.mxu0 0.0
  %1470 = vmatpush.xpose.msra.mxu0 0.0
  %1471 = vmatpush.xpose.msra.mxu0 0.0
  %1472 = vmatpush.xpose.msra.mxu0 0.0
  %1473 = vmatpush.xpose.msra.mxu0 0.0
  %1474 = vmatpush.xpose.msra.mxu0 0.0
  %1475 = vmatpush.xpose.msra.mxu0 0.0
  %1476 = vmatpush.xpose.msra.mxu0 0.0
  %1477 = vmatpush.xpose.msra.mxu0 0.0
  %1478 = vmatpush.xpose.msra.mxu0 0.0
  %1479 = vmatpush.xpose.msra.mxu0 0.0
  %1480 = vmatpush.xpose.msra.mxu0 0.0
  %1481 = vmatpush.xpose.msra.mxu0 %v1401
  %1482 = vmatmul.f32.gmra.mxu0 %v1386
  %v1483 = vpop.f32.mrf.mxu0
  %v1484 = vadd.f32 0.0, %v1483
  %1485 = vdwg.mxu0
  %1486 = vmatpush.xpose.msra.mxu0 0.0
  %1487 = vmatpush.xpose.msra.mxu0 0.0
  %1488 = vmatpush.xpose.msra.mxu0 0.0
  %1489 = vmatpush.xpose.msra.mxu0 0.0
  %1490 = vmatpush.xpose.msra.mxu0 0.0
  %1491 = vmatpush.xpose.msra.mxu0 0.0
  %1492 = vmatpush.xpose.msra.mxu0 0.0
  %1493 = vmatpush.xpose.msra.mxu0 0.0
  %1494 = vmatpush.xpose.msra.mxu0 0.0
  %1495 = vmatpush.xpose.msra.mxu0 0.0
  %1496 = vmatpush.xpose.msra.mxu0 0.0
  %1497 = vmatpush.xpose.msra.mxu0 0.0
  %1498 = vmatpush.xpose.msra.mxu0 0.0
  %1499 = vmatpush.xpose.msra.mxu0 0.0
  %1500 = vmatpush.xpose.msra.mxu0 0.0
  %1501 = vmatpush.xpose.msra.mxu0 %v1402
  %1502 = vmatmul.f32.gmra.mxu0 %v1387
  %v1503 = vpop.f32.mrf.mxu0
  %v1504 = vadd.f32 0.0, %v1503
  %1505 = vdwg.mxu0
  %1506 = vmatpush.xpose.msra.mxu0 0.0
  %1507 = vmatpush.xpose.msra.mxu0 0.0
  %1508 = vmatpush.xpose.msra.mxu0 0.0
  %1509 = vmatpush.xpose.msra.mxu0 0.0
  %1510 = vmatpush.xpose.msra.mxu0 0.0
  %1511 = vmatpush.xpose.msra.mxu0 0.0
  %1512 = vmatpush.xpose.msra.mxu0 0.0
  %1513 = vmatpush.xpose.msra.mxu0 0.0
  %1514 = vmatpush.xpose.msra.mxu0 0.0
  %1515 = vmatpush.xpose.msra.mxu0 0.0
  %1516 = vmatpush.xpose.msra.mxu0 0.0
  %1517 = vmatpush.xpose.msra.mxu0 0.0
  %1518 = vmatpush.xpose.msra.mxu0 0.0
  %1519 = vmatpush.xpose.msra.mxu0 0.0
  %1520 = vmatpush.xpose.msra.mxu0 0.0
  %1521 = vmatpush.xpose.msra.mxu0 %v1403
  %1522 = vmatmul.f32.gmra.mxu0 %v1388
  %v1523 = vpop.f32.mrf.mxu0
  %v1524 = vadd.f32 0.0, %v1523
  %1525 = vdwg.mxu0
  %1526 = vmatpush.xpose.msra.mxu0 0.0
  %1527 = vmatpush.xpose.msra.mxu0 0.0
  %1528 = vmatpush.xpose.msra.mxu0 0.0
  %1529 = vmatpush.xpose.msra.mxu0 0.0
  %1530 = vmatpush.xpose.msra.mxu0 0.0
  %1531 = vmatpush.xpose.msra.mxu0 0.0
  %1532 = vmatpush.xpose.msra.mxu0 0.0
  %1533 = vmatpush.xpose.msra.mxu0 0.0
  %1534 = vmatpush.xpose.msra.mxu0 0.0
  %1535 = vmatpush.xpose.msra.mxu0 0.0
  %1536 = vmatpush.xpose.msra.mxu0 0.0
  %1537 = vmatpush.xpose.msra.mxu0 0.0
  %1538 = vmatpush.xpose.msra.mxu0 0.0
  %1539 = vmatpush.xpose.msra.mxu0 0.0
  %1540 = vmatpush.xpose.msra.mxu0 0.0
  %1541 = vmatpush.xpose.msra.mxu0 %v1404
  %1542 = vmatmul.f32.gmra.mxu0 %v1389
  %v1543 = vpop.f32.mrf.mxu0
  %v1544 = vadd.f32 0.0, %v1543
  %1545 = vdwg.mxu0
  %1546 = vmatpush.xpose.msra.mxu0 0.0
  %1547 = vmatpush.xpose.msra.mxu0 0.0
  %1548 = vmatpush.xpose.msra.mxu0 0.0
  %1549 = vmatpush.xpose.msra.mxu0 0.0
  %1550 = vmatpush.xpose.msra.mxu0 0.0
  %1551 = vmatpush.xpose.msra.mxu0 0.0
  %1552 = vmatpush.xpose.msra.mxu0 0.0
  %1553 = vmatpush.xpose.msra.mxu0 0.0
  %1554 = vmatpush.xpose.msra.mxu0 0.0
  %1555 = vmatpush.xpose.msra.mxu0 0.0
  %1556 = vmatpush.xpose.msra.mxu0 0.0
  %1557 = vmatpush.xpose.msra.mxu0 0.0
  %1558 = vmatpush.xpose.msra.mxu0 0.0
  %1559 = vmatpush.xpose.msra.mxu0 0.0
  %1560 = vmatpush.xpose.msra.mxu0 0.0
  %1561 = vmatpush.xpose.msra.mxu0 %v1405
  %1562 = vmatmul.f32.gmra.mxu0 %v1390
  %v1563 = vpop.f32.mrf.mxu0
  %v1564 = vadd.f32 0.0, %v1563
  %1565 = vdwg.mxu0
  %v1566 = vsel %vm350, %v1424, -1e+30
  %v1567 = vsel %vm359, %v1444, -1e+30
  %v1568 = vsel %vm360, %v1464, -1e+30
  %v1569 = vsel %vm361, %v1484, -1e+30
  %v1570 = vsel %vm362, %v1504, -1e+30
  %v1571 = vsel %vm363, %v1524, -1e+30
  %v1572 = vsel %vm364, %v1544, -1e+30
  %v1573 = vsel %vm365, %v1564, -1e+30
  %v1574 = vsel %vm563, %v1566, -inf
  %1575 = vmax.xlane.f32.xlu0 %v1574
  %v1576 = vpop.xlane.xlu0 %1575
  %v1577 = vsel %vm563, %v1567, -inf
  %1578 = vmax.xlane.f32.xlu0 %v1577
  %v1579 = vpop.xlane.xlu0 %1578
  %v1580 = vsel %vm563, %v1568, -inf
  %1581 = vmax.xlane.f32.xlu0 %v1580
  %v1582 = vpop.xlane.xlu0 %1581
  %v1583 = vsel %vm563, %v1569, -inf
  %1584 = vmax.xlane.f32.xlu0 %v1583
  %v1585 = vpop.xlane.xlu0 %1584
  %v1586 = vsel %vm563, %v1570, -inf
  %1587 = vmax.xlane.f32.xlu0 %v1586
  %v1588 = vpop.xlane.xlu0 %1587
  %v1589 = vsel %vm563, %v1571, -inf
  %1590 = vmax.xlane.f32.xlu0 %v1589
  %v1591 = vpop.xlane.xlu0 %1590
  %v1592 = vsel %vm563, %v1572, -inf
  %1593 = vmax.xlane.f32.xlu0 %v1592
  %v1594 = vpop.xlane.xlu0 %1593
  %v1595 = vsel %vm563, %v1573, -inf
  %1596 = vmax.xlane.f32.xlu0 %v1595
  %v1597 = vpop.xlane.xlu0 %1596
  %v1598 = vsub.f32 %v1566, %v1576
  %v1599 = vsub.f32 %v1567, %v1579
  %v1600 = vsub.f32 %v1568, %v1582
  %v1601 = vsub.f32 %v1569, %v1585
  %v1602 = vsub.f32 %v1570, %v1588
  %v1603 = vsub.f32 %v1571, %v1591
  %v1604 = vsub.f32 %v1572, %v1594
  %v1605 = vsub.f32 %v1573, %v1597
  %v1606 = vmul.f32 %v1598, 1.442695
  %v1607 = vpow.pop %v1606
  %v1608 = vmul.f32 %v1599, 1.442695
  %v1609 = vpow.pop %v1608
  %v1610 = vmul.f32 %v1600, 1.442695
  %v1611 = vpow.pop %v1610
  %v1612 = vmul.f32 %v1601, 1.442695
  %v1613 = vpow.pop %v1612
  %v1614 = vmul.f32 %v1602, 1.442695
  %v1615 = vpow.pop %v1614
  %v1616 = vmul.f32 %v1603, 1.442695
  %v1617 = vpow.pop %v1616
  %v1618 = vmul.f32 %v1604, 1.442695
  %v1619 = vpow.pop %v1618
  %v1620 = vmul.f32 %v1605, 1.442695
  %v1621 = vpow.pop %v1620
  %v1622 = vsel %vm563, %v1607, 0.0
  %1623 = vadd.xlane.f32.xlu0 %v1622
  %v1624 = vpop.xlane.xlu0 %1623
  %v1625 = vsel %vm563, %v1609, 0.0
  %1626 = vadd.xlane.f32.xlu0 %v1625
  %v1627 = vpop.xlane.xlu0 %1626
  %v1628 = vsel %vm563, %v1611, 0.0
  %1629 = vadd.xlane.f32.xlu0 %v1628
  %v1630 = vpop.xlane.xlu0 %1629
  %v1631 = vsel %vm563, %v1613, 0.0
  %1632 = vadd.xlane.f32.xlu0 %v1631
  %v1633 = vpop.xlane.xlu0 %1632
  %v1634 = vsel %vm563, %v1615, 0.0
  %1635 = vadd.xlane.f32.xlu0 %v1634
  %v1636 = vpop.xlane.xlu0 %1635
  %v1637 = vsel %vm563, %v1617, 0.0
  %1638 = vadd.xlane.f32.xlu0 %v1637
  %v1639 = vpop.xlane.xlu0 %1638
  %v1640 = vsel %vm563, %v1619, 0.0
  %1641 = vadd.xlane.f32.xlu0 %v1640
  %v1642 = vpop.xlane.xlu0 %1641
  %v1643 = vsel %vm563, %v1621, 0.0
  %1644 = vadd.xlane.f32.xlu0 %v1643
  %v1645 = vpop.xlane.xlu0 %1644
  %v1646 = vrcp.pop %v1624
  %v1647 = vmul.f32 %v1624, %v1646
  %v1648 = vsub.f32 1.0, %v1647
  %v1649 = vmul.f32 %v1646, %v1648
  %v1650 = vadd.f32 %v1646, %v1649
  %vm1651 = vweird.f32 %v1624
  %vm1652 = vweird.f32 %v1646
  %vm1653 = vmor %vm1651, %vm1652
  %v1654 = vsel %vm1653, %v1646, %v1650
  %v1655 = vand.u32 2147483647, %v1624
  %vm1656 = vcmp.eq.f32.partialorder %v1655, 8.507059e+37
  %v1657 = vand.u32 %v1624, 2147483648
  %v1658 = vor.u32 1.1754944e-38, %v1657
  %v1659 = vsel %vm1656, %v1658, %v1654
  %v1660 = vmul.f32 %v1607, %v1659
  %v1661 = vrcp.pop %v1627
  %v1662 = vmul.f32 %v1627, %v1661
  %v1663 = vsub.f32 1.0, %v1662
  %v1664 = vmul.f32 %v1661, %v1663
  %v1665 = vadd.f32 %v1661, %v1664
  %vm1666 = vweird.f32 %v1627
  %vm1667 = vweird.f32 %v1661
  %vm1668 = vmor %vm1666, %vm1667
  %v1669 = vsel %vm1668, %v1661, %v1665
  %v1670 = vand.u32 2147483647, %v1627
  %vm1671 = vcmp.eq.f32.partialorder %v1670, 8.507059e+37
  %v1672 = vand.u32 %v1627, 2147483648
  %v1673 = vor.u32 1.1754944e-38, %v1672
  %v1674 = vsel %vm1671, %v1673, %v1669
  %v1675 = vmul.f32 %v1609, %v1674
  %v1676 = vrcp.pop %v1630
  %v1677 = vmul.f32 %v1630, %v1676
  %v1678 = vsub.f32 1.0, %v1677
  %v1679 = vmul.f32 %v1676, %v1678
  %v1680 = vadd.f32 %v1676, %v1679
  %vm1681 = vweird.f32 %v1630
  %vm1682 = vweird.f32 %v1676
  %vm1683 = vmor %vm1681, %vm1682
  %v1684 = vsel %vm1683, %v1676, %v1680
  %v1685 = vand.u32 2147483647, %v1630
  %vm1686 = vcmp.eq.f32.partialorder %v1685, 8.507059e+37
  %v1687 = vand.u32 %v1630, 2147483648
  %v1688 = vor.u32 1.1754944e-38, %v1687
  %v1689 = vsel %vm1686, %v1688, %v1684
  %v1690 = vmul.f32 %v1611, %v1689
  %v1691 = vrcp.pop %v1633
  %v1692 = vmul.f32 %v1633, %v1691
  %v1693 = vsub.f32 1.0, %v1692
  %v1694 = vmul.f32 %v1691, %v1693
  %v1695 = vadd.f32 %v1691, %v1694
  %vm1696 = vweird.f32 %v1633
  %vm1697 = vweird.f32 %v1691
  %vm1698 = vmor %vm1696, %vm1697
  %v1699 = vsel %vm1698, %v1691, %v1695
  %v1700 = vand.u32 2147483647, %v1633
  %vm1701 = vcmp.eq.f32.partialorder %v1700, 8.507059e+37
  %v1702 = vand.u32 %v1633, 2147483648
  %v1703 = vor.u32 1.1754944e-38, %v1702
  %v1704 = vsel %vm1701, %v1703, %v1699
  %v1705 = vmul.f32 %v1613, %v1704
  %v1706 = vrcp.pop %v1636
  %v1707 = vmul.f32 %v1636, %v1706
  %v1708 = vsub.f32 1.0, %v1707
  %v1709 = vmul.f32 %v1706, %v1708
  %v1710 = vadd.f32 %v1706, %v1709
  %vm1711 = vweird.f32 %v1636
  %vm1712 = vweird.f32 %v1706
  %vm1713 = vmor %vm1711, %vm1712
  %v1714 = vsel %vm1713, %v1706, %v1710
  %v1715 = vand.u32 2147483647, %v1636
  %vm1716 = vcmp.eq.f32.partialorder %v1715, 8.507059e+37
  %v1717 = vand.u32 %v1636, 2147483648
  %v1718 = vor.u32 1.1754944e-38, %v1717
  %v1719 = vsel %vm1716, %v1718, %v1714
  %v1720 = vmul.f32 %v1615, %v1719
  %v1721 = vrcp.pop %v1639
  %v1722 = vmul.f32 %v1639, %v1721
  %v1723 = vsub.f32 1.0, %v1722
  %v1724 = vmul.f32 %v1721, %v1723
  %v1725 = vadd.f32 %v1721, %v1724
  %vm1726 = vweird.f32 %v1639
  %vm1727 = vweird.f32 %v1721
  %vm1728 = vmor %vm1726, %vm1727
  %v1729 = vsel %vm1728, %v1721, %v1725
  %v1730 = vand.u32 2147483647, %v1639
  %vm1731 = vcmp.eq.f32.partialorder %v1730, 8.507059e+37
  %v1732 = vand.u32 %v1639, 2147483648
  %v1733 = vor.u32 1.1754944e-38, %v1732
  %v1734 = vsel %vm1731, %v1733, %v1729
  %v1735 = vmul.f32 %v1617, %v1734
  %v1736 = vrcp.pop %v1642
  %v1737 = vmul.f32 %v1642, %v1736
  %v1738 = vsub.f32 1.0, %v1737
  %v1739 = vmul.f32 %v1736, %v1738
  %v1740 = vadd.f32 %v1736, %v1739
  %vm1741 = vweird.f32 %v1642
  %vm1742 = vweird.f32 %v1736
  %vm1743 = vmor %vm1741, %vm1742
  %v1744 = vsel %vm1743, %v1736, %v1740
  %v1745 = vand.u32 2147483647, %v1642
  %vm1746 = vcmp.eq.f32.partialorder %v1745, 8.507059e+37
  %v1747 = vand.u32 %v1642, 2147483648
  %v1748 = vor.u32 1.1754944e-38, %v1747
  %v1749 = vsel %vm1746, %v1748, %v1744
  %v1750 = vmul.f32 %v1619, %v1749
  %v1751 = vrcp.pop %v1645
  %v1752 = vmul.f32 %v1645, %v1751
  %v1753 = vsub.f32 1.0, %v1752
  %v1754 = vmul.f32 %v1751, %v1753
  %v1755 = vadd.f32 %v1751, %v1754
  %vm1756 = vweird.f32 %v1645
  %vm1757 = vweird.f32 %v1751
  %vm1758 = vmor %vm1756, %vm1757
  %v1759 = vsel %vm1758, %v1751, %v1755
  %v1760 = vand.u32 2147483647, %v1645
  %vm1761 = vcmp.eq.f32.partialorder %v1760, 8.507059e+37
  %v1762 = vand.u32 %v1645, 2147483648
  %v1763 = vor.u32 1.1754944e-38, %v1762
  %v1764 = vsel %vm1761, %v1763, %v1759
  %v1765 = vmul.f32 %v1621, %v1764
  %v1766 = vld [vmem:[%s1] sm:$0xff]
  %v1767 = vld [vmem:[%s1 + $0x8] sm:$0xff]
  %v1768 = vld [vmem:[%s1 + $0x10] sm:$0xff]
  %v1769 = vld [vmem:[%s1 + $0x18] sm:$0xff]
  %v1770 = vld [vmem:[%s1 + $0x20] sm:$0xff]
  %v1771 = vld [vmem:[%s1 + $0x28] sm:$0xff]
  %v1772 = vld [vmem:[%s1 + $0x30] sm:$0xff]
  %v1773 = vld [vmem:[%s1 + $0x38] sm:$0xff]
  %v1775 = vsel %vm764, %v1660, 0
  %1777 = vmatpush.msra.mxu0 0.0
  %1778 = vmatpush.msra.mxu0 0.0
  %1779 = vmatpush.msra.mxu0 0.0
  %1780 = vmatpush.msra.mxu0 0.0
  %1781 = vmatpush.msra.mxu0 0.0
  %1782 = vmatpush.msra.mxu0 0.0
  %1783 = vmatpush.msra.mxu0 0.0
  %1784 = vmatpush.msra.mxu0 0.0
  %1785 = vmatpush.msra.mxu0 0.0
  %1786 = vmatpush.msra.mxu0 0.0
  %1787 = vmatpush.msra.mxu0 0.0
  %1788 = vmatpush.msra.mxu0 0.0
  %1789 = vmatpush.msra.mxu0 0.0
  %1790 = vmatpush.msra.mxu0 0.0
  %1791 = vmatpush.msra.mxu0 0.0
  %1792 = vmatpush.msra.mxu0 %v1766
  %1793 = vmatmul.f32.gmra.mxu0 %v1775
  %v1794 = vpop.f32.mrf.mxu0
  %v1795 = vadd.f32 0.0, %v1794
  %1796 = vdwg.mxu0
  %v1798 = vsel %vm764, %v1675, 0
  %1800 = vmatpush.msra.mxu0 0.0
  %1801 = vmatpush.msra.mxu0 0.0
  %1802 = vmatpush.msra.mxu0 0.0
  %1803 = vmatpush.msra.mxu0 0.0
  %1804 = vmatpush.msra.mxu0 0.0
  %1805 = vmatpush.msra.mxu0 0.0
  %1806 = vmatpush.msra.mxu0 0.0
  %1807 = vmatpush.msra.mxu0 0.0
  %1808 = vmatpush.msra.mxu0 0.0
  %1809 = vmatpush.msra.mxu0 0.0
  %1810 = vmatpush.msra.mxu0 0.0
  %1811 = vmatpush.msra.mxu0 0.0
  %1812 = vmatpush.msra.mxu0 0.0
  %1813 = vmatpush.msra.mxu0 0.0
  %1814 = vmatpush.msra.mxu0 0.0
  %1815 = vmatpush.msra.mxu0 %v1767
  %1816 = vmatmul.f32.gmra.mxu0 %v1798
  %v1817 = vpop.f32.mrf.mxu0
  %v1818 = vadd.f32 0.0, %v1817
  %1819 = vdwg.mxu0
  %v1821 = vsel %vm764, %v1690, 0
  %1823 = vmatpush.msra.mxu0 0.0
  %1824 = vmatpush.msra.mxu0 0.0
  %1825 = vmatpush.msra.mxu0 0.0
  %1826 = vmatpush.msra.mxu0 0.0
  %1827 = vmatpush.msra.mxu0 0.0
  %1828 = vmatpush.msra.mxu0 0.0
  %1829 = vmatpush.msra.mxu0 0.0
  %1830 = vmatpush.msra.mxu0 0.0
  %1831 = vmatpush.msra.mxu0 0.0
  %1832 = vmatpush.msra.mxu0 0.0
  %1833 = vmatpush.msra.mxu0 0.0
  %1834 = vmatpush.msra.mxu0 0.0
  %1835 = vmatpush.msra.mxu0 0.0
  %1836 = vmatpush.msra.mxu0 0.0
  %1837 = vmatpush.msra.mxu0 0.0
  %1838 = vmatpush.msra.mxu0 %v1768
  %1839 = vmatmul.f32.gmra.mxu0 %v1821
  %v1840 = vpop.f32.mrf.mxu0
  %v1841 = vadd.f32 0.0, %v1840
  %1842 = vdwg.mxu0
  %v1844 = vsel %vm764, %v1705, 0
  %1846 = vmatpush.msra.mxu0 0.0
  %1847 = vmatpush.msra.mxu0 0.0
  %1848 = vmatpush.msra.mxu0 0.0
  %1849 = vmatpush.msra.mxu0 0.0
  %1850 = vmatpush.msra.mxu0 0.0
  %1851 = vmatpush.msra.mxu0 0.0
  %1852 = vmatpush.msra.mxu0 0.0
  %1853 = vmatpush.msra.mxu0 0.0
  %1854 = vmatpush.msra.mxu0 0.0
  %1855 = vmatpush.msra.mxu0 0.0
  %1856 = vmatpush.msra.mxu0 0.0
  %1857 = vmatpush.msra.mxu0 0.0
  %1858 = vmatpush.msra.mxu0 0.0
  %1859 = vmatpush.msra.mxu0 0.0
  %1860 = vmatpush.msra.mxu0 0.0
  %1861 = vmatpush.msra.mxu0 %v1769
  %1862 = vmatmul.f32.gmra.mxu0 %v1844
  %v1863 = vpop.f32.mrf.mxu0
  %v1864 = vadd.f32 0.0, %v1863
  %1865 = vdwg.mxu0
  %v1867 = vsel %vm764, %v1720, 0
  %1869 = vmatpush.msra.mxu0 0.0
  %1870 = vmatpush.msra.mxu0 0.0
  %1871 = vmatpush.msra.mxu0 0.0
  %1872 = vmatpush.msra.mxu0 0.0
  %1873 = vmatpush.msra.mxu0 0.0
  %1874 = vmatpush.msra.mxu0 0.0
  %1875 = vmatpush.msra.mxu0 0.0
  %1876 = vmatpush.msra.mxu0 0.0
  %1877 = vmatpush.msra.mxu0 0.0
  %1878 = vmatpush.msra.mxu0 0.0
  %1879 = vmatpush.msra.mxu0 0.0
  %1880 = vmatpush.msra.mxu0 0.0
  %1881 = vmatpush.msra.mxu0 0.0
  %1882 = vmatpush.msra.mxu0 0.0
  %1883 = vmatpush.msra.mxu0 0.0
  %1884 = vmatpush.msra.mxu0 %v1770
  %1885 = vmatmul.f32.gmra.mxu0 %v1867
  %v1886 = vpop.f32.mrf.mxu0
  %v1887 = vadd.f32 0.0, %v1886
  %1888 = vdwg.mxu0
  %v1890 = vsel %vm764, %v1735, 0
  %1892 = vmatpush.msra.mxu0 0.0
  %1893 = vmatpush.msra.mxu0 0.0
  %1894 = vmatpush.msra.mxu0 0.0
  %1895 = vmatpush.msra.mxu0 0.0
  %1896 = vmatpush.msra.mxu0 0.0
  %1897 = vmatpush.msra.mxu0 0.0
  %1898 = vmatpush.msra.mxu0 0.0
  %1899 = vmatpush.msra.mxu0 0.0
  %1900 = vmatpush.msra.mxu0 0.0
  %1901 = vmatpush.msra.mxu0 0.0
  %1902 = vmatpush.msra.mxu0 0.0
  %1903 = vmatpush.msra.mxu0 0.0
  %1904 = vmatpush.msra.mxu0 0.0
  %1905 = vmatpush.msra.mxu0 0.0
  %1906 = vmatpush.msra.mxu0 0.0
  %1907 = vmatpush.msra.mxu0 %v1771
  %1908 = vmatmul.f32.gmra.mxu0 %v1890
  %v1909 = vpop.f32.mrf.mxu0
  %v1910 = vadd.f32 0.0, %v1909
  %1911 = vdwg.mxu0
  %v1913 = vsel %vm764, %v1750, 0
  %1915 = vmatpush.msra.mxu0 0.0
  %1916 = vmatpush.msra.mxu0 0.0
  %1917 = vmatpush.msra.mxu0 0.0
  %1918 = vmatpush.msra.mxu0 0.0
  %1919 = vmatpush.msra.mxu0 0.0
  %1920 = vmatpush.msra.mxu0 0.0
  %1921 = vmatpush.msra.mxu0 0.0
  %1922 = vmatpush.msra.mxu0 0.0
  %1923 = vmatpush.msra.mxu0 0.0
  %1924 = vmatpush.msra.mxu0 0.0
  %1925 = vmatpush.msra.mxu0 0.0
  %1926 = vmatpush.msra.mxu0 0.0
  %1927 = vmatpush.msra.mxu0 0.0
  %1928 = vmatpush.msra.mxu0 0.0
  %1929 = vmatpush.msra.mxu0 0.0
  %1930 = vmatpush.msra.mxu0 %v1772
  %1931 = vmatmul.f32.gmra.mxu0 %v1913
  %v1932 = vpop.f32.mrf.mxu0
  %v1933 = vadd.f32 0.0, %v1932
  %1934 = vdwg.mxu0
  %v1936 = vsel %vm764, %v1765, 0
  %1938 = vmatpush.msra.mxu0 0.0
  %1939 = vmatpush.msra.mxu0 0.0
  %1940 = vmatpush.msra.mxu0 0.0
  %1941 = vmatpush.msra.mxu0 0.0
  %1942 = vmatpush.msra.mxu0 0.0
  %1943 = vmatpush.msra.mxu0 0.0
  %1944 = vmatpush.msra.mxu0 0.0
  %1945 = vmatpush.msra.mxu0 0.0
  %1946 = vmatpush.msra.mxu0 0.0
  %1947 = vmatpush.msra.mxu0 0.0
  %1948 = vmatpush.msra.mxu0 0.0
  %1949 = vmatpush.msra.mxu0 0.0
  %1950 = vmatpush.msra.mxu0 0.0
  %1951 = vmatpush.msra.mxu0 0.0
  %1952 = vmatpush.msra.mxu0 0.0
  %1953 = vmatpush.msra.mxu0 %v1773
  %1954 = vmatmul.f32.gmra.mxu0 %v1936
  %v1955 = vpop.f32.mrf.mxu0
  %v1956 = vadd.f32 0.0, %v1955
  %1957 = vdwg.mxu0
  %s1958 = scalar_lea.vmem [#allocation2], 32
  %v1959 = vld [vmem:[%s1958] sm:$0xff]
  %v1960 = vld [vmem:[%s1958 + $0x8] sm:$0xff]
  %v1961 = vld [vmem:[%s1958 + $0x10] sm:$0xff]
  %v1962 = vld [vmem:[%s1958 + $0x18] sm:$0xff]
  %v1963 = vld [vmem:[%s7] sm:$0xff]
  %v1964 = vld [vmem:[%s7 + $0x8] sm:$0xff]
  %v1965 = vld [vmem:[%s7 + $0x10] sm:$0xff]
  %v1966 = vld [vmem:[%s7 + $0x18] sm:$0xff]
  %v1967 = vld [vmem:[%s7 + $0x20] sm:$0xff]
  %v1968 = vld [vmem:[%s7 + $0x28] sm:$0xff]
  %v1969 = vld [vmem:[%s7 + $0x30] sm:$0xff]
  %v1970 = vld [vmem:[%s7 + $0x38] sm:$0xff]
  %v1971 = vld [vmem:[%s7 + $0x40] sm:$0xff]
  %v1972 = vld [vmem:[%s7 + $0x48] sm:$0xff]
  %v1973 = vld [vmem:[%s7 + $0x50] sm:$0xff]
  %v1974 = vld [vmem:[%s7 + $0x58] sm:$0xff]
  %v1975 = vld [vmem:[%s7 + $0x60] sm:$0xff]
  %v1976 = vld [vmem:[%s7 + $0x68] sm:$0xff]
  %v1977 = vld [vmem:[%s7 + $0x70] sm:$0xff]
  %v1978 = vld [vmem:[%s7 + $0x78] sm:$0xff]
  %v1979 = vld [vmem:[%s7 + $0x80] sm:$0xff]
  %v1980 = vld [vmem:[%s7 + $0x88] sm:$0xff]
  %v1981 = vld [vmem:[%s7 + $0x90] sm:$0xff]
  %v1982 = vld [vmem:[%s7 + $0x98] sm:$0xff]
  %v1983 = vld [vmem:[%s7 + $0xa0] sm:$0xff]
  %v1984 = vld [vmem:[%s7 + $0xa8] sm:$0xff]
  %v1985 = vld [vmem:[%s7 + $0xb0] sm:$0xff]
  %v1986 = vld [vmem:[%s7 + $0xb8] sm:$0xff]
  %v1987 = vld [vmem:[%s7 + $0xc0] sm:$0xff]
  %v1988 = vld [vmem:[%s7 + $0xc8] sm:$0xff]
  %v1989 = vld [vmem:[%s7 + $0xd0] sm:$0xff]
  %v1990 = vld [vmem:[%s7 + $0xd8] sm:$0xff]
  %v1991 = vld [vmem:[%s7 + $0xe0] sm:$0xff]
  %v1992 = vld [vmem:[%s7 + $0xe8] sm:$0xff]
  %v1993 = vld [vmem:[%s7 + $0xf0] sm:$0xff]
  %v1994 = vld [vmem:[%s7 + $0xf8] sm:$0xff]
  %v1995 = vld [vmem:[%s7 + $0x100] sm:$0xff]
  %v1996 = vld [vmem:[%s7 + $0x108] sm:$0xff]
  %v1997 = vld [vmem:[%s7 + $0x110] sm:$0xff]
  %v1998 = vld [vmem:[%s7 + $0x118] sm:$0xff]
  %v1999 = vld [vmem:[%s7 + $0x120] sm:$0xff]
  %v2000 = vld [vmem:[%s7 + $0x128] sm:$0xff]
  %v2001 = vld [vmem:[%s7 + $0x130] sm:$0xff]
  %v2002 = vld [vmem:[%s7 + $0x138] sm:$0xff]
  %v2003 = vld [vmem:[%s7 + $0x140] sm:$0xff]
  %v2004 = vld [vmem:[%s7 + $0x148] sm:$0xff]
  %v2005 = vld [vmem:[%s7 + $0x150] sm:$0xff]
  %v2006 = vld [vmem:[%s7 + $0x158] sm:$0xff]
  %v2007 = vld [vmem:[%s7 + $0x160] sm:$0xff]
  %v2008 = vld [vmem:[%s7 + $0x168] sm:$0xff]
  %v2009 = vld [vmem:[%s7 + $0x170] sm:$0xff]
  %v2010 = vld [vmem:[%s7 + $0x178] sm:$0xff]
  %v2011 = vld [vmem:[%s7 + $0x180] sm:$0xff]
  %v2012 = vld [vmem:[%s7 + $0x188] sm:$0xff]
  %v2013 = vld [vmem:[%s7 + $0x190] sm:$0xff]
  %v2014 = vld [vmem:[%s7 + $0x198] sm:$0xff]
  %v2015 = vld [vmem:[%s7 + $0x1a0] sm:$0xff]
  %v2016 = vld [vmem:[%s7 + $0x1a8] sm:$0xff]
  %v2017 = vld [vmem:[%s7 + $0x1b0] sm:$0xff]
  %v2018 = vld [vmem:[%s7 + $0x1b8] sm:$0xff]
  %v2019 = vld [vmem:[%s7 + $0x1c0] sm:$0xff]
  %v2020 = vld [vmem:[%s7 + $0x1c8] sm:$0xff]
  %v2021 = vld [vmem:[%s7 + $0x1d0] sm:$0xff]
  %v2022 = vld [vmem:[%s7 + $0x1d8] sm:$0xff]
  %v2023 = vld [vmem:[%s7 + $0x1e0] sm:$0xff]
  %v2024 = vld [vmem:[%s7 + $0x1e8] sm:$0xff]
  %v2025 = vld [vmem:[%s7 + $0x1f0] sm:$0xff]
  %v2026 = vld [vmem:[%s7 + $0x1f8] sm:$0xff]
  %v2035 = vrot.slane %v1818, 7
  %v2036 = vsel %vm1026, %v2035, %v1795
  %v2037 = vrot.slane %v1841, 6
  %v2038 = vsel %vm1029, %v2037, %v2036
  %v2039 = vrot.slane %v1864, 5
  %v2040 = vsel %vm1032, %v2039, %v2038
  %v2041 = vrot.slane %v1887, 4
  %v2042 = vsel %vm1035, %v2041, %v2040
  %v2043 = vrot.slane %v1910, 3
  %v2044 = vsel %vm1038, %v2043, %v2042
  %v2045 = vrot.slane %v1933, 2
  %v2046 = vsel %vm1041, %v2045, %v2044
  %v2047 = vrot.slane %v1956, 1
  %v2048 = vsel %vm1044, %v2047, %v2046
  %2050 = vmatpush.msra.mxu0 %v2023
  %2051 = vmatpush.msra.mxu0 %v2019
  %2052 = vmatpush.msra.mxu0 %v2015
  %2053 = vmatpush.msra.mxu0 %v2011
  %2054 = vmatpush.msra.mxu0 %v2007
  %2055 = vmatpush.msra.mxu0 %v2003
  %2056 = vmatpush.msra.mxu0 %v1999
  %2057 = vmatpush.msra.mxu0 %v1995
  %2058 = vmatpush.msra.mxu0 %v1991
  %2059 = vmatpush.msra.mxu0 %v1987
  %2060 = vmatpush.msra.mxu0 %v1983
  %2061 = vmatpush.msra.mxu0 %v1979
  %2062 = vmatpush.msra.mxu0 %v1975
  %2063 = vmatpush.msra.mxu0 %v1971
  %2064 = vmatpush.msra.mxu0 %v1967
  %2065 = vmatpush.msra.mxu0 %v1963
  %2066 = vmatmul.f32.gmra.mxu0 %v2048
  %v2067 = vpop.f32.mrf.mxu0
  %v2068 = vadd.f32 0.0, %v2067
  %2069 = vdwg.mxu0
  %2070 = vmatpush.msra.mxu0 %v2024
  %2071 = vmatpush.msra.mxu0 %v2020
  %2072 = vmatpush.msra.mxu0 %v2016
  %2073 = vmatpush.msra.mxu0 %v2012
  %2074 = vmatpush.msra.mxu0 %v2008
  %2075 = vmatpush.msra.mxu0 %v2004
  %2076 = vmatpush.msra.mxu0 %v2000
  %2077 = vmatpush.msra.mxu0 %v1996
  %2078 = vmatpush.msra.mxu0 %v1992
  %2079 = vmatpush.msra.mxu0 %v1988
  %2080 = vmatpush.msra.mxu0 %v1984
  %2081 = vmatpush.msra.mxu0 %v1980
  %2082 = vmatpush.msra.mxu0 %v1976
  %2083 = vmatpush.msra.mxu0 %v1972
  %2084 = vmatpush.msra.mxu0 %v1968
  %2085 = vmatpush.msra.mxu0 %v1964
  %2086 = vmatmul.f32.gmra.mxu0 %v2048
  %v2087 = vpop.f32.mrf.mxu0
  %v2088 = vadd.f32 0.0, %v2087
  %2089 = vdwg.mxu0
  %2090 = vmatpush.msra.mxu0 %v2025
  %2091 = vmatpush.msra.mxu0 %v2021
  %2092 = vmatpush.msra.mxu0 %v2017
  %2093 = vmatpush.msra.mxu0 %v2013
  %2094 = vmatpush.msra.mxu0 %v2009
  %2095 = vmatpush.msra.mxu0 %v2005
  %2096 = vmatpush.msra.mxu0 %v2001
  %2097 = vmatpush.msra.mxu0 %v1997
  %2098 = vmatpush.msra.mxu0 %v1993
  %2099 = vmatpush.msra.mxu0 %v1989
  %2100 = vmatpush.msra.mxu0 %v1985
  %2101 = vmatpush.msra.mxu0 %v1981
  %2102 = vmatpush.msra.mxu0 %v1977
  %2103 = vmatpush.msra.mxu0 %v1973
  %2104 = vmatpush.msra.mxu0 %v1969
  %2105 = vmatpush.msra.mxu0 %v1965
  %2106 = vmatmul.f32.gmra.mxu0 %v2048
  %v2107 = vpop.f32.mrf.mxu0
  %v2108 = vadd.f32 0.0, %v2107
  %2109 = vdwg.mxu0
  %2110 = vmatpush.msra.mxu0 %v2026
  %2111 = vmatpush.msra.mxu0 %v2022
  %2112 = vmatpush.msra.mxu0 %v2018
  %2113 = vmatpush.msra.mxu0 %v2014
  %2114 = vmatpush.msra.mxu0 %v2010
  %2115 = vmatpush.msra.mxu0 %v2006
  %2116 = vmatpush.msra.mxu0 %v2002
  %2117 = vmatpush.msra.mxu0 %v1998
  %2118 = vmatpush.msra.mxu0 %v1994
  %2119 = vmatpush.msra.mxu0 %v1990
  %2120 = vmatpush.msra.mxu0 %v1986
  %2121 = vmatpush.msra.mxu0 %v1982
  %2122 = vmatpush.msra.mxu0 %v1978
  %2123 = vmatpush.msra.mxu0 %v1974
  %2124 = vmatpush.msra.mxu0 %v1970
  %2125 = vmatpush.msra.mxu0 %v1966
  %2126 = vmatmul.f32.gmra.mxu0 %v2048
  %v2127 = vpop.f32.mrf.mxu0
  %v2128 = vadd.f32 0.0, %v2127
  %2129 = vdwg.mxu0
  %v2130 = vadd.f32 %v1959, %v2068
  %v2131 = vadd.f32 %v1960, %v2088
  %v2132 = vadd.f32 %v1961, %v2108
  %v2133 = vadd.f32 %v1962, %v2128
  %v2134 = vld [vmem:[%s8] sm:$0xff]
  %v2135 = vld [vmem:[%s8 + $0x8] sm:$0xff]
  %v2136 = vld [vmem:[%s8 + $0x10] sm:$0xff]
  %v2137 = vld [vmem:[%s8 + $0x18] sm:$0xff]
  %v2138 = vld [vmem:[%s8 + $0x20] sm:$0xff]
  %v2139 = vld [vmem:[%s8 + $0x28] sm:$0xff]
  %v2140 = vld [vmem:[%s8 + $0x30] sm:$0xff]
  %v2141 = vld [vmem:[%s8 + $0x38] sm:$0xff]
  %v2142 = vld [vmem:[%s8 + $0x40] sm:$0xff]
  %v2143 = vld [vmem:[%s8 + $0x48] sm:$0xff]
  %v2144 = vld [vmem:[%s8 + $0x50] sm:$0xff]
  %v2145 = vld [vmem:[%s8 + $0x58] sm:$0xff]
  %v2146 = vld [vmem:[%s8 + $0x60] sm:$0xff]
  %v2147 = vld [vmem:[%s8 + $0x68] sm:$0xff]
  %v2148 = vld [vmem:[%s8 + $0x70] sm:$0xff]
  %v2149 = vld [vmem:[%s8 + $0x78] sm:$0xff]
  %v2150 = vld [vmem:[%s8 + $0x80] sm:$0xff]
  %v2151 = vld [vmem:[%s8 + $0x88] sm:$0xff]
  %v2152 = vld [vmem:[%s8 + $0x90] sm:$0xff]
  %v2153 = vld [vmem:[%s8 + $0x98] sm:$0xff]
  %v2154 = vld [vmem:[%s8 + $0xa0] sm:$0xff]
  %v2155 = vld [vmem:[%s8 + $0xa8] sm:$0xff]
  %v2156 = vld [vmem:[%s8 + $0xb0] sm:$0xff]
  %v2157 = vld [vmem:[%s8 + $0xb8] sm:$0xff]
  %v2158 = vld [vmem:[%s8 + $0xc0] sm:$0xff]
  %v2159 = vld [vmem:[%s8 + $0xc8] sm:$0xff]
  %v2160 = vld [vmem:[%s8 + $0xd0] sm:$0xff]
  %v2161 = vld [vmem:[%s8 + $0xd8] sm:$0xff]
  %v2162 = vld [vmem:[%s8 + $0xe0] sm:$0xff]
  %v2163 = vld [vmem:[%s8 + $0xe8] sm:$0xff]
  %v2164 = vld [vmem:[%s8 + $0xf0] sm:$0xff]
  %v2165 = vld [vmem:[%s8 + $0xf8] sm:$0xff]
  %v2166 = vld [vmem:[%s8 + $0x100] sm:$0xff]
  %v2167 = vld [vmem:[%s8 + $0x108] sm:$0xff]
  %v2168 = vld [vmem:[%s8 + $0x110] sm:$0xff]
  %v2169 = vld [vmem:[%s8 + $0x118] sm:$0xff]
  %v2170 = vld [vmem:[%s8 + $0x120] sm:$0xff]
  %v2171 = vld [vmem:[%s8 + $0x128] sm:$0xff]
  %v2172 = vld [vmem:[%s8 + $0x130] sm:$0xff]
  %v2173 = vld [vmem:[%s8 + $0x138] sm:$0xff]
  %v2174 = vld [vmem:[%s8 + $0x140] sm:$0xff]
  %v2175 = vld [vmem:[%s8 + $0x148] sm:$0xff]
  %v2176 = vld [vmem:[%s8 + $0x150] sm:$0xff]
  %v2177 = vld [vmem:[%s8 + $0x158] sm:$0xff]
  %v2178 = vld [vmem:[%s8 + $0x160] sm:$0xff]
  %v2179 = vld [vmem:[%s8 + $0x168] sm:$0xff]
  %v2180 = vld [vmem:[%s8 + $0x170] sm:$0xff]
  %v2181 = vld [vmem:[%s8 + $0x178] sm:$0xff]
  %v2182 = vld [vmem:[%s8 + $0x180] sm:$0xff]
  %v2183 = vld [vmem:[%s8 + $0x188] sm:$0xff]
  %v2184 = vld [vmem:[%s8 + $0x190] sm:$0xff]
  %v2185 = vld [vmem:[%s8 + $0x198] sm:$0xff]
  %v2186 = vld [vmem:[%s8 + $0x1a0] sm:$0xff]
  %v2187 = vld [vmem:[%s8 + $0x1a8] sm:$0xff]
  %v2188 = vld [vmem:[%s8 + $0x1b0] sm:$0xff]
  %v2189 = vld [vmem:[%s8 + $0x1b8] sm:$0xff]
  %v2190 = vld [vmem:[%s8 + $0x1c0] sm:$0xff]
  %v2191 = vld [vmem:[%s8 + $0x1c8] sm:$0xff]
  %v2192 = vld [vmem:[%s8 + $0x1d0] sm:$0xff]
  %v2193 = vld [vmem:[%s8 + $0x1d8] sm:$0xff]
  %v2194 = vld [vmem:[%s8 + $0x1e0] sm:$0xff]
  %v2195 = vld [vmem:[%s8 + $0x1e8] sm:$0xff]
  %v2196 = vld [vmem:[%s8 + $0x1f0] sm:$0xff]
  %v2197 = vld [vmem:[%s8 + $0x1f8] sm:$0xff]
  %2198 = vmatpush.msra.mxu0 %v2194
  %2199 = vmatpush.msra.mxu0 %v2190
  %2200 = vmatpush.msra.mxu0 %v2186
  %2201 = vmatpush.msra.mxu0 %v2182
  %2202 = vmatpush.msra.mxu0 %v2178
  %2203 = vmatpush.msra.mxu0 %v2174
  %2204 = vmatpush.msra.mxu0 %v2170
  %2205 = vmatpush.msra.mxu0 %v2166
  %2206 = vmatpush.msra.mxu0 %v2162
  %2207 = vmatpush.msra.mxu0 %v2158
  %2208 = vmatpush.msra.mxu0 %v2154
  %2209 = vmatpush.msra.mxu0 %v2150
  %2210 = vmatpush.msra.mxu0 %v2146
  %2211 = vmatpush.msra.mxu0 %v2142
  %2212 = vmatpush.msra.mxu0 %v2138
  %2213 = vmatpush.msra.mxu0 %v2134
  %2214 = vmatmul.f32.gmra.mxu0 %v1381
  %v2215 = vpop.f32.mrf.mxu0
  %v2216 = vadd.f32 0.0, %v2215
  %2217 = vdwg.mxu0
  %2218 = vmatpush.msra.mxu0 %v2195
  %2219 = vmatpush.msra.mxu0 %v2191
  %2220 = vmatpush.msra.mxu0 %v2187
  %2221 = vmatpush.msra.mxu0 %v2183
  %2222 = vmatpush.msra.mxu0 %v2179
  %2223 = vmatpush.msra.mxu0 %v2175
  %2224 = vmatpush.msra.mxu0 %v2171
  %2225 = vmatpush.msra.mxu0 %v2167
  %2226 = vmatpush.msra.mxu0 %v2163
  %2227 = vmatpush.msra.mxu0 %v2159
  %2228 = vmatpush.msra.mxu0 %v2155
  %2229 = vmatpush.msra.mxu0 %v2151
  %2230 = vmatpush.msra.mxu0 %v2147
  %2231 = vmatpush.msra.mxu0 %v2143
  %2232 = vmatpush.msra.mxu0 %v2139
  %2233 = vmatpush.msra.mxu0 %v2135
  %2234 = vmatmul.f32.gmra.mxu0 %v1381
  %v2235 = vpop.f32.mrf.mxu0
  %v2236 = vadd.f32 0.0, %v2235
  %2237 = vdwg.mxu0
  %2238 = vmatpush.msra.mxu0 %v2196
  %2239 = vmatpush.msra.mxu0 %v2192
  %2240 = vmatpush.msra.mxu0 %v2188
  %2241 = vmatpush.msra.mxu0 %v2184
  %2242 = vmatpush.msra.mxu0 %v2180
  %2243 = vmatpush.msra.mxu0 %v2176
  %2244 = vmatpush.msra.mxu0 %v2172
  %2245 = vmatpush.msra.mxu0 %v2168
  %2246 = vmatpush.msra.mxu0 %v2164
  %2247 = vmatpush.msra.mxu0 %v2160
  %2248 = vmatpush.msra.mxu0 %v2156
  %2249 = vmatpush.msra.mxu0 %v2152
  %2250 = vmatpush.msra.mxu0 %v2148
  %2251 = vmatpush.msra.mxu0 %v2144
  %2252 = vmatpush.msra.mxu0 %v2140
  %2253 = vmatpush.msra.mxu0 %v2136
  %2254 = vmatmul.f32.gmra.mxu0 %v1381
  %v2255 = vpop.f32.mrf.mxu0
  %v2256 = vadd.f32 0.0, %v2255
  %2257 = vdwg.mxu0
  %2258 = vmatpush.msra.mxu0 %v2197
  %2259 = vmatpush.msra.mxu0 %v2193
  %2260 = vmatpush.msra.mxu0 %v2189
  %2261 = vmatpush.msra.mxu0 %v2185
  %2262 = vmatpush.msra.mxu0 %v2181
  %2263 = vmatpush.msra.mxu0 %v2177
  %2264 = vmatpush.msra.mxu0 %v2173
  %2265 = vmatpush.msra.mxu0 %v2169
  %2266 = vmatpush.msra.mxu0 %v2165
  %2267 = vmatpush.msra.mxu0 %v2161
  %2268 = vmatpush.msra.mxu0 %v2157
  %2269 = vmatpush.msra.mxu0 %v2153
  %2270 = vmatpush.msra.mxu0 %v2149
  %2271 = vmatpush.msra.mxu0 %v2145
  %2272 = vmatpush.msra.mxu0 %v2141
  %2273 = vmatpush.msra.mxu0 %v2137
  %2274 = vmatmul.f32.gmra.mxu0 %v1381
  %v2275 = vpop.f32.mrf.mxu0
  %v2276 = vadd.f32 0.0, %v2275
  %2277 = vdwg.mxu0
  %v2278 = vadd.f32 %v2130, %v2216
  %v2279 = vadd.f32 %v2131, %v2236
  %v2280 = vadd.f32 %v2132, %v2256
  %v2281 = vadd.f32 %v2133, %v2276
  %v2282 = vxor.u32 %v2278, 2147483648
  %v2283 = vmul.f32 %v2282, 1.442695
  %v2284 = vpow.pop %v2283
  %v2285 = vadd.f32 %v2284, 1.0
  %v2286 = vrcp.pop %v2285
  %v2287 = vmul.f32 %v2285, %v2286
  %v2288 = vsub.f32 1.0, %v2287
  %v2289 = vmul.f32 %v2286, %v2288
  %v2290 = vadd.f32 %v2286, %v2289
  %vm2291 = vweird.f32 %v2285
  %vm2292 = vweird.f32 %v2286
  %vm2293 = vmor %vm2291, %vm2292
  %v2294 = vsel %vm2293, %v2286, %v2290
  %v2295 = vand.u32 2147483647, %v2285
  %vm2296 = vcmp.eq.f32.partialorder %v2295, 8.507059e+37
  %v2297 = vand.u32 %v2285, 2147483648
  %v2298 = vor.u32 1.1754944e-38, %v2297
  %v2299 = vsel %vm2296, %v2298, %v2294
  %v2300 = vmul.f32 1.0, %v2299
  %v2301 = vxor.u32 %v2279, 2147483648
  %v2302 = vmul.f32 %v2301, 1.442695
  %v2303 = vpow.pop %v2302
  %v2304 = vadd.f32 %v2303, 1.0
  %v2305 = vrcp.pop %v2304
  %v2306 = vmul.f32 %v2304, %v2305
  %v2307 = vsub.f32 1.0, %v2306
  %v2308 = vmul.f32 %v2305, %v2307
  %v2309 = vadd.f32 %v2305, %v2308
  %vm2310 = vweird.f32 %v2304
  %vm2311 = vweird.f32 %v2305
  %vm2312 = vmor %vm2310, %vm2311
  %v2313 = vsel %vm2312, %v2305, %v2309
  %v2314 = vand.u32 2147483647, %v2304
  %vm2315 = vcmp.eq.f32.partialorder %v2314, 8.507059e+37
  %v2316 = vand.u32 %v2304, 2147483648
  %v2317 = vor.u32 1.1754944e-38, %v2316
  %v2318 = vsel %vm2315, %v2317, %v2313
  %v2319 = vmul.f32 1.0, %v2318
  %v2320 = vtanh.pop %v2280
  %v2321 = vxor.u32 %v2281, 2147483648
  %v2322 = vmul.f32 %v2321, 1.442695
  %v2323 = vpow.pop %v2322
  %v2324 = vadd.f32 %v2323, 1.0
  %v2325 = vrcp.pop %v2324
  %v2326 = vmul.f32 %v2324, %v2325
  %v2327 = vsub.f32 1.0, %v2326
  %v2328 = vmul.f32 %v2325, %v2327
  %v2329 = vadd.f32 %v2325, %v2328
  %vm2330 = vweird.f32 %v2324
  %vm2331 = vweird.f32 %v2325
  %vm2332 = vmor %vm2330, %vm2331
  %v2333 = vsel %vm2332, %v2325, %v2329
  %v2334 = vand.u32 2147483647, %v2324
  %vm2335 = vcmp.eq.f32.partialorder %v2334, 8.507059e+37
  %v2336 = vand.u32 %v2324, 2147483648
  %v2337 = vor.u32 1.1754944e-38, %v2336
  %v2338 = vsel %vm2335, %v2337, %v2333
  %v2339 = vmul.f32 1.0, %v2338
  %v2340 = vmul.f32 %v2319, %v1382
  %v2341 = vmul.f32 %v2300, %v2320
  %v2342 = vadd.f32 %v2340, %v2341
  %v2343 = vtanh.pop %v2342
  %v2344 = vmul.f32 %v2339, %v2343
  %2345 = vst [vmem:[#allocation4] sm:$0xff] %v2344
  %2346 = vst [vmem:[#allocation5] sm:$0xff] %v2342
  %v2347 = vld [vmem:[%s10] sm:$0xff]
  %v2348 = vld [vmem:[%s10 + $0x8] sm:$0xff]
  %v2349 = vld [vmem:[%s10 + $0x10] sm:$0xff]
  %v2350 = vld [vmem:[%s10 + $0x18] sm:$0xff]
  %v2351 = vld [vmem:[%s10 + $0x20] sm:$0xff]
  %v2352 = vld [vmem:[%s10 + $0x28] sm:$0xff]
  %v2353 = vld [vmem:[%s10 + $0x30] sm:$0xff]
  %v2354 = vld [vmem:[%s10 + $0x38] sm:$0xff]
  %v2355 = vld [vmem:[%s10 + $0x40] sm:$0xff]
  %v2356 = vld [vmem:[%s10 + $0x48] sm:$0xff]
  %v2357 = vld [vmem:[%s10 + $0x50] sm:$0xff]
  %v2358 = vld [vmem:[%s10 + $0x58] sm:$0xff]
  %v2359 = vld [vmem:[%s10 + $0x60] sm:$0xff]
  %v2360 = vld [vmem:[%s10 + $0x68] sm:$0xff]
  %v2361 = vld [vmem:[%s10 + $0x70] sm:$0xff]
  %v2362 = vld [vmem:[%s10 + $0x78] sm:$0xff]
  %2363 = vmatpush.msra.mxu0 %v2362
  %2364 = vmatpush.msra.mxu0 %v2361
  %2365 = vmatpush.msra.mxu0 %v2360
  %2366 = vmatpush.msra.mxu0 %v2359
  %2367 = vmatpush.msra.mxu0 %v2358
  %2368 = vmatpush.msra.mxu0 %v2357
  %2369 = vmatpush.msra.mxu0 %v2356
  %2370 = vmatpush.msra.mxu0 %v2355
  %2371 = vmatpush.msra.mxu0 %v2354
  %2372 = vmatpush.msra.mxu0 %v2353
  %2373 = vmatpush.msra.mxu0 %v2352
  %2374 = vmatpush.msra.mxu0 %v2351
  %2375 = vmatpush.msra.mxu0 %v2350
  %2376 = vmatpush.msra.mxu0 %v2349
  %2377 = vmatpush.msra.mxu0 %v2348
  %2378 = vmatpush.msra.mxu0 %v2347
  %2379 = vmatmul.f32.gmra.mxu0 %v2344
  %v2380 = vpop.f32.mrf.mxu0
  %v2381 = vadd.f32 %v368, %v2380
  %2382 = vdwg.mxu0
  %s2383 = scalar_lea.vmem %s12, 8
  %2384 = vst [vmem:[%s2383] sm:$0xff] %v2381
  %v2385 = vld [vmem:[#allocation4] sm:$0xff]
  %v2386 = vld [vmem:[#allocation5] sm:$0xff]
  %v2388 = vrot.slane %v2385, 1
  %v2389 = vrot.slane %v2385, 2
  %v2390 = vrot.slane %v2385, 3
  %v2391 = vrot.slane %v2385, 4
  %v2392 = vrot.slane %v2385, 5
  %v2393 = vrot.slane %v2385, 6
  %v2394 = vrot.slane %v2385, 7
  %v2402 = vld [vmem:[#allocation3] sm:$0xff]
  %v2403 = vld [vmem:[#allocation3 + $0x8] sm:$0xff]
  %v2404 = vld [vmem:[#allocation3 + $0x10] sm:$0xff]
  %v2405 = vld [vmem:[#allocation3 + $0x18] sm:$0xff]
  %v2406 = vld [vmem:[#allocation3 + $0x20] sm:$0xff]
  %v2407 = vld [vmem:[#allocation3 + $0x28] sm:$0xff]
  %v2408 = vld [vmem:[#allocation3 + $0x30] sm:$0xff]
  %v2409 = vld [vmem:[#allocation3 + $0x38] sm:$0xff]
  %2410 = vmatpush.xpose.msra.mxu0 0.0
  %2411 = vmatpush.xpose.msra.mxu0 0.0
  %2412 = vmatpush.xpose.msra.mxu0 0.0
  %2413 = vmatpush.xpose.msra.mxu0 0.0
  %2414 = vmatpush.xpose.msra.mxu0 0.0
  %2415 = vmatpush.xpose.msra.mxu0 0.0
  %2416 = vmatpush.xpose.msra.mxu0 0.0
  %2417 = vmatpush.xpose.msra.mxu0 0.0
  %2418 = vmatpush.xpose.msra.mxu0 0.0
  %2419 = vmatpush.xpose.msra.mxu0 0.0
  %2420 = vmatpush.xpose.msra.mxu0 0.0
  %2421 = vmatpush.xpose.msra.mxu0 0.0
  %2422 = vmatpush.xpose.msra.mxu0 0.0
  %2423 = vmatpush.xpose.msra.mxu0 0.0
  %2424 = vmatpush.xpose.msra.mxu0 0.0
  %2425 = vmatpush.xpose.msra.mxu0 %v2402
  %2426 = vmatmul.f32.gmra.mxu0 %v2385
  %v2427 = vpop.f32.mrf.mxu0
  %v2428 = vadd.f32 0.0, %v2427
  %2429 = vdwg.mxu0
  %2430 = vmatpush.xpose.msra.mxu0 0.0
  %2431 = vmatpush.xpose.msra.mxu0 0.0
  %2432 = vmatpush.xpose.msra.mxu0 0.0
  %2433 = vmatpush.xpose.msra.mxu0 0.0
  %2434 = vmatpush.xpose.msra.mxu0 0.0
  %2435 = vmatpush.xpose.msra.mxu0 0.0
  %2436 = vmatpush.xpose.msra.mxu0 0.0
  %2437 = vmatpush.xpose.msra.mxu0 0.0
  %2438 = vmatpush.xpose.msra.mxu0 0.0
  %2439 = vmatpush.xpose.msra.mxu0 0.0
  %2440 = vmatpush.xpose.msra.mxu0 0.0
  %2441 = vmatpush.xpose.msra.mxu0 0.0
  %2442 = vmatpush.xpose.msra.mxu0 0.0
  %2443 = vmatpush.xpose.msra.mxu0 0.0
  %2444 = vmatpush.xpose.msra.mxu0 0.0
  %2445 = vmatpush.xpose.msra.mxu0 %v2403
  %2446 = vmatmul.f32.gmra.mxu0 %v2388
  %v2447 = vpop.f32.mrf.mxu0
  %v2448 = vadd.f32 0.0, %v2447
  %2449 = vdwg.mxu0
  %2450 = vmatpush.xpose.msra.mxu0 0.0
  %2451 = vmatpush.xpose.msra.mxu0 0.0
  %2452 = vmatpush.xpose.msra.mxu0 0.0
  %2453 = vmatpush.xpose.msra.mxu0 0.0
  %2454 = vmatpush.xpose.msra.mxu0 0.0
  %2455 = vmatpush.xpose.msra.mxu0 0.0
  %2456 = vmatpush.xpose.msra.mxu0 0.0
  %2457 = vmatpush.xpose.msra.mxu0 0.0
  %2458 = vmatpush.xpose.msra.mxu0 0.0
  %2459 = vmatpush.xpose.msra.mxu0 0.0
  %2460 = vmatpush.xpose.msra.mxu0 0.0
  %2461 = vmatpush.xpose.msra.mxu0 0.0
  %2462 = vmatpush.xpose.msra.mxu0 0.0
  %2463 = vmatpush.xpose.msra.mxu0 0.0
  %2464 = vmatpush.xpose.msra.mxu0 0.0
  %2465 = vmatpush.xpose.msra.mxu0 %v2404
  %2466 = vmatmul.f32.gmra.mxu0 %v2389
  %v2467 = vpop.f32.mrf.mxu0
  %v2468 = vadd.f32 0.0, %v2467
  %2469 = vdwg.mxu0
  %2470 = vmatpush.xpose.msra.mxu0 0.0
  %2471 = vmatpush.xpose.msra.mxu0 0.0
  %2472 = vmatpush.xpose.msra.mxu0 0.0
  %2473 = vmatpush.xpose.msra.mxu0 0.0
  %2474 = vmatpush.xpose.msra.mxu0 0.0
  %2475 = vmatpush.xpose.msra.mxu0 0.0
  %2476 = vmatpush.xpose.msra.mxu0 0.0
  %2477 = vmatpush.xpose.msra.mxu0 0.0
  %2478 = vmatpush.xpose.msra.mxu0 0.0
  %2479 = vmatpush.xpose.msra.mxu0 0.0
  %2480 = vmatpush.xpose.msra.mxu0 0.0
  %2481 = vmatpush.xpose.msra.mxu0 0.0
  %2482 = vmatpush.xpose.msra.mxu0 0.0
  %2483 = vmatpush.xpose.msra.mxu0 0.0
  %2484 = vmatpush.xpose.msra.mxu0 0.0
  %2485 = vmatpush.xpose.msra.mxu0 %v2405
  %2486 = vmatmul.f32.gmra.mxu0 %v2390
  %v2487 = vpop.f32.mrf.mxu0
  %v2488 = vadd.f32 0.0, %v2487
  %2489 = vdwg.mxu0
  %2490 = vmatpush.xpose.msra.mxu0 0.0
  %2491 = vmatpush.xpose.msra.mxu0 0.0
  %2492 = vmatpush.xpose.msra.mxu0 0.0
  %2493 = vmatpush.xpose.msra.mxu0 0.0
  %2494 = vmatpush.xpose.msra.mxu0 0.0
  %2495 = vmatpush.xpose.msra.mxu0 0.0
  %2496 = vmatpush.xpose.msra.mxu0 0.0
  %2497 = vmatpush.xpose.msra.mxu0 0.0
  %2498 = vmatpush.xpose.msra.mxu0 0.0
  %2499 = vmatpush.xpose.msra.mxu0 0.0
  %2500 = vmatpush.xpose.msra.mxu0 0.0
  %2501 = vmatpush.xpose.msra.mxu0 0.0
  %2502 = vmatpush.xpose.msra.mxu0 0.0
  %2503 = vmatpush.xpose.msra.mxu0 0.0
  %2504 = vmatpush.xpose.msra.mxu0 0.0
  %2505 = vmatpush.xpose.msra.mxu0 %v2406
  %2506 = vmatmul.f32.gmra.mxu0 %v2391
  %v2507 = vpop.f32.mrf.mxu0
  %v2508 = vadd.f32 0.0, %v2507
  %2509 = vdwg.mxu0
  %2510 = vmatpush.xpose.msra.mxu0 0.0
  %2511 = vmatpush.xpose.msra.mxu0 0.0
  %2512 = vmatpush.xpose.msra.mxu0 0.0
  %2513 = vmatpush.xpose.msra.mxu0 0.0
  %2514 = vmatpush.xpose.msra.mxu0 0.0
  %2515 = vmatpush.xpose.msra.mxu0 0.0
  %2516 = vmatpush.xpose.msra.mxu0 0.0
  %2517 = vmatpush.xpose.msra.mxu0 0.0
  %2518 = vmatpush.xpose.msra.mxu0 0.0
  %2519 = vmatpush.xpose.msra.mxu0 0.0
  %2520 = vmatpush.xpose.msra.mxu0 0.0
  %2521 = vmatpush.xpose.msra.mxu0 0.0
  %2522 = vmatpush.xpose.msra.mxu0 0.0
  %2523 = vmatpush.xpose.msra.mxu0 0.0
  %2524 = vmatpush.xpose.msra.mxu0 0.0
  %2525 = vmatpush.xpose.msra.mxu0 %v2407
  %2526 = vmatmul.f32.gmra.mxu0 %v2392
  %v2527 = vpop.f32.mrf.mxu0
  %v2528 = vadd.f32 0.0, %v2527
  %2529 = vdwg.mxu0
  %2530 = vmatpush.xpose.msra.mxu0 0.0
  %2531 = vmatpush.xpose.msra.mxu0 0.0
  %2532 = vmatpush.xpose.msra.mxu0 0.0
  %2533 = vmatpush.xpose.msra.mxu0 0.0
  %2534 = vmatpush.xpose.msra.mxu0 0.0
  %2535 = vmatpush.xpose.msra.mxu0 0.0
  %2536 = vmatpush.xpose.msra.mxu0 0.0
  %2537 = vmatpush.xpose.msra.mxu0 0.0
  %2538 = vmatpush.xpose.msra.mxu0 0.0
  %2539 = vmatpush.xpose.msra.mxu0 0.0
  %2540 = vmatpush.xpose.msra.mxu0 0.0
  %2541 = vmatpush.xpose.msra.mxu0 0.0
  %2542 = vmatpush.xpose.msra.mxu0 0.0
  %2543 = vmatpush.xpose.msra.mxu0 0.0
  %2544 = vmatpush.xpose.msra.mxu0 0.0
  %2545 = vmatpush.xpose.msra.mxu0 %v2408
  %2546 = vmatmul.f32.gmra.mxu0 %v2393
  %v2547 = vpop.f32.mrf.mxu0
  %v2548 = vadd.f32 0.0, %v2547
  %2549 = vdwg.mxu0
  %2550 = vmatpush.xpose.msra.mxu0 0.0
  %2551 = vmatpush.xpose.msra.mxu0 0.0
  %2552 = vmatpush.xpose.msra.mxu0 0.0
  %2553 = vmatpush.xpose.msra.mxu0 0.0
  %2554 = vmatpush.xpose.msra.mxu0 0.0
  %2555 = vmatpush.xpose.msra.mxu0 0.0
  %2556 = vmatpush.xpose.msra.mxu0 0.0
  %2557 = vmatpush.xpose.msra.mxu0 0.0
  %2558 = vmatpush.xpose.msra.mxu0 0.0
  %2559 = vmatpush.xpose.msra.mxu0 0.0
  %2560 = vmatpush.xpose.msra.mxu0 0.0
  %2561 = vmatpush.xpose.msra.mxu0 0.0
  %2562 = vmatpush.xpose.msra.mxu0 0.0
  %2563 = vmatpush.xpose.msra.mxu0 0.0
  %2564 = vmatpush.xpose.msra.mxu0 0.0
  %2565 = vmatpush.xpose.msra.mxu0 %v2409
  %2566 = vmatmul.f32.gmra.mxu0 %v2394
  %v2567 = vpop.f32.mrf.mxu0
  %v2568 = vadd.f32 0.0, %v2567
  %2569 = vdwg.mxu0
  %v2570 = vsel %vm350, %v2428, -1e+30
  %v2571 = vsel %vm359, %v2448, -1e+30
  %v2572 = vsel %vm360, %v2468, -1e+30
  %v2573 = vsel %vm361, %v2488, -1e+30
  %v2574 = vsel %vm362, %v2508, -1e+30
  %v2575 = vsel %vm363, %v2528, -1e+30
  %v2576 = vsel %vm364, %v2548, -1e+30
  %v2577 = vsel %vm365, %v2568, -1e+30
  %v2578 = vsel %vm563, %v2570, -inf
  %2579 = vmax.xlane.f32.xlu0 %v2578
  %v2580 = vpop.xlane.xlu0 %2579
  %v2581 = vsel %vm563, %v2571, -inf
  %2582 = vmax.xlane.f32.xlu0 %v2581
  %v2583 = vpop.xlane.xlu0 %2582
  %v2584 = vsel %vm563, %v2572, -inf
  %2585 = vmax.xlane.f32.xlu0 %v2584
  %v2586 = vpop.xlane.xlu0 %2585
  %v2587 = vsel %vm563, %v2573, -inf
  %2588 = vmax.xlane.f32.xlu0 %v2587
  %v2589 = vpop.xlane.xlu0 %2588
  %v2590 = vsel %vm563, %v2574, -inf
  %2591 = vmax.xlane.f32.xlu0 %v2590
  %v2592 = vpop.xlane.xlu0 %2591
  %v2593 = vsel %vm563, %v2575, -inf
  %2594 = vmax.xlane.f32.xlu0 %v2593
  %v2595 = vpop.xlane.xlu0 %2594
  %v2596 = vsel %vm563, %v2576, -inf
  %2597 = vmax.xlane.f32.xlu0 %v2596
  %v2598 = vpop.xlane.xlu0 %2597
  %v2599 = vsel %vm563, %v2577, -inf
  %2600 = vmax.xlane.f32.xlu0 %v2599
  %v2601 = vpop.xlane.xlu0 %2600
  %v2602 = vsub.f32 %v2570, %v2580
  %v2603 = vsub.f32 %v2571, %v2583
  %v2604 = vsub.f32 %v2572, %v2586
  %v2605 = vsub.f32 %v2573, %v2589
  %v2606 = vsub.f32 %v2574, %v2592
  %v2607 = vsub.f32 %v2575, %v2595
  %v2608 = vsub.f32 %v2576, %v2598
  %v2609 = vsub.f32 %v2577, %v2601
  %v2610 = vmul.f32 %v2602, 1.442695
  %v2611 = vpow.pop %v2610
  %v2612 = vmul.f32 %v2603, 1.442695
  %v2613 = vpow.pop %v2612
  %v2614 = vmul.f32 %v2604, 1.442695
  %v2615 = vpow.pop %v2614
  %v2616 = vmul.f32 %v2605, 1.442695
  %v2617 = vpow.pop %v2616
  %v2618 = vmul.f32 %v2606, 1.442695
  %v2619 = vpow.pop %v2618
  %v2620 = vmul.f32 %v2607, 1.442695
  %v2621 = vpow.pop %v2620
  %v2622 = vmul.f32 %v2608, 1.442695
  %v2623 = vpow.pop %v2622
  %v2624 = vmul.f32 %v2609, 1.442695
  %v2625 = vpow.pop %v2624
  %v2626 = vsel %vm563, %v2611, 0.0
  %2627 = vadd.xlane.f32.xlu0 %v2626
  %v2628 = vpop.xlane.xlu0 %2627
  %v2629 = vsel %vm563, %v2613, 0.0
  %2630 = vadd.xlane.f32.xlu0 %v2629
  %v2631 = vpop.xlane.xlu0 %2630
  %v2632 = vsel %vm563, %v2615, 0.0
  %2633 = vadd.xlane.f32.xlu0 %v2632
  %v2634 = vpop.xlane.xlu0 %2633
  %v2635 = vsel %vm563, %v2617, 0.0
  %2636 = vadd.xlane.f32.xlu0 %v2635
  %v2637 = vpop.xlane.xlu0 %2636
  %v2638 = vsel %vm563, %v2619, 0.0
  %2639 = vadd.xlane.f32.xlu0 %v2638
  %v2640 = vpop.xlane.xlu0 %2639
  %v2641 = vsel %vm563, %v2621, 0.0
  %2642 = vadd.xlane.f32.xlu0 %v2641
  %v2643 = vpop.xlane.xlu0 %2642
  %v2644 = vsel %vm563, %v2623, 0.0
  %2645 = vadd.xlane.f32.xlu0 %v2644
  %v2646 = vpop.xlane.xlu0 %2645
  %v2647 = vsel %vm563, %v2625, 0.0
  %2648 = vadd.xlane.f32.xlu0 %v2647
  %v2649 = vpop.xlane.xlu0 %2648
  %v2650 = vrcp.pop %v2628
  %v2651 = vmul.f32 %v2628, %v2650
  %v2652 = vsub.f32 1.0, %v2651
  %v2653 = vmul.f32 %v2650, %v2652
  %v2654 = vadd.f32 %v2650, %v2653
  %vm2655 = vweird.f32 %v2628
  %vm2656 = vweird.f32 %v2650
  %vm2657 = vmor %vm2655, %vm2656
  %v2658 = vsel %vm2657, %v2650, %v2654
  %v2659 = vand.u32 2147483647, %v2628
  %vm2660 = vcmp.eq.f32.partialorder %v2659, 8.507059e+37
  %v2661 = vand.u32 %v2628, 2147483648
  %v2662 = vor.u32 1.1754944e-38, %v2661
  %v2663 = vsel %vm2660, %v2662, %v2658
  %v2664 = vmul.f32 %v2611, %v2663
  %v2665 = vrcp.pop %v2631
  %v2666 = vmul.f32 %v2631, %v2665
  %v2667 = vsub.f32 1.0, %v2666
  %v2668 = vmul.f32 %v2665, %v2667
  %v2669 = vadd.f32 %v2665, %v2668
  %vm2670 = vweird.f32 %v2631
  %vm2671 = vweird.f32 %v2665
  %vm2672 = vmor %vm2670, %vm2671
  %v2673 = vsel %vm2672, %v2665, %v2669
  %v2674 = vand.u32 2147483647, %v2631
  %vm2675 = vcmp.eq.f32.partialorder %v2674, 8.507059e+37
  %v2676 = vand.u32 %v2631, 2147483648
  %v2677 = vor.u32 1.1754944e-38, %v2676
  %v2678 = vsel %vm2675, %v2677, %v2673
  %v2679 = vmul.f32 %v2613, %v2678
  %v2680 = vrcp.pop %v2634
  %v2681 = vmul.f32 %v2634, %v2680
  %v2682 = vsub.f32 1.0, %v2681
  %v2683 = vmul.f32 %v2680, %v2682
  %v2684 = vadd.f32 %v2680, %v2683
  %vm2685 = vweird.f32 %v2634
  %vm2686 = vweird.f32 %v2680
  %vm2687 = vmor %vm2685, %vm2686
  %v2688 = vsel %vm2687, %v2680, %v2684
  %v2689 = vand.u32 2147483647, %v2634
  %vm2690 = vcmp.eq.f32.partialorder %v2689, 8.507059e+37
  %v2691 = vand.u32 %v2634, 2147483648
  %v2692 = vor.u32 1.1754944e-38, %v2691
  %v2693 = vsel %vm2690, %v2692, %v2688
  %v2694 = vmul.f32 %v2615, %v2693
  %v2695 = vrcp.pop %v2637
  %v2696 = vmul.f32 %v2637, %v2695
  %v2697 = vsub.f32 1.0, %v2696
  %v2698 = vmul.f32 %v2695, %v2697
  %v2699 = vadd.f32 %v2695, %v2698
  %vm2700 = vweird.f32 %v2637
  %vm2701 = vweird.f32 %v2695
  %vm2702 = vmor %vm2700, %vm2701
  %v2703 = vsel %vm2702, %v2695, %v2699
  %v2704 = vand.u32 2147483647, %v2637
  %vm2705 = vcmp.eq.f32.partialorder %v2704, 8.507059e+37
  %v2706 = vand.u32 %v2637, 2147483648
  %v2707 = vor.u32 1.1754944e-38, %v2706
  %v2708 = vsel %vm2705, %v2707, %v2703
  %v2709 = vmul.f32 %v2617, %v2708
  %v2710 = vrcp.pop %v2640
  %v2711 = vmul.f32 %v2640, %v2710
  %v2712 = vsub.f32 1.0, %v2711
  %v2713 = vmul.f32 %v2710, %v2712
  %v2714 = vadd.f32 %v2710, %v2713
  %vm2715 = vweird.f32 %v2640
  %vm2716 = vweird.f32 %v2710
  %vm2717 = vmor %vm2715, %vm2716
  %v2718 = vsel %vm2717, %v2710, %v2714
  %v2719 = vand.u32 2147483647, %v2640
  %vm2720 = vcmp.eq.f32.partialorder %v2719, 8.507059e+37
  %v2721 = vand.u32 %v2640, 2147483648
  %v2722 = vor.u32 1.1754944e-38, %v2721
  %v2723 = vsel %vm2720, %v2722, %v2718
  %v2724 = vmul.f32 %v2619, %v2723
  %v2725 = vrcp.pop %v2643
  %v2726 = vmul.f32 %v2643, %v2725
  %v2727 = vsub.f32 1.0, %v2726
  %v2728 = vmul.f32 %v2725, %v2727
  %v2729 = vadd.f32 %v2725, %v2728
  %vm2730 = vweird.f32 %v2643
  %vm2731 = vweird.f32 %v2725
  %vm2732 = vmor %vm2730, %vm2731
  %v2733 = vsel %vm2732, %v2725, %v2729
  %v2734 = vand.u32 2147483647, %v2643
  %vm2735 = vcmp.eq.f32.partialorder %v2734, 8.507059e+37
  %v2736 = vand.u32 %v2643, 2147483648
  %v2737 = vor.u32 1.1754944e-38, %v2736
  %v2738 = vsel %vm2735, %v2737, %v2733
  %v2739 = vmul.f32 %v2621, %v2738
  %v2740 = vrcp.pop %v2646
  %v2741 = vmul.f32 %v2646, %v2740
  %v2742 = vsub.f32 1.0, %v2741
  %v2743 = vmul.f32 %v2740, %v2742
  %v2744 = vadd.f32 %v2740, %v2743
  %vm2745 = vweird.f32 %v2646
  %vm2746 = vweird.f32 %v2740
  %vm2747 = vmor %vm2745, %vm2746
  %v2748 = vsel %vm2747, %v2740, %v2744
  %v2749 = vand.u32 2147483647, %v2646
  %vm2750 = vcmp.eq.f32.partialorder %v2749, 8.507059e+37
  %v2751 = vand.u32 %v2646, 2147483648
  %v2752 = vor.u32 1.1754944e-38, %v2751
  %v2753 = vsel %vm2750, %v2752, %v2748
  %v2754 = vmul.f32 %v2623, %v2753
  %v2755 = vrcp.pop %v2649
  %v2756 = vmul.f32 %v2649, %v2755
  %v2757 = vsub.f32 1.0, %v2756
  %v2758 = vmul.f32 %v2755, %v2757
  %v2759 = vadd.f32 %v2755, %v2758
  %vm2760 = vweird.f32 %v2649
  %vm2761 = vweird.f32 %v2755
  %vm2762 = vmor %vm2760, %vm2761
  %v2763 = vsel %vm2762, %v2755, %v2759
  %v2764 = vand.u32 2147483647, %v2649
  %vm2765 = vcmp.eq.f32.partialorder %v2764, 8.507059e+37
  %v2766 = vand.u32 %v2649, 2147483648
  %v2767 = vor.u32 1.1754944e-38, %v2766
  %v2768 = vsel %vm2765, %v2767, %v2763
  %v2769 = vmul.f32 %v2625, %v2768
  %v2770 = vld [vmem:[%s1] sm:$0xff]
  %v2771 = vld [vmem:[%s1 + $0x8] sm:$0xff]
  %v2772 = vld [vmem:[%s1 + $0x10] sm:$0xff]
  %v2773 = vld [vmem:[%s1 + $0x18] sm:$0xff]
  %v2774 = vld [vmem:[%s1 + $0x20] sm:$0xff]
  %v2775 = vld [vmem:[%s1 + $0x28] sm:$0xff]
  %v2776 = vld [vmem:[%s1 + $0x30] sm:$0xff]
  %v2777 = vld [vmem:[%s1 + $0x38] sm:$0xff]
  %v2779 = vsel %vm764, %v2664, 0
  %2781 = vmatpush.msra.mxu0 0.0
  %2782 = vmatpush.msra.mxu0 0.0
  %2783 = vmatpush.msra.mxu0 0.0
  %2784 = vmatpush.msra.mxu0 0.0
  %2785 = vmatpush.msra.mxu0 0.0
  %2786 = vmatpush.msra.mxu0 0.0
  %2787 = vmatpush.msra.mxu0 0.0
  %2788 = vmatpush.msra.mxu0 0.0
  %2789 = vmatpush.msra.mxu0 0.0
  %2790 = vmatpush.msra.mxu0 0.0
  %2791 = vmatpush.msra.mxu0 0.0
  %2792 = vmatpush.msra.mxu0 0.0
  %2793 = vmatpush.msra.mxu0 0.0
  %2794 = vmatpush.msra.mxu0 0.0
  %2795 = vmatpush.msra.mxu0 0.0
  %2796 = vmatpush.msra.mxu0 %v2770
  %2797 = vmatmul.f32.gmra.mxu0 %v2779
  %v2798 = vpop.f32.mrf.mxu0
  %v2799 = vadd.f32 0.0, %v2798
  %2800 = vdwg.mxu0
  %v2802 = vsel %vm764, %v2679, 0
  %2804 = vmatpush.msra.mxu0 0.0
  %2805 = vmatpush.msra.mxu0 0.0
  %2806 = vmatpush.msra.mxu0 0.0
  %2807 = vmatpush.msra.mxu0 0.0
  %2808 = vmatpush.msra.mxu0 0.0
  %2809 = vmatpush.msra.mxu0 0.0
  %2810 = vmatpush.msra.mxu0 0.0
  %2811 = vmatpush.msra.mxu0 0.0
  %2812 = vmatpush.msra.mxu0 0.0
  %2813 = vmatpush.msra.mxu0 0.0
  %2814 = vmatpush.msra.mxu0 0.0
  %2815 = vmatpush.msra.mxu0 0.0
  %2816 = vmatpush.msra.mxu0 0.0
  %2817 = vmatpush.msra.mxu0 0.0
  %2818 = vmatpush.msra.mxu0 0.0
  %2819 = vmatpush.msra.mxu0 %v2771
  %2820 = vmatmul.f32.gmra.mxu0 %v2802
  %v2821 = vpop.f32.mrf.mxu0
  %v2822 = vadd.f32 0.0, %v2821
  %2823 = vdwg.mxu0
  %v2825 = vsel %vm764, %v2694, 0
  %2827 = vmatpush.msra.mxu0 0.0
  %2828 = vmatpush.msra.mxu0 0.0
  %2829 = vmatpush.msra.mxu0 0.0
  %2830 = vmatpush.msra.mxu0 0.0
  %2831 = vmatpush.msra.mxu0 0.0
  %2832 = vmatpush.msra.mxu0 0.0
  %2833 = vmatpush.msra.mxu0 0.0
  %2834 = vmatpush.msra.mxu0 0.0
  %2835 = vmatpush.msra.mxu0 0.0
  %2836 = vmatpush.msra.mxu0 0.0
  %2837 = vmatpush.msra.mxu0 0.0
  %2838 = vmatpush.msra.mxu0 0.0
  %2839 = vmatpush.msra.mxu0 0.0
  %2840 = vmatpush.msra.mxu0 0.0
  %2841 = vmatpush.msra.mxu0 0.0
  %2842 = vmatpush.msra.mxu0 %v2772
  %2843 = vmatmul.f32.gmra.mxu0 %v2825
  %v2844 = vpop.f32.mrf.mxu0
  %v2845 = vadd.f32 0.0, %v2844
  %2846 = vdwg.mxu0
  %v2848 = vsel %vm764, %v2709, 0
  %2850 = vmatpush.msra.mxu0 0.0
  %2851 = vmatpush.msra.mxu0 0.0
  %2852 = vmatpush.msra.mxu0 0.0
  %2853 = vmatpush.msra.mxu0 0.0
  %2854 = vmatpush.msra.mxu0 0.0
  %2855 = vmatpush.msra.mxu0 0.0
  %2856 = vmatpush.msra.mxu0 0.0
  %2857 = vmatpush.msra.mxu0 0.0
  %2858 = vmatpush.msra.mxu0 0.0
  %2859 = vmatpush.msra.mxu0 0.0
  %2860 = vmatpush.msra.mxu0 0.0
  %2861 = vmatpush.msra.mxu0 0.0
  %2862 = vmatpush.msra.mxu0 0.0
  %2863 = vmatpush.msra.mxu0 0.0
  %2864 = vmatpush.msra.mxu0 0.0
  %2865 = vmatpush.msra.mxu0 %v2773
  %2866 = vmatmul.f32.gmra.mxu0 %v2848
  %v2867 = vpop.f32.mrf.mxu0
  %v2868 = vadd.f32 0.0, %v2867
  %2869 = vdwg.mxu0
  %v2871 = vsel %vm764, %v2724, 0
  %2873 = vmatpush.msra.mxu0 0.0
  %2874 = vmatpush.msra.mxu0 0.0
  %2875 = vmatpush.msra.mxu0 0.0
  %2876 = vmatpush.msra.mxu0 0.0
  %2877 = vmatpush.msra.mxu0 0.0
  %2878 = vmatpush.msra.mxu0 0.0
  %2879 = vmatpush.msra.mxu0 0.0
  %2880 = vmatpush.msra.mxu0 0.0
  %2881 = vmatpush.msra.mxu0 0.0
  %2882 = vmatpush.msra.mxu0 0.0
  %2883 = vmatpush.msra.mxu0 0.0
  %2884 = vmatpush.msra.mxu0 0.0
  %2885 = vmatpush.msra.mxu0 0.0
  %2886 = vmatpush.msra.mxu0 0.0
  %2887 = vmatpush.msra.mxu0 0.0
  %2888 = vmatpush.msra.mxu0 %v2774
  %2889 = vmatmul.f32.gmra.mxu0 %v2871
  %v2890 = vpop.f32.mrf.mxu0
  %v2891 = vadd.f32 0.0, %v2890
  %2892 = vdwg.mxu0
  %v2894 = vsel %vm764, %v2739, 0
  %2896 = vmatpush.msra.mxu0 0.0
  %2897 = vmatpush.msra.mxu0 0.0
  %2898 = vmatpush.msra.mxu0 0.0
  %2899 = vmatpush.msra.mxu0 0.0
  %2900 = vmatpush.msra.mxu0 0.0
  %2901 = vmatpush.msra.mxu0 0.0
  %2902 = vmatpush.msra.mxu0 0.0
  %2903 = vmatpush.msra.mxu0 0.0
  %2904 = vmatpush.msra.mxu0 0.0
  %2905 = vmatpush.msra.mxu0 0.0
  %2906 = vmatpush.msra.mxu0 0.0
  %2907 = vmatpush.msra.mxu0 0.0
  %2908 = vmatpush.msra.mxu0 0.0
  %2909 = vmatpush.msra.mxu0 0.0
  %2910 = vmatpush.msra.mxu0 0.0
  %2911 = vmatpush.msra.mxu0 %v2775
  %2912 = vmatmul.f32.gmra.mxu0 %v2894
  %v2913 = vpop.f32.mrf.mxu0
  %v2914 = vadd.f32 0.0, %v2913
  %2915 = vdwg.mxu0
  %v2917 = vsel %vm764, %v2754, 0
  %2919 = vmatpush.msra.mxu0 0.0
  %2920 = vmatpush.msra.mxu0 0.0
  %2921 = vmatpush.msra.mxu0 0.0
  %2922 = vmatpush.msra.mxu0 0.0
  %2923 = vmatpush.msra.mxu0 0.0
  %2924 = vmatpush.msra.mxu0 0.0
  %2925 = vmatpush.msra.mxu0 0.0
  %2926 = vmatpush.msra.mxu0 0.0
  %2927 = vmatpush.msra.mxu0 0.0
  %2928 = vmatpush.msra.mxu0 0.0
  %2929 = vmatpush.msra.mxu0 0.0
  %2930 = vmatpush.msra.mxu0 0.0
  %2931 = vmatpush.msra.mxu0 0.0
  %2932 = vmatpush.msra.mxu0 0.0
  %2933 = vmatpush.msra.mxu0 0.0
  %2934 = vmatpush.msra.mxu0 %v2776
  %2935 = vmatmul.f32.gmra.mxu0 %v2917
  %v2936 = vpop.f32.mrf.mxu0
  %v2937 = vadd.f32 0.0, %v2936
  %2938 = vdwg.mxu0
  %v2940 = vsel %vm764, %v2769, 0
  %2942 = vmatpush.msra.mxu0 0.0
  %2943 = vmatpush.msra.mxu0 0.0
  %2944 = vmatpush.msra.mxu0 0.0
  %2945 = vmatpush.msra.mxu0 0.0
  %2946 = vmatpush.msra.mxu0 0.0
  %2947 = vmatpush.msra.mxu0 0.0
  %2948 = vmatpush.msra.mxu0 0.0
  %2949 = vmatpush.msra.mxu0 0.0
  %2950 = vmatpush.msra.mxu0 0.0
  %2951 = vmatpush.msra.mxu0 0.0
  %2952 = vmatpush.msra.mxu0 0.0
  %2953 = vmatpush.msra.mxu0 0.0
  %2954 = vmatpush.msra.mxu0 0.0
  %2955 = vmatpush.msra.mxu0 0.0
  %2956 = vmatpush.msra.mxu0 0.0
  %2957 = vmatpush.msra.mxu0 %v2777
  %2958 = vmatmul.f32.gmra.mxu0 %v2940
  %v2959 = vpop.f32.mrf.mxu0
  %v2960 = vadd.f32 0.0, %v2959
  %2961 = vdwg.mxu0
  %s2962 = scalar_lea.vmem [#allocation2], 64
  %v2963 = vld [vmem:[%s2962] sm:$0xff]
  %v2964 = vld [vmem:[%s2962 + $0x8] sm:$0xff]
  %v2965 = vld [vmem:[%s2962 + $0x10] sm:$0xff]
  %v2966 = vld [vmem:[%s2962 + $0x18] sm:$0xff]
  %v2967 = vld [vmem:[%s7] sm:$0xff]
  %v2968 = vld [vmem:[%s7 + $0x8] sm:$0xff]
  %v2969 = vld [vmem:[%s7 + $0x10] sm:$0xff]
  %v2970 = vld [vmem:[%s7 + $0x18] sm:$0xff]
  %v2971 = vld [vmem:[%s7 + $0x20] sm:$0xff]
  %v2972 = vld [vmem:[%s7 + $0x28] sm:$0xff]
  %v2973 = vld [vmem:[%s7 + $0x30] sm:$0xff]
  %v2974 = vld [vmem:[%s7 + $0x38] sm:$0xff]
  %v2975 = vld [vmem:[%s7 + $0x40] sm:$0xff]
  %v2976 = vld [vmem:[%s7 + $0x48] sm:$0xff]
  %v2977 = vld [vmem:[%s7 + $0x50] sm:$0xff]
  %v2978 = vld [vmem:[%s7 + $0x58] sm:$0xff]
  %v2979 = vld [vmem:[%s7 + $0x60] sm:$0xff]
  %v2980 = vld [vmem:[%s7 + $0x68] sm:$0xff]
  %v2981 = vld [vmem:[%s7 + $0x70] sm:$0xff]
  %v2982 = vld [vmem:[%s7 + $0x78] sm:$0xff]
  %v2983 = vld [vmem:[%s7 + $0x80] sm:$0xff]
  %v2984 = vld [vmem:[%s7 + $0x88] sm:$0xff]
  %v2985 = vld [vmem:[%s7 + $0x90] sm:$0xff]
  %v2986 = vld [vmem:[%s7 + $0x98] sm:$0xff]
  %v2987 = vld [vmem:[%s7 + $0xa0] sm:$0xff]
  %v2988 = vld [vmem:[%s7 + $0xa8] sm:$0xff]
  %v2989 = vld [vmem:[%s7 + $0xb0] sm:$0xff]
  %v2990 = vld [vmem:[%s7 + $0xb8] sm:$0xff]
  %v2991 = vld [vmem:[%s7 + $0xc0] sm:$0xff]
  %v2992 = vld [vmem:[%s7 + $0xc8] sm:$0xff]
  %v2993 = vld [vmem:[%s7 + $0xd0] sm:$0xff]
  %v2994 = vld [vmem:[%s7 + $0xd8] sm:$0xff]
  %v2995 = vld [vmem:[%s7 + $0xe0] sm:$0xff]
  %v2996 = vld [vmem:[%s7 + $0xe8] sm:$0xff]
  %v2997 = vld [vmem:[%s7 + $0xf0] sm:$0xff]
  %v2998 = vld [vmem:[%s7 + $0xf8] sm:$0xff]
  %v2999 = vld [vmem:[%s7 + $0x100] sm:$0xff]
  %v3000 = vld [vmem:[%s7 + $0x108] sm:$0xff]
  %v3001 = vld [vmem:[%s7 + $0x110] sm:$0xff]
  %v3002 = vld [vmem:[%s7 + $0x118] sm:$0xff]
  %v3003 = vld [vmem:[%s7 + $0x120] sm:$0xff]
  %v3004 = vld [vmem:[%s7 + $0x128] sm:$0xff]
  %v3005 = vld [vmem:[%s7 + $0x130] sm:$0xff]
  %v3006 = vld [vmem:[%s7 + $0x138] sm:$0xff]
  %v3007 = vld [vmem:[%s7 + $0x140] sm:$0xff]
  %v3008 = vld [vmem:[%s7 + $0x148] sm:$0xff]
  %v3009 = vld [vmem:[%s7 + $0x150] sm:$0xff]
  %v3010 = vld [vmem:[%s7 + $0x158] sm:$0xff]
  %v3011 = vld [vmem:[%s7 + $0x160] sm:$0xff]
  %v3012 = vld [vmem:[%s7 + $0x168] sm:$0xff]
  %v3013 = vld [vmem:[%s7 + $0x170] sm:$0xff]
  %v3014 = vld [vmem:[%s7 + $0x178] sm:$0xff]
  %v3015 = vld [vmem:[%s7 + $0x180] sm:$0xff]
  %v3016 = vld [vmem:[%s7 + $0x188] sm:$0xff]
  %v3017 = vld [vmem:[%s7 + $0x190] sm:$0xff]
  %v3018 = vld [vmem:[%s7 + $0x198] sm:$0xff]
  %v3019 = vld [vmem:[%s7 + $0x1a0] sm:$0xff]
  %v3020 = vld [vmem:[%s7 + $0x1a8] sm:$0xff]
  %v3021 = vld [vmem:[%s7 + $0x1b0] sm:$0xff]
  %v3022 = vld [vmem:[%s7 + $0x1b8] sm:$0xff]
  %v3023 = vld [vmem:[%s7 + $0x1c0] sm:$0xff]
  %v3024 = vld [vmem:[%s7 + $0x1c8] sm:$0xff]
  %v3025 = vld [vmem:[%s7 + $0x1d0] sm:$0xff]
  %v3026 = vld [vmem:[%s7 + $0x1d8] sm:$0xff]
  %v3027 = vld [vmem:[%s7 + $0x1e0] sm:$0xff]
  %v3028 = vld [vmem:[%s7 + $0x1e8] sm:$0xff]
  %v3029 = vld [vmem:[%s7 + $0x1f0] sm:$0xff]
  %v3030 = vld [vmem:[%s7 + $0x1f8] sm:$0xff]
  %v3039 = vrot.slane %v2822, 7
  %v3040 = vsel %vm1026, %v3039, %v2799
  %v3041 = vrot.slane %v2845, 6
  %v3042 = vsel %vm1029, %v3041, %v3040
  %v3043 = vrot.slane %v2868, 5
  %v3044 = vsel %vm1032, %v3043, %v3042
  %v3045 = vrot.slane %v2891, 4
  %v3046 = vsel %vm1035, %v3045, %v3044
  %v3047 = vrot.slane %v2914, 3
  %v3048 = vsel %vm1038, %v3047, %v3046
  %v3049 = vrot.slane %v2937, 2
  %v3050 = vsel %vm1041, %v3049, %v3048
  %v3051 = vrot.slane %v2960, 1
  %v3052 = vsel %vm1044, %v3051, %v3050
  %3054 = vmatpush.msra.mxu0 %v3027
  %3055 = vmatpush.msra.mxu0 %v3023
  %3056 = vmatpush.msra.mxu0 %v3019
  %3057 = vmatpush.msra.mxu0 %v3015
  %3058 = vmatpush.msra.mxu0 %v3011
  %3059 = vmatpush.msra.mxu0 %v3007
  %3060 = vmatpush.msra.mxu0 %v3003
  %3061 = vmatpush.msra.mxu0 %v2999
  %3062 = vmatpush.msra.mxu0 %v2995
  %3063 = vmatpush.msra.mxu0 %v2991
  %3064 = vmatpush.msra.mxu0 %v2987
  %3065 = vmatpush.msra.mxu0 %v2983
  %3066 = vmatpush.msra.mxu0 %v2979
  %3067 = vmatpush.msra.mxu0 %v2975
  %3068 = vmatpush.msra.mxu0 %v2971
  %3069 = vmatpush.msra.mxu0 %v2967
  %3070 = vmatmul.f32.gmra.mxu0 %v3052
  %v3071 = vpop.f32.mrf.mxu0
  %v3072 = vadd.f32 0.0, %v3071
  %3073 = vdwg.mxu0
  %3074 = vmatpush.msra.mxu0 %v3028
  %3075 = vmatpush.msra.mxu0 %v3024
  %3076 = vmatpush.msra.mxu0 %v3020
  %3077 = vmatpush.msra.mxu0 %v3016
  %3078 = vmatpush.msra.mxu0 %v3012
  %3079 = vmatpush.msra.mxu0 %v3008
  %3080 = vmatpush.msra.mxu0 %v3004
  %3081 = vmatpush.msra.mxu0 %v3000
  %3082 = vmatpush.msra.mxu0 %v2996
  %3083 = vmatpush.msra.mxu0 %v2992
  %3084 = vmatpush.msra.mxu0 %v2988
  %3085 = vmatpush.msra.mxu0 %v2984
  %3086 = vmatpush.msra.mxu0 %v2980
  %3087 = vmatpush.msra.mxu0 %v2976
  %3088 = vmatpush.msra.mxu0 %v2972
  %3089 = vmatpush.msra.mxu0 %v2968
  %3090 = vmatmul.f32.gmra.mxu0 %v3052
  %v3091 = vpop.f32.mrf.mxu0
  %v3092 = vadd.f32 0.0, %v3091
  %3093 = vdwg.mxu0
  %3094 = vmatpush.msra.mxu0 %v3029
  %3095 = vmatpush.msra.mxu0 %v3025
  %3096 = vmatpush.msra.mxu0 %v3021
  %3097 = vmatpush.msra.mxu0 %v3017
  %3098 = vmatpush.msra.mxu0 %v3013
  %3099 = vmatpush.msra.mxu0 %v3009
  %3100 = vmatpush.msra.mxu0 %v3005
  %3101 = vmatpush.msra.mxu0 %v3001
  %3102 = vmatpush.msra.mxu0 %v2997
  %3103 = vmatpush.msra.mxu0 %v2993
  %3104 = vmatpush.msra.mxu0 %v2989
  %3105 = vmatpush.msra.mxu0 %v2985
  %3106 = vmatpush.msra.mxu0 %v2981
  %3107 = vmatpush.msra.mxu0 %v2977
  %3108 = vmatpush.msra.mxu0 %v2973
  %3109 = vmatpush.msra.mxu0 %v2969
  %3110 = vmatmul.f32.gmra.mxu0 %v3052
  %v3111 = vpop.f32.mrf.mxu0
  %v3112 = vadd.f32 0.0, %v3111
  %3113 = vdwg.mxu0
  %3114 = vmatpush.msra.mxu0 %v3030
  %3115 = vmatpush.msra.mxu0 %v3026
  %3116 = vmatpush.msra.mxu0 %v3022
  %3117 = vmatpush.msra.mxu0 %v3018
  %3118 = vmatpush.msra.mxu0 %v3014
  %3119 = vmatpush.msra.mxu0 %v3010
  %3120 = vmatpush.msra.mxu0 %v3006
  %3121 = vmatpush.msra.mxu0 %v3002
  %3122 = vmatpush.msra.mxu0 %v2998
  %3123 = vmatpush.msra.mxu0 %v2994
  %3124 = vmatpush.msra.mxu0 %v2990
  %3125 = vmatpush.msra.mxu0 %v2986
  %3126 = vmatpush.msra.mxu0 %v2982
  %3127 = vmatpush.msra.mxu0 %v2978
  %3128 = vmatpush.msra.mxu0 %v2974
  %3129 = vmatpush.msra.mxu0 %v2970
  %3130 = vmatmul.f32.gmra.mxu0 %v3052
  %v3131 = vpop.f32.mrf.mxu0
  %v3132 = vadd.f32 0.0, %v3131
  %3133 = vdwg.mxu0
  %v3134 = vadd.f32 %v2963, %v3072
  %v3135 = vadd.f32 %v2964, %v3092
  %v3136 = vadd.f32 %v2965, %v3112
  %v3137 = vadd.f32 %v2966, %v3132
  %v3138 = vld [vmem:[%s8] sm:$0xff]
  %v3139 = vld [vmem:[%s8 + $0x8] sm:$0xff]
  %v3140 = vld [vmem:[%s8 + $0x10] sm:$0xff]
  %v3141 = vld [vmem:[%s8 + $0x18] sm:$0xff]
  %v3142 = vld [vmem:[%s8 + $0x20] sm:$0xff]
  %v3143 = vld [vmem:[%s8 + $0x28] sm:$0xff]
  %v3144 = vld [vmem:[%s8 + $0x30] sm:$0xff]
  %v3145 = vld [vmem:[%s8 + $0x38] sm:$0xff]
  %v3146 = vld [vmem:[%s8 + $0x40] sm:$0xff]
  %v3147 = vld [vmem:[%s8 + $0x48] sm:$0xff]
  %v3148 = vld [vmem:[%s8 + $0x50] sm:$0xff]
  %v3149 = vld [vmem:[%s8 + $0x58] sm:$0xff]
  %v3150 = vld [vmem:[%s8 + $0x60] sm:$0xff]
  %v3151 = vld [vmem:[%s8 + $0x68] sm:$0xff]
  %v3152 = vld [vmem:[%s8 + $0x70] sm:$0xff]
  %v3153 = vld [vmem:[%s8 + $0x78] sm:$0xff]
  %v3154 = vld [vmem:[%s8 + $0x80] sm:$0xff]
  %v3155 = vld [vmem:[%s8 + $0x88] sm:$0xff]
  %v3156 = vld [vmem:[%s8 + $0x90] sm:$0xff]
  %v3157 = vld [vmem:[%s8 + $0x98] sm:$0xff]
  %v3158 = vld [vmem:[%s8 + $0xa0] sm:$0xff]
  %v3159 = vld [vmem:[%s8 + $0xa8] sm:$0xff]
  %v3160 = vld [vmem:[%s8 + $0xb0] sm:$0xff]
  %v3161 = vld [vmem:[%s8 + $0xb8] sm:$0xff]
  %v3162 = vld [vmem:[%s8 + $0xc0] sm:$0xff]
  %v3163 = vld [vmem:[%s8 + $0xc8] sm:$0xff]
  %v3164 = vld [vmem:[%s8 + $0xd0] sm:$0xff]
  %v3165 = vld [vmem:[%s8 + $0xd8] sm:$0xff]
  %v3166 = vld [vmem:[%s8 + $0xe0] sm:$0xff]
  %v3167 = vld [vmem:[%s8 + $0xe8] sm:$0xff]
  %v3168 = vld [vmem:[%s8 + $0xf0] sm:$0xff]
  %v3169 = vld [vmem:[%s8 + $0xf8] sm:$0xff]
  %v3170 = vld [vmem:[%s8 + $0x100] sm:$0xff]
  %v3171 = vld [vmem:[%s8 + $0x108] sm:$0xff]
  %v3172 = vld [vmem:[%s8 + $0x110] sm:$0xff]
  %v3173 = vld [vmem:[%s8 + $0x118] sm:$0xff]
  %v3174 = vld [vmem:[%s8 + $0x120] sm:$0xff]
  %v3175 = vld [vmem:[%s8 + $0x128] sm:$0xff]
  %v3176 = vld [vmem:[%s8 + $0x130] sm:$0xff]
  %v3177 = vld [vmem:[%s8 + $0x138] sm:$0xff]
  %v3178 = vld [vmem:[%s8 + $0x140] sm:$0xff]
  %v3179 = vld [vmem:[%s8 + $0x148] sm:$0xff]
  %v3180 = vld [vmem:[%s8 + $0x150] sm:$0xff]
  %v3181 = vld [vmem:[%s8 + $0x158] sm:$0xff]
  %v3182 = vld [vmem:[%s8 + $0x160] sm:$0xff]
  %v3183 = vld [vmem:[%s8 + $0x168] sm:$0xff]
  %v3184 = vld [vmem:[%s8 + $0x170] sm:$0xff]
  %v3185 = vld [vmem:[%s8 + $0x178] sm:$0xff]
  %v3186 = vld [vmem:[%s8 + $0x180] sm:$0xff]
  %v3187 = vld [vmem:[%s8 + $0x188] sm:$0xff]
  %v3188 = vld [vmem:[%s8 + $0x190] sm:$0xff]
  %v3189 = vld [vmem:[%s8 + $0x198] sm:$0xff]
  %v3190 = vld [vmem:[%s8 + $0x1a0] sm:$0xff]
  %v3191 = vld [vmem:[%s8 + $0x1a8] sm:$0xff]
  %v3192 = vld [vmem:[%s8 + $0x1b0] sm:$0xff]
  %v3193 = vld [vmem:[%s8 + $0x1b8] sm:$0xff]
  %v3194 = vld [vmem:[%s8 + $0x1c0] sm:$0xff]
  %v3195 = vld [vmem:[%s8 + $0x1c8] sm:$0xff]
  %v3196 = vld [vmem:[%s8 + $0x1d0] sm:$0xff]
  %v3197 = vld [vmem:[%s8 + $0x1d8] sm:$0xff]
  %v3198 = vld [vmem:[%s8 + $0x1e0] sm:$0xff]
  %v3199 = vld [vmem:[%s8 + $0x1e8] sm:$0xff]
  %v3200 = vld [vmem:[%s8 + $0x1f0] sm:$0xff]
  %v3201 = vld [vmem:[%s8 + $0x1f8] sm:$0xff]
  %3202 = vmatpush.msra.mxu0 %v3198
  %3203 = vmatpush.msra.mxu0 %v3194
  %3204 = vmatpush.msra.mxu0 %v3190
  %3205 = vmatpush.msra.mxu0 %v3186
  %3206 = vmatpush.msra.mxu0 %v3182
  %3207 = vmatpush.msra.mxu0 %v3178
  %3208 = vmatpush.msra.mxu0 %v3174
  %3209 = vmatpush.msra.mxu0 %v3170
  %3210 = vmatpush.msra.mxu0 %v3166
  %3211 = vmatpush.msra.mxu0 %v3162
  %3212 = vmatpush.msra.mxu0 %v3158
  %3213 = vmatpush.msra.mxu0 %v3154
  %3214 = vmatpush.msra.mxu0 %v3150
  %3215 = vmatpush.msra.mxu0 %v3146
  %3216 = vmatpush.msra.mxu0 %v3142
  %3217 = vmatpush.msra.mxu0 %v3138
  %3218 = vmatmul.f32.gmra.mxu0 %v2385
  %v3219 = vpop.f32.mrf.mxu0
  %v3220 = vadd.f32 0.0, %v3219
  %3221 = vdwg.mxu0
  %3222 = vmatpush.msra.mxu0 %v3199
  %3223 = vmatpush.msra.mxu0 %v3195
  %3224 = vmatpush.msra.mxu0 %v3191
  %3225 = vmatpush.msra.mxu0 %v3187
  %3226 = vmatpush.msra.mxu0 %v3183
  %3227 = vmatpush.msra.mxu0 %v3179
  %3228 = vmatpush.msra.mxu0 %v3175
  %3229 = vmatpush.msra.mxu0 %v3171
  %3230 = vmatpush.msra.mxu0 %v3167
  %3231 = vmatpush.msra.mxu0 %v3163
  %3232 = vmatpush.msra.mxu0 %v3159
  %3233 = vmatpush.msra.mxu0 %v3155
  %3234 = vmatpush.msra.mxu0 %v3151
  %3235 = vmatpush.msra.mxu0 %v3147
  %3236 = vmatpush.msra.mxu0 %v3143
  %3237 = vmatpush.msra.mxu0 %v3139
  %3238 = vmatmul.f32.gmra.mxu0 %v2385
  %v3239 = vpop.f32.mrf.mxu0
  %v3240 = vadd.f32 0.0, %v3239
  %3241 = vdwg.mxu0
  %3242 = vmatpush.msra.mxu0 %v3200
  %3243 = vmatpush.msra.mxu0 %v3196
  %3244 = vmatpush.msra.mxu0 %v3192
  %3245 = vmatpush.msra.mxu0 %v3188
  %3246 = vmatpush.msra.mxu0 %v3184
  %3247 = vmatpush.msra.mxu0 %v3180
  %3248 = vmatpush.msra.mxu0 %v3176
  %3249 = vmatpush.msra.mxu0 %v3172
  %3250 = vmatpush.msra.mxu0 %v3168
  %3251 = vmatpush.msra.mxu0 %v3164
  %3252 = vmatpush.msra.mxu0 %v3160
  %3253 = vmatpush.msra.mxu0 %v3156
  %3254 = vmatpush.msra.mxu0 %v3152
  %3255 = vmatpush.msra.mxu0 %v3148
  %3256 = vmatpush.msra.mxu0 %v3144
  %3257 = vmatpush.msra.mxu0 %v3140
  %3258 = vmatmul.f32.gmra.mxu0 %v2385
  %v3259 = vpop.f32.mrf.mxu0
  %v3260 = vadd.f32 0.0, %v3259
  %3261 = vdwg.mxu0
  %3262 = vmatpush.msra.mxu0 %v3201
  %3263 = vmatpush.msra.mxu0 %v3197
  %3264 = vmatpush.msra.mxu0 %v3193
  %3265 = vmatpush.msra.mxu0 %v3189
  %3266 = vmatpush.msra.mxu0 %v3185
  %3267 = vmatpush.msra.mxu0 %v3181
  %3268 = vmatpush.msra.mxu0 %v3177
  %3269 = vmatpush.msra.mxu0 %v3173
  %3270 = vmatpush.msra.mxu0 %v3169
  %3271 = vmatpush.msra.mxu0 %v3165
  %3272 = vmatpush.msra.mxu0 %v3161
  %3273 = vmatpush.msra.mxu0 %v3157
  %3274 = vmatpush.msra.mxu0 %v3153
  %3275 = vmatpush.msra.mxu0 %v3149
  %3276 = vmatpush.msra.mxu0 %v3145
  %3277 = vmatpush.msra.mxu0 %v3141
  %3278 = vmatmul.f32.gmra.mxu0 %v2385
  %v3279 = vpop.f32.mrf.mxu0
  %v3280 = vadd.f32 0.0, %v3279
  %3281 = vdwg.mxu0
  %v3282 = vadd.f32 %v3134, %v3220
  %v3283 = vadd.f32 %v3135, %v3240
  %v3284 = vadd.f32 %v3136, %v3260
  %v3285 = vadd.f32 %v3137, %v3280
  %v3286 = vxor.u32 %v3282, 2147483648
  %v3287 = vmul.f32 %v3286, 1.442695
  %v3288 = vpow.pop %v3287
  %v3289 = vadd.f32 %v3288, 1.0
  %v3290 = vrcp.pop %v3289
  %v3291 = vmul.f32 %v3289, %v3290
  %v3292 = vsub.f32 1.0, %v3291
  %v3293 = vmul.f32 %v3290, %v3292
  %v3294 = vadd.f32 %v3290, %v3293
  %vm3295 = vweird.f32 %v3289
  %vm3296 = vweird.f32 %v3290
  %vm3297 = vmor %vm3295, %vm3296
  %v3298 = vsel %vm3297, %v3290, %v3294
  %v3299 = vand.u32 2147483647, %v3289
  %vm3300 = vcmp.eq.f32.partialorder %v3299, 8.507059e+37
  %v3301 = vand.u32 %v3289, 2147483648
  %v3302 = vor.u32 1.1754944e-38, %v3301
  %v3303 = vsel %vm3300, %v3302, %v3298
  %v3304 = vmul.f32 1.0, %v3303
  %v3305 = vxor.u32 %v3283, 2147483648
  %v3306 = vmul.f32 %v3305, 1.442695
  %v3307 = vpow.pop %v3306
  %v3308 = vadd.f32 %v3307, 1.0
  %v3309 = vrcp.pop %v3308
  %v3310 = vmul.f32 %v3308, %v3309
  %v3311 = vsub.f32 1.0, %v3310
  %v3312 = vmul.f32 %v3309, %v3311
  %v3313 = vadd.f32 %v3309, %v3312
  %vm3314 = vweird.f32 %v3308
  %vm3315 = vweird.f32 %v3309
  %vm3316 = vmor %vm3314, %vm3315
  %v3317 = vsel %vm3316, %v3309, %v3313
  %v3318 = vand.u32 2147483647, %v3308
  %vm3319 = vcmp.eq.f32.partialorder %v3318, 8.507059e+37
  %v3320 = vand.u32 %v3308, 2147483648
  %v3321 = vor.u32 1.1754944e-38, %v3320
  %v3322 = vsel %vm3319, %v3321, %v3317
  %v3323 = vmul.f32 1.0, %v3322
  %v3324 = vtanh.pop %v3284
  %v3325 = vxor.u32 %v3285, 2147483648
  %v3326 = vmul.f32 %v3325, 1.442695
  %v3327 = vpow.pop %v3326
  %v3328 = vadd.f32 %v3327, 1.0
  %v3329 = vrcp.pop %v3328
  %v3330 = vmul.f32 %v3328, %v3329
  %v3331 = vsub.f32 1.0, %v3330
  %v3332 = vmul.f32 %v3329, %v3331
  %v3333 = vadd.f32 %v3329, %v3332
  %vm3334 = vweird.f32 %v3328
  %vm3335 = vweird.f32 %v3329
  %vm3336 = vmor %vm3334, %vm3335
  %v3337 = vsel %vm3336, %v3329, %v3333
  %v3338 = vand.u32 2147483647, %v3328
  %vm3339 = vcmp.eq.f32.partialorder %v3338, 8.507059e+37
  %v3340 = vand.u32 %v3328, 2147483648
  %v3341 = vor.u32 1.1754944e-38, %v3340
  %v3342 = vsel %vm3339, %v3341, %v3337
  %v3343 = vmul.f32 1.0, %v3342
  %v3344 = vmul.f32 %v3323, %v2386
  %v3345 = vmul.f32 %v3304, %v3324
  %v3346 = vadd.f32 %v3344, %v3345
  %v3347 = vtanh.pop %v3346
  %v3348 = vmul.f32 %v3343, %v3347
  %3349 = vst [vmem:[#allocation4] sm:$0xff] %v3348
  %3350 = vst [vmem:[#allocation5] sm:$0xff] %v3346
  %v3351 = vld [vmem:[%s10] sm:$0xff]
  %v3352 = vld [vmem:[%s10 + $0x8] sm:$0xff]
  %v3353 = vld [vmem:[%s10 + $0x10] sm:$0xff]
  %v3354 = vld [vmem:[%s10 + $0x18] sm:$0xff]
  %v3355 = vld [vmem:[%s10 + $0x20] sm:$0xff]
  %v3356 = vld [vmem:[%s10 + $0x28] sm:$0xff]
  %v3357 = vld [vmem:[%s10 + $0x30] sm:$0xff]
  %v3358 = vld [vmem:[%s10 + $0x38] sm:$0xff]
  %v3359 = vld [vmem:[%s10 + $0x40] sm:$0xff]
  %v3360 = vld [vmem:[%s10 + $0x48] sm:$0xff]
  %v3361 = vld [vmem:[%s10 + $0x50] sm:$0xff]
  %v3362 = vld [vmem:[%s10 + $0x58] sm:$0xff]
  %v3363 = vld [vmem:[%s10 + $0x60] sm:$0xff]
  %v3364 = vld [vmem:[%s10 + $0x68] sm:$0xff]
  %v3365 = vld [vmem:[%s10 + $0x70] sm:$0xff]
  %v3366 = vld [vmem:[%s10 + $0x78] sm:$0xff]
  %3367 = vmatpush.msra.mxu0 %v3366
  %3368 = vmatpush.msra.mxu0 %v3365
  %3369 = vmatpush.msra.mxu0 %v3364
  %3370 = vmatpush.msra.mxu0 %v3363
  %3371 = vmatpush.msra.mxu0 %v3362
  %3372 = vmatpush.msra.mxu0 %v3361
  %3373 = vmatpush.msra.mxu0 %v3360
  %3374 = vmatpush.msra.mxu0 %v3359
  %3375 = vmatpush.msra.mxu0 %v3358
  %3376 = vmatpush.msra.mxu0 %v3357
  %3377 = vmatpush.msra.mxu0 %v3356
  %3378 = vmatpush.msra.mxu0 %v3355
  %3379 = vmatpush.msra.mxu0 %v3354
  %3380 = vmatpush.msra.mxu0 %v3353
  %3381 = vmatpush.msra.mxu0 %v3352
  %3382 = vmatpush.msra.mxu0 %v3351
  %3383 = vmatmul.f32.gmra.mxu0 %v3348
  %v3384 = vpop.f32.mrf.mxu0
  %v3385 = vadd.f32 %v368, %v3384
  %3386 = vdwg.mxu0
  %s3387 = scalar_lea.vmem %s12, 16
  %3388 = vst [vmem:[%s3387] sm:$0xff] %v3385
  %v3389 = vld [vmem:[#allocation4] sm:$0xff]
  %v3390 = vld [vmem:[#allocation5] sm:$0xff]
  %v3392 = vrot.slane %v3389, 1
  %v3393 = vrot.slane %v3389, 2
  %v3394 = vrot.slane %v3389, 3
  %v3395 = vrot.slane %v3389, 4
  %v3396 = vrot.slane %v3389, 5
  %v3397 = vrot.slane %v3389, 6
  %v3398 = vrot.slane %v3389, 7
  %v3406 = vld [vmem:[#allocation3] sm:$0xff]
  %v3407 = vld [vmem:[#allocation3 + $0x8] sm:$0xff]
  %v3408 = vld [vmem:[#allocation3 + $0x10] sm:$0xff]
  %v3409 = vld [vmem:[#allocation3 + $0x18] sm:$0xff]
  %v3410 = vld [vmem:[#allocation3 + $0x20] sm:$0xff]
  %v3411 = vld [vmem:[#allocation3 + $0x28] sm:$0xff]
  %v3412 = vld [vmem:[#allocation3 + $0x30] sm:$0xff]
  %v3413 = vld [vmem:[#allocation3 + $0x38] sm:$0xff]
  %3414 = vmatpush.xpose.msra.mxu0 0.0
  %3415 = vmatpush.xpose.msra.mxu0 0.0
  %3416 = vmatpush.xpose.msra.mxu0 0.0
  %3417 = vmatpush.xpose.msra.mxu0 0.0
  %3418 = vmatpush.xpose.msra.mxu0 0.0
  %3419 = vmatpush.xpose.msra.mxu0 0.0
  %3420 = vmatpush.xpose.msra.mxu0 0.0
  %3421 = vmatpush.xpose.msra.mxu0 0.0
  %3422 = vmatpush.xpose.msra.mxu0 0.0
  %3423 = vmatpush.xpose.msra.mxu0 0.0
  %3424 = vmatpush.xpose.msra.mxu0 0.0
  %3425 = vmatpush.xpose.msra.mxu0 0.0
  %3426 = vmatpush.xpose.msra.mxu0 0.0
  %3427 = vmatpush.xpose.msra.mxu0 0.0
  %3428 = vmatpush.xpose.msra.mxu0 0.0
  %3429 = vmatpush.xpose.msra.mxu0 %v3406
  %3430 = vmatmul.f32.gmra.mxu0 %v3389
  %v3431 = vpop.f32.mrf.mxu0
  %v3432 = vadd.f32 0.0, %v3431
  %3433 = vdwg.mxu0
  %3434 = vmatpush.xpose.msra.mxu0 0.0
  %3435 = vmatpush.xpose.msra.mxu0 0.0
  %3436 = vmatpush.xpose.msra.mxu0 0.0
  %3437 = vmatpush.xpose.msra.mxu0 0.0
  %3438 = vmatpush.xpose.msra.mxu0 0.0
  %3439 = vmatpush.xpose.msra.mxu0 0.0
  %3440 = vmatpush.xpose.msra.mxu0 0.0
  %3441 = vmatpush.xpose.msra.mxu0 0.0
  %3442 = vmatpush.xpose.msra.mxu0 0.0
  %3443 = vmatpush.xpose.msra.mxu0 0.0
  %3444 = vmatpush.xpose.msra.mxu0 0.0
  %3445 = vmatpush.xpose.msra.mxu0 0.0
  %3446 = vmatpush.xpose.msra.mxu0 0.0
  %3447 = vmatpush.xpose.msra.mxu0 0.0
  %3448 = vmatpush.xpose.msra.mxu0 0.0
  %3449 = vmatpush.xpose.msra.mxu0 %v3407
  %3450 = vmatmul.f32.gmra.mxu0 %v3392
  %v3451 = vpop.f32.mrf.mxu0
  %v3452 = vadd.f32 0.0, %v3451
  %3453 = vdwg.mxu0
  %3454 = vmatpush.xpose.msra.mxu0 0.0
  %3455 = vmatpush.xpose.msra.mxu0 0.0
  %3456 = vmatpush.xpose.msra.mxu0 0.0
  %3457 = vmatpush.xpose.msra.mxu0 0.0
  %3458 = vmatpush.xpose.msra.mxu0 0.0
  %3459 = vmatpush.xpose.msra.mxu0 0.0
  %3460 = vmatpush.xpose.msra.mxu0 0.0
  %3461 = vmatpush.xpose.msra.mxu0 0.0
  %3462 = vmatpush.xpose.msra.mxu0 0.0
  %3463 = vmatpush.xpose.msra.mxu0 0.0
  %3464 = vmatpush.xpose.msra.mxu0 0.0
  %3465 = vmatpush.xpose.msra.mxu0 0.0
  %3466 = vmatpush.xpose.msra.mxu0 0.0
  %3467 = vmatpush.xpose.msra.mxu0 0.0
  %3468 = vmatpush.xpose.msra.mxu0 0.0
  %3469 = vmatpush.xpose.msra.mxu0 %v3408
  %3470 = vmatmul.f32.gmra.mxu0 %v3393
  %v3471 = vpop.f32.mrf.mxu0
  %v3472 = vadd.f32 0.0, %v3471
  %3473 = vdwg.mxu0
  %3474 = vmatpush.xpose.msra.mxu0 0.0
  %3475 = vmatpush.xpose.msra.mxu0 0.0
  %3476 = vmatpush.xpose.msra.mxu0 0.0
  %3477 = vmatpush.xpose.msra.mxu0 0.0
  %3478 = vmatpush.xpose.msra.mxu0 0.0
  %3479 = vmatpush.xpose.msra.mxu0 0.0
  %3480 = vmatpush.xpose.msra.mxu0 0.0
  %3481 = vmatpush.xpose.msra.mxu0 0.0
  %3482 = vmatpush.xpose.msra.mxu0 0.0
  %3483 = vmatpush.xpose.msra.mxu0 0.0
  %3484 = vmatpush.xpose.msra.mxu0 0.0
  %3485 = vmatpush.xpose.msra.mxu0 0.0
  %3486 = vmatpush.xpose.msra.mxu0 0.0
  %3487 = vmatpush.xpose.msra.mxu0 0.0
  %3488 = vmatpush.xpose.msra.mxu0 0.0
  %3489 = vmatpush.xpose.msra.mxu0 %v3409
  %3490 = vmatmul.f32.gmra.mxu0 %v3394
  %v3491 = vpop.f32.mrf.mxu0
  %v3492 = vadd.f32 0.0, %v3491
  %3493 = vdwg.mxu0
  %3494 = vmatpush.xpose.msra.mxu0 0.0
  %3495 = vmatpush.xpose.msra.mxu0 0.0
  %3496 = vmatpush.xpose.msra.mxu0 0.0
  %3497 = vmatpush.xpose.msra.mxu0 0.0
  %3498 = vmatpush.xpose.msra.mxu0 0.0
  %3499 = vmatpush.xpose.msra.mxu0 0.0
  %3500 = vmatpush.xpose.msra.mxu0 0.0
  %3501 = vmatpush.xpose.msra.mxu0 0.0
  %3502 = vmatpush.xpose.msra.mxu0 0.0
  %3503 = vmatpush.xpose.msra.mxu0 0.0
  %3504 = vmatpush.xpose.msra.mxu0 0.0
  %3505 = vmatpush.xpose.msra.mxu0 0.0
  %3506 = vmatpush.xpose.msra.mxu0 0.0
  %3507 = vmatpush.xpose.msra.mxu0 0.0
  %3508 = vmatpush.xpose.msra.mxu0 0.0
  %3509 = vmatpush.xpose.msra.mxu0 %v3410
  %3510 = vmatmul.f32.gmra.mxu0 %v3395
  %v3511 = vpop.f32.mrf.mxu0
  %v3512 = vadd.f32 0.0, %v3511
  %3513 = vdwg.mxu0
  %3514 = vmatpush.xpose.msra.mxu0 0.0
  %3515 = vmatpush.xpose.msra.mxu0 0.0
  %3516 = vmatpush.xpose.msra.mxu0 0.0
  %3517 = vmatpush.xpose.msra.mxu0 0.0
  %3518 = vmatpush.xpose.msra.mxu0 0.0
  %3519 = vmatpush.xpose.msra.mxu0 0.0
  %3520 = vmatpush.xpose.msra.mxu0 0.0
  %3521 = vmatpush.xpose.msra.mxu0 0.0
  %3522 = vmatpush.xpose.msra.mxu0 0.0
  %3523 = vmatpush.xpose.msra.mxu0 0.0
  %3524 = vmatpush.xpose.msra.mxu0 0.0
  %3525 = vmatpush.xpose.msra.mxu0 0.0
  %3526 = vmatpush.xpose.msra.mxu0 0.0
  %3527 = vmatpush.xpose.msra.mxu0 0.0
  %3528 = vmatpush.xpose.msra.mxu0 0.0
  %3529 = vmatpush.xpose.msra.mxu0 %v3411
  %3530 = vmatmul.f32.gmra.mxu0 %v3396
  %v3531 = vpop.f32.mrf.mxu0
  %v3532 = vadd.f32 0.0, %v3531
  %3533 = vdwg.mxu0
  %3534 = vmatpush.xpose.msra.mxu0 0.0
  %3535 = vmatpush.xpose.msra.mxu0 0.0
  %3536 = vmatpush.xpose.msra.mxu0 0.0
  %3537 = vmatpush.xpose.msra.mxu0 0.0
  %3538 = vmatpush.xpose.msra.mxu0 0.0
  %3539 = vmatpush.xpose.msra.mxu0 0.0
  %3540 = vmatpush.xpose.msra.mxu0 0.0
  %3541 = vmatpush.xpose.msra.mxu0 0.0
  %3542 = vmatpush.xpose.msra.mxu0 0.0
  %3543 = vmatpush.xpose.msra.mxu0 0.0
  %3544 = vmatpush.xpose.msra.mxu0 0.0
  %3545 = vmatpush.xpose.msra.mxu0 0.0
  %3546 = vmatpush.xpose.msra.mxu0 0.0
  %3547 = vmatpush.xpose.msra.mxu0 0.0
  %3548 = vmatpush.xpose.msra.mxu0 0.0
  %3549 = vmatpush.xpose.msra.mxu0 %v3412
  %3550 = vmatmul.f32.gmra.mxu0 %v3397
  %v3551 = vpop.f32.mrf.mxu0
  %v3552 = vadd.f32 0.0, %v3551
  %3553 = vdwg.mxu0
  %3554 = vmatpush.xpose.msra.mxu0 0.0
  %3555 = vmatpush.xpose.msra.mxu0 0.0
  %3556 = vmatpush.xpose.msra.mxu0 0.0
  %3557 = vmatpush.xpose.msra.mxu0 0.0
  %3558 = vmatpush.xpose.msra.mxu0 0.0
  %3559 = vmatpush.xpose.msra.mxu0 0.0
  %3560 = vmatpush.xpose.msra.mxu0 0.0
  %3561 = vmatpush.xpose.msra.mxu0 0.0
  %3562 = vmatpush.xpose.msra.mxu0 0.0
  %3563 = vmatpush.xpose.msra.mxu0 0.0
  %3564 = vmatpush.xpose.msra.mxu0 0.0
  %3565 = vmatpush.xpose.msra.mxu0 0.0
  %3566 = vmatpush.xpose.msra.mxu0 0.0
  %3567 = vmatpush.xpose.msra.mxu0 0.0
  %3568 = vmatpush.xpose.msra.mxu0 0.0
  %3569 = vmatpush.xpose.msra.mxu0 %v3413
  %3570 = vmatmul.f32.gmra.mxu0 %v3398
  %v3571 = vpop.f32.mrf.mxu0
  %v3572 = vadd.f32 0.0, %v3571
  %3573 = vdwg.mxu0
  %v3574 = vsel %vm350, %v3432, -1e+30
  %v3575 = vsel %vm359, %v3452, -1e+30
  %v3576 = vsel %vm360, %v3472, -1e+30
  %v3577 = vsel %vm361, %v3492, -1e+30
  %v3578 = vsel %vm362, %v3512, -1e+30
  %v3579 = vsel %vm363, %v3532, -1e+30
  %v3580 = vsel %vm364, %v3552, -1e+30
  %v3581 = vsel %vm365, %v3572, -1e+30
  %v3582 = vsel %vm563, %v3574, -inf
  %3583 = vmax.xlane.f32.xlu0 %v3582
  %v3584 = vpop.xlane.xlu0 %3583
  %v3585 = vsel %vm563, %v3575, -inf
  %3586 = vmax.xlane.f32.xlu0 %v3585
  %v3587 = vpop.xlane.xlu0 %3586
  %v3588 = vsel %vm563, %v3576, -inf
  %3589 = vmax.xlane.f32.xlu0 %v3588
  %v3590 = vpop.xlane.xlu0 %3589
  %v3591 = vsel %vm563, %v3577, -inf
  %3592 = vmax.xlane.f32.xlu0 %v3591
  %v3593 = vpop.xlane.xlu0 %3592
  %v3594 = vsel %vm563, %v3578, -inf
  %3595 = vmax.xlane.f32.xlu0 %v3594
  %v3596 = vpop.xlane.xlu0 %3595
  %v3597 = vsel %vm563, %v3579, -inf
  %3598 = vmax.xlane.f32.xlu0 %v3597
  %v3599 = vpop.xlane.xlu0 %3598
  %v3600 = vsel %vm563, %v3580, -inf
  %3601 = vmax.xlane.f32.xlu0 %v3600
  %v3602 = vpop.xlane.xlu0 %3601
  %v3603 = vsel %vm563, %v3581, -inf
  %3604 = vmax.xlane.f32.xlu0 %v3603
  %v3605 = vpop.xlane.xlu0 %3604
  %v3606 = vsub.f32 %v3574, %v3584
  %v3607 = vsub.f32 %v3575, %v3587
  %v3608 = vsub.f32 %v3576, %v3590
  %v3609 = vsub.f32 %v3577, %v3593
  %v3610 = vsub.f32 %v3578, %v3596
  %v3611 = vsub.f32 %v3579, %v3599
  %v3612 = vsub.f32 %v3580, %v3602
  %v3613 = vsub.f32 %v3581, %v3605
  %v3614 = vmul.f32 %v3606, 1.442695
  %v3615 = vpow.pop %v3614
  %v3616 = vmul.f32 %v3607, 1.442695
  %v3617 = vpow.pop %v3616
  %v3618 = vmul.f32 %v3608, 1.442695
  %v3619 = vpow.pop %v3618
  %v3620 = vmul.f32 %v3609, 1.442695
  %v3621 = vpow.pop %v3620
  %v3622 = vmul.f32 %v3610, 1.442695
  %v3623 = vpow.pop %v3622
  %v3624 = vmul.f32 %v3611, 1.442695
  %v3625 = vpow.pop %v3624
  %v3626 = vmul.f32 %v3612, 1.442695
  %v3627 = vpow.pop %v3626
  %v3628 = vmul.f32 %v3613, 1.442695
  %v3629 = vpow.pop %v3628
  %v3630 = vsel %vm563, %v3615, 0.0
  %3631 = vadd.xlane.f32.xlu0 %v3630
  %v3632 = vpop.xlane.xlu0 %3631
  %v3633 = vsel %vm563, %v3617, 0.0
  %3634 = vadd.xlane.f32.xlu0 %v3633
  %v3635 = vpop.xlane.xlu0 %3634
  %v3636 = vsel %vm563, %v3619, 0.0
  %3637 = vadd.xlane.f32.xlu0 %v3636
  %v3638 = vpop.xlane.xlu0 %3637
  %v3639 = vsel %vm563, %v3621, 0.0
  %3640 = vadd.xlane.f32.xlu0 %v3639
  %v3641 = vpop.xlane.xlu0 %3640
  %v3642 = vsel %vm563, %v3623, 0.0
  %3643 = vadd.xlane.f32.xlu0 %v3642
  %v3644 = vpop.xlane.xlu0 %3643
  %v3645 = vsel %vm563, %v3625, 0.0
  %3646 = vadd.xlane.f32.xlu0 %v3645
  %v3647 = vpop.xlane.xlu0 %3646
  %v3648 = vsel %vm563, %v3627, 0.0
  %3649 = vadd.xlane.f32.xlu0 %v3648
  %v3650 = vpop.xlane.xlu0 %3649
  %v3651 = vsel %vm563, %v3629, 0.0
  %3652 = vadd.xlane.f32.xlu0 %v3651
  %v3653 = vpop.xlane.xlu0 %3652
  %v3654 = vrcp.pop %v3632
  %v3655 = vmul.f32 %v3632, %v3654
  %v3656 = vsub.f32 1.0, %v3655
  %v3657 = vmul.f32 %v3654, %v3656
  %v3658 = vadd.f32 %v3654, %v3657
  %vm3659 = vweird.f32 %v3632
  %vm3660 = vweird.f32 %v3654
  %vm3661 = vmor %vm3659, %vm3660
  %v3662 = vsel %vm3661, %v3654, %v3658
  %v3663 = vand.u32 2147483647, %v3632
  %vm3664 = vcmp.eq.f32.partialorder %v3663, 8.507059e+37
  %v3665 = vand.u32 %v3632, 2147483648
  %v3666 = vor.u32 1.1754944e-38, %v3665
  %v3667 = vsel %vm3664, %v3666, %v3662
  %v3668 = vmul.f32 %v3615, %v3667
  %v3669 = vrcp.pop %v3635
  %v3670 = vmul.f32 %v3635, %v3669
  %v3671 = vsub.f32 1.0, %v3670
  %v3672 = vmul.f32 %v3669, %v3671
  %v3673 = vadd.f32 %v3669, %v3672
  %vm3674 = vweird.f32 %v3635
  %vm3675 = vweird.f32 %v3669
  %vm3676 = vmor %vm3674, %vm3675
  %v3677 = vsel %vm3676, %v3669, %v3673
  %v3678 = vand.u32 2147483647, %v3635
  %vm3679 = vcmp.eq.f32.partialorder %v3678, 8.507059e+37
  %v3680 = vand.u32 %v3635, 2147483648
  %v3681 = vor.u32 1.1754944e-38, %v3680
  %v3682 = vsel %vm3679, %v3681, %v3677
  %v3683 = vmul.f32 %v3617, %v3682
  %v3684 = vrcp.pop %v3638
  %v3685 = vmul.f32 %v3638, %v3684
  %v3686 = vsub.f32 1.0, %v3685
  %v3687 = vmul.f32 %v3684, %v3686
  %v3688 = vadd.f32 %v3684, %v3687
  %vm3689 = vweird.f32 %v3638
  %vm3690 = vweird.f32 %v3684
  %vm3691 = vmor %vm3689, %vm3690
  %v3692 = vsel %vm3691, %v3684, %v3688
  %v3693 = vand.u32 2147483647, %v3638
  %vm3694 = vcmp.eq.f32.partialorder %v3693, 8.507059e+37
  %v3695 = vand.u32 %v3638, 2147483648
  %v3696 = vor.u32 1.1754944e-38, %v3695
  %v3697 = vsel %vm3694, %v3696, %v3692
  %v3698 = vmul.f32 %v3619, %v3697
  %v3699 = vrcp.pop %v3641
  %v3700 = vmul.f32 %v3641, %v3699
  %v3701 = vsub.f32 1.0, %v3700
  %v3702 = vmul.f32 %v3699, %v3701
  %v3703 = vadd.f32 %v3699, %v3702
  %vm3704 = vweird.f32 %v3641
  %vm3705 = vweird.f32 %v3699
  %vm3706 = vmor %vm3704, %vm3705
  %v3707 = vsel %vm3706, %v3699, %v3703
  %v3708 = vand.u32 2147483647, %v3641
  %vm3709 = vcmp.eq.f32.partialorder %v3708, 8.507059e+37
  %v3710 = vand.u32 %v3641, 2147483648
  %v3711 = vor.u32 1.1754944e-38, %v3710
  %v3712 = vsel %vm3709, %v3711, %v3707
  %v3713 = vmul.f32 %v3621, %v3712
  %v3714 = vrcp.pop %v3644
  %v3715 = vmul.f32 %v3644, %v3714
  %v3716 = vsub.f32 1.0, %v3715
  %v3717 = vmul.f32 %v3714, %v3716
  %v3718 = vadd.f32 %v3714, %v3717
  %vm3719 = vweird.f32 %v3644
  %vm3720 = vweird.f32 %v3714
  %vm3721 = vmor %vm3719, %vm3720
  %v3722 = vsel %vm3721, %v3714, %v3718
  %v3723 = vand.u32 2147483647, %v3644
  %vm3724 = vcmp.eq.f32.partialorder %v3723, 8.507059e+37
  %v3725 = vand.u32 %v3644, 2147483648
  %v3726 = vor.u32 1.1754944e-38, %v3725
  %v3727 = vsel %vm3724, %v3726, %v3722
  %v3728 = vmul.f32 %v3623, %v3727
  %v3729 = vrcp.pop %v3647
  %v3730 = vmul.f32 %v3647, %v3729
  %v3731 = vsub.f32 1.0, %v3730
  %v3732 = vmul.f32 %v3729, %v3731
  %v3733 = vadd.f32 %v3729, %v3732
  %vm3734 = vweird.f32 %v3647
  %vm3735 = vweird.f32 %v3729
  %vm3736 = vmor %vm3734, %vm3735
  %v3737 = vsel %vm3736, %v3729, %v3733
  %v3738 = vand.u32 2147483647, %v3647
  %vm3739 = vcmp.eq.f32.partialorder %v3738, 8.507059e+37
  %v3740 = vand.u32 %v3647, 2147483648
  %v3741 = vor.u32 1.1754944e-38, %v3740
  %v3742 = vsel %vm3739, %v3741, %v3737
  %v3743 = vmul.f32 %v3625, %v3742
  %v3744 = vrcp.pop %v3650
  %v3745 = vmul.f32 %v3650, %v3744
  %v3746 = vsub.f32 1.0, %v3745
  %v3747 = vmul.f32 %v3744, %v3746
  %v3748 = vadd.f32 %v3744, %v3747
  %vm3749 = vweird.f32 %v3650
  %vm3750 = vweird.f32 %v3744
  %vm3751 = vmor %vm3749, %vm3750
  %v3752 = vsel %vm3751, %v3744, %v3748
  %v3753 = vand.u32 2147483647, %v3650
  %vm3754 = vcmp.eq.f32.partialorder %v3753, 8.507059e+37
  %v3755 = vand.u32 %v3650, 2147483648
  %v3756 = vor.u32 1.1754944e-38, %v3755
  %v3757 = vsel %vm3754, %v3756, %v3752
  %v3758 = vmul.f32 %v3627, %v3757
  %v3759 = vrcp.pop %v3653
  %v3760 = vmul.f32 %v3653, %v3759
  %v3761 = vsub.f32 1.0, %v3760
  %v3762 = vmul.f32 %v3759, %v3761
  %v3763 = vadd.f32 %v3759, %v3762
  %vm3764 = vweird.f32 %v3653
  %vm3765 = vweird.f32 %v3759
  %vm3766 = vmor %vm3764, %vm3765
  %v3767 = vsel %vm3766, %v3759, %v3763
  %v3768 = vand.u32 2147483647, %v3653
  %vm3769 = vcmp.eq.f32.partialorder %v3768, 8.507059e+37
  %v3770 = vand.u32 %v3653, 2147483648
  %v3771 = vor.u32 1.1754944e-38, %v3770
  %v3772 = vsel %vm3769, %v3771, %v3767
  %v3773 = vmul.f32 %v3629, %v3772
  %v3774 = vld [vmem:[%s1] sm:$0xff]
  %v3775 = vld [vmem:[%s1 + $0x8] sm:$0xff]
  %v3776 = vld [vmem:[%s1 + $0x10] sm:$0xff]
  %v3777 = vld [vmem:[%s1 + $0x18] sm:$0xff]
  %v3778 = vld [vmem:[%s1 + $0x20] sm:$0xff]
  %v3779 = vld [vmem:[%s1 + $0x28] sm:$0xff]
  %v3780 = vld [vmem:[%s1 + $0x30] sm:$0xff]
  %v3781 = vld [vmem:[%s1 + $0x38] sm:$0xff]
  %v3783 = vsel %vm764, %v3668, 0
  %3785 = vmatpush.msra.mxu0 0.0
  %3786 = vmatpush.msra.mxu0 0.0
  %3787 = vmatpush.msra.mxu0 0.0
  %3788 = vmatpush.msra.mxu0 0.0
  %3789 = vmatpush.msra.mxu0 0.0
  %3790 = vmatpush.msra.mxu0 0.0
  %3791 = vmatpush.msra.mxu0 0.0
  %3792 = vmatpush.msra.mxu0 0.0
  %3793 = vmatpush.msra.mxu0 0.0
  %3794 = vmatpush.msra.mxu0 0.0
  %3795 = vmatpush.msra.mxu0 0.0
  %3796 = vmatpush.msra.mxu0 0.0
  %3797 = vmatpush.msra.mxu0 0.0
  %3798 = vmatpush.msra.mxu0 0.0
  %3799 = vmatpush.msra.mxu0 0.0
  %3800 = vmatpush.msra.mxu0 %v3774
  %3801 = vmatmul.f32.gmra.mxu0 %v3783
  %v3802 = vpop.f32.mrf.mxu0
  %v3803 = vadd.f32 0.0, %v3802
  %3804 = vdwg.mxu0
  %v3806 = vsel %vm764, %v3683, 0
  %3808 = vmatpush.msra.mxu0 0.0
  %3809 = vmatpush.msra.mxu0 0.0
  %3810 = vmatpush.msra.mxu0 0.0
  %3811 = vmatpush.msra.mxu0 0.0
  %3812 = vmatpush.msra.mxu0 0.0
  %3813 = vmatpush.msra.mxu0 0.0
  %3814 = vmatpush.msra.mxu0 0.0
  %3815 = vmatpush.msra.mxu0 0.0
  %3816 = vmatpush.msra.mxu0 0.0
  %3817 = vmatpush.msra.mxu0 0.0
  %3818 = vmatpush.msra.mxu0 0.0
  %3819 = vmatpush.msra.mxu0 0.0
  %3820 = vmatpush.msra.mxu0 0.0
  %3821 = vmatpush.msra.mxu0 0.0
  %3822 = vmatpush.msra.mxu0 0.0
  %3823 = vmatpush.msra.mxu0 %v3775
  %3824 = vmatmul.f32.gmra.mxu0 %v3806
  %v3825 = vpop.f32.mrf.mxu0
  %v3826 = vadd.f32 0.0, %v3825
  %3827 = vdwg.mxu0
  %v3829 = vsel %vm764, %v3698, 0
  %3831 = vmatpush.msra.mxu0 0.0
  %3832 = vmatpush.msra.mxu0 0.0
  %3833 = vmatpush.msra.mxu0 0.0
  %3834 = vmatpush.msra.mxu0 0.0
  %3835 = vmatpush.msra.mxu0 0.0
  %3836 = vmatpush.msra.mxu0 0.0
  %3837 = vmatpush.msra.mxu0 0.0
  %3838 = vmatpush.msra.mxu0 0.0
  %3839 = vmatpush.msra.mxu0 0.0
  %3840 = vmatpush.msra.mxu0 0.0
  %3841 = vmatpush.msra.mxu0 0.0
  %3842 = vmatpush.msra.mxu0 0.0
  %3843 = vmatpush.msra.mxu0 0.0
  %3844 = vmatpush.msra.mxu0 0.0
  %3845 = vmatpush.msra.mxu0 0.0
  %3846 = vmatpush.msra.mxu0 %v3776
  %3847 = vmatmul.f32.gmra.mxu0 %v3829
  %v3848 = vpop.f32.mrf.mxu0
  %v3849 = vadd.f32 0.0, %v3848
  %3850 = vdwg.mxu0
  %v3852 = vsel %vm764, %v3713, 0
  %3854 = vmatpush.msra.mxu0 0.0
  %3855 = vmatpush.msra.mxu0 0.0
  %3856 = vmatpush.msra.mxu0 0.0
  %3857 = vmatpush.msra.mxu0 0.0
  %3858 = vmatpush.msra.mxu0 0.0
  %3859 = vmatpush.msra.mxu0 0.0
  %3860 = vmatpush.msra.mxu0 0.0
  %3861 = vmatpush.msra.mxu0 0.0
  %3862 = vmatpush.msra.mxu0 0.0
  %3863 = vmatpush.msra.mxu0 0.0
  %3864 = vmatpush.msra.mxu0 0.0
  %3865 = vmatpush.msra.mxu0 0.0
  %3866 = vmatpush.msra.mxu0 0.0
  %3867 = vmatpush.msra.mxu0 0.0
  %3868 = vmatpush.msra.mxu0 0.0
  %3869 = vmatpush.msra.mxu0 %v3777
  %3870 = vmatmul.f32.gmra.mxu0 %v3852
  %v3871 = vpop.f32.mrf.mxu0
  %v3872 = vadd.f32 0.0, %v3871
  %3873 = vdwg.mxu0
  %v3875 = vsel %vm764, %v3728, 0
  %3877 = vmatpush.msra.mxu0 0.0
  %3878 = vmatpush.msra.mxu0 0.0
  %3879 = vmatpush.msra.mxu0 0.0
  %3880 = vmatpush.msra.mxu0 0.0
  %3881 = vmatpush.msra.mxu0 0.0
  %3882 = vmatpush.msra.mxu0 0.0
  %3883 = vmatpush.msra.mxu0 0.0
  %3884 = vmatpush.msra.mxu0 0.0
  %3885 = vmatpush.msra.mxu0 0.0
  %3886 = vmatpush.msra.mxu0 0.0
  %3887 = vmatpush.msra.mxu0 0.0
  %3888 = vmatpush.msra.mxu0 0.0
  %3889 = vmatpush.msra.mxu0 0.0
  %3890 = vmatpush.msra.mxu0 0.0
  %3891 = vmatpush.msra.mxu0 0.0
  %3892 = vmatpush.msra.mxu0 %v3778
  %3893 = vmatmul.f32.gmra.mxu0 %v3875
  %v3894 = vpop.f32.mrf.mxu0
  %v3895 = vadd.f32 0.0, %v3894
  %3896 = vdwg.mxu0
  %v3898 = vsel %vm764, %v3743, 0
  %3900 = vmatpush.msra.mxu0 0.0
  %3901 = vmatpush.msra.mxu0 0.0
  %3902 = vmatpush.msra.mxu0 0.0
  %3903 = vmatpush.msra.mxu0 0.0
  %3904 = vmatpush.msra.mxu0 0.0
  %3905 = vmatpush.msra.mxu0 0.0
  %3906 = vmatpush.msra.mxu0 0.0
  %3907 = vmatpush.msra.mxu0 0.0
  %3908 = vmatpush.msra.mxu0 0.0
  %3909 = vmatpush.msra.mxu0 0.0
  %3910 = vmatpush.msra.mxu0 0.0
  %3911 = vmatpush.msra.mxu0 0.0
  %3912 = vmatpush.msra.mxu0 0.0
  %3913 = vmatpush.msra.mxu0 0.0
  %3914 = vmatpush.msra.mxu0 0.0
  %3915 = vmatpush.msra.mxu0 %v3779
  %3916 = vmatmul.f32.gmra.mxu0 %v3898
  %v3917 = vpop.f32.mrf.mxu0
  %v3918 = vadd.f32 0.0, %v3917
  %3919 = vdwg.mxu0
  %v3921 = vsel %vm764, %v3758, 0
  %3923 = vmatpush.msra.mxu0 0.0
  %3924 = vmatpush.msra.mxu0 0.0
  %3925 = vmatpush.msra.mxu0 0.0
  %3926 = vmatpush.msra.mxu0 0.0
  %3927 = vmatpush.msra.mxu0 0.0
  %3928 = vmatpush.msra.mxu0 0.0
  %3929 = vmatpush.msra.mxu0 0.0
  %3930 = vmatpush.msra.mxu0 0.0
  %3931 = vmatpush.msra.mxu0 0.0
  %3932 = vmatpush.msra.mxu0 0.0
  %3933 = vmatpush.msra.mxu0 0.0
  %3934 = vmatpush.msra.mxu0 0.0
  %3935 = vmatpush.msra.mxu0 0.0
  %3936 = vmatpush.msra.mxu0 0.0
  %3937 = vmatpush.msra.mxu0 0.0
  %3938 = vmatpush.msra.mxu0 %v3780
  %3939 = vmatmul.f32.gmra.mxu0 %v3921
  %v3940 = vpop.f32.mrf.mxu0
  %v3941 = vadd.f32 0.0, %v3940
  %3942 = vdwg.mxu0
  %v3944 = vsel %vm764, %v3773, 0
  %3946 = vmatpush.msra.mxu0 0.0
  %3947 = vmatpush.msra.mxu0 0.0
  %3948 = vmatpush.msra.mxu0 0.0
  %3949 = vmatpush.msra.mxu0 0.0
  %3950 = vmatpush.msra.mxu0 0.0
  %3951 = vmatpush.msra.mxu0 0.0
  %3952 = vmatpush.msra.mxu0 0.0
  %3953 = vmatpush.msra.mxu0 0.0
  %3954 = vmatpush.msra.mxu0 0.0
  %3955 = vmatpush.msra.mxu0 0.0
  %3956 = vmatpush.msra.mxu0 0.0
  %3957 = vmatpush.msra.mxu0 0.0
  %3958 = vmatpush.msra.mxu0 0.0
  %3959 = vmatpush.msra.mxu0 0.0
  %3960 = vmatpush.msra.mxu0 0.0
  %3961 = vmatpush.msra.mxu0 %v3781
  %3962 = vmatmul.f32.gmra.mxu0 %v3944
  %v3963 = vpop.f32.mrf.mxu0
  %v3964 = vadd.f32 0.0, %v3963
  %3965 = vdwg.mxu0
  %s3966 = scalar_lea.vmem [#allocation2], 96
  %v3967 = vld [vmem:[%s3966] sm:$0xff]
  %v3968 = vld [vmem:[%s3966 + $0x8] sm:$0xff]
  %v3969 = vld [vmem:[%s3966 + $0x10] sm:$0xff]
  %v3970 = vld [vmem:[%s3966 + $0x18] sm:$0xff]
  %v3971 = vld [vmem:[%s7] sm:$0xff]
  %v3972 = vld [vmem:[%s7 + $0x8] sm:$0xff]
  %v3973 = vld [vmem:[%s7 + $0x10] sm:$0xff]
  %v3974 = vld [vmem:[%s7 + $0x18] sm:$0xff]
  %v3975 = vld [vmem:[%s7 + $0x20] sm:$0xff]
  %v3976 = vld [vmem:[%s7 + $0x28] sm:$0xff]
  %v3977 = vld [vmem:[%s7 + $0x30] sm:$0xff]
  %v3978 = vld [vmem:[%s7 + $0x38] sm:$0xff]
  %v3979 = vld [vmem:[%s7 + $0x40] sm:$0xff]
  %v3980 = vld [vmem:[%s7 + $0x48] sm:$0xff]
  %v3981 = vld [vmem:[%s7 + $0x50] sm:$0xff]
  %v3982 = vld [vmem:[%s7 + $0x58] sm:$0xff]
  %v3983 = vld [vmem:[%s7 + $0x60] sm:$0xff]
  %v3984 = vld [vmem:[%s7 + $0x68] sm:$0xff]
  %v3985 = vld [vmem:[%s7 + $0x70] sm:$0xff]
  %v3986 = vld [vmem:[%s7 + $0x78] sm:$0xff]
  %v3987 = vld [vmem:[%s7 + $0x80] sm:$0xff]
  %v3988 = vld [vmem:[%s7 + $0x88] sm:$0xff]
  %v3989 = vld [vmem:[%s7 + $0x90] sm:$0xff]
  %v3990 = vld [vmem:[%s7 + $0x98] sm:$0xff]
  %v3991 = vld [vmem:[%s7 + $0xa0] sm:$0xff]
  %v3992 = vld [vmem:[%s7 + $0xa8] sm:$0xff]
  %v3993 = vld [vmem:[%s7 + $0xb0] sm:$0xff]
  %v3994 = vld [vmem:[%s7 + $0xb8] sm:$0xff]
  %v3995 = vld [vmem:[%s7 + $0xc0] sm:$0xff]
  %v3996 = vld [vmem:[%s7 + $0xc8] sm:$0xff]
  %v3997 = vld [vmem:[%s7 + $0xd0] sm:$0xff]
  %v3998 = vld [vmem:[%s7 + $0xd8] sm:$0xff]
  %v3999 = vld [vmem:[%s7 + $0xe0] sm:$0xff]
  %v4000 = vld [vmem:[%s7 + $0xe8] sm:$0xff]
  %v4001 = vld [vmem:[%s7 + $0xf0] sm:$0xff]
  %v4002 = vld [vmem:[%s7 + $0xf8] sm:$0xff]
  %v4003 = vld [vmem:[%s7 + $0x100] sm:$0xff]
  %v4004 = vld [vmem:[%s7 + $0x108] sm:$0xff]
  %v4005 = vld [vmem:[%s7 + $0x110] sm:$0xff]
  %v4006 = vld [vmem:[%s7 + $0x118] sm:$0xff]
  %v4007 = vld [vmem:[%s7 + $0x120] sm:$0xff]
  %v4008 = vld [vmem:[%s7 + $0x128] sm:$0xff]
  %v4009 = vld [vmem:[%s7 + $0x130] sm:$0xff]
  %v4010 = vld [vmem:[%s7 + $0x138] sm:$0xff]
  %v4011 = vld [vmem:[%s7 + $0x140] sm:$0xff]
  %v4012 = vld [vmem:[%s7 + $0x148] sm:$0xff]
  %v4013 = vld [vmem:[%s7 + $0x150] sm:$0xff]
  %v4014 = vld [vmem:[%s7 + $0x158] sm:$0xff]
  %v4015 = vld [vmem:[%s7 + $0x160] sm:$0xff]
  %v4016 = vld [vmem:[%s7 + $0x168] sm:$0xff]
  %v4017 = vld [vmem:[%s7 + $0x170] sm:$0xff]
  %v4018 = vld [vmem:[%s7 + $0x178] sm:$0xff]
  %v4019 = vld [vmem:[%s7 + $0x180] sm:$0xff]
  %v4020 = vld [vmem:[%s7 + $0x188] sm:$0xff]
  %v4021 = vld [vmem:[%s7 + $0x190] sm:$0xff]
  %v4022 = vld [vmem:[%s7 + $0x198] sm:$0xff]
  %v4023 = vld [vmem:[%s7 + $0x1a0] sm:$0xff]
  %v4024 = vld [vmem:[%s7 + $0x1a8] sm:$0xff]
  %v4025 = vld [vmem:[%s7 + $0x1b0] sm:$0xff]
  %v4026 = vld [vmem:[%s7 + $0x1b8] sm:$0xff]
  %v4027 = vld [vmem:[%s7 + $0x1c0] sm:$0xff]
  %v4028 = vld [vmem:[%s7 + $0x1c8] sm:$0xff]
  %v4029 = vld [vmem:[%s7 + $0x1d0] sm:$0xff]
  %v4030 = vld [vmem:[%s7 + $0x1d8] sm:$0xff]
  %v4031 = vld [vmem:[%s7 + $0x1e0] sm:$0xff]
  %v4032 = vld [vmem:[%s7 + $0x1e8] sm:$0xff]
  %v4033 = vld [vmem:[%s7 + $0x1f0] sm:$0xff]
  %v4034 = vld [vmem:[%s7 + $0x1f8] sm:$0xff]
  %v4043 = vrot.slane %v3826, 7
  %v4044 = vsel %vm1026, %v4043, %v3803
  %v4045 = vrot.slane %v3849, 6
  %v4046 = vsel %vm1029, %v4045, %v4044
  %v4047 = vrot.slane %v3872, 5
  %v4048 = vsel %vm1032, %v4047, %v4046
  %v4049 = vrot.slane %v3895, 4
  %v4050 = vsel %vm1035, %v4049, %v4048
  %v4051 = vrot.slane %v3918, 3
  %v4052 = vsel %vm1038, %v4051, %v4050
  %v4053 = vrot.slane %v3941, 2
  %v4054 = vsel %vm1041, %v4053, %v4052
  %v4055 = vrot.slane %v3964, 1
  %v4056 = vsel %vm1044, %v4055, %v4054
  %4058 = vmatpush.msra.mxu0 %v4031
  %4059 = vmatpush.msra.mxu0 %v4027
  %4060 = vmatpush.msra.mxu0 %v4023
  %4061 = vmatpush.msra.mxu0 %v4019
  %4062 = vmatpush.msra.mxu0 %v4015
  %4063 = vmatpush.msra.mxu0 %v4011
  %4064 = vmatpush.msra.mxu0 %v4007
  %4065 = vmatpush.msra.mxu0 %v4003
  %4066 = vmatpush.msra.mxu0 %v3999
  %4067 = vmatpush.msra.mxu0 %v3995
  %4068 = vmatpush.msra.mxu0 %v3991
  %4069 = vmatpush.msra.mxu0 %v3987
  %4070 = vmatpush.msra.mxu0 %v3983
  %4071 = vmatpush.msra.mxu0 %v3979
  %4072 = vmatpush.msra.mxu0 %v3975
  %4073 = vmatpush.msra.mxu0 %v3971
  %4074 = vmatmul.f32.gmra.mxu0 %v4056
  %v4075 = vpop.f32.mrf.mxu0
  %v4076 = vadd.f32 0.0, %v4075
  %4077 = vdwg.mxu0
  %4078 = vmatpush.msra.mxu0 %v4032
  %4079 = vmatpush.msra.mxu0 %v4028
  %4080 = vmatpush.msra.mxu0 %v4024
  %4081 = vmatpush.msra.mxu0 %v4020
  %4082 = vmatpush.msra.mxu0 %v4016
  %4083 = vmatpush.msra.mxu0 %v4012
  %4084 = vmatpush.msra.mxu0 %v4008
  %4085 = vmatpush.msra.mxu0 %v4004
  %4086 = vmatpush.msra.mxu0 %v4000
  %4087 = vmatpush.msra.mxu0 %v3996
  %4088 = vmatpush.msra.mxu0 %v3992
  %4089 = vmatpush.msra.mxu0 %v3988
  %4090 = vmatpush.msra.mxu0 %v3984
  %4091 = vmatpush.msra.mxu0 %v3980
  %4092 = vmatpush.msra.mxu0 %v3976
  %4093 = vmatpush.msra.mxu0 %v3972
  %4094 = vmatmul.f32.gmra.mxu0 %v4056
  %v4095 = vpop.f32.mrf.mxu0
  %v4096 = vadd.f32 0.0, %v4095
  %4097 = vdwg.mxu0
  %4098 = vmatpush.msra.mxu0 %v4033
  %4099 = vmatpush.msra.mxu0 %v4029
  %4100 = vmatpush.msra.mxu0 %v4025
  %4101 = vmatpush.msra.mxu0 %v4021
  %4102 = vmatpush.msra.mxu0 %v4017
  %4103 = vmatpush.msra.mxu0 %v4013
  %4104 = vmatpush.msra.mxu0 %v4009
  %4105 = vmatpush.msra.mxu0 %v4005
  %4106 = vmatpush.msra.mxu0 %v4001
  %4107 = vmatpush.msra.mxu0 %v3997
  %4108 = vmatpush.msra.mxu0 %v3993
  %4109 = vmatpush.msra.mxu0 %v3989
  %4110 = vmatpush.msra.mxu0 %v3985
  %4111 = vmatpush.msra.mxu0 %v3981
  %4112 = vmatpush.msra.mxu0 %v3977
  %4113 = vmatpush.msra.mxu0 %v3973
  %4114 = vmatmul.f32.gmra.mxu0 %v4056
  %v4115 = vpop.f32.mrf.mxu0
  %v4116 = vadd.f32 0.0, %v4115
  %4117 = vdwg.mxu0
  %4118 = vmatpush.msra.mxu0 %v4034
  %4119 = vmatpush.msra.mxu0 %v4030
  %4120 = vmatpush.msra.mxu0 %v4026
  %4121 = vmatpush.msra.mxu0 %v4022
  %4122 = vmatpush.msra.mxu0 %v4018
  %4123 = vmatpush.msra.mxu0 %v4014
  %4124 = vmatpush.msra.mxu0 %v4010
  %4125 = vmatpush.msra.mxu0 %v4006
  %4126 = vmatpush.msra.mxu0 %v4002
  %4127 = vmatpush.msra.mxu0 %v3998
  %4128 = vmatpush.msra.mxu0 %v3994
  %4129 = vmatpush.msra.mxu0 %v3990
  %4130 = vmatpush.msra.mxu0 %v3986
  %4131 = vmatpush.msra.mxu0 %v3982
  %4132 = vmatpush.msra.mxu0 %v3978
  %4133 = vmatpush.msra.mxu0 %v3974
  %4134 = vmatmul.f32.gmra.mxu0 %v4056
  %v4135 = vpop.f32.mrf.mxu0
  %v4136 = vadd.f32 0.0, %v4135
  %4137 = vdwg.mxu0
  %v4138 = vadd.f32 %v3967, %v4076
  %v4139 = vadd.f32 %v3968, %v4096
  %v4140 = vadd.f32 %v3969, %v4116
  %v4141 = vadd.f32 %v3970, %v4136
  %v4142 = vld [vmem:[%s8] sm:$0xff]
  %v4143 = vld [vmem:[%s8 + $0x8] sm:$0xff]
  %v4144 = vld [vmem:[%s8 + $0x10] sm:$0xff]
  %v4145 = vld [vmem:[%s8 + $0x18] sm:$0xff]
  %v4146 = vld [vmem:[%s8 + $0x20] sm:$0xff]
  %v4147 = vld [vmem:[%s8 + $0x28] sm:$0xff]
  %v4148 = vld [vmem:[%s8 + $0x30] sm:$0xff]
  %v4149 = vld [vmem:[%s8 + $0x38] sm:$0xff]
  %v4150 = vld [vmem:[%s8 + $0x40] sm:$0xff]
  %v4151 = vld [vmem:[%s8 + $0x48] sm:$0xff]
  %v4152 = vld [vmem:[%s8 + $0x50] sm:$0xff]
  %v4153 = vld [vmem:[%s8 + $0x58] sm:$0xff]
  %v4154 = vld [vmem:[%s8 + $0x60] sm:$0xff]
  %v4155 = vld [vmem:[%s8 + $0x68] sm:$0xff]
  %v4156 = vld [vmem:[%s8 + $0x70] sm:$0xff]
  %v4157 = vld [vmem:[%s8 + $0x78] sm:$0xff]
  %v4158 = vld [vmem:[%s8 + $0x80] sm:$0xff]
  %v4159 = vld [vmem:[%s8 + $0x88] sm:$0xff]
  %v4160 = vld [vmem:[%s8 + $0x90] sm:$0xff]
  %v4161 = vld [vmem:[%s8 + $0x98] sm:$0xff]
  %v4162 = vld [vmem:[%s8 + $0xa0] sm:$0xff]
  %v4163 = vld [vmem:[%s8 + $0xa8] sm:$0xff]
  %v4164 = vld [vmem:[%s8 + $0xb0] sm:$0xff]
  %v4165 = vld [vmem:[%s8 + $0xb8] sm:$0xff]
  %v4166 = vld [vmem:[%s8 + $0xc0] sm:$0xff]
  %v4167 = vld [vmem:[%s8 + $0xc8] sm:$0xff]
  %v4168 = vld [vmem:[%s8 + $0xd0] sm:$0xff]
  %v4169 = vld [vmem:[%s8 + $0xd8] sm:$0xff]
  %v4170 = vld [vmem:[%s8 + $0xe0] sm:$0xff]
  %v4171 = vld [vmem:[%s8 + $0xe8] sm:$0xff]
  %v4172 = vld [vmem:[%s8 + $0xf0] sm:$0xff]
  %v4173 = vld [vmem:[%s8 + $0xf8] sm:$0xff]
  %v4174 = vld [vmem:[%s8 + $0x100] sm:$0xff]
  %v4175 = vld [vmem:[%s8 + $0x108] sm:$0xff]
  %v4176 = vld [vmem:[%s8 + $0x110] sm:$0xff]
  %v4177 = vld [vmem:[%s8 + $0x118] sm:$0xff]
  %v4178 = vld [vmem:[%s8 + $0x120] sm:$0xff]
  %v4179 = vld [vmem:[%s8 + $0x128] sm:$0xff]
  %v4180 = vld [vmem:[%s8 + $0x130] sm:$0xff]
  %v4181 = vld [vmem:[%s8 + $0x138] sm:$0xff]
  %v4182 = vld [vmem:[%s8 + $0x140] sm:$0xff]
  %v4183 = vld [vmem:[%s8 + $0x148] sm:$0xff]
  %v4184 = vld [vmem:[%s8 + $0x150] sm:$0xff]
  %v4185 = vld [vmem:[%s8 + $0x158] sm:$0xff]
  %v4186 = vld [vmem:[%s8 + $0x160] sm:$0xff]
  %v4187 = vld [vmem:[%s8 + $0x168] sm:$0xff]
  %v4188 = vld [vmem:[%s8 + $0x170] sm:$0xff]
  %v4189 = vld [vmem:[%s8 + $0x178] sm:$0xff]
  %v4190 = vld [vmem:[%s8 + $0x180] sm:$0xff]
  %v4191 = vld [vmem:[%s8 + $0x188] sm:$0xff]
  %v4192 = vld [vmem:[%s8 + $0x190] sm:$0xff]
  %v4193 = vld [vmem:[%s8 + $0x198] sm:$0xff]
  %v4194 = vld [vmem:[%s8 + $0x1a0] sm:$0xff]
  %v4195 = vld [vmem:[%s8 + $0x1a8] sm:$0xff]
  %v4196 = vld [vmem:[%s8 + $0x1b0] sm:$0xff]
  %v4197 = vld [vmem:[%s8 + $0x1b8] sm:$0xff]
  %v4198 = vld [vmem:[%s8 + $0x1c0] sm:$0xff]
  %v4199 = vld [vmem:[%s8 + $0x1c8] sm:$0xff]
  %v4200 = vld [vmem:[%s8 + $0x1d0] sm:$0xff]
  %v4201 = vld [vmem:[%s8 + $0x1d8] sm:$0xff]
  %v4202 = vld [vmem:[%s8 + $0x1e0] sm:$0xff]
  %v4203 = vld [vmem:[%s8 + $0x1e8] sm:$0xff]
  %v4204 = vld [vmem:[%s8 + $0x1f0] sm:$0xff]
  %v4205 = vld [vmem:[%s8 + $0x1f8] sm:$0xff]
  %4206 = vmatpush.msra.mxu0 %v4202
  %4207 = vmatpush.msra.mxu0 %v4198
  %4208 = vmatpush.msra.mxu0 %v4194
  %4209 = vmatpush.msra.mxu0 %v4190
  %4210 = vmatpush.msra.mxu0 %v4186
  %4211 = vmatpush.msra.mxu0 %v4182
  %4212 = vmatpush.msra.mxu0 %v4178
  %4213 = vmatpush.msra.mxu0 %v4174
  %4214 = vmatpush.msra.mxu0 %v4170
  %4215 = vmatpush.msra.mxu0 %v4166
  %4216 = vmatpush.msra.mxu0 %v4162
  %4217 = vmatpush.msra.mxu0 %v4158
  %4218 = vmatpush.msra.mxu0 %v4154
  %4219 = vmatpush.msra.mxu0 %v4150
  %4220 = vmatpush.msra.mxu0 %v4146
  %4221 = vmatpush.msra.mxu0 %v4142
  %4222 = vmatmul.f32.gmra.mxu0 %v3389
  %v4223 = vpop.f32.mrf.mxu0
  %v4224 = vadd.f32 0.0, %v4223
  %4225 = vdwg.mxu0
  %4226 = vmatpush.msra.mxu0 %v4203
  %4227 = vmatpush.msra.mxu0 %v4199
  %4228 = vmatpush.msra.mxu0 %v4195
  %4229 = vmatpush.msra.mxu0 %v4191
  %4230 = vmatpush.msra.mxu0 %v4187
  %4231 = vmatpush.msra.mxu0 %v4183
  %4232 = vmatpush.msra.mxu0 %v4179
  %4233 = vmatpush.msra.mxu0 %v4175
  %4234 = vmatpush.msra.mxu0 %v4171
  %4235 = vmatpush.msra.mxu0 %v4167
  %4236 = vmatpush.msra.mxu0 %v4163
  %4237 = vmatpush.msra.mxu0 %v4159
  %4238 = vmatpush.msra.mxu0 %v4155
  %4239 = vmatpush.msra.mxu0 %v4151
  %4240 = vmatpush.msra.mxu0 %v4147
  %4241 = vmatpush.msra.mxu0 %v4143
  %4242 = vmatmul.f32.gmra.mxu0 %v3389
  %v4243 = vpop.f32.mrf.mxu0
  %v4244 = vadd.f32 0.0, %v4243
  %4245 = vdwg.mxu0
  %4246 = vmatpush.msra.mxu0 %v4204
  %4247 = vmatpush.msra.mxu0 %v4200
  %4248 = vmatpush.msra.mxu0 %v4196
  %4249 = vmatpush.msra.mxu0 %v4192
  %4250 = vmatpush.msra.mxu0 %v4188
  %4251 = vmatpush.msra.mxu0 %v4184
  %4252 = vmatpush.msra.mxu0 %v4180
  %4253 = vmatpush.msra.mxu0 %v4176
  %4254 = vmatpush.msra.mxu0 %v4172
  %4255 = vmatpush.msra.mxu0 %v4168
  %4256 = vmatpush.msra.mxu0 %v4164
  %4257 = vmatpush.msra.mxu0 %v4160
  %4258 = vmatpush.msra.mxu0 %v4156
  %4259 = vmatpush.msra.mxu0 %v4152
  %4260 = vmatpush.msra.mxu0 %v4148
  %4261 = vmatpush.msra.mxu0 %v4144
  %4262 = vmatmul.f32.gmra.mxu0 %v3389
  %v4263 = vpop.f32.mrf.mxu0
  %v4264 = vadd.f32 0.0, %v4263
  %4265 = vdwg.mxu0
  %4266 = vmatpush.msra.mxu0 %v4205
  %4267 = vmatpush.msra.mxu0 %v4201
  %4268 = vmatpush.msra.mxu0 %v4197
  %4269 = vmatpush.msra.mxu0 %v4193
  %4270 = vmatpush.msra.mxu0 %v4189
  %4271 = vmatpush.msra.mxu0 %v4185
  %4272 = vmatpush.msra.mxu0 %v4181
  %4273 = vmatpush.msra.mxu0 %v4177
  %4274 = vmatpush.msra.mxu0 %v4173
  %4275 = vmatpush.msra.mxu0 %v4169
  %4276 = vmatpush.msra.mxu0 %v4165
  %4277 = vmatpush.msra.mxu0 %v4161
  %4278 = vmatpush.msra.mxu0 %v4157
  %4279 = vmatpush.msra.mxu0 %v4153
  %4280 = vmatpush.msra.mxu0 %v4149
  %4281 = vmatpush.msra.mxu0 %v4145
  %4282 = vmatmul.f32.gmra.mxu0 %v3389
  %v4283 = vpop.f32.mrf.mxu0
  %v4284 = vadd.f32 0.0, %v4283
  %4285 = vdwg.mxu0
  %v4286 = vadd.f32 %v4138, %v4224
  %v4287 = vadd.f32 %v4139, %v4244
  %v4288 = vadd.f32 %v4140, %v4264
  %v4289 = vadd.f32 %v4141, %v4284
  %v4290 = vxor.u32 %v4286, 2147483648
  %v4291 = vmul.f32 %v4290, 1.442695
  %v4292 = vpow.pop %v4291
  %v4293 = vadd.f32 %v4292, 1.0
  %v4294 = vrcp.pop %v4293
  %v4295 = vmul.f32 %v4293, %v4294
  %v4296 = vsub.f32 1.0, %v4295
  %v4297 = vmul.f32 %v4294, %v4296
  %v4298 = vadd.f32 %v4294, %v4297
  %vm4299 = vweird.f32 %v4293
  %vm4300 = vweird.f32 %v4294
  %vm4301 = vmor %vm4299, %vm4300
  %v4302 = vsel %vm4301, %v4294, %v4298
  %v4303 = vand.u32 2147483647, %v4293
  %vm4304 = vcmp.eq.f32.partialorder %v4303, 8.507059e+37
  %v4305 = vand.u32 %v4293, 2147483648
  %v4306 = vor.u32 1.1754944e-38, %v4305
  %v4307 = vsel %vm4304, %v4306, %v4302
  %v4308 = vmul.f32 1.0, %v4307
  %v4309 = vxor.u32 %v4287, 2147483648
  %v4310 = vmul.f32 %v4309, 1.442695
  %v4311 = vpow.pop %v4310
  %v4312 = vadd.f32 %v4311, 1.0
  %v4313 = vrcp.pop %v4312
  %v4314 = vmul.f32 %v4312, %v4313
  %v4315 = vsub.f32 1.0, %v4314
  %v4316 = vmul.f32 %v4313, %v4315
  %v4317 = vadd.f32 %v4313, %v4316
  %vm4318 = vweird.f32 %v4312
  %vm4319 = vweird.f32 %v4313
  %vm4320 = vmor %vm4318, %vm4319
  %v4321 = vsel %vm4320, %v4313, %v4317
  %v4322 = vand.u32 2147483647, %v4312
  %vm4323 = vcmp.eq.f32.partialorder %v4322, 8.507059e+37
  %v4324 = vand.u32 %v4312, 2147483648
  %v4325 = vor.u32 1.1754944e-38, %v4324
  %v4326 = vsel %vm4323, %v4325, %v4321
  %v4327 = vmul.f32 1.0, %v4326
  %v4328 = vtanh.pop %v4288
  %v4329 = vxor.u32 %v4289, 2147483648
  %v4330 = vmul.f32 %v4329, 1.442695
  %v4331 = vpow.pop %v4330
  %v4332 = vadd.f32 %v4331, 1.0
  %v4333 = vrcp.pop %v4332
  %v4334 = vmul.f32 %v4332, %v4333
  %v4335 = vsub.f32 1.0, %v4334
  %v4336 = vmul.f32 %v4333, %v4335
  %v4337 = vadd.f32 %v4333, %v4336
  %vm4338 = vweird.f32 %v4332
  %vm4339 = vweird.f32 %v4333
  %vm4340 = vmor %vm4338, %vm4339
  %v4341 = vsel %vm4340, %v4333, %v4337
  %v4342 = vand.u32 2147483647, %v4332
  %vm4343 = vcmp.eq.f32.partialorder %v4342, 8.507059e+37
  %v4344 = vand.u32 %v4332, 2147483648
  %v4345 = vor.u32 1.1754944e-38, %v4344
  %v4346 = vsel %vm4343, %v4345, %v4341
  %v4347 = vmul.f32 1.0, %v4346
  %v4348 = vmul.f32 %v4327, %v3390
  %v4349 = vmul.f32 %v4308, %v4328
  %v4350 = vadd.f32 %v4348, %v4349
  %v4351 = vtanh.pop %v4350
  %v4352 = vmul.f32 %v4347, %v4351
  %4353 = vst [vmem:[#allocation4] sm:$0xff] %v4352
  %4354 = vst [vmem:[#allocation5] sm:$0xff] %v4350
  %v4355 = vld [vmem:[%s10] sm:$0xff]
  %v4356 = vld [vmem:[%s10 + $0x8] sm:$0xff]
  %v4357 = vld [vmem:[%s10 + $0x10] sm:$0xff]
  %v4358 = vld [vmem:[%s10 + $0x18] sm:$0xff]
  %v4359 = vld [vmem:[%s10 + $0x20] sm:$0xff]
  %v4360 = vld [vmem:[%s10 + $0x28] sm:$0xff]
  %v4361 = vld [vmem:[%s10 + $0x30] sm:$0xff]
  %v4362 = vld [vmem:[%s10 + $0x38] sm:$0xff]
  %v4363 = vld [vmem:[%s10 + $0x40] sm:$0xff]
  %v4364 = vld [vmem:[%s10 + $0x48] sm:$0xff]
  %v4365 = vld [vmem:[%s10 + $0x50] sm:$0xff]
  %v4366 = vld [vmem:[%s10 + $0x58] sm:$0xff]
  %v4367 = vld [vmem:[%s10 + $0x60] sm:$0xff]
  %v4368 = vld [vmem:[%s10 + $0x68] sm:$0xff]
  %v4369 = vld [vmem:[%s10 + $0x70] sm:$0xff]
  %v4370 = vld [vmem:[%s10 + $0x78] sm:$0xff]
  %4371 = vmatpush.msra.mxu0 %v4370
  %4372 = vmatpush.msra.mxu0 %v4369
  %4373 = vmatpush.msra.mxu0 %v4368
  %4374 = vmatpush.msra.mxu0 %v4367
  %4375 = vmatpush.msra.mxu0 %v4366
  %4376 = vmatpush.msra.mxu0 %v4365
  %4377 = vmatpush.msra.mxu0 %v4364
  %4378 = vmatpush.msra.mxu0 %v4363
  %4379 = vmatpush.msra.mxu0 %v4362
  %4380 = vmatpush.msra.mxu0 %v4361
  %4381 = vmatpush.msra.mxu0 %v4360
  %4382 = vmatpush.msra.mxu0 %v4359
  %4383 = vmatpush.msra.mxu0 %v4358
  %4384 = vmatpush.msra.mxu0 %v4357
  %4385 = vmatpush.msra.mxu0 %v4356
  %4386 = vmatpush.msra.mxu0 %v4355
  %4387 = vmatmul.f32.gmra.mxu0 %v4352
  %v4388 = vpop.f32.mrf.mxu0
  %v4389 = vadd.f32 %v368, %v4388
  %4390 = vdwg.mxu0
  %s4391 = scalar_lea.vmem %s12, 24
  %4392 = vst [vmem:[%s4391] sm:$0xff] %v4389
  %v4393 = vld [vmem:[#allocation4] sm:$0xff]
  %v4394 = vld [vmem:[#allocation5] sm:$0xff]
  %v4396 = vrot.slane %v4393, 1
  %v4397 = vrot.slane %v4393, 2
  %v4398 = vrot.slane %v4393, 3
  %v4399 = vrot.slane %v4393, 4
  %v4400 = vrot.slane %v4393, 5
  %v4401 = vrot.slane %v4393, 6
  %v4402 = vrot.slane %v4393, 7
  %v4410 = vld [vmem:[#allocation3] sm:$0xff]
  %v4411 = vld [vmem:[#allocation3 + $0x8] sm:$0xff]
  %v4412 = vld [vmem:[#allocation3 + $0x10] sm:$0xff]
  %v4413 = vld [vmem:[#allocation3 + $0x18] sm:$0xff]
  %v4414 = vld [vmem:[#allocation3 + $0x20] sm:$0xff]
  %v4415 = vld [vmem:[#allocation3 + $0x28] sm:$0xff]
  %v4416 = vld [vmem:[#allocation3 + $0x30] sm:$0xff]
  %v4417 = vld [vmem:[#allocation3 + $0x38] sm:$0xff]
  %4418 = vmatpush.xpose.msra.mxu0 0.0
  %4419 = vmatpush.xpose.msra.mxu0 0.0
  %4420 = vmatpush.xpose.msra.mxu0 0.0
  %4421 = vmatpush.xpose.msra.mxu0 0.0
  %4422 = vmatpush.xpose.msra.mxu0 0.0
  %4423 = vmatpush.xpose.msra.mxu0 0.0
  %4424 = vmatpush.xpose.msra.mxu0 0.0
  %4425 = vmatpush.xpose.msra.mxu0 0.0
  %4426 = vmatpush.xpose.msra.mxu0 0.0
  %4427 = vmatpush.xpose.msra.mxu0 0.0
  %4428 = vmatpush.xpose.msra.mxu0 0.0
  %4429 = vmatpush.xpose.msra.mxu0 0.0
  %4430 = vmatpush.xpose.msra.mxu0 0.0
  %4431 = vmatpush.xpose.msra.mxu0 0.0
  %4432 = vmatpush.xpose.msra.mxu0 0.0
  %4433 = vmatpush.xpose.msra.mxu0 %v4410
  %4434 = vmatmul.f32.gmra.mxu0 %v4393
  %v4435 = vpop.f32.mrf.mxu0
  %v4436 = vadd.f32 0.0, %v4435
  %4437 = vdwg.mxu0
  %4438 = vmatpush.xpose.msra.mxu0 0.0
  %4439 = vmatpush.xpose.msra.mxu0 0.0
  %4440 = vmatpush.xpose.msra.mxu0 0.0
  %4441 = vmatpush.xpose.msra.mxu0 0.0
  %4442 = vmatpush.xpose.msra.mxu0 0.0
  %4443 = vmatpush.xpose.msra.mxu0 0.0
  %4444 = vmatpush.xpose.msra.mxu0 0.0
  %4445 = vmatpush.xpose.msra.mxu0 0.0
  %4446 = vmatpush.xpose.msra.mxu0 0.0
  %4447 = vmatpush.xpose.msra.mxu0 0.0
  %4448 = vmatpush.xpose.msra.mxu0 0.0
  %4449 = vmatpush.xpose.msra.mxu0 0.0
  %4450 = vmatpush.xpose.msra.mxu0 0.0
  %4451 = vmatpush.xpose.msra.mxu0 0.0
  %4452 = vmatpush.xpose.msra.mxu0 0.0
  %4453 = vmatpush.xpose.msra.mxu0 %v4411
  %4454 = vmatmul.f32.gmra.mxu0 %v4396
  %v4455 = vpop.f32.mrf.mxu0
  %v4456 = vadd.f32 0.0, %v4455
  %4457 = vdwg.mxu0
  %4458 = vmatpush.xpose.msra.mxu0 0.0
  %4459 = vmatpush.xpose.msra.mxu0 0.0
  %4460 = vmatpush.xpose.msra.mxu0 0.0
  %4461 = vmatpush.xpose.msra.mxu0 0.0
  %4462 = vmatpush.xpose.msra.mxu0 0.0
  %4463 = vmatpush.xpose.msra.mxu0 0.0
  %4464 = vmatpush.xpose.msra.mxu0 0.0
  %4465 = vmatpush.xpose.msra.mxu0 0.0
  %4466 = vmatpush.xpose.msra.mxu0 0.0
  %4467 = vmatpush.xpose.msra.mxu0 0.0
  %4468 = vmatpush.xpose.msra.mxu0 0.0
  %4469 = vmatpush.xpose.msra.mxu0 0.0
  %4470 = vmatpush.xpose.msra.mxu0 0.0
  %4471 = vmatpush.xpose.msra.mxu0 0.0
  %4472 = vmatpush.xpose.msra.mxu0 0.0
  %4473 = vmatpush.xpose.msra.mxu0 %v4412
  %4474 = vmatmul.f32.gmra.mxu0 %v4397
  %v4475 = vpop.f32.mrf.mxu0
  %v4476 = vadd.f32 0.0, %v4475
  %4477 = vdwg.mxu0
  %4478 = vmatpush.xpose.msra.mxu0 0.0
  %4479 = vmatpush.xpose.msra.mxu0 0.0
  %4480 = vmatpush.xpose.msra.mxu0 0.0
  %4481 = vmatpush.xpose.msra.mxu0 0.0
  %4482 = vmatpush.xpose.msra.mxu0 0.0
  %4483 = vmatpush.xpose.msra.mxu0 0.0
  %4484 = vmatpush.xpose.msra.mxu0 0.0
  %4485 = vmatpush.xpose.msra.mxu0 0.0
  %4486 = vmatpush.xpose.msra.mxu0 0.0
  %4487 = vmatpush.xpose.msra.mxu0 0.0
  %4488 = vmatpush.xpose.msra.mxu0 0.0
  %4489 = vmatpush.xpose.msra.mxu0 0.0
  %4490 = vmatpush.xpose.msra.mxu0 0.0
  %4491 = vmatpush.xpose.msra.mxu0 0.0
  %4492 = vmatpush.xpose.msra.mxu0 0.0
  %4493 = vmatpush.xpose.msra.mxu0 %v4413
  %4494 = vmatmul.f32.gmra.mxu0 %v4398
  %v4495 = vpop.f32.mrf.mxu0
  %v4496 = vadd.f32 0.0, %v4495
  %4497 = vdwg.mxu0
  %4498 = vmatpush.xpose.msra.mxu0 0.0
  %4499 = vmatpush.xpose.msra.mxu0 0.0
  %4500 = vmatpush.xpose.msra.mxu0 0.0
  %4501 = vmatpush.xpose.msra.mxu0 0.0
  %4502 = vmatpush.xpose.msra.mxu0 0.0
  %4503 = vmatpush.xpose.msra.mxu0 0.0
  %4504 = vmatpush.xpose.msra.mxu0 0.0
  %4505 = vmatpush.xpose.msra.mxu0 0.0
  %4506 = vmatpush.xpose.msra.mxu0 0.0
  %4507 = vmatpush.xpose.msra.mxu0 0.0
  %4508 = vmatpush.xpose.msra.mxu0 0.0
  %4509 = vmatpush.xpose.msra.mxu0 0.0
  %4510 = vmatpush.xpose.msra.mxu0 0.0
  %4511 = vmatpush.xpose.msra.mxu0 0.0
  %4512 = vmatpush.xpose.msra.mxu0 0.0
  %4513 = vmatpush.xpose.msra.mxu0 %v4414
  %4514 = vmatmul.f32.gmra.mxu0 %v4399
  %v4515 = vpop.f32.mrf.mxu0
  %v4516 = vadd.f32 0.0, %v4515
  %4517 = vdwg.mxu0
  %4518 = vmatpush.xpose.msra.mxu0 0.0
  %4519 = vmatpush.xpose.msra.mxu0 0.0
  %4520 = vmatpush.xpose.msra.mxu0 0.0
  %4521 = vmatpush.xpose.msra.mxu0 0.0
  %4522 = vmatpush.xpose.msra.mxu0 0.0
  %4523 = vmatpush.xpose.msra.mxu0 0.0
  %4524 = vmatpush.xpose.msra.mxu0 0.0
  %4525 = vmatpush.xpose.msra.mxu0 0.0
  %4526 = vmatpush.xpose.msra.mxu0 0.0
  %4527 = vmatpush.xpose.msra.mxu0 0.0
  %4528 = vmatpush.xpose.msra.mxu0 0.0
  %4529 = vmatpush.xpose.msra.mxu0 0.0
  %4530 = vmatpush.xpose.msra.mxu0 0.0
  %4531 = vmatpush.xpose.msra.mxu0 0.0
  %4532 = vmatpush.xpose.msra.mxu0 0.0
  %4533 = vmatpush.xpose.msra.mxu0 %v4415
  %4534 = vmatmul.f32.gmra.mxu0 %v4400
  %v4535 = vpop.f32.mrf.mxu0
  %v4536 = vadd.f32 0.0, %v4535
  %4537 = vdwg.mxu0
  %4538 = vmatpush.xpose.msra.mxu0 0.0
  %4539 = vmatpush.xpose.msra.mxu0 0.0
  %4540 = vmatpush.xpose.msra.mxu0 0.0
  %4541 = vmatpush.xpose.msra.mxu0 0.0
  %4542 = vmatpush.xpose.msra.mxu0 0.0
  %4543 = vmatpush.xpose.msra.mxu0 0.0
  %4544 = vmatpush.xpose.msra.mxu0 0.0
  %4545 = vmatpush.xpose.msra.mxu0 0.0
  %4546 = vmatpush.xpose.msra.mxu0 0.0
  %4547 = vmatpush.xpose.msra.mxu0 0.0
  %4548 = vmatpush.xpose.msra.mxu0 0.0
  %4549 = vmatpush.xpose.msra.mxu0 0.0
  %4550 = vmatpush.xpose.msra.mxu0 0.0
  %4551 = vmatpush.xpose.msra.mxu0 0.0
  %4552 = vmatpush.xpose.msra.mxu0 0.0
  %4553 = vmatpush.xpose.msra.mxu0 %v4416
  %4554 = vmatmul.f32.gmra.mxu0 %v4401
  %v4555 = vpop.f32.mrf.mxu0
  %v4556 = vadd.f32 0.0, %v4555
  %4557 = vdwg.mxu0
  %4558 = vmatpush.xpose.msra.mxu0 0.0
  %4559 = vmatpush.xpose.msra.mxu0 0.0
  %4560 = vmatpush.xpose.msra.mxu0 0.0
  %4561 = vmatpush.xpose.msra.mxu0 0.0
  %4562 = vmatpush.xpose.msra.mxu0 0.0
  %4563 = vmatpush.xpose.msra.mxu0 0.0
  %4564 = vmatpush.xpose.msra.mxu0 0.0
  %4565 = vmatpush.xpose.msra.mxu0 0.0
  %4566 = vmatpush.xpose.msra.mxu0 0.0
  %4567 = vmatpush.xpose.msra.mxu0 0.0
  %4568 = vmatpush.xpose.msra.mxu0 0.0
  %4569 = vmatpush.xpose.msra.mxu0 0.0
  %4570 = vmatpush.xpose.msra.mxu0 0.0
  %4571 = vmatpush.xpose.msra.mxu0 0.0
  %4572 = vmatpush.xpose.msra.mxu0 0.0
  %4573 = vmatpush.xpose.msra.mxu0 %v4417
  %4574 = vmatmul.f32.gmra.mxu0 %v4402
  %v4575 = vpop.f32.mrf.mxu0
  %v4576 = vadd.f32 0.0, %v4575
  %4577 = vdwg.mxu0
  %v4578 = vsel %vm350, %v4436, -1e+30
  %v4579 = vsel %vm359, %v4456, -1e+30
  %v4580 = vsel %vm360, %v4476, -1e+30
  %v4581 = vsel %vm361, %v4496, -1e+30
  %v4582 = vsel %vm362, %v4516, -1e+30
  %v4583 = vsel %vm363, %v4536, -1e+30
  %v4584 = vsel %vm364, %v4556, -1e+30
  %v4585 = vsel %vm365, %v4576, -1e+30
  %v4586 = vsel %vm563, %v4578, -inf
  %4587 = vmax.xlane.f32.xlu0 %v4586
  %v4588 = vpop.xlane.xlu0 %4587
  %v4589 = vsel %vm563, %v4579, -inf
  %4590 = vmax.xlane.f32.xlu0 %v4589
  %v4591 = vpop.xlane.xlu0 %4590
  %v4592 = vsel %vm563, %v4580, -inf
  %4593 = vmax.xlane.f32.xlu0 %v4592
  %v4594 = vpop.xlane.xlu0 %4593
  %v4595 = vsel %vm563, %v4581, -inf
  %4596 = vmax.xlane.f32.xlu0 %v4595
  %v4597 = vpop.xlane.xlu0 %4596
  %v4598 = vsel %vm563, %v4582, -inf
  %4599 = vmax.xlane.f32.xlu0 %v4598
  %v4600 = vpop.xlane.xlu0 %4599
  %v4601 = vsel %vm563, %v4583, -inf
  %4602 = vmax.xlane.f32.xlu0 %v4601
  %v4603 = vpop.xlane.xlu0 %4602
  %v4604 = vsel %vm563, %v4584, -inf
  %4605 = vmax.xlane.f32.xlu0 %v4604
  %v4606 = vpop.xlane.xlu0 %4605
  %v4607 = vsel %vm563, %v4585, -inf
  %4608 = vmax.xlane.f32.xlu0 %v4607
  %v4609 = vpop.xlane.xlu0 %4608
  %v4610 = vsub.f32 %v4578, %v4588
  %v4611 = vsub.f32 %v4579, %v4591
  %v4612 = vsub.f32 %v4580, %v4594
  %v4613 = vsub.f32 %v4581, %v4597
  %v4614 = vsub.f32 %v4582, %v4600
  %v4615 = vsub.f32 %v4583, %v4603
  %v4616 = vsub.f32 %v4584, %v4606
  %v4617 = vsub.f32 %v4585, %v4609
  %v4618 = vmul.f32 %v4610, 1.442695
  %v4619 = vpow.pop %v4618
  %v4620 = vmul.f32 %v4611, 1.442695
  %v4621 = vpow.pop %v4620
  %v4622 = vmul.f32 %v4612, 1.442695
  %v4623 = vpow.pop %v4622
  %v4624 = vmul.f32 %v4613, 1.442695
  %v4625 = vpow.pop %v4624
  %v4626 = vmul.f32 %v4614, 1.442695
  %v4627 = vpow.pop %v4626
  %v4628 = vmul.f32 %v4615, 1.442695
  %v4629 = vpow.pop %v4628
  %v4630 = vmul.f32 %v4616, 1.442695
  %v4631 = vpow.pop %v4630
  %v4632 = vmul.f32 %v4617, 1.442695
  %v4633 = vpow.pop %v4632
  %v4634 = vsel %vm563, %v4619, 0.0
  %4635 = vadd.xlane.f32.xlu0 %v4634
  %v4636 = vpop.xlane.xlu0 %4635
  %v4637 = vsel %vm563, %v4621, 0.0
  %4638 = vadd.xlane.f32.xlu0 %v4637
  %v4639 = vpop.xlane.xlu0 %4638
  %v4640 = vsel %vm563, %v4623, 0.0
  %4641 = vadd.xlane.f32.xlu0 %v4640
  %v4642 = vpop.xlane.xlu0 %4641
  %v4643 = vsel %vm563, %v4625, 0.0
  %4644 = vadd.xlane.f32.xlu0 %v4643
  %v4645 = vpop.xlane.xlu0 %4644
  %v4646 = vsel %vm563, %v4627, 0.0
  %4647 = vadd.xlane.f32.xlu0 %v4646
  %v4648 = vpop.xlane.xlu0 %4647
  %v4649 = vsel %vm563, %v4629, 0.0
  %4650 = vadd.xlane.f32.xlu0 %v4649
  %v4651 = vpop.xlane.xlu0 %4650
  %v4652 = vsel %vm563, %v4631, 0.0
  %4653 = vadd.xlane.f32.xlu0 %v4652
  %v4654 = vpop.xlane.xlu0 %4653
  %v4655 = vsel %vm563, %v4633, 0.0
  %4656 = vadd.xlane.f32.xlu0 %v4655
  %v4657 = vpop.xlane.xlu0 %4656
  %v4658 = vrcp.pop %v4636
  %v4659 = vmul.f32 %v4636, %v4658
  %v4660 = vsub.f32 1.0, %v4659
  %v4661 = vmul.f32 %v4658, %v4660
  %v4662 = vadd.f32 %v4658, %v4661
  %vm4663 = vweird.f32 %v4636
  %vm4664 = vweird.f32 %v4658
  %vm4665 = vmor %vm4663, %vm4664
  %v4666 = vsel %vm4665, %v4658, %v4662
  %v4667 = vand.u32 2147483647, %v4636
  %vm4668 = vcmp.eq.f32.partialorder %v4667, 8.507059e+37
  %v4669 = vand.u32 %v4636, 2147483648
  %v4670 = vor.u32 1.1754944e-38, %v4669
  %v4671 = vsel %vm4668, %v4670, %v4666
  %v4672 = vmul.f32 %v4619, %v4671
  %v4673 = vrcp.pop %v4639
  %v4674 = vmul.f32 %v4639, %v4673
  %v4675 = vsub.f32 1.0, %v4674
  %v4676 = vmul.f32 %v4673, %v4675
  %v4677 = vadd.f32 %v4673, %v4676
  %vm4678 = vweird.f32 %v4639
  %vm4679 = vweird.f32 %v4673
  %vm4680 = vmor %vm4678, %vm4679
  %v4681 = vsel %vm4680, %v4673, %v4677
  %v4682 = vand.u32 2147483647, %v4639
  %vm4683 = vcmp.eq.f32.partialorder %v4682, 8.507059e+37
  %v4684 = vand.u32 %v4639, 2147483648
  %v4685 = vor.u32 1.1754944e-38, %v4684
  %v4686 = vsel %vm4683, %v4685, %v4681
  %v4687 = vmul.f32 %v4621, %v4686
  %v4688 = vrcp.pop %v4642
  %v4689 = vmul.f32 %v4642, %v4688
  %v4690 = vsub.f32 1.0, %v4689
  %v4691 = vmul.f32 %v4688, %v4690
  %v4692 = vadd.f32 %v4688, %v4691
  %vm4693 = vweird.f32 %v4642
  %vm4694 = vweird.f32 %v4688
  %vm4695 = vmor %vm4693, %vm4694
  %v4696 = vsel %vm4695, %v4688, %v4692
  %v4697 = vand.u32 2147483647, %v4642
  %vm4698 = vcmp.eq.f32.partialorder %v4697, 8.507059e+37
  %v4699 = vand.u32 %v4642, 2147483648
  %v4700 = vor.u32 1.1754944e-38, %v4699
  %v4701 = vsel %vm4698, %v4700, %v4696
  %v4702 = vmul.f32 %v4623, %v4701
  %v4703 = vrcp.pop %v4645
  %v4704 = vmul.f32 %v4645, %v4703
  %v4705 = vsub.f32 1.0, %v4704
  %v4706 = vmul.f32 %v4703, %v4705
  %v4707 = vadd.f32 %v4703, %v4706
  %vm4708 = vweird.f32 %v4645
  %vm4709 = vweird.f32 %v4703
  %vm4710 = vmor %vm4708, %vm4709
  %v4711 = vsel %vm4710, %v4703, %v4707
  %v4712 = vand.u32 2147483647, %v4645
  %vm4713 = vcmp.eq.f32.partialorder %v4712, 8.507059e+37
  %v4714 = vand.u32 %v4645, 2147483648
  %v4715 = vor.u32 1.1754944e-38, %v4714
  %v4716 = vsel %vm4713, %v4715, %v4711
  %v4717 = vmul.f32 %v4625, %v4716
  %v4718 = vrcp.pop %v4648
  %v4719 = vmul.f32 %v4648, %v4718
  %v4720 = vsub.f32 1.0, %v4719
  %v4721 = vmul.f32 %v4718, %v4720
  %v4722 = vadd.f32 %v4718, %v4721
  %vm4723 = vweird.f32 %v4648
  %vm4724 = vweird.f32 %v4718
  %vm4725 = vmor %vm4723, %vm4724
  %v4726 = vsel %vm4725, %v4718, %v4722
  %v4727 = vand.u32 2147483647, %v4648
  %vm4728 = vcmp.eq.f32.partialorder %v4727, 8.507059e+37
  %v4729 = vand.u32 %v4648, 2147483648
  %v4730 = vor.u32 1.1754944e-38, %v4729
  %v4731 = vsel %vm4728, %v4730, %v4726
  %v4732 = vmul.f32 %v4627, %v4731
  %v4733 = vrcp.pop %v4651
  %v4734 = vmul.f32 %v4651, %v4733
  %v4735 = vsub.f32 1.0, %v4734
  %v4736 = vmul.f32 %v4733, %v4735
  %v4737 = vadd.f32 %v4733, %v4736
  %vm4738 = vweird.f32 %v4651
  %vm4739 = vweird.f32 %v4733
  %vm4740 = vmor %vm4738, %vm4739
  %v4741 = vsel %vm4740, %v4733, %v4737
  %v4742 = vand.u32 2147483647, %v4651
  %vm4743 = vcmp.eq.f32.partialorder %v4742, 8.507059e+37
  %v4744 = vand.u32 %v4651, 2147483648
  %v4745 = vor.u32 1.1754944e-38, %v4744
  %v4746 = vsel %vm4743, %v4745, %v4741
  %v4747 = vmul.f32 %v4629, %v4746
  %v4748 = vrcp.pop %v4654
  %v4749 = vmul.f32 %v4654, %v4748
  %v4750 = vsub.f32 1.0, %v4749
  %v4751 = vmul.f32 %v4748, %v4750
  %v4752 = vadd.f32 %v4748, %v4751
  %vm4753 = vweird.f32 %v4654
  %vm4754 = vweird.f32 %v4748
  %vm4755 = vmor %vm4753, %vm4754
  %v4756 = vsel %vm4755, %v4748, %v4752
  %v4757 = vand.u32 2147483647, %v4654
  %vm4758 = vcmp.eq.f32.partialorder %v4757, 8.507059e+37
  %v4759 = vand.u32 %v4654, 2147483648
  %v4760 = vor.u32 1.1754944e-38, %v4759
  %v4761 = vsel %vm4758, %v4760, %v4756
  %v4762 = vmul.f32 %v4631, %v4761
  %v4763 = vrcp.pop %v4657
  %v4764 = vmul.f32 %v4657, %v4763
  %v4765 = vsub.f32 1.0, %v4764
  %v4766 = vmul.f32 %v4763, %v4765
  %v4767 = vadd.f32 %v4763, %v4766
  %vm4768 = vweird.f32 %v4657
  %vm4769 = vweird.f32 %v4763
  %vm4770 = vmor %vm4768, %vm4769
  %v4771 = vsel %vm4770, %v4763, %v4767
  %v4772 = vand.u32 2147483647, %v4657
  %vm4773 = vcmp.eq.f32.partialorder %v4772, 8.507059e+37
  %v4774 = vand.u32 %v4657, 2147483648
  %v4775 = vor.u32 1.1754944e-38, %v4774
  %v4776 = vsel %vm4773, %v4775, %v4771
  %v4777 = vmul.f32 %v4633, %v4776
  %v4778 = vld [vmem:[%s1] sm:$0xff]
  %v4779 = vld [vmem:[%s1 + $0x8] sm:$0xff]
  %v4780 = vld [vmem:[%s1 + $0x10] sm:$0xff]
  %v4781 = vld [vmem:[%s1 + $0x18] sm:$0xff]
  %v4782 = vld [vmem:[%s1 + $0x20] sm:$0xff]
  %v4783 = vld [vmem:[%s1 + $0x28] sm:$0xff]
  %v4784 = vld [vmem:[%s1 + $0x30] sm:$0xff]
  %v4785 = vld [vmem:[%s1 + $0x38] sm:$0xff]
  %v4787 = vsel %vm764, %v4672, 0
  %4789 = vmatpush.msra.mxu0 0.0
  %4790 = vmatpush.msra.mxu0 0.0
  %4791 = vmatpush.msra.mxu0 0.0
  %4792 = vmatpush.msra.mxu0 0.0
  %4793 = vmatpush.msra.mxu0 0.0
  %4794 = vmatpush.msra.mxu0 0.0
  %4795 = vmatpush.msra.mxu0 0.0
  %4796 = vmatpush.msra.mxu0 0.0
  %4797 = vmatpush.msra.mxu0 0.0
  %4798 = vmatpush.msra.mxu0 0.0
  %4799 = vmatpush.msra.mxu0 0.0
  %4800 = vmatpush.msra.mxu0 0.0
  %4801 = vmatpush.msra.mxu0 0.0
  %4802 = vmatpush.msra.mxu0 0.0
  %4803 = vmatpush.msra.mxu0 0.0
  %4804 = vmatpush.msra.mxu0 %v4778
  %4805 = vmatmul.f32.gmra.mxu0 %v4787
  %v4806 = vpop.f32.mrf.mxu0
  %v4807 = vadd.f32 0.0, %v4806
  %4808 = vdwg.mxu0
  %v4810 = vsel %vm764, %v4687, 0
  %4812 = vmatpush.msra.mxu0 0.0
  %4813 = vmatpush.msra.mxu0 0.0
  %4814 = vmatpush.msra.mxu0 0.0
  %4815 = vmatpush.msra.mxu0 0.0
  %4816 = vmatpush.msra.mxu0 0.0
  %4817 = vmatpush.msra.mxu0 0.0
  %4818 = vmatpush.msra.mxu0 0.0
  %4819 = vmatpush.msra.mxu0 0.0
  %4820 = vmatpush.msra.mxu0 0.0
  %4821 = vmatpush.msra.mxu0 0.0
  %4822 = vmatpush.msra.mxu0 0.0
  %4823 = vmatpush.msra.mxu0 0.0
  %4824 = vmatpush.msra.mxu0 0.0
  %4825 = vmatpush.msra.mxu0 0.0
  %4826 = vmatpush.msra.mxu0 0.0
  %4827 = vmatpush.msra.mxu0 %v4779
  %4828 = vmatmul.f32.gmra.mxu0 %v4810
  %v4829 = vpop.f32.mrf.mxu0
  %v4830 = vadd.f32 0.0, %v4829
  %4831 = vdwg.mxu0
  %v4833 = vsel %vm764, %v4702, 0
  %4835 = vmatpush.msra.mxu0 0.0
  %4836 = vmatpush.msra.mxu0 0.0
  %4837 = vmatpush.msra.mxu0 0.0
  %4838 = vmatpush.msra.mxu0 0.0
  %4839 = vmatpush.msra.mxu0 0.0
  %4840 = vmatpush.msra.mxu0 0.0
  %4841 = vmatpush.msra.mxu0 0.0
  %4842 = vmatpush.msra.mxu0 0.0
  %4843 = vmatpush.msra.mxu0 0.0
  %4844 = vmatpush.msra.mxu0 0.0
  %4845 = vmatpush.msra.mxu0 0.0
  %4846 = vmatpush.msra.mxu0 0.0
  %4847 = vmatpush.msra.mxu0 0.0
  %4848 = vmatpush.msra.mxu0 0.0
  %4849 = vmatpush.msra.mxu0 0.0
  %4850 = vmatpush.msra.mxu0 %v4780
  %4851 = vmatmul.f32.gmra.mxu0 %v4833
  %v4852 = vpop.f32.mrf.mxu0
  %v4853 = vadd.f32 0.0, %v4852
  %4854 = vdwg.mxu0
  %v4856 = vsel %vm764, %v4717, 0
  %4858 = vmatpush.msra.mxu0 0.0
  %4859 = vmatpush.msra.mxu0 0.0
  %4860 = vmatpush.msra.mxu0 0.0
  %4861 = vmatpush.msra.mxu0 0.0
  %4862 = vmatpush.msra.mxu0 0.0
  %4863 = vmatpush.msra.mxu0 0.0
  %4864 = vmatpush.msra.mxu0 0.0
  %4865 = vmatpush.msra.mxu0 0.0
  %4866 = vmatpush.msra.mxu0 0.0
  %4867 = vmatpush.msra.mxu0 0.0
  %4868 = vmatpush.msra.mxu0 0.0
  %4869 = vmatpush.msra.mxu0 0.0
  %4870 = vmatpush.msra.mxu0 0.0
  %4871 = vmatpush.msra.mxu0 0.0
  %4872 = vmatpush.msra.mxu0 0.0
  %4873 = vmatpush.msra.mxu0 %v4781
  %4874 = vmatmul.f32.gmra.mxu0 %v4856
  %v4875 = vpop.f32.mrf.mxu0
  %v4876 = vadd.f32 0.0, %v4875
  %4877 = vdwg.mxu0
  %v4879 = vsel %vm764, %v4732, 0
  %4881 = vmatpush.msra.mxu0 0.0
  %4882 = vmatpush.msra.mxu0 0.0
  %4883 = vmatpush.msra.mxu0 0.0
  %4884 = vmatpush.msra.mxu0 0.0
  %4885 = vmatpush.msra.mxu0 0.0
  %4886 = vmatpush.msra.mxu0 0.0
  %4887 = vmatpush.msra.mxu0 0.0
  %4888 = vmatpush.msra.mxu0 0.0
  %4889 = vmatpush.msra.mxu0 0.0
  %4890 = vmatpush.msra.mxu0 0.0
  %4891 = vmatpush.msra.mxu0 0.0
  %4892 = vmatpush.msra.mxu0 0.0
  %4893 = vmatpush.msra.mxu0 0.0
  %4894 = vmatpush.msra.mxu0 0.0
  %4895 = vmatpush.msra.mxu0 0.0
  %4896 = vmatpush.msra.mxu0 %v4782
  %4897 = vmatmul.f32.gmra.mxu0 %v4879
  %v4898 = vpop.f32.mrf.mxu0
  %v4899 = vadd.f32 0.0, %v4898
  %4900 = vdwg.mxu0
  %v4902 = vsel %vm764, %v4747, 0
  %4904 = vmatpush.msra.mxu0 0.0
  %4905 = vmatpush.msra.mxu0 0.0
  %4906 = vmatpush.msra.mxu0 0.0
  %4907 = vmatpush.msra.mxu0 0.0
  %4908 = vmatpush.msra.mxu0 0.0
  %4909 = vmatpush.msra.mxu0 0.0
  %4910 = vmatpush.msra.mxu0 0.0
  %4911 = vmatpush.msra.mxu0 0.0
  %4912 = vmatpush.msra.mxu0 0.0
  %4913 = vmatpush.msra.mxu0 0.0
  %4914 = vmatpush.msra.mxu0 0.0
  %4915 = vmatpush.msra.mxu0 0.0
  %4916 = vmatpush.msra.mxu0 0.0
  %4917 = vmatpush.msra.mxu0 0.0
  %4918 = vmatpush.msra.mxu0 0.0
  %4919 = vmatpush.msra.mxu0 %v4783
  %4920 = vmatmul.f32.gmra.mxu0 %v4902
  %v4921 = vpop.f32.mrf.mxu0
  %v4922 = vadd.f32 0.0, %v4921
  %4923 = vdwg.mxu0
  %v4925 = vsel %vm764, %v4762, 0
  %4927 = vmatpush.msra.mxu0 0.0
  %4928 = vmatpush.msra.mxu0 0.0
  %4929 = vmatpush.msra.mxu0 0.0
  %4930 = vmatpush.msra.mxu0 0.0
  %4931 = vmatpush.msra.mxu0 0.0
  %4932 = vmatpush.msra.mxu0 0.0
  %4933 = vmatpush.msra.mxu0 0.0
  %4934 = vmatpush.msra.mxu0 0.0
  %4935 = vmatpush.msra.mxu0 0.0
  %4936 = vmatpush.msra.mxu0 0.0
  %4937 = vmatpush.msra.mxu0 0.0
  %4938 = vmatpush.msra.mxu0 0.0
  %4939 = vmatpush.msra.mxu0 0.0
  %4940 = vmatpush.msra.mxu0 0.0
  %4941 = vmatpush.msra.mxu0 0.0
  %4942 = vmatpush.msra.mxu0 %v4784
  %4943 = vmatmul.f32.gmra.mxu0 %v4925
  %v4944 = vpop.f32.mrf.mxu0
  %v4945 = vadd.f32 0.0, %v4944
  %4946 = vdwg.mxu0
  %v4948 = vsel %vm764, %v4777, 0
  %4950 = vmatpush.msra.mxu0 0.0
  %4951 = vmatpush.msra.mxu0 0.0
  %4952 = vmatpush.msra.mxu0 0.0
  %4953 = vmatpush.msra.mxu0 0.0
  %4954 = vmatpush.msra.mxu0 0.0
  %4955 = vmatpush.msra.mxu0 0.0
  %4956 = vmatpush.msra.mxu0 0.0
  %4957 = vmatpush.msra.mxu0 0.0
  %4958 = vmatpush.msra.mxu0 0.0
  %4959 = vmatpush.msra.mxu0 0.0
  %4960 = vmatpush.msra.mxu0 0.0
  %4961 = vmatpush.msra.mxu0 0.0
  %4962 = vmatpush.msra.mxu0 0.0
  %4963 = vmatpush.msra.mxu0 0.0
  %4964 = vmatpush.msra.mxu0 0.0
  %4965 = vmatpush.msra.mxu0 %v4785
  %4966 = vmatmul.f32.gmra.mxu0 %v4948
  %v4967 = vpop.f32.mrf.mxu0
  %v4968 = vadd.f32 0.0, %v4967
  %4969 = vdwg.mxu0
  %s4970 = scalar_lea.vmem [#allocation2], 128
  %v4971 = vld [vmem:[%s4970] sm:$0xff]
  %v4972 = vld [vmem:[%s4970 + $0x8] sm:$0xff]
  %v4973 = vld [vmem:[%s4970 + $0x10] sm:$0xff]
  %v4974 = vld [vmem:[%s4970 + $0x18] sm:$0xff]
  %v4975 = vld [vmem:[%s7] sm:$0xff]
  %v4976 = vld [vmem:[%s7 + $0x8] sm:$0xff]
  %v4977 = vld [vmem:[%s7 + $0x10] sm:$0xff]
  %v4978 = vld [vmem:[%s7 + $0x18] sm:$0xff]
  %v4979 = vld [vmem:[%s7 + $0x20] sm:$0xff]
  %v4980 = vld [vmem:[%s7 + $0x28] sm:$0xff]
  %v4981 = vld [vmem:[%s7 + $0x30] sm:$0xff]
  %v4982 = vld [vmem:[%s7 + $0x38] sm:$0xff]
  %v4983 = vld [vmem:[%s7 + $0x40] sm:$0xff]
  %v4984 = vld [vmem:[%s7 + $0x48] sm:$0xff]
  %v4985 = vld [vmem:[%s7 + $0x50] sm:$0xff]
  %v4986 = vld [vmem:[%s7 + $0x58] sm:$0xff]
  %v4987 = vld [vmem:[%s7 + $0x60] sm:$0xff]
  %v4988 = vld [vmem:[%s7 + $0x68] sm:$0xff]
  %v4989 = vld [vmem:[%s7 + $0x70] sm:$0xff]
  %v4990 = vld [vmem:[%s7 + $0x78] sm:$0xff]
  %v4991 = vld [vmem:[%s7 + $0x80] sm:$0xff]
  %v4992 = vld [vmem:[%s7 + $0x88] sm:$0xff]
  %v4993 = vld [vmem:[%s7 + $0x90] sm:$0xff]
  %v4994 = vld [vmem:[%s7 + $0x98] sm:$0xff]
  %v4995 = vld [vmem:[%s7 + $0xa0] sm:$0xff]
  %v4996 = vld [vmem:[%s7 + $0xa8] sm:$0xff]
  %v4997 = vld [vmem:[%s7 + $0xb0] sm:$0xff]
  %v4998 = vld [vmem:[%s7 + $0xb8] sm:$0xff]
  %v4999 = vld [vmem:[%s7 + $0xc0] sm:$0xff]
  %v5000 = vld [vmem:[%s7 + $0xc8] sm:$0xff]
  %v5001 = vld [vmem:[%s7 + $0xd0] sm:$0xff]
  %v5002 = vld [vmem:[%s7 + $0xd8] sm:$0xff]
  %v5003 = vld [vmem:[%s7 + $0xe0] sm:$0xff]
  %v5004 = vld [vmem:[%s7 + $0xe8] sm:$0xff]
  %v5005 = vld [vmem:[%s7 + $0xf0] sm:$0xff]
  %v5006 = vld [vmem:[%s7 + $0xf8] sm:$0xff]
  %v5007 = vld [vmem:[%s7 + $0x100] sm:$0xff]
  %v5008 = vld [vmem:[%s7 + $0x108] sm:$0xff]
  %v5009 = vld [vmem:[%s7 + $0x110] sm:$0xff]
  %v5010 = vld [vmem:[%s7 + $0x118] sm:$0xff]
  %v5011 = vld [vmem:[%s7 + $0x120] sm:$0xff]
  %v5012 = vld [vmem:[%s7 + $0x128] sm:$0xff]
  %v5013 = vld [vmem:[%s7 + $0x130] sm:$0xff]
  %v5014 = vld [vmem:[%s7 + $0x138] sm:$0xff]
  %v5015 = vld [vmem:[%s7 + $0x140] sm:$0xff]
  %v5016 = vld [vmem:[%s7 + $0x148] sm:$0xff]
  %v5017 = vld [vmem:[%s7 + $0x150] sm:$0xff]
  %v5018 = vld [vmem:[%s7 + $0x158] sm:$0xff]
  %v5019 = vld [vmem:[%s7 + $0x160] sm:$0xff]
  %v5020 = vld [vmem:[%s7 + $0x168] sm:$0xff]
  %v5021 = vld [vmem:[%s7 + $0x170] sm:$0xff]
  %v5022 = vld [vmem:[%s7 + $0x178] sm:$0xff]
  %v5023 = vld [vmem:[%s7 + $0x180] sm:$0xff]
  %v5024 = vld [vmem:[%s7 + $0x188] sm:$0xff]
  %v5025 = vld [vmem:[%s7 + $0x190] sm:$0xff]
  %v5026 = vld [vmem:[%s7 + $0x198] sm:$0xff]
  %v5027 = vld [vmem:[%s7 + $0x1a0] sm:$0xff]
  %v5028 = vld [vmem:[%s7 + $0x1a8] sm:$0xff]
  %v5029 = vld [vmem:[%s7 + $0x1b0] sm:$0xff]
  %v5030 = vld [vmem:[%s7 + $0x1b8] sm:$0xff]
  %v5031 = vld [vmem:[%s7 + $0x1c0] sm:$0xff]
  %v5032 = vld [vmem:[%s7 + $0x1c8] sm:$0xff]
  %v5033 = vld [vmem:[%s7 + $0x1d0] sm:$0xff]
  %v5034 = vld [vmem:[%s7 + $0x1d8] sm:$0xff]
  %v5035 = vld [vmem:[%s7 + $0x1e0] sm:$0xff]
  %v5036 = vld [vmem:[%s7 + $0x1e8] sm:$0xff]
  %v5037 = vld [vmem:[%s7 + $0x1f0] sm:$0xff]
  %v5038 = vld [vmem:[%s7 + $0x1f8] sm:$0xff]
  %v5047 = vrot.slane %v4830, 7
  %v5048 = vsel %vm1026, %v5047, %v4807
  %v5049 = vrot.slane %v4853, 6
  %v5050 = vsel %vm1029, %v5049, %v5048
  %v5051 = vrot.slane %v4876, 5
  %v5052 = vsel %vm1032, %v5051, %v5050
  %v5053 = vrot.slane %v4899, 4
  %v5054 = vsel %vm1035, %v5053, %v5052
  %v5055 = vrot.slane %v4922, 3
  %v5056 = vsel %vm1038, %v5055, %v5054
  %v5057 = vrot.slane %v4945, 2
  %v5058 = vsel %vm1041, %v5057, %v5056
  %v5059 = vrot.slane %v4968, 1
  %v5060 = vsel %vm1044, %v5059, %v5058
  %5062 = vmatpush.msra.mxu0 %v5035
  %5063 = vmatpush.msra.mxu0 %v5031
  %5064 = vmatpush.msra.mxu0 %v5027
  %5065 = vmatpush.msra.mxu0 %v5023
  %5066 = vmatpush.msra.mxu0 %v5019
  %5067 = vmatpush.msra.mxu0 %v5015
  %5068 = vmatpush.msra.mxu0 %v5011
  %5069 = vmatpush.msra.mxu0 %v5007
  %5070 = vmatpush.msra.mxu0 %v5003
  %5071 = vmatpush.msra.mxu0 %v4999
  %5072 = vmatpush.msra.mxu0 %v4995
  %5073 = vmatpush.msra.mxu0 %v4991
  %5074 = vmatpush.msra.mxu0 %v4987
  %5075 = vmatpush.msra.mxu0 %v4983
  %5076 = vmatpush.msra.mxu0 %v4979
  %5077 = vmatpush.msra.mxu0 %v4975
  %5078 = vmatmul.f32.gmra.mxu0 %v5060
  %v5079 = vpop.f32.mrf.mxu0
  %v5080 = vadd.f32 0.0, %v5079
  %5081 = vdwg.mxu0
  %5082 = vmatpush.msra.mxu0 %v5036
  %5083 = vmatpush.msra.mxu0 %v5032
  %5084 = vmatpush.msra.mxu0 %v5028
  %5085 = vmatpush.msra.mxu0 %v5024
  %5086 = vmatpush.msra.mxu0 %v5020
  %5087 = vmatpush.msra.mxu0 %v5016
  %5088 = vmatpush.msra.mxu0 %v5012
  %5089 = vmatpush.msra.mxu0 %v5008
  %5090 = vmatpush.msra.mxu0 %v5004
  %5091 = vmatpush.msra.mxu0 %v5000
  %5092 = vmatpush.msra.mxu0 %v4996
  %5093 = vmatpush.msra.mxu0 %v4992
  %5094 = vmatpush.msra.mxu0 %v4988
  %5095 = vmatpush.msra.mxu0 %v4984
  %5096 = vmatpush.msra.mxu0 %v4980
  %5097 = vmatpush.msra.mxu0 %v4976
  %5098 = vmatmul.f32.gmra.mxu0 %v5060
  %v5099 = vpop.f32.mrf.mxu0
  %v5100 = vadd.f32 0.0, %v5099
  %5101 = vdwg.mxu0
  %5102 = vmatpush.msra.mxu0 %v5037
  %5103 = vmatpush.msra.mxu0 %v5033
  %5104 = vmatpush.msra.mxu0 %v5029
  %5105 = vmatpush.msra.mxu0 %v5025
  %5106 = vmatpush.msra.mxu0 %v5021
  %5107 = vmatpush.msra.mxu0 %v5017
  %5108 = vmatpush.msra.mxu0 %v5013
  %5109 = vmatpush.msra.mxu0 %v5009
  %5110 = vmatpush.msra.mxu0 %v5005
  %5111 = vmatpush.msra.mxu0 %v5001
  %5112 = vmatpush.msra.mxu0 %v4997
  %5113 = vmatpush.msra.mxu0 %v4993
  %5114 = vmatpush.msra.mxu0 %v4989
  %5115 = vmatpush.msra.mxu0 %v4985
  %5116 = vmatpush.msra.mxu0 %v4981
  %5117 = vmatpush.msra.mxu0 %v4977
  %5118 = vmatmul.f32.gmra.mxu0 %v5060
  %v5119 = vpop.f32.mrf.mxu0
  %v5120 = vadd.f32 0.0, %v5119
  %5121 = vdwg.mxu0
  %5122 = vmatpush.msra.mxu0 %v5038
  %5123 = vmatpush.msra.mxu0 %v5034
  %5124 = vmatpush.msra.mxu0 %v5030
  %5125 = vmatpush.msra.mxu0 %v5026
  %5126 = vmatpush.msra.mxu0 %v5022
  %5127 = vmatpush.msra.mxu0 %v5018
  %5128 = vmatpush.msra.mxu0 %v5014
  %5129 = vmatpush.msra.mxu0 %v5010
  %5130 = vmatpush.msra.mxu0 %v5006
  %5131 = vmatpush.msra.mxu0 %v5002
  %5132 = vmatpush.msra.mxu0 %v4998
  %5133 = vmatpush.msra.mxu0 %v4994
  %5134 = vmatpush.msra.mxu0 %v4990
  %5135 = vmatpush.msra.mxu0 %v4986
  %5136 = vmatpush.msra.mxu0 %v4982
  %5137 = vmatpush.msra.mxu0 %v4978
  %5138 = vmatmul.f32.gmra.mxu0 %v5060
  %v5139 = vpop.f32.mrf.mxu0
  %v5140 = vadd.f32 0.0, %v5139
  %5141 = vdwg.mxu0
  %v5142 = vadd.f32 %v4971, %v5080
  %v5143 = vadd.f32 %v4972, %v5100
  %v5144 = vadd.f32 %v4973, %v5120
  %v5145 = vadd.f32 %v4974, %v5140
  %v5146 = vld [vmem:[%s8] sm:$0xff]
  %v5147 = vld [vmem:[%s8 + $0x8] sm:$0xff]
  %v5148 = vld [vmem:[%s8 + $0x10] sm:$0xff]
  %v5149 = vld [vmem:[%s8 + $0x18] sm:$0xff]
  %v5150 = vld [vmem:[%s8 + $0x20] sm:$0xff]
  %v5151 = vld [vmem:[%s8 + $0x28] sm:$0xff]
  %v5152 = vld [vmem:[%s8 + $0x30] sm:$0xff]
  %v5153 = vld [vmem:[%s8 + $0x38] sm:$0xff]
  %v5154 = vld [vmem:[%s8 + $0x40] sm:$0xff]
  %v5155 = vld [vmem:[%s8 + $0x48] sm:$0xff]
  %v5156 = vld [vmem:[%s8 + $0x50] sm:$0xff]
  %v5157 = vld [vmem:[%s8 + $0x58] sm:$0xff]
  %v5158 = vld [vmem:[%s8 + $0x60] sm:$0xff]
  %v5159 = vld [vmem:[%s8 + $0x68] sm:$0xff]
  %v5160 = vld [vmem:[%s8 + $0x70] sm:$0xff]
  %v5161 = vld [vmem:[%s8 + $0x78] sm:$0xff]
  %v5162 = vld [vmem:[%s8 + $0x80] sm:$0xff]
  %v5163 = vld [vmem:[%s8 + $0x88] sm:$0xff]
  %v5164 = vld [vmem:[%s8 + $0x90] sm:$0xff]
  %v5165 = vld [vmem:[%s8 + $0x98] sm:$0xff]
  %v5166 = vld [vmem:[%s8 + $0xa0] sm:$0xff]
  %v5167 = vld [vmem:[%s8 + $0xa8] sm:$0xff]
  %v5168 = vld [vmem:[%s8 + $0xb0] sm:$0xff]
  %v5169 = vld [vmem:[%s8 + $0xb8] sm:$0xff]
  %v5170 = vld [vmem:[%s8 + $0xc0] sm:$0xff]
  %v5171 = vld [vmem:[%s8 + $0xc8] sm:$0xff]
  %v5172 = vld [vmem:[%s8 + $0xd0] sm:$0xff]
  %v5173 = vld [vmem:[%s8 + $0xd8] sm:$0xff]
  %v5174 = vld [vmem:[%s8 + $0xe0] sm:$0xff]
  %v5175 = vld [vmem:[%s8 + $0xe8] sm:$0xff]
  %v5176 = vld [vmem:[%s8 + $0xf0] sm:$0xff]
  %v5177 = vld [vmem:[%s8 + $0xf8] sm:$0xff]
  %v5178 = vld [vmem:[%s8 + $0x100] sm:$0xff]
  %v5179 = vld [vmem:[%s8 + $0x108] sm:$0xff]
  %v5180 = vld [vmem:[%s8 + $0x110] sm:$0xff]
  %v5181 = vld [vmem:[%s8 + $0x118] sm:$0xff]
  %v5182 = vld [vmem:[%s8 + $0x120] sm:$0xff]
  %v5183 = vld [vmem:[%s8 + $0x128] sm:$0xff]
  %v5184 = vld [vmem:[%s8 + $0x130] sm:$0xff]
  %v5185 = vld [vmem:[%s8 + $0x138] sm:$0xff]
  %v5186 = vld [vmem:[%s8 + $0x140] sm:$0xff]
  %v5187 = vld [vmem:[%s8 + $0x148] sm:$0xff]
  %v5188 = vld [vmem:[%s8 + $0x150] sm:$0xff]
  %v5189 = vld [vmem:[%s8 + $0x158] sm:$0xff]
  %v5190 = vld [vmem:[%s8 + $0x160] sm:$0xff]
  %v5191 = vld [vmem:[%s8 + $0x168] sm:$0xff]
  %v5192 = vld [vmem:[%s8 + $0x170] sm:$0xff]
  %v5193 = vld [vmem:[%s8 + $0x178] sm:$0xff]
  %v5194 = vld [vmem:[%s8 + $0x180] sm:$0xff]
  %v5195 = vld [vmem:[%s8 + $0x188] sm:$0xff]
  %v5196 = vld [vmem:[%s8 + $0x190] sm:$0xff]
  %v5197 = vld [vmem:[%s8 + $0x198] sm:$0xff]
  %v5198 = vld [vmem:[%s8 + $0x1a0] sm:$0xff]
  %v5199 = vld [vmem:[%s8 + $0x1a8] sm:$0xff]
  %v5200 = vld [vmem:[%s8 + $0x1b0] sm:$0xff]
  %v5201 = vld [vmem:[%s8 + $0x1b8] sm:$0xff]
  %v5202 = vld [vmem:[%s8 + $0x1c0] sm:$0xff]
  %v5203 = vld [vmem:[%s8 + $0x1c8] sm:$0xff]
  %v5204 = vld [vmem:[%s8 + $0x1d0] sm:$0xff]
  %v5205 = vld [vmem:[%s8 + $0x1d8] sm:$0xff]
  %v5206 = vld [vmem:[%s8 + $0x1e0] sm:$0xff]
  %v5207 = vld [vmem:[%s8 + $0x1e8] sm:$0xff]
  %v5208 = vld [vmem:[%s8 + $0x1f0] sm:$0xff]
  %v5209 = vld [vmem:[%s8 + $0x1f8] sm:$0xff]
  %5210 = vmatpush.msra.mxu0 %v5206
  %5211 = vmatpush.msra.mxu0 %v5202
  %5212 = vmatpush.msra.mxu0 %v5198
  %5213 = vmatpush.msra.mxu0 %v5194
  %5214 = vmatpush.msra.mxu0 %v5190
  %5215 = vmatpush.msra.mxu0 %v5186
  %5216 = vmatpush.msra.mxu0 %v5182
  %5217 = vmatpush.msra.mxu0 %v5178
  %5218 = vmatpush.msra.mxu0 %v5174
  %5219 = vmatpush.msra.mxu0 %v5170
  %5220 = vmatpush.msra.mxu0 %v5166
  %5221 = vmatpush.msra.mxu0 %v5162
  %5222 = vmatpush.msra.mxu0 %v5158
  %5223 = vmatpush.msra.mxu0 %v5154
  %5224 = vmatpush.msra.mxu0 %v5150
  %5225 = vmatpush.msra.mxu0 %v5146
  %5226 = vmatmul.f32.gmra.mxu0 %v4393
  %v5227 = vpop.f32.mrf.mxu0
  %v5228 = vadd.f32 0.0, %v5227
  %5229 = vdwg.mxu0
  %5230 = vmatpush.msra.mxu0 %v5207
  %5231 = vmatpush.msra.mxu0 %v5203
  %5232 = vmatpush.msra.mxu0 %v5199
  %5233 = vmatpush.msra.mxu0 %v5195
  %5234 = vmatpush.msra.mxu0 %v5191
  %5235 = vmatpush.msra.mxu0 %v5187
  %5236 = vmatpush.msra.mxu0 %v5183
  %5237 = vmatpush.msra.mxu0 %v5179
  %5238 = vmatpush.msra.mxu0 %v5175
  %5239 = vmatpush.msra.mxu0 %v5171
  %5240 = vmatpush.msra.mxu0 %v5167
  %5241 = vmatpush.msra.mxu0 %v5163
  %5242 = vmatpush.msra.mxu0 %v5159
  %5243 = vmatpush.msra.mxu0 %v5155
  %5244 = vmatpush.msra.mxu0 %v5151
  %5245 = vmatpush.msra.mxu0 %v5147
  %5246 = vmatmul.f32.gmra.mxu0 %v4393
  %v5247 = vpop.f32.mrf.mxu0
  %v5248 = vadd.f32 0.0, %v5247
  %5249 = vdwg.mxu0
  %5250 = vmatpush.msra.mxu0 %v5208
  %5251 = vmatpush.msra.mxu0 %v5204
  %5252 = vmatpush.msra.mxu0 %v5200
  %5253 = vmatpush.msra.mxu0 %v5196
  %5254 = vmatpush.msra.mxu0 %v5192
  %5255 = vmatpush.msra.mxu0 %v5188
  %5256 = vmatpush.msra.mxu0 %v5184
  %5257 = vmatpush.msra.mxu0 %v5180
  %5258 = vmatpush.msra.mxu0 %v5176
  %5259 = vmatpush.msra.mxu0 %v5172
  %5260 = vmatpush.msra.mxu0 %v5168
  %5261 = vmatpush.msra.mxu0 %v5164
  %5262 = vmatpush.msra.mxu0 %v5160
  %5263 = vmatpush.msra.mxu0 %v5156
  %5264 = vmatpush.msra.mxu0 %v5152
  %5265 = vmatpush.msra.mxu0 %v5148
  %5266 = vmatmul.f32.gmra.mxu0 %v4393
  %v5267 = vpop.f32.mrf.mxu0
  %v5268 = vadd.f32 0.0, %v5267
  %5269 = vdwg.mxu0
  %5270 = vmatpush.msra.mxu0 %v5209
  %5271 = vmatpush.msra.mxu0 %v5205
  %5272 = vmatpush.msra.mxu0 %v5201
  %5273 = vmatpush.msra.mxu0 %v5197
  %5274 = vmatpush.msra.mxu0 %v5193
  %5275 = vmatpush.msra.mxu0 %v5189
  %5276 = vmatpush.msra.mxu0 %v5185
  %5277 = vmatpush.msra.mxu0 %v5181
  %5278 = vmatpush.msra.mxu0 %v5177
  %5279 = vmatpush.msra.mxu0 %v5173
  %5280 = vmatpush.msra.mxu0 %v5169
  %5281 = vmatpush.msra.mxu0 %v5165
  %5282 = vmatpush.msra.mxu0 %v5161
  %5283 = vmatpush.msra.mxu0 %v5157
  %5284 = vmatpush.msra.mxu0 %v5153
  %5285 = vmatpush.msra.mxu0 %v5149
  %5286 = vmatmul.f32.gmra.mxu0 %v4393
  %v5287 = vpop.f32.mrf.mxu0
  %v5288 = vadd.f32 0.0, %v5287
  %5289 = vdwg.mxu0
  %v5290 = vadd.f32 %v5142, %v5228
  %v5291 = vadd.f32 %v5143, %v5248
  %v5292 = vadd.f32 %v5144, %v5268
  %v5293 = vadd.f32 %v5145, %v5288
  %v5294 = vxor.u32 %v5290, 2147483648
  %v5295 = vmul.f32 %v5294, 1.442695
  %v5296 = vpow.pop %v5295
  %v5297 = vadd.f32 %v5296, 1.0
  %v5298 = vrcp.pop %v5297
  %v5299 = vmul.f32 %v5297, %v5298
  %v5300 = vsub.f32 1.0, %v5299
  %v5301 = vmul.f32 %v5298, %v5300
  %v5302 = vadd.f32 %v5298, %v5301
  %vm5303 = vweird.f32 %v5297
  %vm5304 = vweird.f32 %v5298
  %vm5305 = vmor %vm5303, %vm5304
  %v5306 = vsel %vm5305, %v5298, %v5302
  %v5307 = vand.u32 2147483647, %v5297
  %vm5308 = vcmp.eq.f32.partialorder %v5307, 8.507059e+37
  %v5309 = vand.u32 %v5297, 2147483648
  %v5310 = vor.u32 1.1754944e-38, %v5309
  %v5311 = vsel %vm5308, %v5310, %v5306
  %v5312 = vmul.f32 1.0, %v5311
  %v5313 = vxor.u32 %v5291, 2147483648
  %v5314 = vmul.f32 %v5313, 1.442695
  %v5315 = vpow.pop %v5314
  %v5316 = vadd.f32 %v5315, 1.0
  %v5317 = vrcp.pop %v5316
  %v5318 = vmul.f32 %v5316, %v5317
  %v5319 = vsub.f32 1.0, %v5318
  %v5320 = vmul.f32 %v5317, %v5319
  %v5321 = vadd.f32 %v5317, %v5320
  %vm5322 = vweird.f32 %v5316
  %vm5323 = vweird.f32 %v5317
  %vm5324 = vmor %vm5322, %vm5323
  %v5325 = vsel %vm5324, %v5317, %v5321
  %v5326 = vand.u32 2147483647, %v5316
  %vm5327 = vcmp.eq.f32.partialorder %v5326, 8.507059e+37
  %v5328 = vand.u32 %v5316, 2147483648
  %v5329 = vor.u32 1.1754944e-38, %v5328
  %v5330 = vsel %vm5327, %v5329, %v5325
  %v5331 = vmul.f32 1.0, %v5330
  %v5332 = vtanh.pop %v5292
  %v5333 = vxor.u32 %v5293, 2147483648
  %v5334 = vmul.f32 %v5333, 1.442695
  %v5335 = vpow.pop %v5334
  %v5336 = vadd.f32 %v5335, 1.0
  %v5337 = vrcp.pop %v5336
  %v5338 = vmul.f32 %v5336, %v5337
  %v5339 = vsub.f32 1.0, %v5338
  %v5340 = vmul.f32 %v5337, %v5339
  %v5341 = vadd.f32 %v5337, %v5340
  %vm5342 = vweird.f32 %v5336
  %vm5343 = vweird.f32 %v5337
  %vm5344 = vmor %vm5342, %vm5343
  %v5345 = vsel %vm5344, %v5337, %v5341
  %v5346 = vand.u32 2147483647, %v5336
  %vm5347 = vcmp.eq.f32.partialorder %v5346, 8.507059e+37
  %v5348 = vand.u32 %v5336, 2147483648
  %v5349 = vor.u32 1.1754944e-38, %v5348
  %v5350 = vsel %vm5347, %v5349, %v5345
  %v5351 = vmul.f32 1.0, %v5350
  %v5352 = vmul.f32 %v5331, %v4394
  %v5353 = vmul.f32 %v5312, %v5332
  %v5354 = vadd.f32 %v5352, %v5353
  %v5355 = vtanh.pop %v5354
  %v5356 = vmul.f32 %v5351, %v5355
  %5357 = vst [vmem:[#allocation4] sm:$0xff] %v5356
  %5358 = vst [vmem:[#allocation5] sm:$0xff] %v5354
  %v5359 = vld [vmem:[%s10] sm:$0xff]
  %v5360 = vld [vmem:[%s10 + $0x8] sm:$0xff]
  %v5361 = vld [vmem:[%s10 + $0x10] sm:$0xff]
  %v5362 = vld [vmem:[%s10 + $0x18] sm:$0xff]
  %v5363 = vld [vmem:[%s10 + $0x20] sm:$0xff]
  %v5364 = vld [vmem:[%s10 + $0x28] sm:$0xff]
  %v5365 = vld [vmem:[%s10 + $0x30] sm:$0xff]
  %v5366 = vld [vmem:[%s10 + $0x38] sm:$0xff]
  %v5367 = vld [vmem:[%s10 + $0x40] sm:$0xff]
  %v5368 = vld [vmem:[%s10 + $0x48] sm:$0xff]
  %v5369 = vld [vmem:[%s10 + $0x50] sm:$0xff]
  %v5370 = vld [vmem:[%s10 + $0x58] sm:$0xff]
  %v5371 = vld [vmem:[%s10 + $0x60] sm:$0xff]
  %v5372 = vld [vmem:[%s10 + $0x68] sm:$0xff]
  %v5373 = vld [vmem:[%s10 + $0x70] sm:$0xff]
  %v5374 = vld [vmem:[%s10 + $0x78] sm:$0xff]
  %5375 = vmatpush.msra.mxu0 %v5374
  %5376 = vmatpush.msra.mxu0 %v5373
  %5377 = vmatpush.msra.mxu0 %v5372
  %5378 = vmatpush.msra.mxu0 %v5371
  %5379 = vmatpush.msra.mxu0 %v5370
  %5380 = vmatpush.msra.mxu0 %v5369
  %5381 = vmatpush.msra.mxu0 %v5368
  %5382 = vmatpush.msra.mxu0 %v5367
  %5383 = vmatpush.msra.mxu0 %v5366
  %5384 = vmatpush.msra.mxu0 %v5365
  %5385 = vmatpush.msra.mxu0 %v5364
  %5386 = vmatpush.msra.mxu0 %v5363
  %5387 = vmatpush.msra.mxu0 %v5362
  %5388 = vmatpush.msra.mxu0 %v5361
  %5389 = vmatpush.msra.mxu0 %v5360
  %5390 = vmatpush.msra.mxu0 %v5359
  %5391 = vmatmul.f32.gmra.mxu0 %v5356
  %v5392 = vpop.f32.mrf.mxu0
  %v5393 = vadd.f32 %v368, %v5392
  %5394 = vdwg.mxu0
  %s5395 = scalar_lea.vmem %s12, 32
  %5396 = vst [vmem:[%s5395] sm:$0xff] %v5393
  %v5397 = vld [vmem:[#allocation4] sm:$0xff]
  %v5398 = vld [vmem:[#allocation5] sm:$0xff]
  %v5400 = vrot.slane %v5397, 1
  %v5401 = vrot.slane %v5397, 2
  %v5402 = vrot.slane %v5397, 3
  %v5403 = vrot.slane %v5397, 4
  %v5404 = vrot.slane %v5397, 5
  %v5405 = vrot.slane %v5397, 6
  %v5406 = vrot.slane %v5397, 7
  %v5414 = vld [vmem:[#allocation3] sm:$0xff]
  %v5415 = vld [vmem:[#allocation3 + $0x8] sm:$0xff]
  %v5416 = vld [vmem:[#allocation3 + $0x10] sm:$0xff]
  %v5417 = vld [vmem:[#allocation3 + $0x18] sm:$0xff]
  %v5418 = vld [vmem:[#allocation3 + $0x20] sm:$0xff]
  %v5419 = vld [vmem:[#allocation3 + $0x28] sm:$0xff]
  %v5420 = vld [vmem:[#allocation3 + $0x30] sm:$0xff]
  %v5421 = vld [vmem:[#allocation3 + $0x38] sm:$0xff]
  %5422 = vmatpush.xpose.msra.mxu0 0.0
  %5423 = vmatpush.xpose.msra.mxu0 0.0
  %5424 = vmatpush.xpose.msra.mxu0 0.0
  %5425 = vmatpush.xpose.msra.mxu0 0.0
  %5426 = vmatpush.xpose.msra.mxu0 0.0
  %5427 = vmatpush.xpose.msra.mxu0 0.0
  %5428 = vmatpush.xpose.msra.mxu0 0.0
  %5429 = vmatpush.xpose.msra.mxu0 0.0
  %5430 = vmatpush.xpose.msra.mxu0 0.0
  %5431 = vmatpush.xpose.msra.mxu0 0.0
  %5432 = vmatpush.xpose.msra.mxu0 0.0
  %5433 = vmatpush.xpose.msra.mxu0 0.0
  %5434 = vmatpush.xpose.msra.mxu0 0.0
  %5435 = vmatpush.xpose.msra.mxu0 0.0
  %5436 = vmatpush.xpose.msra.mxu0 0.0
  %5437 = vmatpush.xpose.msra.mxu0 %v5414
  %5438 = vmatmul.f32.gmra.mxu0 %v5397
  %v5439 = vpop.f32.mrf.mxu0
  %v5440 = vadd.f32 0.0, %v5439
  %5441 = vdwg.mxu0
  %5442 = vmatpush.xpose.msra.mxu0 0.0
  %5443 = vmatpush.xpose.msra.mxu0 0.0
  %5444 = vmatpush.xpose.msra.mxu0 0.0
  %5445 = vmatpush.xpose.msra.mxu0 0.0
  %5446 = vmatpush.xpose.msra.mxu0 0.0
  %5447 = vmatpush.xpose.msra.mxu0 0.0
  %5448 = vmatpush.xpose.msra.mxu0 0.0
  %5449 = vmatpush.xpose.msra.mxu0 0.0
  %5450 = vmatpush.xpose.msra.mxu0 0.0
  %5451 = vmatpush.xpose.msra.mxu0 0.0
  %5452 = vmatpush.xpose.msra.mxu0 0.0
  %5453 = vmatpush.xpose.msra.mxu0 0.0
  %5454 = vmatpush.xpose.msra.mxu0 0.0
  %5455 = vmatpush.xpose.msra.mxu0 0.0
  %5456 = vmatpush.xpose.msra.mxu0 0.0
  %5457 = vmatpush.xpose.msra.mxu0 %v5415
  %5458 = vmatmul.f32.gmra.mxu0 %v5400
  %v5459 = vpop.f32.mrf.mxu0
  %v5460 = vadd.f32 0.0, %v5459
  %5461 = vdwg.mxu0
  %5462 = vmatpush.xpose.msra.mxu0 0.0
  %5463 = vmatpush.xpose.msra.mxu0 0.0
  %5464 = vmatpush.xpose.msra.mxu0 0.0
  %5465 = vmatpush.xpose.msra.mxu0 0.0
  %5466 = vmatpush.xpose.msra.mxu0 0.0
  %5467 = vmatpush.xpose.msra.mxu0 0.0
  %5468 = vmatpush.xpose.msra.mxu0 0.0
  %5469 = vmatpush.xpose.msra.mxu0 0.0
  %5470 = vmatpush.xpose.msra.mxu0 0.0
  %5471 = vmatpush.xpose.msra.mxu0 0.0
  %5472 = vmatpush.xpose.msra.mxu0 0.0
  %5473 = vmatpush.xpose.msra.mxu0 0.0
  %5474 = vmatpush.xpose.msra.mxu0 0.0
  %5475 = vmatpush.xpose.msra.mxu0 0.0
  %5476 = vmatpush.xpose.msra.mxu0 0.0
  %5477 = vmatpush.xpose.msra.mxu0 %v5416
  %5478 = vmatmul.f32.gmra.mxu0 %v5401
  %v5479 = vpop.f32.mrf.mxu0
  %v5480 = vadd.f32 0.0, %v5479
  %5481 = vdwg.mxu0
  %5482 = vmatpush.xpose.msra.mxu0 0.0
  %5483 = vmatpush.xpose.msra.mxu0 0.0
  %5484 = vmatpush.xpose.msra.mxu0 0.0
  %5485 = vmatpush.xpose.msra.mxu0 0.0
  %5486 = vmatpush.xpose.msra.mxu0 0.0
  %5487 = vmatpush.xpose.msra.mxu0 0.0
  %5488 = vmatpush.xpose.msra.mxu0 0.0
  %5489 = vmatpush.xpose.msra.mxu0 0.0
  %5490 = vmatpush.xpose.msra.mxu0 0.0
  %5491 = vmatpush.xpose.msra.mxu0 0.0
  %5492 = vmatpush.xpose.msra.mxu0 0.0
  %5493 = vmatpush.xpose.msra.mxu0 0.0
  %5494 = vmatpush.xpose.msra.mxu0 0.0
  %5495 = vmatpush.xpose.msra.mxu0 0.0
  %5496 = vmatpush.xpose.msra.mxu0 0.0
  %5497 = vmatpush.xpose.msra.mxu0 %v5417
  %5498 = vmatmul.f32.gmra.mxu0 %v5402
  %v5499 = vpop.f32.mrf.mxu0
  %v5500 = vadd.f32 0.0, %v5499
  %5501 = vdwg.mxu0
  %5502 = vmatpush.xpose.msra.mxu0 0.0
  %5503 = vmatpush.xpose.msra.mxu0 0.0
  %5504 = vmatpush.xpose.msra.mxu0 0.0
  %5505 = vmatpush.xpose.msra.mxu0 0.0
  %5506 = vmatpush.xpose.msra.mxu0 0.0
  %5507 = vmatpush.xpose.msra.mxu0 0.0
  %5508 = vmatpush.xpose.msra.mxu0 0.0
  %5509 = vmatpush.xpose.msra.mxu0 0.0
  %5510 = vmatpush.xpose.msra.mxu0 0.0
  %5511 = vmatpush.xpose.msra.mxu0 0.0
  %5512 = vmatpush.xpose.msra.mxu0 0.0
  %5513 = vmatpush.xpose.msra.mxu0 0.0
  %5514 = vmatpush.xpose.msra.mxu0 0.0
  %5515 = vmatpush.xpose.msra.mxu0 0.0
  %5516 = vmatpush.xpose.msra.mxu0 0.0
  %5517 = vmatpush.xpose.msra.mxu0 %v5418
  %5518 = vmatmul.f32.gmra.mxu0 %v5403
  %v5519 = vpop.f32.mrf.mxu0
  %v5520 = vadd.f32 0.0, %v5519
  %5521 = vdwg.mxu0
  %5522 = vmatpush.xpose.msra.mxu0 0.0
  %5523 = vmatpush.xpose.msra.mxu0 0.0
  %5524 = vmatpush.xpose.msra.mxu0 0.0
  %5525 = vmatpush.xpose.msra.mxu0 0.0
  %5526 = vmatpush.xpose.msra.mxu0 0.0
  %5527 = vmatpush.xpose.msra.mxu0 0.0
  %5528 = vmatpush.xpose.msra.mxu0 0.0
  %5529 = vmatpush.xpose.msra.mxu0 0.0
  %5530 = vmatpush.xpose.msra.mxu0 0.0
  %5531 = vmatpush.xpose.msra.mxu0 0.0
  %5532 = vmatpush.xpose.msra.mxu0 0.0
  %5533 = vmatpush.xpose.msra.mxu0 0.0
  %5534 = vmatpush.xpose.msra.mxu0 0.0
  %5535 = vmatpush.xpose.msra.mxu0 0.0
  %5536 = vmatpush.xpose.msra.mxu0 0.0
  %5537 = vmatpush.xpose.msra.mxu0 %v5419
  %5538 = vmatmul.f32.gmra.mxu0 %v5404
  %v5539 = vpop.f32.mrf.mxu0
  %v5540 = vadd.f32 0.0, %v5539
  %5541 = vdwg.mxu0
  %5542 = vmatpush.xpose.msra.mxu0 0.0
  %5543 = vmatpush.xpose.msra.mxu0 0.0
  %5544 = vmatpush.xpose.msra.mxu0 0.0
  %5545 = vmatpush.xpose.msra.mxu0 0.0
  %5546 = vmatpush.xpose.msra.mxu0 0.0
  %5547 = vmatpush.xpose.msra.mxu0 0.0
  %5548 = vmatpush.xpose.msra.mxu0 0.0
  %5549 = vmatpush.xpose.msra.mxu0 0.0
  %5550 = vmatpush.xpose.msra.mxu0 0.0
  %5551 = vmatpush.xpose.msra.mxu0 0.0
  %5552 = vmatpush.xpose.msra.mxu0 0.0
  %5553 = vmatpush.xpose.msra.mxu0 0.0
  %5554 = vmatpush.xpose.msra.mxu0 0.0
  %5555 = vmatpush.xpose.msra.mxu0 0.0
  %5556 = vmatpush.xpose.msra.mxu0 0.0
  %5557 = vmatpush.xpose.msra.mxu0 %v5420
  %5558 = vmatmul.f32.gmra.mxu0 %v5405
  %v5559 = vpop.f32.mrf.mxu0
  %v5560 = vadd.f32 0.0, %v5559
  %5561 = vdwg.mxu0
  %5562 = vmatpush.xpose.msra.mxu0 0.0
  %5563 = vmatpush.xpose.msra.mxu0 0.0
  %5564 = vmatpush.xpose.msra.mxu0 0.0
  %5565 = vmatpush.xpose.msra.mxu0 0.0
  %5566 = vmatpush.xpose.msra.mxu0 0.0
  %5567 = vmatpush.xpose.msra.mxu0 0.0
  %5568 = vmatpush.xpose.msra.mxu0 0.0
  %5569 = vmatpush.xpose.msra.mxu0 0.0
  %5570 = vmatpush.xpose.msra.mxu0 0.0
  %5571 = vmatpush.xpose.msra.mxu0 0.0
  %5572 = vmatpush.xpose.msra.mxu0 0.0
  %5573 = vmatpush.xpose.msra.mxu0 0.0
  %5574 = vmatpush.xpose.msra.mxu0 0.0
  %5575 = vmatpush.xpose.msra.mxu0 0.0
  %5576 = vmatpush.xpose.msra.mxu0 0.0
  %5577 = vmatpush.xpose.msra.mxu0 %v5421
  %5578 = vmatmul.f32.gmra.mxu0 %v5406
  %v5579 = vpop.f32.mrf.mxu0
  %v5580 = vadd.f32 0.0, %v5579
  %5581 = vdwg.mxu0
  %v5582 = vsel %vm350, %v5440, -1e+30
  %v5583 = vsel %vm359, %v5460, -1e+30
  %v5584 = vsel %vm360, %v5480, -1e+30
  %v5585 = vsel %vm361, %v5500, -1e+30
  %v5586 = vsel %vm362, %v5520, -1e+30
  %v5587 = vsel %vm363, %v5540, -1e+30
  %v5588 = vsel %vm364, %v5560, -1e+30
  %v5589 = vsel %vm365, %v5580, -1e+30
  %v5590 = vsel %vm563, %v5582, -inf
  %5591 = vmax.xlane.f32.xlu0 %v5590
  %v5592 = vpop.xlane.xlu0 %5591
  %v5593 = vsel %vm563, %v5583, -inf
  %5594 = vmax.xlane.f32.xlu0 %v5593
  %v5595 = vpop.xlane.xlu0 %5594
  %v5596 = vsel %vm563, %v5584, -inf
  %5597 = vmax.xlane.f32.xlu0 %v5596
  %v5598 = vpop.xlane.xlu0 %5597
  %v5599 = vsel %vm563, %v5585, -inf
  %5600 = vmax.xlane.f32.xlu0 %v5599
  %v5601 = vpop.xlane.xlu0 %5600
  %v5602 = vsel %vm563, %v5586, -inf
  %5603 = vmax.xlane.f32.xlu0 %v5602
  %v5604 = vpop.xlane.xlu0 %5603
  %v5605 = vsel %vm563, %v5587, -inf
  %5606 = vmax.xlane.f32.xlu0 %v5605
  %v5607 = vpop.xlane.xlu0 %5606
  %v5608 = vsel %vm563, %v5588, -inf
  %5609 = vmax.xlane.f32.xlu0 %v5608
  %v5610 = vpop.xlane.xlu0 %5609
  %v5611 = vsel %vm563, %v5589, -inf
  %5612 = vmax.xlane.f32.xlu0 %v5611
  %v5613 = vpop.xlane.xlu0 %5612
  %v5614 = vsub.f32 %v5582, %v5592
  %v5615 = vsub.f32 %v5583, %v5595
  %v5616 = vsub.f32 %v5584, %v5598
  %v5617 = vsub.f32 %v5585, %v5601
  %v5618 = vsub.f32 %v5586, %v5604
  %v5619 = vsub.f32 %v5587, %v5607
  %v5620 = vsub.f32 %v5588, %v5610
  %v5621 = vsub.f32 %v5589, %v5613
  %v5622 = vmul.f32 %v5614, 1.442695
  %v5623 = vpow.pop %v5622
  %v5624 = vmul.f32 %v5615, 1.442695
  %v5625 = vpow.pop %v5624
  %v5626 = vmul.f32 %v5616, 1.442695
  %v5627 = vpow.pop %v5626
  %v5628 = vmul.f32 %v5617, 1.442695
  %v5629 = vpow.pop %v5628
  %v5630 = vmul.f32 %v5618, 1.442695
  %v5631 = vpow.pop %v5630
  %v5632 = vmul.f32 %v5619, 1.442695
  %v5633 = vpow.pop %v5632
  %v5634 = vmul.f32 %v5620, 1.442695
  %v5635 = vpow.pop %v5634
  %v5636 = vmul.f32 %v5621, 1.442695
  %v5637 = vpow.pop %v5636
  %v5638 = vsel %vm563, %v5623, 0.0
  %5639 = vadd.xlane.f32.xlu0 %v5638
  %v5640 = vpop.xlane.xlu0 %5639
  %v5641 = vsel %vm563, %v5625, 0.0
  %5642 = vadd.xlane.f32.xlu0 %v5641
  %v5643 = vpop.xlane.xlu0 %5642
  %v5644 = vsel %vm563, %v5627, 0.0
  %5645 = vadd.xlane.f32.xlu0 %v5644
  %v5646 = vpop.xlane.xlu0 %5645
  %v5647 = vsel %vm563, %v5629, 0.0
  %5648 = vadd.xlane.f32.xlu0 %v5647
  %v5649 = vpop.xlane.xlu0 %5648
  %v5650 = vsel %vm563, %v5631, 0.0
  %5651 = vadd.xlane.f32.xlu0 %v5650
  %v5652 = vpop.xlane.xlu0 %5651
  %v5653 = vsel %vm563, %v5633, 0.0
  %5654 = vadd.xlane.f32.xlu0 %v5653
  %v5655 = vpop.xlane.xlu0 %5654
  %v5656 = vsel %vm563, %v5635, 0.0
  %5657 = vadd.xlane.f32.xlu0 %v5656
  %v5658 = vpop.xlane.xlu0 %5657
  %v5659 = vsel %vm563, %v5637, 0.0
  %5660 = vadd.xlane.f32.xlu0 %v5659
  %v5661 = vpop.xlane.xlu0 %5660
  %v5662 = vrcp.pop %v5640
  %v5663 = vmul.f32 %v5640, %v5662
  %v5664 = vsub.f32 1.0, %v5663
  %v5665 = vmul.f32 %v5662, %v5664
  %v5666 = vadd.f32 %v5662, %v5665
  %vm5667 = vweird.f32 %v5640
  %vm5668 = vweird.f32 %v5662
  %vm5669 = vmor %vm5667, %vm5668
  %v5670 = vsel %vm5669, %v5662, %v5666
  %v5671 = vand.u32 2147483647, %v5640
  %vm5672 = vcmp.eq.f32.partialorder %v5671, 8.507059e+37
  %v5673 = vand.u32 %v5640, 2147483648
  %v5674 = vor.u32 1.1754944e-38, %v5673
  %v5675 = vsel %vm5672, %v5674, %v5670
  %v5676 = vmul.f32 %v5623, %v5675
  %v5677 = vrcp.pop %v5643
  %v5678 = vmul.f32 %v5643, %v5677
  %v5679 = vsub.f32 1.0, %v5678
  %v5680 = vmul.f32 %v5677, %v5679
  %v5681 = vadd.f32 %v5677, %v5680
  %vm5682 = vweird.f32 %v5643
  %vm5683 = vweird.f32 %v5677
  %vm5684 = vmor %vm5682, %vm5683
  %v5685 = vsel %vm5684, %v5677, %v5681
  %v5686 = vand.u32 2147483647, %v5643
  %vm5687 = vcmp.eq.f32.partialorder %v5686, 8.507059e+37
  %v5688 = vand.u32 %v5643, 2147483648
  %v5689 = vor.u32 1.1754944e-38, %v5688
  %v5690 = vsel %vm5687, %v5689, %v5685
  %v5691 = vmul.f32 %v5625, %v5690
  %v5692 = vrcp.pop %v5646
  %v5693 = vmul.f32 %v5646, %v5692
  %v5694 = vsub.f32 1.0, %v5693
  %v5695 = vmul.f32 %v5692, %v5694
  %v5696 = vadd.f32 %v5692, %v5695
  %vm5697 = vweird.f32 %v5646
  %vm5698 = vweird.f32 %v5692
  %vm5699 = vmor %vm5697, %vm5698
  %v5700 = vsel %vm5699, %v5692, %v5696
  %v5701 = vand.u32 2147483647, %v5646
  %vm5702 = vcmp.eq.f32.partialorder %v5701, 8.507059e+37
  %v5703 = vand.u32 %v5646, 2147483648
  %v5704 = vor.u32 1.1754944e-38, %v5703
  %v5705 = vsel %vm5702, %v5704, %v5700
  %v5706 = vmul.f32 %v5627, %v5705
  %v5707 = vrcp.pop %v5649
  %v5708 = vmul.f32 %v5649, %v5707
  %v5709 = vsub.f32 1.0, %v5708
  %v5710 = vmul.f32 %v5707, %v5709
  %v5711 = vadd.f32 %v5707, %v5710
  %vm5712 = vweird.f32 %v5649
  %vm5713 = vweird.f32 %v5707
  %vm5714 = vmor %vm5712, %vm5713
  %v5715 = vsel %vm5714, %v5707, %v5711
  %v5716 = vand.u32 2147483647, %v5649
  %vm5717 = vcmp.eq.f32.partialorder %v5716, 8.507059e+37
  %v5718 = vand.u32 %v5649, 2147483648
  %v5719 = vor.u32 1.1754944e-38, %v5718
  %v5720 = vsel %vm5717, %v5719, %v5715
  %v5721 = vmul.f32 %v5629, %v5720
  %v5722 = vrcp.pop %v5652
  %v5723 = vmul.f32 %v5652, %v5722
  %v5724 = vsub.f32 1.0, %v5723
  %v5725 = vmul.f32 %v5722, %v5724
  %v5726 = vadd.f32 %v5722, %v5725
  %vm5727 = vweird.f32 %v5652
  %vm5728 = vweird.f32 %v5722
  %vm5729 = vmor %vm5727, %vm5728
  %v5730 = vsel %vm5729, %v5722, %v5726
  %v5731 = vand.u32 2147483647, %v5652
  %vm5732 = vcmp.eq.f32.partialorder %v5731, 8.507059e+37
  %v5733 = vand.u32 %v5652, 2147483648
  %v5734 = vor.u32 1.1754944e-38, %v5733
  %v5735 = vsel %vm5732, %v5734, %v5730
  %v5736 = vmul.f32 %v5631, %v5735
  %v5737 = vrcp.pop %v5655
  %v5738 = vmul.f32 %v5655, %v5737
  %v5739 = vsub.f32 1.0, %v5738
  %v5740 = vmul.f32 %v5737, %v5739
  %v5741 = vadd.f32 %v5737, %v5740
  %vm5742 = vweird.f32 %v5655
  %vm5743 = vweird.f32 %v5737
  %vm5744 = vmor %vm5742, %vm5743
  %v5745 = vsel %vm5744, %v5737, %v5741
  %v5746 = vand.u32 2147483647, %v5655
  %vm5747 = vcmp.eq.f32.partialorder %v5746, 8.507059e+37
  %v5748 = vand.u32 %v5655, 2147483648
  %v5749 = vor.u32 1.1754944e-38, %v5748
  %v5750 = vsel %vm5747, %v5749, %v5745
  %v5751 = vmul.f32 %v5633, %v5750
  %v5752 = vrcp.pop %v5658
  %v5753 = vmul.f32 %v5658, %v5752
  %v5754 = vsub.f32 1.0, %v5753
  %v5755 = vmul.f32 %v5752, %v5754
  %v5756 = vadd.f32 %v5752, %v5755
  %vm5757 = vweird.f32 %v5658
  %vm5758 = vweird.f32 %v5752
  %vm5759 = vmor %vm5757, %vm5758
  %v5760 = vsel %vm5759, %v5752, %v5756
  %v5761 = vand.u32 2147483647, %v5658
  %vm5762 = vcmp.eq.f32.partialorder %v5761, 8.507059e+37
  %v5763 = vand.u32 %v5658, 2147483648
  %v5764 = vor.u32 1.1754944e-38, %v5763
  %v5765 = vsel %vm5762, %v5764, %v5760
  %v5766 = vmul.f32 %v5635, %v5765
  %v5767 = vrcp.pop %v5661
  %v5768 = vmul.f32 %v5661, %v5767
  %v5769 = vsub.f32 1.0, %v5768
  %v5770 = vmul.f32 %v5767, %v5769
  %v5771 = vadd.f32 %v5767, %v5770
  %vm5772 = vweird.f32 %v5661
  %vm5773 = vweird.f32 %v5767
  %vm5774 = vmor %vm5772, %vm5773
  %v5775 = vsel %vm5774, %v5767, %v5771
  %v5776 = vand.u32 2147483647, %v5661
  %vm5777 = vcmp.eq.f32.partialorder %v5776, 8.507059e+37
  %v5778 = vand.u32 %v5661, 2147483648
  %v5779 = vor.u32 1.1754944e-38, %v5778
  %v5780 = vsel %vm5777, %v5779, %v5775
  %v5781 = vmul.f32 %v5637, %v5780
  %v5782 = vld [vmem:[%s1] sm:$0xff]
  %v5783 = vld [vmem:[%s1 + $0x8] sm:$0xff]
  %v5784 = vld [vmem:[%s1 + $0x10] sm:$0xff]
  %v5785 = vld [vmem:[%s1 + $0x18] sm:$0xff]
  %v5786 = vld [vmem:[%s1 + $0x20] sm:$0xff]
  %v5787 = vld [vmem:[%s1 + $0x28] sm:$0xff]
  %v5788 = vld [vmem:[%s1 + $0x30] sm:$0xff]
  %v5789 = vld [vmem:[%s1 + $0x38] sm:$0xff]
  %v5791 = vsel %vm764, %v5676, 0
  %5793 = vmatpush.msra.mxu0 0.0
  %5794 = vmatpush.msra.mxu0 0.0
  %5795 = vmatpush.msra.mxu0 0.0
  %5796 = vmatpush.msra.mxu0 0.0
  %5797 = vmatpush.msra.mxu0 0.0
  %5798 = vmatpush.msra.mxu0 0.0
  %5799 = vmatpush.msra.mxu0 0.0
  %5800 = vmatpush.msra.mxu0 0.0
  %5801 = vmatpush.msra.mxu0 0.0
  %5802 = vmatpush.msra.mxu0 0.0
  %5803 = vmatpush.msra.mxu0 0.0
  %5804 = vmatpush.msra.mxu0 0.0
  %5805 = vmatpush.msra.mxu0 0.0
  %5806 = vmatpush.msra.mxu0 0.0
  %5807 = vmatpush.msra.mxu0 0.0
  %5808 = vmatpush.msra.mxu0 %v5782
  %5809 = vmatmul.f32.gmra.mxu0 %v5791
  %v5810 = vpop.f32.mrf.mxu0
  %v5811 = vadd.f32 0.0, %v5810
  %5812 = vdwg.mxu0
  %v5814 = vsel %vm764, %v5691, 0
  %5816 = vmatpush.msra.mxu0 0.0
  %5817 = vmatpush.msra.mxu0 0.0
  %5818 = vmatpush.msra.mxu0 0.0
  %5819 = vmatpush.msra.mxu0 0.0
  %5820 = vmatpush.msra.mxu0 0.0
  %5821 = vmatpush.msra.mxu0 0.0
  %5822 = vmatpush.msra.mxu0 0.0
  %5823 = vmatpush.msra.mxu0 0.0
  %5824 = vmatpush.msra.mxu0 0.0
  %5825 = vmatpush.msra.mxu0 0.0
  %5826 = vmatpush.msra.mxu0 0.0
  %5827 = vmatpush.msra.mxu0 0.0
  %5828 = vmatpush.msra.mxu0 0.0
  %5829 = vmatpush.msra.mxu0 0.0
  %5830 = vmatpush.msra.mxu0 0.0
  %5831 = vmatpush.msra.mxu0 %v5783
  %5832 = vmatmul.f32.gmra.mxu0 %v5814
  %v5833 = vpop.f32.mrf.mxu0
  %v5834 = vadd.f32 0.0, %v5833
  %5835 = vdwg.mxu0
  %v5837 = vsel %vm764, %v5706, 0
  %5839 = vmatpush.msra.mxu0 0.0
  %5840 = vmatpush.msra.mxu0 0.0
  %5841 = vmatpush.msra.mxu0 0.0
  %5842 = vmatpush.msra.mxu0 0.0
  %5843 = vmatpush.msra.mxu0 0.0
  %5844 = vmatpush.msra.mxu0 0.0
  %5845 = vmatpush.msra.mxu0 0.0
  %5846 = vmatpush.msra.mxu0 0.0
  %5847 = vmatpush.msra.mxu0 0.0
  %5848 = vmatpush.msra.mxu0 0.0
  %5849 = vmatpush.msra.mxu0 0.0
  %5850 = vmatpush.msra.mxu0 0.0
  %5851 = vmatpush.msra.mxu0 0.0
  %5852 = vmatpush.msra.mxu0 0.0
  %5853 = vmatpush.msra.mxu0 0.0
  %5854 = vmatpush.msra.mxu0 %v5784
  %5855 = vmatmul.f32.gmra.mxu0 %v5837
  %v5856 = vpop.f32.mrf.mxu0
  %v5857 = vadd.f32 0.0, %v5856
  %5858 = vdwg.mxu0
  %v5860 = vsel %vm764, %v5721, 0
  %5862 = vmatpush.msra.mxu0 0.0
  %5863 = vmatpush.msra.mxu0 0.0
  %5864 = vmatpush.msra.mxu0 0.0
  %5865 = vmatpush.msra.mxu0 0.0
  %5866 = vmatpush.msra.mxu0 0.0
  %5867 = vmatpush.msra.mxu0 0.0
  %5868 = vmatpush.msra.mxu0 0.0
  %5869 = vmatpush.msra.mxu0 0.0
  %5870 = vmatpush.msra.mxu0 0.0
  %5871 = vmatpush.msra.mxu0 0.0
  %5872 = vmatpush.msra.mxu0 0.0
  %5873 = vmatpush.msra.mxu0 0.0
  %5874 = vmatpush.msra.mxu0 0.0
  %5875 = vmatpush.msra.mxu0 0.0
  %5876 = vmatpush.msra.mxu0 0.0
  %5877 = vmatpush.msra.mxu0 %v5785
  %5878 = vmatmul.f32.gmra.mxu0 %v5860
  %v5879 = vpop.f32.mrf.mxu0
  %v5880 = vadd.f32 0.0, %v5879
  %5881 = vdwg.mxu0
  %v5883 = vsel %vm764, %v5736, 0
  %5885 = vmatpush.msra.mxu0 0.0
  %5886 = vmatpush.msra.mxu0 0.0
  %5887 = vmatpush.msra.mxu0 0.0
  %5888 = vmatpush.msra.mxu0 0.0
  %5889 = vmatpush.msra.mxu0 0.0
  %5890 = vmatpush.msra.mxu0 0.0
  %5891 = vmatpush.msra.mxu0 0.0
  %5892 = vmatpush.msra.mxu0 0.0
  %5893 = vmatpush.msra.mxu0 0.0
  %5894 = vmatpush.msra.mxu0 0.0
  %5895 = vmatpush.msra.mxu0 0.0
  %5896 = vmatpush.msra.mxu0 0.0
  %5897 = vmatpush.msra.mxu0 0.0
  %5898 = vmatpush.msra.mxu0 0.0
  %5899 = vmatpush.msra.mxu0 0.0
  %5900 = vmatpush.msra.mxu0 %v5786
  %5901 = vmatmul.f32.gmra.mxu0 %v5883
  %v5902 = vpop.f32.mrf.mxu0
  %v5903 = vadd.f32 0.0, %v5902
  %5904 = vdwg.mxu0
  %v5906 = vsel %vm764, %v5751, 0
  %5908 = vmatpush.msra.mxu0 0.0
  %5909 = vmatpush.msra.mxu0 0.0
  %5910 = vmatpush.msra.mxu0 0.0
  %5911 = vmatpush.msra.mxu0 0.0
  %5912 = vmatpush.msra.mxu0 0.0
  %5913 = vmatpush.msra.mxu0 0.0
  %5914 = vmatpush.msra.mxu0 0.0
  %5915 = vmatpush.msra.mxu0 0.0
  %5916 = vmatpush.msra.mxu0 0.0
  %5917 = vmatpush.msra.mxu0 0.0
  %5918 = vmatpush.msra.mxu0 0.0
  %5919 = vmatpush.msra.mxu0 0.0
  %5920 = vmatpush.msra.mxu0 0.0
  %5921 = vmatpush.msra.mxu0 0.0
  %5922 = vmatpush.msra.mxu0 0.0
  %5923 = vmatpush.msra.mxu0 %v5787
  %5924 = vmatmul.f32.gmra.mxu0 %v5906
  %v5925 = vpop.f32.mrf.mxu0
  %v5926 = vadd.f32 0.0, %v5925
  %5927 = vdwg.mxu0
  %v5929 = vsel %vm764, %v5766, 0
  %5931 = vmatpush.msra.mxu0 0.0
  %5932 = vmatpush.msra.mxu0 0.0
  %5933 = vmatpush.msra.mxu0 0.0
  %5934 = vmatpush.msra.mxu0 0.0
  %5935 = vmatpush.msra.mxu0 0.0
  %5936 = vmatpush.msra.mxu0 0.0
  %5937 = vmatpush.msra.mxu0 0.0
  %5938 = vmatpush.msra.mxu0 0.0
  %5939 = vmatpush.msra.mxu0 0.0
  %5940 = vmatpush.msra.mxu0 0.0
  %5941 = vmatpush.msra.mxu0 0.0
  %5942 = vmatpush.msra.mxu0 0.0
  %5943 = vmatpush.msra.mxu0 0.0
  %5944 = vmatpush.msra.mxu0 0.0
  %5945 = vmatpush.msra.mxu0 0.0
  %5946 = vmatpush.msra.mxu0 %v5788
  %5947 = vmatmul.f32.gmra.mxu0 %v5929
  %v5948 = vpop.f32.mrf.mxu0
  %v5949 = vadd.f32 0.0, %v5948
  %5950 = vdwg.mxu0
  %v5952 = vsel %vm764, %v5781, 0
  %5954 = vmatpush.msra.mxu0 0.0
  %5955 = vmatpush.msra.mxu0 0.0
  %5956 = vmatpush.msra.mxu0 0.0
  %5957 = vmatpush.msra.mxu0 0.0
  %5958 = vmatpush.msra.mxu0 0.0
  %5959 = vmatpush.msra.mxu0 0.0
  %5960 = vmatpush.msra.mxu0 0.0
  %5961 = vmatpush.msra.mxu0 0.0
  %5962 = vmatpush.msra.mxu0 0.0
  %5963 = vmatpush.msra.mxu0 0.0
  %5964 = vmatpush.msra.mxu0 0.0
  %5965 = vmatpush.msra.mxu0 0.0
  %5966 = vmatpush.msra.mxu0 0.0
  %5967 = vmatpush.msra.mxu0 0.0
  %5968 = vmatpush.msra.mxu0 0.0
  %5969 = vmatpush.msra.mxu0 %v5789
  %5970 = vmatmul.f32.gmra.mxu0 %v5952
  %v5971 = vpop.f32.mrf.mxu0
  %v5972 = vadd.f32 0.0, %v5971
  %5973 = vdwg.mxu0
  %s5974 = scalar_lea.vmem [#allocation2], 160
  %v5975 = vld [vmem:[%s5974] sm:$0xff]
  %v5976 = vld [vmem:[%s5974 + $0x8] sm:$0xff]
  %v5977 = vld [vmem:[%s5974 + $0x10] sm:$0xff]
  %v5978 = vld [vmem:[%s5974 + $0x18] sm:$0xff]
  %v5979 = vld [vmem:[%s7] sm:$0xff]
  %v5980 = vld [vmem:[%s7 + $0x8] sm:$0xff]
  %v5981 = vld [vmem:[%s7 + $0x10] sm:$0xff]
  %v5982 = vld [vmem:[%s7 + $0x18] sm:$0xff]
  %v5983 = vld [vmem:[%s7 + $0x20] sm:$0xff]
  %v5984 = vld [vmem:[%s7 + $0x28] sm:$0xff]
  %v5985 = vld [vmem:[%s7 + $0x30] sm:$0xff]
  %v5986 = vld [vmem:[%s7 + $0x38] sm:$0xff]
  %v5987 = vld [vmem:[%s7 + $0x40] sm:$0xff]
  %v5988 = vld [vmem:[%s7 + $0x48] sm:$0xff]
  %v5989 = vld [vmem:[%s7 + $0x50] sm:$0xff]
  %v5990 = vld [vmem:[%s7 + $0x58] sm:$0xff]
  %v5991 = vld [vmem:[%s7 + $0x60] sm:$0xff]
  %v5992 = vld [vmem:[%s7 + $0x68] sm:$0xff]
  %v5993 = vld [vmem:[%s7 + $0x70] sm:$0xff]
  %v5994 = vld [vmem:[%s7 + $0x78] sm:$0xff]
  %v5995 = vld [vmem:[%s7 + $0x80] sm:$0xff]
  %v5996 = vld [vmem:[%s7 + $0x88] sm:$0xff]
  %v5997 = vld [vmem:[%s7 + $0x90] sm:$0xff]
  %v5998 = vld [vmem:[%s7 + $0x98] sm:$0xff]
  %v5999 = vld [vmem:[%s7 + $0xa0] sm:$0xff]
  %v6000 = vld [vmem:[%s7 + $0xa8] sm:$0xff]
  %v6001 = vld [vmem:[%s7 + $0xb0] sm:$0xff]
  %v6002 = vld [vmem:[%s7 + $0xb8] sm:$0xff]
  %v6003 = vld [vmem:[%s7 + $0xc0] sm:$0xff]
  %v6004 = vld [vmem:[%s7 + $0xc8] sm:$0xff]
  %v6005 = vld [vmem:[%s7 + $0xd0] sm:$0xff]
  %v6006 = vld [vmem:[%s7 + $0xd8] sm:$0xff]
  %v6007 = vld [vmem:[%s7 + $0xe0] sm:$0xff]
  %v6008 = vld [vmem:[%s7 + $0xe8] sm:$0xff]
  %v6009 = vld [vmem:[%s7 + $0xf0] sm:$0xff]
  %v6010 = vld [vmem:[%s7 + $0xf8] sm:$0xff]
  %v6011 = vld [vmem:[%s7 + $0x100] sm:$0xff]
  %v6012 = vld [vmem:[%s7 + $0x108] sm:$0xff]
  %v6013 = vld [vmem:[%s7 + $0x110] sm:$0xff]
  %v6014 = vld [vmem:[%s7 + $0x118] sm:$0xff]
  %v6015 = vld [vmem:[%s7 + $0x120] sm:$0xff]
  %v6016 = vld [vmem:[%s7 + $0x128] sm:$0xff]
  %v6017 = vld [vmem:[%s7 + $0x130] sm:$0xff]
  %v6018 = vld [vmem:[%s7 + $0x138] sm:$0xff]
  %v6019 = vld [vmem:[%s7 + $0x140] sm:$0xff]
  %v6020 = vld [vmem:[%s7 + $0x148] sm:$0xff]
  %v6021 = vld [vmem:[%s7 + $0x150] sm:$0xff]
  %v6022 = vld [vmem:[%s7 + $0x158] sm:$0xff]
  %v6023 = vld [vmem:[%s7 + $0x160] sm:$0xff]
  %v6024 = vld [vmem:[%s7 + $0x168] sm:$0xff]
  %v6025 = vld [vmem:[%s7 + $0x170] sm:$0xff]
  %v6026 = vld [vmem:[%s7 + $0x178] sm:$0xff]
  %v6027 = vld [vmem:[%s7 + $0x180] sm:$0xff]
  %v6028 = vld [vmem:[%s7 + $0x188] sm:$0xff]
  %v6029 = vld [vmem:[%s7 + $0x190] sm:$0xff]
  %v6030 = vld [vmem:[%s7 + $0x198] sm:$0xff]
  %v6031 = vld [vmem:[%s7 + $0x1a0] sm:$0xff]
  %v6032 = vld [vmem:[%s7 + $0x1a8] sm:$0xff]
  %v6033 = vld [vmem:[%s7 + $0x1b0] sm:$0xff]
  %v6034 = vld [vmem:[%s7 + $0x1b8] sm:$0xff]
  %v6035 = vld [vmem:[%s7 + $0x1c0] sm:$0xff]
  %v6036 = vld [vmem:[%s7 + $0x1c8] sm:$0xff]
  %v6037 = vld [vmem:[%s7 + $0x1d0] sm:$0xff]
  %v6038 = vld [vmem:[%s7 + $0x1d8] sm:$0xff]
  %v6039 = vld [vmem:[%s7 + $0x1e0] sm:$0xff]
  %v6040 = vld [vmem:[%s7 + $0x1e8] sm:$0xff]
  %v6041 = vld [vmem:[%s7 + $0x1f0] sm:$0xff]
  %v6042 = vld [vmem:[%s7 + $0x1f8] sm:$0xff]
  %v6051 = vrot.slane %v5834, 7
  %v6052 = vsel %vm1026, %v6051, %v5811
  %v6053 = vrot.slane %v5857, 6
  %v6054 = vsel %vm1029, %v6053, %v6052
  %v6055 = vrot.slane %v5880, 5
  %v6056 = vsel %vm1032, %v6055, %v6054
  %v6057 = vrot.slane %v5903, 4
  %v6058 = vsel %vm1035, %v6057, %v6056
  %v6059 = vrot.slane %v5926, 3
  %v6060 = vsel %vm1038, %v6059, %v6058
  %v6061 = vrot.slane %v5949, 2
  %v6062 = vsel %vm1041, %v6061, %v6060
  %v6063 = vrot.slane %v5972, 1
  %v6064 = vsel %vm1044, %v6063, %v6062
  %6066 = vmatpush.msra.mxu0 %v6039
  %6067 = vmatpush.msra.mxu0 %v6035
  %6068 = vmatpush.msra.mxu0 %v6031
  %6069 = vmatpush.msra.mxu0 %v6027
  %6070 = vmatpush.msra.mxu0 %v6023
  %6071 = vmatpush.msra.mxu0 %v6019
  %6072 = vmatpush.msra.mxu0 %v6015
  %6073 = vmatpush.msra.mxu0 %v6011
  %6074 = vmatpush.msra.mxu0 %v6007
  %6075 = vmatpush.msra.mxu0 %v6003
  %6076 = vmatpush.msra.mxu0 %v5999
  %6077 = vmatpush.msra.mxu0 %v5995
  %6078 = vmatpush.msra.mxu0 %v5991
  %6079 = vmatpush.msra.mxu0 %v5987
  %6080 = vmatpush.msra.mxu0 %v5983
  %6081 = vmatpush.msra.mxu0 %v5979
  %6082 = vmatmul.f32.gmra.mxu0 %v6064
  %v6083 = vpop.f32.mrf.mxu0
  %v6084 = vadd.f32 0.0, %v6083
  %6085 = vdwg.mxu0
  %6086 = vmatpush.msra.mxu0 %v6040
  %6087 = vmatpush.msra.mxu0 %v6036
  %6088 = vmatpush.msra.mxu0 %v6032
  %6089 = vmatpush.msra.mxu0 %v6028
  %6090 = vmatpush.msra.mxu0 %v6024
  %6091 = vmatpush.msra.mxu0 %v6020
  %6092 = vmatpush.msra.mxu0 %v6016
  %6093 = vmatpush.msra.mxu0 %v6012
  %6094 = vmatpush.msra.mxu0 %v6008
  %6095 = vmatpush.msra.mxu0 %v6004
  %6096 = vmatpush.msra.mxu0 %v6000
  %6097 = vmatpush.msra.mxu0 %v5996
  %6098 = vmatpush.msra.mxu0 %v5992
  %6099 = vmatpush.msra.mxu0 %v5988
  %6100 = vmatpush.msra.mxu0 %v5984
  %6101 = vmatpush.msra.mxu0 %v5980
  %6102 = vmatmul.f32.gmra.mxu0 %v6064
  %v6103 = vpop.f32.mrf.mxu0
  %v6104 = vadd.f32 0.0, %v6103
  %6105 = vdwg.mxu0
  %6106 = vmatpush.msra.mxu0 %v6041
  %6107 = vmatpush.msra.mxu0 %v6037
  %6108 = vmatpush.msra.mxu0 %v6033
  %6109 = vmatpush.msra.mxu0 %v6029
  %6110 = vmatpush.msra.mxu0 %v6025
  %6111 = vmatpush.msra.mxu0 %v6021
  %6112 = vmatpush.msra.mxu0 %v6017
  %6113 = vmatpush.msra.mxu0 %v6013
  %6114 = vmatpush.msra.mxu0 %v6009
  %6115 = vmatpush.msra.mxu0 %v6005
  %6116 = vmatpush.msra.mxu0 %v6001
  %6117 = vmatpush.msra.mxu0 %v5997
  %6118 = vmatpush.msra.mxu0 %v5993
  %6119 = vmatpush.msra.mxu0 %v5989
  %6120 = vmatpush.msra.mxu0 %v5985
  %6121 = vmatpush.msra.mxu0 %v5981
  %6122 = vmatmul.f32.gmra.mxu0 %v6064
  %v6123 = vpop.f32.mrf.mxu0
  %v6124 = vadd.f32 0.0, %v6123
  %6125 = vdwg.mxu0
  %6126 = vmatpush.msra.mxu0 %v6042
  %6127 = vmatpush.msra.mxu0 %v6038
  %6128 = vmatpush.msra.mxu0 %v6034
  %6129 = vmatpush.msra.mxu0 %v6030
  %6130 = vmatpush.msra.mxu0 %v6026
  %6131 = vmatpush.msra.mxu0 %v6022
  %6132 = vmatpush.msra.mxu0 %v6018
  %6133 = vmatpush.msra.mxu0 %v6014
  %6134 = vmatpush.msra.mxu0 %v6010
  %6135 = vmatpush.msra.mxu0 %v6006
  %6136 = vmatpush.msra.mxu0 %v6002
  %6137 = vmatpush.msra.mxu0 %v5998
  %6138 = vmatpush.msra.mxu0 %v5994
  %6139 = vmatpush.msra.mxu0 %v5990
  %6140 = vmatpush.msra.mxu0 %v5986
  %6141 = vmatpush.msra.mxu0 %v5982
  %6142 = vmatmul.f32.gmra.mxu0 %v6064
  %v6143 = vpop.f32.mrf.mxu0
  %v6144 = vadd.f32 0.0, %v6143
  %6145 = vdwg.mxu0
  %v6146 = vadd.f32 %v5975, %v6084
  %v6147 = vadd.f32 %v5976, %v6104
  %v6148 = vadd.f32 %v5977, %v6124
  %v6149 = vadd.f32 %v5978, %v6144
  %v6150 = vld [vmem:[%s8] sm:$0xff]
  %v6151 = vld [vmem:[%s8 + $0x8] sm:$0xff]
  %v6152 = vld [vmem:[%s8 + $0x10] sm:$0xff]
  %v6153 = vld [vmem:[%s8 + $0x18] sm:$0xff]
  %v6154 = vld [vmem:[%s8 + $0x20] sm:$0xff]
  %v6155 = vld [vmem:[%s8 + $0x28] sm:$0xff]
  %v6156 = vld [vmem:[%s8 + $0x30] sm:$0xff]
  %v6157 = vld [vmem:[%s8 + $0x38] sm:$0xff]
  %v6158 = vld [vmem:[%s8 + $0x40] sm:$0xff]
  %v6159 = vld [vmem:[%s8 + $0x48] sm:$0xff]
  %v6160 = vld [vmem:[%s8 + $0x50] sm:$0xff]
  %v6161 = vld [vmem:[%s8 + $0x58] sm:$0xff]
  %v6162 = vld [vmem:[%s8 + $0x60] sm:$0xff]
  %v6163 = vld [vmem:[%s8 + $0x68] sm:$0xff]
  %v6164 = vld [vmem:[%s8 + $0x70] sm:$0xff]
  %v6165 = vld [vmem:[%s8 + $0x78] sm:$0xff]
  %v6166 = vld [vmem:[%s8 + $0x80] sm:$0xff]
  %v6167 = vld [vmem:[%s8 + $0x88] sm:$0xff]
  %v6168 = vld [vmem:[%s8 + $0x90] sm:$0xff]
  %v6169 = vld [vmem:[%s8 + $0x98] sm:$0xff]
  %v6170 = vld [vmem:[%s8 + $0xa0] sm:$0xff]
  %v6171 = vld [vmem:[%s8 + $0xa8] sm:$0xff]
  %v6172 = vld [vmem:[%s8 + $0xb0] sm:$0xff]
  %v6173 = vld [vmem:[%s8 + $0xb8] sm:$0xff]
  %v6174 = vld [vmem:[%s8 + $0xc0] sm:$0xff]
  %v6175 = vld [vmem:[%s8 + $0xc8] sm:$0xff]
  %v6176 = vld [vmem:[%s8 + $0xd0] sm:$0xff]
  %v6177 = vld [vmem:[%s8 + $0xd8] sm:$0xff]
  %v6178 = vld [vmem:[%s8 + $0xe0] sm:$0xff]
  %v6179 = vld [vmem:[%s8 + $0xe8] sm:$0xff]
  %v6180 = vld [vmem:[%s8 + $0xf0] sm:$0xff]
  %v6181 = vld [vmem:[%s8 + $0xf8] sm:$0xff]
  %v6182 = vld [vmem:[%s8 + $0x100] sm:$0xff]
  %v6183 = vld [vmem:[%s8 + $0x108] sm:$0xff]
  %v6184 = vld [vmem:[%s8 + $0x110] sm:$0xff]
  %v6185 = vld [vmem:[%s8 + $0x118] sm:$0xff]
  %v6186 = vld [vmem:[%s8 + $0x120] sm:$0xff]
  %v6187 = vld [vmem:[%s8 + $0x128] sm:$0xff]
  %v6188 = vld [vmem:[%s8 + $0x130] sm:$0xff]
  %v6189 = vld [vmem:[%s8 + $0x138] sm:$0xff]
  %v6190 = vld [vmem:[%s8 + $0x140] sm:$0xff]
  %v6191 = vld [vmem:[%s8 + $0x148] sm:$0xff]
  %v6192 = vld [vmem:[%s8 + $0x150] sm:$0xff]
  %v6193 = vld [vmem:[%s8 + $0x158] sm:$0xff]
  %v6194 = vld [vmem:[%s8 + $0x160] sm:$0xff]
  %v6195 = vld [vmem:[%s8 + $0x168] sm:$0xff]
  %v6196 = vld [vmem:[%s8 + $0x170] sm:$0xff]
  %v6197 = vld [vmem:[%s8 + $0x178] sm:$0xff]
  %v6198 = vld [vmem:[%s8 + $0x180] sm:$0xff]
  %v6199 = vld [vmem:[%s8 + $0x188] sm:$0xff]
  %v6200 = vld [vmem:[%s8 + $0x190] sm:$0xff]
  %v6201 = vld [vmem:[%s8 + $0x198] sm:$0xff]
  %v6202 = vld [vmem:[%s8 + $0x1a0] sm:$0xff]
  %v6203 = vld [vmem:[%s8 + $0x1a8] sm:$0xff]
  %v6204 = vld [vmem:[%s8 + $0x1b0] sm:$0xff]
  %v6205 = vld [vmem:[%s8 + $0x1b8] sm:$0xff]
  %v6206 = vld [vmem:[%s8 + $0x1c0] sm:$0xff]
  %v6207 = vld [vmem:[%s8 + $0x1c8] sm:$0xff]
  %v6208 = vld [vmem:[%s8 + $0x1d0] sm:$0xff]
  %v6209 = vld [vmem:[%s8 + $0x1d8] sm:$0xff]
  %v6210 = vld [vmem:[%s8 + $0x1e0] sm:$0xff]
  %v6211 = vld [vmem:[%s8 + $0x1e8] sm:$0xff]
  %v6212 = vld [vmem:[%s8 + $0x1f0] sm:$0xff]
  %v6213 = vld [vmem:[%s8 + $0x1f8] sm:$0xff]
  %6214 = vmatpush.msra.mxu0 %v6210
  %6215 = vmatpush.msra.mxu0 %v6206
  %6216 = vmatpush.msra.mxu0 %v6202
  %6217 = vmatpush.msra.mxu0 %v6198
  %6218 = vmatpush.msra.mxu0 %v6194
  %6219 = vmatpush.msra.mxu0 %v6190
  %6220 = vmatpush.msra.mxu0 %v6186
  %6221 = vmatpush.msra.mxu0 %v6182
  %6222 = vmatpush.msra.mxu0 %v6178
  %6223 = vmatpush.msra.mxu0 %v6174
  %6224 = vmatpush.msra.mxu0 %v6170
  %6225 = vmatpush.msra.mxu0 %v6166
  %6226 = vmatpush.msra.mxu0 %v6162
  %6227 = vmatpush.msra.mxu0 %v6158
  %6228 = vmatpush.msra.mxu0 %v6154
  %6229 = vmatpush.msra.mxu0 %v6150
  %6230 = vmatmul.f32.gmra.mxu0 %v5397
  %v6231 = vpop.f32.mrf.mxu0
  %v6232 = vadd.f32 0.0, %v6231
  %6233 = vdwg.mxu0
  %6234 = vmatpush.msra.mxu0 %v6211
  %6235 = vmatpush.msra.mxu0 %v6207
  %6236 = vmatpush.msra.mxu0 %v6203
  %6237 = vmatpush.msra.mxu0 %v6199
  %6238 = vmatpush.msra.mxu0 %v6195
  %6239 = vmatpush.msra.mxu0 %v6191
  %6240 = vmatpush.msra.mxu0 %v6187
  %6241 = vmatpush.msra.mxu0 %v6183
  %6242 = vmatpush.msra.mxu0 %v6179
  %6243 = vmatpush.msra.mxu0 %v6175
  %6244 = vmatpush.msra.mxu0 %v6171
  %6245 = vmatpush.msra.mxu0 %v6167
  %6246 = vmatpush.msra.mxu0 %v6163
  %6247 = vmatpush.msra.mxu0 %v6159
  %6248 = vmatpush.msra.mxu0 %v6155
  %6249 = vmatpush.msra.mxu0 %v6151
  %6250 = vmatmul.f32.gmra.mxu0 %v5397
  %v6251 = vpop.f32.mrf.mxu0
  %v6252 = vadd.f32 0.0, %v6251
  %6253 = vdwg.mxu0
  %6254 = vmatpush.msra.mxu0 %v6212
  %6255 = vmatpush.msra.mxu0 %v6208
  %6256 = vmatpush.msra.mxu0 %v6204
  %6257 = vmatpush.msra.mxu0 %v6200
  %6258 = vmatpush.msra.mxu0 %v6196
  %6259 = vmatpush.msra.mxu0 %v6192
  %6260 = vmatpush.msra.mxu0 %v6188
  %6261 = vmatpush.msra.mxu0 %v6184
  %6262 = vmatpush.msra.mxu0 %v6180
  %6263 = vmatpush.msra.mxu0 %v6176
  %6264 = vmatpush.msra.mxu0 %v6172
  %6265 = vmatpush.msra.mxu0 %v6168
  %6266 = vmatpush.msra.mxu0 %v6164
  %6267 = vmatpush.msra.mxu0 %v6160
  %6268 = vmatpush.msra.mxu0 %v6156
  %6269 = vmatpush.msra.mxu0 %v6152
  %6270 = vmatmul.f32.gmra.mxu0 %v5397
  %v6271 = vpop.f32.mrf.mxu0
  %v6272 = vadd.f32 0.0, %v6271
  %6273 = vdwg.mxu0
  %6274 = vmatpush.msra.mxu0 %v6213
  %6275 = vmatpush.msra.mxu0 %v6209
  %6276 = vmatpush.msra.mxu0 %v6205
  %6277 = vmatpush.msra.mxu0 %v6201
  %6278 = vmatpush.msra.mxu0 %v6197
  %6279 = vmatpush.msra.mxu0 %v6193
  %6280 = vmatpush.msra.mxu0 %v6189
  %6281 = vmatpush.msra.mxu0 %v6185
  %6282 = vmatpush.msra.mxu0 %v6181
  %6283 = vmatpush.msra.mxu0 %v6177
  %6284 = vmatpush.msra.mxu0 %v6173
  %6285 = vmatpush.msra.mxu0 %v6169
  %6286 = vmatpush.msra.mxu0 %v6165
  %6287 = vmatpush.msra.mxu0 %v6161
  %6288 = vmatpush.msra.mxu0 %v6157
  %6289 = vmatpush.msra.mxu0 %v6153
  %6290 = vmatmul.f32.gmra.mxu0 %v5397
  %v6291 = vpop.f32.mrf.mxu0
  %v6292 = vadd.f32 0.0, %v6291
  %6293 = vdwg.mxu0
  %v6294 = vadd.f32 %v6146, %v6232
  %v6295 = vadd.f32 %v6147, %v6252
  %v6296 = vadd.f32 %v6148, %v6272
  %v6297 = vadd.f32 %v6149, %v6292
  %v6298 = vxor.u32 %v6294, 2147483648
  %v6299 = vmul.f32 %v6298, 1.442695
  %v6300 = vpow.pop %v6299
  %v6301 = vadd.f32 %v6300, 1.0
  %v6302 = vrcp.pop %v6301
  %v6303 = vmul.f32 %v6301, %v6302
  %v6304 = vsub.f32 1.0, %v6303
  %v6305 = vmul.f32 %v6302, %v6304
  %v6306 = vadd.f32 %v6302, %v6305
  %vm6307 = vweird.f32 %v6301
  %vm6308 = vweird.f32 %v6302
  %vm6309 = vmor %vm6307, %vm6308
  %v6310 = vsel %vm6309, %v6302, %v6306
  %v6311 = vand.u32 2147483647, %v6301
  %vm6312 = vcmp.eq.f32.partialorder %v6311, 8.507059e+37
  %v6313 = vand.u32 %v6301, 2147483648
  %v6314 = vor.u32 1.1754944e-38, %v6313
  %v6315 = vsel %vm6312, %v6314, %v6310
  %v6316 = vmul.f32 1.0, %v6315
  %v6317 = vxor.u32 %v6295, 2147483648
  %v6318 = vmul.f32 %v6317, 1.442695
  %v6319 = vpow.pop %v6318
  %v6320 = vadd.f32 %v6319, 1.0
  %v6321 = vrcp.pop %v6320
  %v6322 = vmul.f32 %v6320, %v6321
  %v6323 = vsub.f32 1.0, %v6322
  %v6324 = vmul.f32 %v6321, %v6323
  %v6325 = vadd.f32 %v6321, %v6324
  %vm6326 = vweird.f32 %v6320
  %vm6327 = vweird.f32 %v6321
  %vm6328 = vmor %vm6326, %vm6327
  %v6329 = vsel %vm6328, %v6321, %v6325
  %v6330 = vand.u32 2147483647, %v6320
  %vm6331 = vcmp.eq.f32.partialorder %v6330, 8.507059e+37
  %v6332 = vand.u32 %v6320, 2147483648
  %v6333 = vor.u32 1.1754944e-38, %v6332
  %v6334 = vsel %vm6331, %v6333, %v6329
  %v6335 = vmul.f32 1.0, %v6334
  %v6336 = vtanh.pop %v6296
  %v6337 = vxor.u32 %v6297, 2147483648
  %v6338 = vmul.f32 %v6337, 1.442695
  %v6339 = vpow.pop %v6338
  %v6340 = vadd.f32 %v6339, 1.0
  %v6341 = vrcp.pop %v6340
  %v6342 = vmul.f32 %v6340, %v6341
  %v6343 = vsub.f32 1.0, %v6342
  %v6344 = vmul.f32 %v6341, %v6343
  %v6345 = vadd.f32 %v6341, %v6344
  %vm6346 = vweird.f32 %v6340
  %vm6347 = vweird.f32 %v6341
  %vm6348 = vmor %vm6346, %vm6347
  %v6349 = vsel %vm6348, %v6341, %v6345
  %v6350 = vand.u32 2147483647, %v6340
  %vm6351 = vcmp.eq.f32.partialorder %v6350, 8.507059e+37
  %v6352 = vand.u32 %v6340, 2147483648
  %v6353 = vor.u32 1.1754944e-38, %v6352
  %v6354 = vsel %vm6351, %v6353, %v6349
  %v6355 = vmul.f32 1.0, %v6354
  %v6356 = vmul.f32 %v6335, %v5398
  %v6357 = vmul.f32 %v6316, %v6336
  %v6358 = vadd.f32 %v6356, %v6357
  %v6359 = vtanh.pop %v6358
  %v6360 = vmul.f32 %v6355, %v6359
  %6361 = vst [vmem:[#allocation4] sm:$0xff] %v6360
  %6362 = vst [vmem:[#allocation5] sm:$0xff] %v6358
  %v6363 = vld [vmem:[%s10] sm:$0xff]
  %v6364 = vld [vmem:[%s10 + $0x8] sm:$0xff]
  %v6365 = vld [vmem:[%s10 + $0x10] sm:$0xff]
  %v6366 = vld [vmem:[%s10 + $0x18] sm:$0xff]
  %v6367 = vld [vmem:[%s10 + $0x20] sm:$0xff]
  %v6368 = vld [vmem:[%s10 + $0x28] sm:$0xff]
  %v6369 = vld [vmem:[%s10 + $0x30] sm:$0xff]
  %v6370 = vld [vmem:[%s10 + $0x38] sm:$0xff]
  %v6371 = vld [vmem:[%s10 + $0x40] sm:$0xff]
  %v6372 = vld [vmem:[%s10 + $0x48] sm:$0xff]
  %v6373 = vld [vmem:[%s10 + $0x50] sm:$0xff]
  %v6374 = vld [vmem:[%s10 + $0x58] sm:$0xff]
  %v6375 = vld [vmem:[%s10 + $0x60] sm:$0xff]
  %v6376 = vld [vmem:[%s10 + $0x68] sm:$0xff]
  %v6377 = vld [vmem:[%s10 + $0x70] sm:$0xff]
  %v6378 = vld [vmem:[%s10 + $0x78] sm:$0xff]
  %6379 = vmatpush.msra.mxu0 %v6378
  %6380 = vmatpush.msra.mxu0 %v6377
  %6381 = vmatpush.msra.mxu0 %v6376
  %6382 = vmatpush.msra.mxu0 %v6375
  %6383 = vmatpush.msra.mxu0 %v6374
  %6384 = vmatpush.msra.mxu0 %v6373
  %6385 = vmatpush.msra.mxu0 %v6372
  %6386 = vmatpush.msra.mxu0 %v6371
  %6387 = vmatpush.msra.mxu0 %v6370
  %6388 = vmatpush.msra.mxu0 %v6369
  %6389 = vmatpush.msra.mxu0 %v6368
  %6390 = vmatpush.msra.mxu0 %v6367
  %6391 = vmatpush.msra.mxu0 %v6366
  %6392 = vmatpush.msra.mxu0 %v6365
  %6393 = vmatpush.msra.mxu0 %v6364
  %6394 = vmatpush.msra.mxu0 %v6363
  %6395 = vmatmul.f32.gmra.mxu0 %v6360
  %v6396 = vpop.f32.mrf.mxu0
  %v6397 = vadd.f32 %v368, %v6396
  %6398 = vdwg.mxu0
  %s6399 = scalar_lea.vmem %s12, 40
  %6400 = vst [vmem:[%s6399] sm:$0xff] %v6397
  // Predicated region
  $region50: #{encoder_decoder_lstm_ma.3} parent=0 // pred_check
    _
  $region51: #{encoder_decoder_lstm_ma.3} parent=0 // pred_check_branch
    %6402 = sbr.rel (0) target = $region53
  $region52: #{encoder_decoder_lstm_ma.3} parent=0 // pred_region
    _
  $region53: #{encoder_decoder_lstm_ma.3} parent=0 // pred_fallthru
    _
  // Predicated region
  $region54: #{encoder_decoder_lstm_ma.3} parent=0 // pred_check
    _
  $region55: #{encoder_decoder_lstm_ma.3} parent=0 // pred_check_branch
    %6404 = sbr.rel (0) target = $region57
  $region56: #{encoder_decoder_lstm_ma.3} parent=0 // pred_region
    _
  $region57: #{encoder_decoder_lstm_ma.3} parent=0 // pred_fallthru
    _

</llo_original>
